<compile_context>
chip_gen: v6e
topology: v6e:2x2x1
jax: 0.10.0
libtpu: 0.0.40
codegen_flags: <defaults>
</compile_context>

<pallas_src>
import math
from functools import partial

import jax
import jax.numpy as jnp
from jax.experimental import pallas as pl
from jax.experimental.pallas import tpu as pltpu

# ----------------------------- config (small test shapes) -----------------------------
VOCAB_SIZE = 128
NUM_LAYERS = 12          # forward hard-codes 12 block masks and layer-7-has-no-attn
NUM_HEADS = 1
HEAD_DIM = 128           # hard-coded in CausalSelfAttention
MODEL_DIM = NUM_HEADS * HEAD_DIM
MLP_DIM = 4 * MODEL_DIM
MAX_SEQ_LEN = 256
SEQ_LEN = 256            # must be a multiple of 128 (BLOCK_SIZE)
BLOCK_SIZE = 128
RMS_EPS = 1.1920929e-07  # torch.finfo(float32).eps (F.rms_norm default)
ATTN_SCALE = 0.12
NEG_INF = -1e30
N_SKIP = NUM_LAYERS // 2


def next_multiple_of_n(v, *, n):
    return next(x for x in range(n, int(v) + 1 + n, n) if x >= v)


VOCAB_PAD = next_multiple_of_n(VOCAB_SIZE, n=128)


# ----------------------------- fused trunk + loss kernel -----------------------------
def _rms(x, eps):
    return x * jax.lax.rsqrt(jnp.mean(x * x, axis=-1, keepdims=True) + eps)


def _trunk_kernel(ve_sel_ref, bias_sel_ref,                     # scalar-prefetch (SMEM)
                  emb_ref, ve_ref, bias_ref,                    # activations / mask
                  qkvw_ref, aprojw_ref, cfcw_ref, mprojw_ref,   # per-layer weights (bf16)
                  cos_ref, sin_ref, lmw_ref, tgt_ref,           # rotary, lm head, targets
                  mixc_ref, alam_ref,                           # per-layer scalars (SMEM)
                  loss_ref,                                     # output: per-row loss (T,1)
                  x_scr, x0_scr, skips_scr,                     # VMEM scratch
                  *, eps, scale, dh, half, inv_temp, cap, n_layers, n_skip):
    i = pl.program_id(0)

    # ---- one-time init: x = x0 = rmsnorm(embed), zero the skip slabs ----
    @pl.when(i == 0)
    def _init():
        x0 = _rms(emb_ref[...], eps)
        x0_scr[...] = x0
        x_scr[...] = x0
        skips_scr[...] = jnp.zeros(skips_scr.shape, skips_scr.dtype)

    # ---- residual mix: x = lam0*x + lam0*skip_w*skip + lam1*x0 (skip coef 0 for i<6) ----
    c_x = mixc_ref[i, 0]
    c_skip = mixc_ref[i, 1]
    c_x0 = mixc_ref[i, 2]
    skip_idx = jnp.clip(n_layers - 1 - i, 0, n_skip - 1)
    xm = c_x * x_scr[...] + c_skip * skips_scr[skip_idx] + c_x0 * x0_scr[...]
    xn = _rms(xm, eps).astype(jnp.bfloat16)

    x_scr[...] = xm                                   # provisional (layer 7 has no attention)

    # ---- attention (all layers except layer 7) ----
    @pl.when(i != 7)
    def _attn():
        qkv = jnp.dot(xn, qkvw_ref[...], preferred_element_type=jnp.float32)   # (T, 3*Dh)
        q = qkv[:, 0:dh]
        k = qkv[:, dh:2 * dh]
        v = qkv[:, 2 * dh:3 * dh]
        cos = cos_ref[...]
        sin = sin_ref[...]
        qn = _rms(q, eps)
        kn = _rms(k, eps)
        # rotary: y = x*[cos,cos] + roll(x, Dh/2)*[sin,-sin]   (axis=1: last dim of 2D value)
        qr = qn * cos + pltpu.roll(qn, shift=half, axis=1) * sin
        kr = kn * cos + pltpu.roll(kn, shift=half, axis=1) * sin
        al0 = alam_ref[i, 0]
        al1 = alam_ref[i, 1]                          # pre-multiplied by has_ve in the wrapper
        vm = al0 * v + al1 * ve_ref[...]
        s = jax.lax.dot_general(qr.astype(jnp.bfloat16), kr.astype(jnp.bfloat16),
                                (((1,), (1,)), ((), ())),
                                preferred_element_type=jnp.float32) * scale
        s = s + bias_ref[...]                         # 0 (allowed) / -1e30 (masked)
        m = jnp.max(s, axis=-1, keepdims=True)
        p = jnp.exp(s - m)
        denom = jnp.sum(p, axis=-1, keepdims=True)
        y = jnp.dot(p.astype(jnp.bfloat16), vm.astype(jnp.bfloat16),
                    preferred_element_type=jnp.float32)
        y = y * pl.reciprocal(denom, approx=True)
        x_scr[...] = xm + jnp.dot(y.astype(jnp.bfloat16), aprojw_ref[...],
                                  preferred_element_type=jnp.float32)

    # ---- MLP: x = x + c_proj(relu(c_fc(rmsnorm(x)))^2) ----
    xa = x_scr[...]
    h = jnp.dot(_rms(xa, eps).astype(jnp.bfloat16), cfcw_ref[...],
                preferred_element_type=jnp.float32)
    r = jnp.maximum(h, 0.0)
    h2 = (r * r).astype(jnp.bfloat16)
    x_new = xa + jnp.dot(h2, mprojw_ref[...], preferred_element_type=jnp.float32)
    x_scr[...] = x_new

    # ---- push U-net skip for the first half of the network ----
    @pl.when(i < n_skip)
    def _push_skip():
        skips_scr[i] = x_new

    # ---- fused final rms-norm + lm-head + soft-cap + per-row cross-entropy (last layer) ----
    @pl.when(i == n_layers - 1)
    def _loss():
        xf = _rms(x_new, eps)
        z = jnp.dot(xf.astype(jnp.bfloat16), lmw_ref[...],
                    preferred_element_type=jnp.float32)
        logits = cap * jax.nn.sigmoid(z * inv_temp)    # 30*sigmoid(z/(7.5*sqrt(D)))
        mx = jnp.max(logits, axis=-1, keepdims=True)
        lse = mx + jnp.log(jnp.sum(jnp.exp(logits - mx), axis=-1, keepdims=True))
        col = jax.lax.broadcasted_iota(jnp.int32, logits.shape, 1)
        tgt_logit = jnp.sum(jnp.where(col == tgt_ref[...], logits, 0.0),
                            axis=-1, keepdims=True)
        loss_ref[...] = lse - tgt_logit


def gpt_trunk_and_loss(params, emb, ve_stack, bias_stack, cos_f, sin_s, tgt2d,
                       mix_coefs, attn_lam, ve_sel, bias_sel):
    T = emb.shape[0]
    grid_spec = pltpu.PrefetchScalarGridSpec(
        num_scalar_prefetch=2,
        grid=(NUM_LAYERS,),
        in_specs=[
            pl.BlockSpec((T, MODEL_DIM), lambda i, vs, bs: (0, 0)),                    # emb
            pl.BlockSpec((None, T, MODEL_DIM), lambda i, vs, bs: (vs[i], 0, 0)),       # ve
            pl.BlockSpec((None, T, T), lambda i, vs, bs: (bs[i], 0, 0)),               # bias
            pl.BlockSpec((None, MODEL_DIM, 3 * HEAD_DIM), lambda i, vs, bs: (i, 0, 0)),  # qkv
            pl.BlockSpec((None, HEAD_DIM, MODEL_DIM), lambda i, vs, bs: (i, 0, 0)),    # attn proj
            pl.BlockSpec((None, MODEL_DIM, MLP_DIM), lambda i, vs, bs: (i, 0, 0)),     # c_fc
            pl.BlockSpec((None, MLP_DIM, MODEL_DIM), lambda i, vs, bs: (i, 0, 0)),     # mlp proj
            pl.BlockSpec((T, HEAD_DIM), lambda i, vs, bs: (0, 0)),                     # cos
            pl.BlockSpec((T, HEAD_DIM), lambda i, vs, bs: (0, 0)),                     # sin(+/-)
            pl.BlockSpec((MODEL_DIM, VOCAB_PAD), lambda i, vs, bs: (0, 0)),            # lm head
            pl.BlockSpec((T, 1), lambda i, vs, bs: (0, 0)),                            # targets
            pl.BlockSpec(memory_space=pltpu.MemorySpace.SMEM),                         # mix coefs
            pl.BlockSpec(memory_space=pltpu.MemorySpace.SMEM),                         # attn lambdas
        ],
        out_specs=pl.BlockSpec((T, 1), lambda i, vs, bs: (0, 0)),
        scratch_shapes=[
            pltpu.VMEM((T, MODEL_DIM), jnp.float32),                # x (residual stream)
            pltpu.VMEM((T, MODEL_DIM), jnp.float32),                # x0
            pltpu.VMEM((N_SKIP, T, MODEL_DIM), jnp.float32),        # U-net skips
        ],
    )
    row_loss = pl.pallas_call(
        partial(_trunk_kernel, eps=RMS_EPS, scale=ATTN_SCALE, dh=HEAD_DIM,
                half=HEAD_DIM // 2, inv_temp=1.0 / (7.5 * math.sqrt(MODEL_DIM)),
                cap=30.0, n_layers=NUM_LAYERS, n_skip=N_SKIP),
        grid_spec=grid_spec,
        out_shape=jax.ShapeDtypeStruct((T, 1), jnp.float32),
        compiler_params=pltpu.CompilerParams(
            dimension_semantics=("arbitrary",),           # layers are sequential
            vmem_limit_bytes=32 * 1024 * 1024),           # explicit; safe on v5e/v6e/v7x
    )(ve_sel, bias_sel, emb, ve_stack, bias_stack,
      params["qkv_w_t"], params["attn_proj_t"], params["c_fc_t"], params["mlp_proj_t"],
      cos_f, sin_s, params["lm_head_t"], tgt2d, mix_coefs, attn_lam)
    return jnp.sum(row_loss)   # training=True -> reduction='sum'


# ----------------------------- block-mask (FlexAttention) glue -----------------------------
def build_attention_bias(input_seq, window_blocks):
    """Dense (T, T) additive bias reproducing BlockMask.from_kv_blocks semantics
    used in GPT.create_blockmasks (document-causal + block-level sliding window)."""
    T = input_seq.shape[0]
    assert T % BLOCK_SIZE == 0
    nb = T // BLOCK_SIZE
    docs = jnp.cumsum((input_seq == 50256).astype(jnp.int32))

    bi = jnp.arange(nb, dtype=jnp.int32)
    causal_any = bi[:, None] >= bi[None, :]
    causal_all = bi[:, None] > bi[None, :]
    docs_blk = docs.reshape(nb, BLOCK_SIZE)
    dl, dh = docs_blk[:, 0], docs_blk[:, -1]
    doc_any = (dl[:, None] <= dh[None, :]) & (dh[:, None] >= dl[None, :])
    doc_all = (dl[:, None] == dh[None, :]) & (dh[:, None] == dl[None, :])

    bm_any = causal_any & doc_any
    bm_all = causal_all & doc_all
    part_blocks = bm_any & (~bm_all)     # partial blocks (mask_mod applied)
    full_blocks = bm_all                 # full blocks (no mask_mod)

    p_cnt = part_blocks.sum(-1).astype(jnp.int32)
    f_cnt = full_blocks.sum(-1).astype(jnp.int32)
    keep_p = jnp.minimum(p_cnt, jnp.maximum(window_blocks - f_cnt, 1))
    keep_f = jnp.minimum(f_cnt, window_blocks - 1)

    def kept(mask_bool, keep_count):
        m = mask_bool.astype(jnp.int32)
        suffix_incl = jnp.cumsum(m[:, ::-1], axis=-1)[:, ::-1]
        rank_desc = suffix_incl - m
        return mask_bool & (rank_desc < keep_count[:, None])

    p_kept = kept(part_blocks, keep_p)
    f_kept = kept(full_blocks, keep_f)

    q_idx = jnp.arange(T, dtype=jnp.int32)
    elem_causal = q_idx[:, None] >= q_idx[None, :]
    elem_doc = docs[:, None] == docs[None, :]
    qb = q_idx // BLOCK_SIZE
    full_e = f_kept[qb][:, qb]
    part_e = p_kept[qb][:, qb]
    allowed = full_e | (part_e & elem_causal & elem_doc)
    return jnp.where(allowed, 0.0, NEG_INF).astype(jnp.float32)


# ----------------------------- rotary tables (glue) -----------------------------
def make_rotary_tables(head_dim, max_seq_len):
    ang = (1.0 / 1024.0) ** jnp.linspace(0.0, 1.0, head_dim // 4, dtype=jnp.float32)
    ang = jnp.concatenate([ang, jnp.zeros(head_dim // 4, dtype=jnp.float32)])
    t = jnp.arange(max_seq_len, dtype=jnp.float32)
    theta = t[:, None] * ang[None, :]
    cos, sin = jnp.cos(theta), jnp.sin(theta)
    # packed for the fused in-kernel rotary: y = x*[cos,cos] + roll(x, Dh/2)*[sin,-sin]
    cos_full = jnp.concatenate([cos, cos], axis=-1)       # (S, Dh)
    sin_signed = jnp.concatenate([sin, -sin], axis=-1)    # (S, Dh)
    return cos_full, sin_signed


# ----------------------------- parameters -----------------------------
def init_params(key):
    ks = iter(jax.random.split(key, 64))
    nxt = lambda: next(ks)

    def casted_linear_t(in_f, out_f):
        # torch layout is (out_f, in_f); store pre-transposed (in_f, out_f) in bf16
        bound = math.sqrt(3.0) * 0.5 * in_f ** (-0.5)
        w = jax.random.uniform(nxt(), (out_f, in_f), jnp.float32, -bound, bound)
        return jnp.transpose(w).astype(jnp.bfloat16)

    qkv, aproj, cfc, mproj = [], [], [], []
    for i in range(NUM_LAYERS):
        if i != 7:
            qkv.append(casted_linear_t(MODEL_DIM, 3 * HEAD_DIM))
            aproj.append(casted_linear_t(HEAD_DIM, MODEL_DIM))
        else:   # layer 7 has no attention; zero placeholders (skipped by pl.when)
            qkv.append(jnp.zeros((MODEL_DIM, 3 * HEAD_DIM), jnp.bfloat16))
            aproj.append(jnp.zeros((HEAD_DIM, MODEL_DIM), jnp.bfloat16))
        cfc.append(casted_linear_t(MODEL_DIM, MLP_DIM))
        mproj.append(casted_linear_t(MLP_DIM, MODEL_DIM))

    # NOTE: original code zero-inits lm_head / c_proj weights; we use small random values
    # so the kernels compute something non-trivial (semantics otherwise unchanged).
    params = {
        "embed": jax.random.normal(nxt(), (VOCAB_SIZE, MODEL_DIM), jnp.float32),
        "value_embeds": jax.random.normal(nxt(), (3, VOCAB_SIZE, MODEL_DIM), jnp.float32),
        "lm_head_t": casted_linear_t(MODEL_DIM, VOCAB_PAD),
        "qkv_w_t": jnp.stack(qkv),          # (12, D, 3*Dh) bf16
        "attn_proj_t": jnp.stack(aproj),    # (12, Dh, D)   bf16
        "c_fc_t": jnp.stack(cfc),           # (12, D, 4D)   bf16
        "mlp_proj_t": jnp.stack(mproj),     # (12, 4D, D)   bf16
        "block_lambdas": jnp.tile(jnp.array([[1.0, 0.0]], jnp.float32), (NUM_LAYERS, 1)),
        "attn_lambdas": jnp.tile(jnp.array([[0.5, 0.5]], jnp.float32), (NUM_LAYERS, 1)),
        "skip_weights": jnp.ones((N_SKIP,), jnp.float32),
    }
    return params


# ----------------------------- forward pass -----------------------------
def gpt_forward(params, input_seq, target_seq, sliding_window_num_blocks):
    assert input_seq.ndim == 1
    T = input_seq.shape[0]

    # ---- plain-JAX glue: gathers, rotary tables, block-mask bias, per-layer scalars ----
    emb = jnp.take(params["embed"], input_seq, axis=0)                    # (T, D)
    ve_stack = jnp.take(params["value_embeds"], input_seq, axis=1)        # (3, T, D)

    long_bias = build_attention_bias(input_seq, sliding_window_num_blocks)
    short_bias = build_attention_bias(input_seq, sliding_window_num_blocks // 2)
    bias_stack = jnp.stack([long_bias, short_bias])                       # (2, T, T)

    cos_f, sin_s = make_rotary_tables(HEAD_DIM, MAX_SEQ_LEN)
    cos_f, sin_s = cos_f[:T], sin_s[:T]

    lam = params["block_lambdas"]                                         # (12, 2)
    skip_full = jnp.concatenate([jnp.zeros((N_SKIP,), jnp.float32), params["skip_weights"]])
    # x_mix = lam0*x + (lam0*skip_w)*skip + lam1*x0
    mix_coefs = jnp.stack([lam[:, 0], lam[:, 0] * skip_full, lam[:, 1]], axis=1)  # (12, 3)

    has_ve = jnp.array([1, 1, 1, 0, 0, 0, 0, 0, 0, 1, 1, 1], jnp.float32)
    alam = params["attn_lambdas"]
    attn_lam = jnp.stack([alam[:, 0], alam[:, 1] * has_ve], axis=1)       # (12, 2)

    ve_sel = jnp.array([0, 1, 2, 0, 0, 0, 0, 0, 0, 0, 1, 2], jnp.int32)   # layers 3..8 unused
    bias_sel = jnp.array([0, 1, 1, 1, 0, 1, 1, 0, 1, 1, 1, 0], jnp.int32)  # 0=long, 1=short

    tgt2d = target_seq.astype(jnp.int32).reshape(T, 1)

    # ---- whole trunk + loss in a single fused Pallas kernel ----
    return gpt_trunk_and_loss(params, emb, ve_stack, bias_stack, cos_f, sin_s, tgt2d,
                              mix_coefs, attn_lam, ve_sel, bias_sel)


# ----------------------------- main -----------------------------
if __name__ == "__main__":
    key = jax.random.PRNGKey(0)
    kp, ki, kt = jax.random.split(key, 3)
    params = init_params(kp)
    input_seq = jax.random.randint(ki, (SEQ_LEN,), 0, VOCAB_SIZE, dtype=jnp.int32)
    target_seq = jax.random.randint(kt, (SEQ_LEN,), 0, VOCAB_SIZE, dtype=jnp.int32)
    sliding_window_num_blocks = jnp.array(2, dtype=jnp.int32)

    fwd = jax.jit(gpt_forward)
    loss = fwd(params, input_seq, target_seq, sliding_window_num_blocks)
    jax.block_until_ready(loss)
    assert jnp.isfinite(loss)
    print("KERNEL_OK")
</pallas_src>

<mosaic_0001>
module attributes {stable_mosaic.version = 11 : i64} {
  func.func @_trunk_kernel(%arg0: i32, %arg1: memref<12xi32, #tpu.memory_space<smem>>, %arg2: memref<12xi32, #tpu.memory_space<smem>>, %arg3: memref<256x128xf32, #tpu.memory_space<vmem>>, %arg4: memref<1x256x128xf32, #tpu.memory_space<vmem>>, %arg5: memref<1x256x256xf32, #tpu.memory_space<vmem>>, %arg6: memref<1x128x384xbf16, #tpu.memory_space<vmem>>, %arg7: memref<1x128x128xbf16, #tpu.memory_space<vmem>>, %arg8: memref<1x128x512xbf16, #tpu.memory_space<vmem>>, %arg9: memref<1x512x128xbf16, #tpu.memory_space<vmem>>, %arg10: memref<256x128xf32, #tpu.memory_space<vmem>>, %arg11: memref<256x128xf32, #tpu.memory_space<vmem>>, %arg12: memref<128x128xbf16, #tpu.memory_space<vmem>>, %arg13: memref<256x1xi32, #tpu.memory_space<vmem>>, %arg14: memref<12x3xf32, #tpu.memory_space<smem>>, %arg15: memref<12x2xf32, #tpu.memory_space<smem>>, %arg16: memref<256x1xf32, #tpu.memory_space<vmem>>, %arg17: memref<256x128xf32, #tpu.memory_space<vmem>>, %arg18: memref<256x128xf32, #tpu.memory_space<vmem>>, %arg19: memref<6x256x128xf32, #tpu.memory_space<vmem>>) attributes {dimension_semantics = [#tpu.dimension_semantics<arbitrary>], iteration_bounds = array<i64: 12>, scalar_prefetch = 2 : i64, scratch_operands = 3 : i64, tpu.core_type = #tpu.core_type<tc>, window_params = [{pipeline_mode = #tpu.pipeline_mode<synchronous>, transform_indices = @transform_0, window_bounds = array<i64: 256, 128>}, {transform_indices = @transform_1, window_bounds = array<i64: 1, 256, 128>}, {transform_indices = @transform_2, window_bounds = array<i64: 1, 256, 256>}, {transform_indices = @transform_3, window_bounds = array<i64: 1, 128, 384>}, {transform_indices = @transform_4, window_bounds = array<i64: 1, 128, 128>}, {transform_indices = @transform_5, window_bounds = array<i64: 1, 128, 512>}, {transform_indices = @transform_6, window_bounds = array<i64: 1, 512, 128>}, {pipeline_mode = #tpu.pipeline_mode<synchronous>, transform_indices = @transform_7, window_bounds = array<i64: 256, 128>}, {pipeline_mode = #tpu.pipeline_mode<synchronous>, transform_indices = @transform_8, window_bounds = array<i64: 256, 128>}, {pipeline_mode = #tpu.pipeline_mode<synchronous>, transform_indices = @transform_9, window_bounds = array<i64: 128, 128>}, {pipeline_mode = #tpu.pipeline_mode<synchronous>, transform_indices = @transform_10, window_bounds = array<i64: 256, 1>}, {transform_indices = @transform_11, window_bounds = array<i64: 12, 3>}, {transform_indices = @transform_12, window_bounds = array<i64: 12, 2>}, {pipeline_mode = #tpu.pipeline_mode<synchronous>, transform_indices = @transform_13, window_bounds = array<i64: 256, 1>}]} {
    %c0_i32 = arith.constant 0 : i32
    %0 = arith.cmpi eq, %arg0, %c0_i32 : i32
    %1 = arith.extui %0 : i1 to i32
    %c0_i32_0 = arith.constant 0 : i32
    %2 = arith.cmpi ne, %1, %c0_i32_0 : i32
    scf.if %2 {
      %c0_32 = arith.constant 0 : index
      %c0_33 = arith.constant 0 : index
      %70 = vector.load %arg3[%c0_32, %c0_33] : memref<256x128xf32, #tpu.memory_space<vmem>>, vector<256x128xf32>
      %71 = arith.mulf %70, %70 : vector<256x128xf32>
      %cst_34 = arith.constant dense<0.000000e+00> : vector<256xf32>
      %72 = vector.multi_reduction <add>, %71, %cst_34 [1] : vector<256x128xf32> to vector<256xf32>
      %73 = vector.shape_cast %72 : vector<256xf32> to vector<256x1xf32>
      %cst_35 = arith.constant 1.280000e+02 : f32
      %74 = vector.broadcast %cst_35 : f32 to vector<256x1xf32>
      %75 = arith.divf %73, %74 : vector<256x1xf32>
      %cst_36 = arith.constant 1.1920929E-7 : f32
      %76 = vector.broadcast %cst_36 : f32 to vector<256x1xf32>
      %77 = arith.addf %75, %76 : vector<256x1xf32>
      %78 = math.rsqrt %77 : vector<256x1xf32>
      %79 = vector.broadcast %78 : vector<256x1xf32> to vector<256x128xf32>
      %80 = arith.mulf %70, %79 : vector<256x128xf32>
      %c0_37 = arith.constant 0 : index
      %c0_38 = arith.constant 0 : index
      %81 = vector.load %arg18[%c0_37, %c0_38] : memref<256x128xf32, #tpu.memory_space<vmem>>, vector<256x128xf32>
      tpu.vector_store %arg18[%c0_37, %c0_38], %80 {strides = array<i32>} : memref<256x128xf32, #tpu.memory_space<vmem>>, vector<256x128xf32>,
      %c0_39 = arith.constant 0 : index
      %c0_40 = arith.constant 0 : index
      %82 = vector.load %arg17[%c0_39, %c0_40] : memref<256x128xf32, #tpu.memory_space<vmem>>, vector<256x128xf32>
      tpu.vector_store %arg17[%c0_39, %c0_40], %80 {strides = array<i32>} : memref<256x128xf32, #tpu.memory_space<vmem>>, vector<256x128xf32>,
      %cst_41 = arith.constant 0.000000e+00 : f32
      %83 = vector.broadcast %cst_41 : f32 to vector<6x256x128xf32>
      %c0_42 = arith.constant 0 : index
      %c0_43 = arith.constant 0 : index
      %c0_44 = arith.constant 0 : index
      %84 = vector.load %arg19[%c0_42, %c0_43, %c0_44] : memref<6x256x128xf32, #tpu.memory_space<vmem>>, vector<6x256x128xf32>
      tpu.vector_store %arg19[%c0_42, %c0_43, %c0_44], %83 {strides = array<i32>} : memref<6x256x128xf32, #tpu.memory_space<vmem>>, vector<6x256x128xf32>,
    } else {
    }
    %3 = arith.index_cast %arg0 : i32 to index
    %c0 = arith.constant 0 : index
    %4 = memref.load %arg14[%3, %c0] : memref<12x3xf32, #tpu.memory_space<smem>>
    %5 = arith.index_cast %arg0 : i32 to index
    %c1 = arith.constant 1 : index
    %6 = memref.load %arg14[%5, %c1] : memref<12x3xf32, #tpu.memory_space<smem>>
    %7 = arith.index_cast %arg0 : i32 to index
    %c2 = arith.constant 2 : index
    %8 = memref.load %arg14[%7, %c2] : memref<12x3xf32, #tpu.memory_space<smem>>
    %c11_i32 = arith.constant 11 : i32
    %9 = arith.subi %c11_i32, %arg0 : i32
    %c0_i32_1 = arith.constant 0 : i32
    %c5_i32 = arith.constant 5 : i32
    %10 = arith.maxsi %c0_i32_1, %9 : i32
    %11 = arith.minsi %c5_i32, %10 : i32
    %c0_2 = arith.constant 0 : index
    %c0_3 = arith.constant 0 : index
    %12 = vector.load %arg17[%c0_2, %c0_3] : memref<256x128xf32, #tpu.memory_space<vmem>>, vector<256x128xf32>
    %13 = vector.broadcast %4 : f32 to vector<256x128xf32>
    %14 = arith.mulf %13, %12 : vector<256x128xf32>
    %15 = arith.index_cast %11 : i32 to index
    %c0_4 = arith.constant 0 : index
    %c0_5 = arith.constant 0 : index
    %16 = vector.load %arg19[%15, %c0_4, %c0_5] : memref<6x256x128xf32, #tpu.memory_space<vmem>>, vector<1x256x128xf32>
    %17 = vector.shape_cast %16 : vector<1x256x128xf32> to vector<256x128xf32>
    %18 = vector.broadcast %6 : f32 to vector<256x128xf32>
    %19 = arith.mulf %18, %17 : vector<256x128xf32>
    %20 = arith.addf %14, %19 : vector<256x128xf32>
    %c0_6 = arith.constant 0 : index
    %c0_7 = arith.constant 0 : index
    %21 = vector.load %arg18[%c0_6, %c0_7] : memref<256x128xf32, #tpu.memory_space<vmem>>, vector<256x128xf32>
    %22 = vector.broadcast %8 : f32 to vector<256x128xf32>
    %23 = arith.mulf %22, %21 : vector<256x128xf32>
    %24 = arith.addf %20, %23 : vector<256x128xf32>
    %25 = arith.mulf %24, %24 : vector<256x128xf32>
    %cst = arith.constant dense<0.000000e+00> : vector<256xf32>
    %26 = vector.multi_reduction <add>, %25, %cst [1] : vector<256x128xf32> to vector<256xf32>
    %27 = vector.shape_cast %26 : vector<256xf32> to vector<256x1xf32>
    %cst_8 = arith.constant 1.280000e+02 : f32
    %28 = vector.broadcast %cst_8 : f32 to vector<256x1xf32>
    %29 = arith.divf %27, %28 : vector<256x1xf32>
    %cst_9 = arith.constant 1.1920929E-7 : f32
    %30 = vector.broadcast %cst_9 : f32 to vector<256x1xf32>
    %31 = arith.addf %29, %30 : vector<256x1xf32>
    %32 = math.rsqrt %31 : vector<256x1xf32>
    %33 = vector.broadcast %32 : vector<256x1xf32> to vector<256x128xf32>
    %34 = arith.mulf %24, %33 : vector<256x128xf32>
    %35 = arith.truncf %34 : vector<256x128xf32> to vector<256x128xbf16>
    %c0_10 = arith.constant 0 : index
    %c0_11 = arith.constant 0 : index
    %36 = vector.load %arg17[%c0_10, %c0_11] : memref<256x128xf32, #tpu.memory_space<vmem>>, vector<256x128xf32>
    tpu.vector_store %arg17[%c0_10, %c0_11], %24 {strides = array<i32>} : memref<256x128xf32, #tpu.memory_space<vmem>>, vector<256x128xf32>,
    %c7_i32 = arith.constant 7 : i32
    %37 = arith.cmpi ne, %arg0, %c7_i32 : i32
    %38 = arith.extui %37 : i1 to i32
    %c0_i32_12 = arith.constant 0 : i32
    %39 = arith.cmpi ne, %38, %c0_i32_12 : i32
    scf.if %39 {
      %c0_32 = arith.constant 0 : index
      %c0_33 = arith.constant 0 : index
      %c0_34 = arith.constant 0 : index
      %70 = vector.load %arg6[%c0_32, %c0_33, %c0_34] : memref<1x128x384xbf16, #tpu.memory_space<vmem>>, vector<1x128x384xbf16>
      %71 = vector.shape_cast %70 : vector<1x128x384xbf16> to vector<128x384xbf16>
      %cst_35 = arith.constant dense<0.000000e+00> : vector<256x384xf32>
      %72 = tpu.matmul %35, %71, %cst_35 {dimension_numbers = #tpu.dot_dimension_numbers<[1], [0], [0], [1], [0, 0, 1, 1], [], []>} : vector<256x128xbf16>, vector<128x384xbf16>, vector<256x384xf32> -> vector<256x384xf32>
      %73 = vector.extract_strided_slice %72 {offsets = [0, 0], sizes = [256, 128], strides = [1, 1]} : vector<256x384xf32> to vector<256x128xf32>
      %74 = vector.extract_strided_slice %72 {offsets = [0, 128], sizes = [256, 128], strides = [1, 1]} : vector<256x384xf32> to vector<256x128xf32>
      %75 = vector.extract_strided_slice %72 {offsets = [0, 256], sizes = [256, 128], strides = [1, 1]} : vector<256x384xf32> to vector<256x128xf32>
      %c0_36 = arith.constant 0 : index
      %c0_37 = arith.constant 0 : index
      %76 = vector.load %arg10[%c0_36, %c0_37] : memref<256x128xf32, #tpu.memory_space<vmem>>, vector<256x128xf32>
      %c0_38 = arith.constant 0 : index
      %c0_39 = arith.constant 0 : index
      %77 = vector.load %arg11[%c0_38, %c0_39] : memref<256x128xf32, #tpu.memory_space<vmem>>, vector<256x128xf32>
      %78 = arith.mulf %73, %73 : vector<256x128xf32>
      %cst_40 = arith.constant dense<0.000000e+00> : vector<256xf32>
      %79 = vector.multi_reduction <add>, %78, %cst_40 [1] : vector<256x128xf32> to vector<256xf32>
      %80 = vector.shape_cast %79 : vector<256xf32> to vector<256x1xf32>
      %cst_41 = arith.constant 1.280000e+02 : f32
      %81 = vector.broadcast %cst_41 : f32 to vector<256x1xf32>
      %82 = arith.divf %80, %81 : vector<256x1xf32>
      %cst_42 = arith.constant 1.1920929E-7 : f32
      %83 = vector.broadcast %cst_42 : f32 to vector<256x1xf32>
      %84 = arith.addf %82, %83 : vector<256x1xf32>
      %85 = math.rsqrt %84 : vector<256x1xf32>
      %86 = vector.broadcast %85 : vector<256x1xf32> to vector<256x128xf32>
      %87 = arith.mulf %73, %86 : vector<256x128xf32>
      %88 = arith.mulf %74, %74 : vector<256x128xf32>
      %cst_43 = arith.constant dense<0.000000e+00> : vector<256xf32>
      %89 = vector.multi_reduction <add>, %88, %cst_43 [1] : vector<256x128xf32> to vector<256xf32>
      %90 = vector.shape_cast %89 : vector<256xf32> to vector<256x1xf32>
      %cst_44 = arith.constant 1.280000e+02 : f32
      %91 = vector.broadcast %cst_44 : f32 to vector<256x1xf32>
      %92 = arith.divf %90, %91 : vector<256x1xf32>
      %cst_45 = arith.constant 1.1920929E-7 : f32
      %93 = vector.broadcast %cst_45 : f32 to vector<256x1xf32>
      %94 = arith.addf %92, %93 : vector<256x1xf32>
      %95 = math.rsqrt %94 : vector<256x1xf32>
      %96 = vector.broadcast %95 : vector<256x1xf32> to vector<256x128xf32>
      %97 = arith.mulf %74, %96 : vector<256x128xf32>
      %98 = arith.mulf %87, %76 : vector<256x128xf32>
      %c64_i32 = arith.constant 64 : i32
      %99 = tpu.dynamic_rotate %87 by %c64_i32 dim 1 : vector<256x128xf32>, i32 -> vector<256x128xf32>
      %100 = arith.mulf %99, %77 : vector<256x128xf32>
      %101 = arith.addf %98, %100 : vector<256x128xf32>
      %102 = arith.mulf %97, %76 : vector<256x128xf32>
      %c64_i32_46 = arith.constant 64 : i32
      %103 = tpu.dynamic_rotate %97 by %c64_i32_46 dim 1 : vector<256x128xf32>, i32 -> vector<256x128xf32>
      %104 = arith.mulf %103, %77 : vector<256x128xf32>
      %105 = arith.addf %102, %104 : vector<256x128xf32>
      %106 = arith.index_cast %arg0 : i32 to index
      %c0_47 = arith.constant 0 : index
      %107 = memref.load %arg15[%106, %c0_47] : memref<12x2xf32, #tpu.memory_space<smem>>
      %108 = arith.index_cast %arg0 : i32 to index
      %c1_48 = arith.constant 1 : index
      %109 = memref.load %arg15[%108, %c1_48] : memref<12x2xf32, #tpu.memory_space<smem>>
      %110 = vector.broadcast %107 : f32 to vector<256x128xf32>
      %111 = arith.mulf %110, %75 : vector<256x128xf32>
      %c0_49 = arith.constant 0 : index
      %c0_50 = arith.constant 0 : index
      %c0_51 = arith.constant 0 : index
      %112 = vector.load %arg4[%c0_49, %c0_50, %c0_51] : memref<1x256x128xf32, #tpu.memory_space<vmem>>, vector<1x256x128xf32>
      %113 = vector.shape_cast %112 : vector<1x256x128xf32> to vector<256x128xf32>
      %114 = vector.broadcast %109 : f32 to vector<256x128xf32>
      %115 = arith.mulf %114, %113 : vector<256x128xf32>
      %116 = arith.addf %111, %115 : vector<256x128xf32>
      %117 = arith.truncf %101 : vector<256x128xf32> to vector<256x128xbf16>
      %118 = arith.truncf %105 : vector<256x128xf32> to vector<256x128xbf16>
      %cst_52 = arith.constant dense<0.000000e+00> : vector<256x256xf32>
      %119 = tpu.matmul %117, %118, %cst_52 {dimension_numbers = #tpu.dot_dimension_numbers<[1], [1], [0], [0], [0, 0, 1, 0], [], []>} : vector<256x128xbf16>, vector<256x128xbf16>, vector<256x256xf32> -> vector<256x256xf32>
      %cst_53 = arith.constant 1.200000e-01 : f32
      %120 = vector.broadcast %cst_53 : f32 to vector<256x256xf32>
      %121 = arith.mulf %119, %120 : vector<256x256xf32>
      %c0_54 = arith.constant 0 : index
      %c0_55 = arith.constant 0 : index
      %c0_56 = arith.constant 0 : index
      %122 = vector.load %arg5[%c0_54, %c0_55, %c0_56] : memref<1x256x256xf32, #tpu.memory_space<vmem>>, vector<1x256x256xf32>
      %123 = vector.shape_cast %122 : vector<1x256x256xf32> to vector<256x256xf32>
      %124 = arith.addf %121, %123 : vector<256x256xf32>
      %cst_57 = arith.constant dense<0xFF800000> : vector<256xf32>
      %125 = vector.multi_reduction <maximumf>, %124, %cst_57 [1] : vector<256x256xf32> to vector<256xf32>
      %126 = vector.shape_cast %125 : vector<256xf32> to vector<256x1xf32>
      %127 = vector.broadcast %126 : vector<256x1xf32> to vector<256x256xf32>
      %128 = arith.subf %124, %127 : vector<256x256xf32>
      %129 = math.exp %128 : vector<256x256xf32>
      %cst_58 = arith.constant dense<0.000000e+00> : vector<256xf32>
      %130 = vector.multi_reduction <add>, %129, %cst_58 [1] : vector<256x256xf32> to vector<256xf32>
      %131 = vector.shape_cast %130 : vector<256xf32> to vector<256x1xf32>
      %132 = arith.truncf %129 : vector<256x256xf32> to vector<256x256xbf16>
      %133 = arith.truncf %116 : vector<256x128xf32> to vector<256x128xbf16>
      %cst_59 = arith.constant dense<0.000000e+00> : vector<256x128xf32>
      %134 = tpu.matmul %132, %133, %cst_59 {dimension_numbers = #tpu.dot_dimension_numbers<[1], [0], [0], [1], [0, 0, 1, 1], [], []>} : vector<256x256xbf16>, vector<256x128xbf16>, vector<256x128xf32> -> vector<256x128xf32>
      %135 = tpu.reciprocal %131 {approx = true} : vector<256x1xf32> -> vector<256x1xf32>
      %136 = vector.broadcast %135 : vector<256x1xf32> to vector<256x128xf32>
      %137 = arith.mulf %134, %136 : vector<256x128xf32>
      %138 = arith.truncf %137 : vector<256x128xf32> to vector<256x128xbf16>
      %c0_60 = arith.constant 0 : index
      %c0_61 = arith.constant 0 : index
      %c0_62 = arith.constant 0 : index
      %139 = vector.load %arg7[%c0_60, %c0_61, %c0_62] : memref<1x128x128xbf16, #tpu.memory_space<vmem>>, vector<1x128x128xbf16>
      %140 = vector.shape_cast %139 : vector<1x128x128xbf16> to vector<128x128xbf16>
      %cst_63 = arith.constant dense<0.000000e+00> : vector<256x128xf32>
      %141 = tpu.matmul %138, %140, %cst_63 {dimension_numbers = #tpu.dot_dimension_numbers<[1], [0], [0], [1], [0, 0, 1, 1], [], []>} : vector<256x128xbf16>, vector<128x128xbf16>, vector<256x128xf32> -> vector<256x128xf32>
      %142 = arith.addf %24, %141 : vector<256x128xf32>
      %c0_64 = arith.constant 0 : index
      %c0_65 = arith.constant 0 : index
      %143 = vector.load %arg17[%c0_64, %c0_65] : memref<256x128xf32, #tpu.memory_space<vmem>>, vector<256x128xf32>
      tpu.vector_store %arg17[%c0_64, %c0_65], %142 {strides = array<i32>} : memref<256x128xf32, #tpu.memory_space<vmem>>, vector<256x128xf32>,
    } else {
    }
    %c0_13 = arith.constant 0 : index
    %c0_14 = arith.constant 0 : index
    %40 = vector.load %arg17[%c0_13, %c0_14] : memref<256x128xf32, #tpu.memory_space<vmem>>, vector<256x128xf32>
    %41 = arith.mulf %40, %40 : vector<256x128xf32>
    %cst_15 = arith.constant dense<0.000000e+00> : vector<256xf32>
    %42 = vector.multi_reduction <add>, %41, %cst_15 [1] : vector<256x128xf32> to vector<256xf32>
    %43 = vector.shape_cast %42 : vector<256xf32> to vector<256x1xf32>
    %cst_16 = arith.constant 1.280000e+02 : f32
    %44 = vector.broadcast %cst_16 : f32 to vector<256x1xf32>
    %45 = arith.divf %43, %44 : vector<256x1xf32>
    %cst_17 = arith.constant 1.1920929E-7 : f32
    %46 = vector.broadcast %cst_17 : f32 to vector<256x1xf32>
    %47 = arith.addf %45, %46 : vector<256x1xf32>
    %48 = math.rsqrt %47 : vector<256x1xf32>
    %49 = vector.broadcast %48 : vector<256x1xf32> to vector<256x128xf32>
    %50 = arith.mulf %40, %49 : vector<256x128xf32>
    %51 = arith.truncf %50 : vector<256x128xf32> to vector<256x128xbf16>
    %c0_18 = arith.constant 0 : index
    %c0_19 = arith.constant 0 : index
    %c0_20 = arith.constant 0 : index
    %52 = vector.load %arg8[%c0_18, %c0_19, %c0_20] : memref<1x128x512xbf16, #tpu.memory_space<vmem>>, vector<1x128x512xbf16>
    %53 = vector.shape_cast %52 : vector<1x128x512xbf16> to vector<128x512xbf16>
    %cst_21 = arith.constant dense<0.000000e+00> : vector<256x512xf32>
    %54 = tpu.matmul %51, %53, %cst_21 {dimension_numbers = #tpu.dot_dimension_numbers<[1], [0], [0], [1], [0, 0, 1, 1], [], []>} : vector<256x128xbf16>, vector<128x512xbf16>, vector<256x512xf32> -> vector<256x512xf32>
    %cst_22 = arith.constant 0.000000e+00 : f32
    %55 = vector.broadcast %cst_22 : f32 to vector<256x512xf32>
    %56 = arith.maximumf %54, %55 : vector<256x512xf32>
    %57 = arith.mulf %56, %56 : vector<256x512xf32>
    %58 = arith.truncf %57 : vector<256x512xf32> to vector<256x512xbf16>
    %c0_23 = arith.constant 0 : index
    %c0_24 = arith.constant 0 : index
    %c0_25 = arith.constant 0 : index
    %59 = vector.load %arg9[%c0_23, %c0_24, %c0_25] : memref<1x512x128xbf16, #tpu.memory_space<vmem>>, vector<1x512x128xbf16>
    %60 = vector.shape_cast %59 : vector<1x512x128xbf16> to vector<512x128xbf16>
    %cst_26 = arith.constant dense<0.000000e+00> : vector<256x128xf32>
    %61 = tpu.matmul %58, %60, %cst_26 {dimension_numbers = #tpu.dot_dimension_numbers<[1], [0], [0], [1], [0, 0, 1, 1], [], []>} : vector<256x512xbf16>, vector<512x128xbf16>, vector<256x128xf32> -> vector<256x128xf32>
    %62 = arith.addf %40, %61 : vector<256x128xf32>
    %c0_27 = arith.constant 0 : index
    %c0_28 = arith.constant 0 : index
    %63 = vector.load %arg17[%c0_27, %c0_28] : memref<256x128xf32, #tpu.memory_space<vmem>>, vector<256x128xf32>
    tpu.vector_store %arg17[%c0_27, %c0_28], %62 {strides = array<i32>} : memref<256x128xf32, #tpu.memory_space<vmem>>, vector<256x128xf32>,
    %c6_i32 = arith.constant 6 : i32
    %64 = arith.cmpi slt, %arg0, %c6_i32 : i32
    %65 = arith.extui %64 : i1 to i32
    %c0_i32_29 = arith.constant 0 : i32
    %66 = arith.cmpi ne, %65, %c0_i32_29 : i32
    scf.if %66 {
      %70 = arith.index_cast %arg0 : i32 to index
      %c0_32 = arith.constant 0 : index
      %c0_33 = arith.constant 0 : index
      %71 = vector.load %arg19[%70, %c0_32, %c0_33] : memref<6x256x128xf32, #tpu.memory_space<vmem>>, vector<1x256x128xf32>
      %72 = vector.shape_cast %71 : vector<1x256x128xf32> to vector<256x128xf32>
      %73 = vector.shape_cast %62 : vector<256x128xf32> to vector<1x256x128xf32>
      tpu.vector_store %arg19[%70, %c0_32, %c0_33], %73 {strides = array<i32>} : memref<6x256x128xf32, #tpu.memory_space<vmem>>, vector<1x256x128xf32>,
    } else {
    }
    %c11_i32_30 = arith.constant 11 : i32
    %67 = arith.cmpi eq, %arg0, %c11_i32_30 : i32
    %68 = arith.extui %67 : i1 to i32
    %c0_i32_31 = arith.constant 0 : i32
    %69 = arith.cmpi ne, %68, %c0_i32_31 : i32
    scf.if %69 {
      %70 = arith.mulf %62, %62 : vector<256x128xf32>
      %cst_32 = arith.constant dense<0.000000e+00> : vector<256xf32>
      %71 = vector.multi_reduction <add>, %70, %cst_32 [1] : vector<256x128xf32> to vector<256xf32>
      %72 = vector.shape_cast %71 : vector<256xf32> to vector<256x1xf32>
      %cst_33 = arith.constant 1.280000e+02 : f32
      %73 = vector.broadcast %cst_33 : f32 to vector<256x1xf32>
      %74 = arith.divf %72, %73 : vector<256x1xf32>
      %cst_34 = arith.constant 1.1920929E-7 : f32
      %75 = vector.broadcast %cst_34 : f32 to vector<256x1xf32>
      %76 = arith.addf %74, %75 : vector<256x1xf32>
      %77 = math.rsqrt %76 : vector<256x1xf32>
      %78 = vector.broadcast %77 : vector<256x1xf32> to vector<256x128xf32>
      %79 = arith.mulf %62, %78 : vector<256x128xf32>
      %80 = arith.truncf %79 : vector<256x128xf32> to vector<256x128xbf16>
      %c0_35 = arith.constant 0 : index
      %c0_36 = arith.constant 0 : index
      %81 = vector.load %arg12[%c0_35, %c0_36] : memref<128x128xbf16, #tpu.memory_space<vmem>>, vector<128x128xbf16>
      %cst_37 = arith.constant dense<0.000000e+00> : vector<256x128xf32>
      %82 = tpu.matmul %80, %81, %cst_37 {dimension_numbers = #tpu.dot_dimension_numbers<[1], [0], [0], [1], [0, 0, 1, 1], [], []>} : vector<256x128xbf16>, vector<128x128xbf16>, vector<256x128xf32> -> vector<256x128xf32>
      %cst_38 = arith.constant 0.0117851133 : f32
      %83 = vector.broadcast %cst_38 : f32 to vector<256x128xf32>
      %84 = arith.mulf %82, %83 : vector<256x128xf32>
      %85 = arith.negf %84 : vector<256x128xf32>
      %86 = math.exp %85 : vector<256x128xf32>
      %cst_39 = arith.constant 1.000000e+00 : f32
      %87 = vector.broadcast %cst_39 : f32 to vector<256x128xf32>
      %88 = arith.addf %87, %86 : vector<256x128xf32>
      %89 = arith.divf %87, %88 : vector<256x128xf32>
      %cst_40 = arith.constant 3.000000e+01 : f32
      %90 = vector.broadcast %cst_40 : f32 to vector<256x128xf32>
      %91 = arith.mulf %90, %89 : vector<256x128xf32>
      %cst_41 = arith.constant dense<0xFF800000> : vector<256xf32>
      %92 = vector.multi_reduction <maximumf>, %91, %cst_41 [1] : vector<256x128xf32> to vector<256xf32>
      %93 = vector.shape_cast %92 : vector<256xf32> to vector<256x1xf32>
      %94 = vector.broadcast %93 : vector<256x1xf32> to vector<256x128xf32>
      %95 = arith.subf %91, %94 : vector<256x128xf32>
      %96 = math.exp %95 : vector<256x128xf32>
      %cst_42 = arith.constant dense<0.000000e+00> : vector<256xf32>
      %97 = vector.multi_reduction <add>, %96, %cst_42 [1] : vector<256x128xf32> to vector<256xf32>
      %98 = vector.shape_cast %97 : vector<256xf32> to vector<256x1xf32>
      %99 = math.log %98 : vector<256x1xf32>
      %100 = arith.addf %93, %99 : vector<256x1xf32>
      %101 = tpu.iota {dimensions = array<i32: 1>} : vector<256x128xi32>
      %c0_43 = arith.constant 0 : index
      %c0_44 = arith.constant 0 : index
      %102 = vector.load %arg13[%c0_43, %c0_44] : memref<256x1xi32, #tpu.memory_space<vmem>>, vector<256x1xi32>
      %103 = vector.broadcast %102 : vector<256x1xi32> to vector<256x128xi32>
      %104 = arith.cmpi eq, %101, %103 : vector<256x128xi32>
      %cst_45 = arith.constant 0.000000e+00 : f32
      %105 = vector.broadcast %cst_45 : f32 to vector<256x128xf32>
      %106 = arith.select %104, %91, %105 : vector<256x128xi1>, vector<256x128xf32>
      %cst_46 = arith.constant dense<0.000000e+00> : vector<256xf32>
      %107 = vector.multi_reduction <add>, %106, %cst_46 [1] : vector<256x128xf32> to vector<256xf32>
      %108 = vector.shape_cast %107 : vector<256xf32> to vector<256x1xf32>
      %109 = arith.subf %100, %108 : vector<256x1xf32>
      %c0_47 = arith.constant 0 : index
      %c0_48 = arith.constant 0 : index
      %110 = vector.load %arg16[%c0_47, %c0_48] : memref<256x1xf32, #tpu.memory_space<vmem>>, vector<256x1xf32>
      tpu.vector_store %arg16[%c0_47, %c0_48], %109 {strides = array<i32>} : memref<256x1xf32, #tpu.memory_space<vmem>>, vector<256x1xf32>,
    } else {
    }
    return
  }
  func.func @transform_0(%arg0: i32, %arg1: memref<12xi32, #tpu.memory_space<smem>>, %arg2: memref<12xi32, #tpu.memory_space<smem>>) -> (i32, i32) {
    %c0_i32 = arith.constant 0 : i32
    %c0_i32_0 = arith.constant 0 : i32
    %c0_i32_1 = arith.constant 0 : i32
    return %c0_i32, %c0_i32_0 : i32, i32
  }
  func.func @transform_1(%arg0: i32, %arg1: memref<12xi32, #tpu.memory_space<smem>>, %arg2: memref<12xi32, #tpu.memory_space<smem>>) -> (i32, i32, i32) {
    %0 = arith.index_cast %arg0 : i32 to index
    %1 = memref.load %arg1[%0] : memref<12xi32, #tpu.memory_space<smem>>
    %c0_i32 = arith.constant 0 : i32
    %c0_i32_0 = arith.constant 0 : i32
    %c0_i32_1 = arith.constant 0 : i32
    return %1, %c0_i32, %c0_i32_0 : i32, i32, i32
  }
  func.func @transform_2(%arg0: i32, %arg1: memref<12xi32, #tpu.memory_space<smem>>, %arg2: memref<12xi32, #tpu.memory_space<smem>>) -> (i32, i32, i32) {
    %0 = arith.index_cast %arg0 : i32 to index
    %1 = memref.load %arg2[%0] : memref<12xi32, #tpu.memory_space<smem>>
    %c0_i32 = arith.constant 0 : i32
    %c0_i32_0 = arith.constant 0 : i32
    %c0_i32_1 = arith.constant 0 : i32
    return %1, %c0_i32, %c0_i32_0 : i32, i32, i32
  }
  func.func @transform_3(%arg0: i32, %arg1: memref<12xi32, #tpu.memory_space<smem>>, %arg2: memref<12xi32, #tpu.memory_space<smem>>) -> (i32, i32, i32) {
    %c0_i32 = arith.constant 0 : i32
    %c0_i32_0 = arith.constant 0 : i32
    %c0_i32_1 = arith.constant 0 : i32
    return %arg0, %c0_i32, %c0_i32_0 : i32, i32, i32
  }
  func.func @transform_4(%arg0: i32, %arg1: memref<12xi32, #tpu.memory_space<smem>>, %arg2: memref<12xi32, #tpu.memory_space<smem>>) -> (i32, i32, i32) {
    %c0_i32 = arith.constant 0 : i32
    %c0_i32_0 = arith.constant 0 : i32
    %c0_i32_1 = arith.constant 0 : i32
    return %arg0, %c0_i32, %c0_i32_0 : i32, i32, i32
  }
  func.func @transform_5(%arg0: i32, %arg1: memref<12xi32, #tpu.memory_space<smem>>, %arg2: memref<12xi32, #tpu.memory_space<smem>>) -> (i32, i32, i32) {
    %c0_i32 = arith.constant 0 : i32
    %c0_i32_0 = arith.constant 0 : i32
    %c0_i32_1 = arith.constant 0 : i32
    return %arg0, %c0_i32, %c0_i32_0 : i32, i32, i32
  }
  func.func @transform_6(%arg0: i32, %arg1: memref<12xi32, #tpu.memory_space<smem>>, %arg2: memref<12xi32, #tpu.memory_space<smem>>) -> (i32, i32, i32) {
    %c0_i32 = arith.constant 0 : i32
    %c0_i32_0 = arith.constant 0 : i32
    %c0_i32_1 = arith.constant 0 : i32
    return %arg0, %c0_i32, %c0_i32_0 : i32, i32, i32
  }
  func.func @transform_7(%arg0: i32, %arg1: memref<12xi32, #tpu.memory_space<smem>>, %arg2: memref<12xi32, #tpu.memory_space<smem>>) -> (i32, i32) {
    %c0_i32 = arith.constant 0 : i32
    %c0_i32_0 = arith.constant 0 : i32
    %c0_i32_1 = arith.constant 0 : i32
    return %c0_i32, %c0_i32_0 : i32, i32
  }
  func.func @transform_8(%arg0: i32, %arg1: memref<12xi32, #tpu.memory_space<smem>>, %arg2: memref<12xi32, #tpu.memory_space<smem>>) -> (i32, i32) {
    %c0_i32 = arith.constant 0 : i32
    %c0_i32_0 = arith.constant 0 : i32
    %c0_i32_1 = arith.constant 0 : i32
    return %c0_i32, %c0_i32_0 : i32, i32
  }
  func.func @transform_9(%arg0: i32, %arg1: memref<12xi32, #tpu.memory_space<smem>>, %arg2: memref<12xi32, #tpu.memory_space<smem>>) -> (i32, i32) {
    %c0_i32 = arith.constant 0 : i32
    %c0_i32_0 = arith.constant 0 : i32
    %c0_i32_1 = arith.constant 0 : i32
    return %c0_i32, %c0_i32_0 : i32, i32
  }
  func.func @transform_10(%arg0: i32, %arg1: memref<12xi32, #tpu.memory_space<smem>>, %arg2: memref<12xi32, #tpu.memory_space<smem>>) -> (i32, i32) {
    %c0_i32 = arith.constant 0 : i32
    %c0_i32_0 = arith.constant 0 : i32
    %c0_i32_1 = arith.constant 0 : i32
    return %c0_i32, %c0_i32_0 : i32, i32
  }
  func.func @transform_11(%arg0: i32, %arg1: memref<12xi32, #tpu.memory_space<smem>>, %arg2: memref<12xi32, #tpu.memory_space<smem>>) -> (i32, i32) {
    %c0_i32 = arith.constant 0 : i32
    %c0_i32_0 = arith.constant 0 : i32
    %c0_i32_1 = arith.constant 0 : i32
    return %c0_i32, %c0_i32_0 : i32, i32
  }
  func.func @transform_12(%arg0: i32, %arg1: memref<12xi32, #tpu.memory_space<smem>>, %arg2: memref<12xi32, #tpu.memory_space<smem>>) -> (i32, i32) {
    %c0_i32 = arith.constant 0 : i32
    %c0_i32_0 = arith.constant 0 : i32
    %c0_i32_1 = arith.constant 0 : i32
    return %c0_i32, %c0_i32_0 : i32, i32
  }
  func.func @transform_13(%arg0: i32, %arg1: memref<12xi32, #tpu.memory_space<smem>>, %arg2: memref<12xi32, #tpu.memory_space<smem>>) -> (i32, i32) {
    %c0_i32 = arith.constant 0 : i32
    %c0_i32_0 = arith.constant 0 : i32
    %c0_i32_1 = arith.constant 0 : i32
    return %c0_i32, %c0_i32_0 : i32, i32
  }
}

</mosaic_0001>

<llo_original>
// kernel: gpt_forward.1
$region0: #{gpt_forward.1}
  #allocation0 [shape = 'u32[]', space=smem, size = 0x4, offset = 0x4, fixed_abs, tag = 'smem constant byte address 0x4 - core index']
  #allocation1 [shape = 'u32[144,128]{1,0:T(1,128)}', space=vmem, size = 0x12000, scoped, tag = 'internal scratch']
  #allocation2 [shape = 'f32[256,128]{1,0:T(8,128)}', space=vmem, size = 0x20000, scoped, tag = 'scratch operand']
  #allocation3 [shape = 'f32[256,128]{1,0:T(8,128)}', space=vmem, size = 0x20000, scoped, tag = 'scratch operand']
  #allocation4 [shape = 'f32[6,256,128]{2,1,0:T(8,128)}', space=vmem, size = 0xc0000, scoped, tag = 'scratch operand']
  #allocation5 [shape = 's32[1]{0}', space=sflag, size = 0x4, scoped, tag = 'scoped memory for gpt_forward.1']
  #allocation6 [shape = 'u8[512]{0}', space=smem, size = 0x200, scoped, tag = 'prefetched SMEM operand 0']
  #allocation7 [shape = 'u8[512]{0}', space=smem, size = 0x200, scoped, tag = 'prefetched SMEM operand 1']
  %s0 = inlined_call_operand.vmem [shape: s32[12], index: 0, kind: input, shape index: {}]
  %s1 = inlined_call_operand.vmem [shape: s32[12], index: 1, kind: input, shape index: {}]
  %s2 = inlined_call_operand.vmem [shape: f32[256,128], index: 2, kind: input, shape index: {}]
  %s3 = inlined_call_operand.vmem [shape: f32[3,256,128], index: 3, kind: input, shape index: {}]
  %s4 = inlined_call_operand.vmem [shape: f32[2,256,256], index: 4, kind: input, shape index: {}]
  %s5 = inlined_call_operand.vmem [shape: bf16[12,128,384], index: 5, kind: input, shape index: {}]
  %s6 = inlined_call_operand.vmem [shape: bf16[12,128,128], index: 6, kind: input, shape index: {}]
  %s7 = inlined_call_operand.vmem [shape: bf16[12,128,512], index: 7, kind: input, shape index: {}]
  %s8 = inlined_call_operand.vmem [shape: bf16[12,512,128], index: 8, kind: input, shape index: {}]
  %s9 = inlined_call_operand.vmem [shape: f32[256,128], index: 9, kind: input, shape index: {}]
  %s10 = inlined_call_operand.vmem [shape: f32[256,128], index: 10, kind: input, shape index: {}]
  %s11 = inlined_call_operand.vmem [shape: bf16[128,128], index: 11, kind: input, shape index: {}]
  %s12 = inlined_call_operand.vmem [shape: s32[256,1], index: 12, kind: input, shape index: {}]
  %s13 = inlined_call_operand.vmem [shape: f32[12,3], index: 13, kind: input, shape index: {}]
  %s14 = inlined_call_operand.vmem [shape: f32[12,2], index: 14, kind: input, shape index: {}]
  %s15 = inlined_call_operand.vmem [shape: f32[256,1], index: 15, kind: output, shape index: {}]
  %s16 = sld [smem:[#allocation0]]
  $region109: #{gpt_forward.1} parent=0
    _
  %s18 = ssub.s32 1, %s16
  %s19 = scalar_select 0, %s18, %s16
  %s20 = sshll.u32 %s0, 4
  %s21 = int_to_ptr.vmem [resolvable:$true] %s20
  %23 = dma.vmem_to_smem %s21, 16, [#allocation6], [#allocation5]
  %s24 = sshll.u32 %s1, 4
  %s25 = int_to_ptr.vmem [resolvable:$true] %s24
  %27 = dma.vmem_to_smem %s25, 16, [#allocation7], [#allocation5]
  %28 = dma.done [#allocation5], 32
  %29 = sfence
  $region1: #{gpt_forward.1} parent=0
    #allocation8 [shape = 'u8[8192]{0}', space=smem, size = 0x2000, scoped, tag = 'input window, operand 13, single buffered']
    #allocation9 [shape = 's32[2]{0}', space=sflag, size = 0x8, scoped, tag = 'scoped memory for gpt_forward.1']
    #allocation10 [shape = 'u8[8192]{0}', space=smem, size = 0x2000, scoped, tag = 'input window, operand 14, single buffered']
    #allocation11 [shape = 's32[1]{0}', space=sflag, size = 0x4, scoped, tag = 'scoped memory for gpt_forward.1']
    %30 = vsyncpa [#allocation9], 0
    %31 = vsyncpa [#allocation11], 0
    loop: start=0, step=1, limit=14
    $region2: #{gpt_forward.1} parent=1 // loop_pre_header
      _
    $region3: #{gpt_forward.1} parent=1 // loop_header
      %s33 = sphi 0, %s37
      %p34 = scmp.ge.s32.totalorder %s33, 14
      %s41 = sphi 0, %s41
      %s43 = sphi 0, %s41
      %s44 = sphi 0, %s43
      %s58 = sphi 0, %s44
      %s66 = sphi 0, %s68
      %s69 = sphi 0, %s66
      %s70 = sphi 0, %s69
      %s86 = sphi 0, %s70
      %s94 = sphi 0, %s96
      %s97 = sphi 0, %s94
      %s98 = sphi 0, %s97
      %s114 = sphi 0, %s98
      %s120 = sphi 0, %s122
      %s123 = sphi 0, %s120
      %s124 = sphi 0, %s123
      %s140 = sphi 0, %s124
      %s146 = sphi 0, %s148
      %s149 = sphi 0, %s146
      %s150 = sphi 0, %s149
      %s166 = sphi 0, %s150
      %s172 = sphi 0, %s174
      %s175 = sphi 0, %s172
      %s176 = sphi 0, %s175
      %s192 = sphi 0, %s176
      %s198 = sphi 0, %s200
      %s201 = sphi 0, %s198
      %s202 = sphi 0, %s201
      %s218 = sphi 0, %s202
      %s222 = sphi 0, %s222
      %s224 = sphi 0, %s222
      %s225 = sphi 0, %s224
      %s239 = sphi 0, %s225
      %s243 = sphi 0, %s243
      %s245 = sphi 0, %s243
      %s246 = sphi 0, %s245
      %s260 = sphi 0, %s246
      %s264 = sphi 0, %s264
      %s266 = sphi 0, %s264
      %s267 = sphi 0, %s266
      %s281 = sphi 0, %s267
      %s285 = sphi 0, %s285
      %s287 = sphi 0, %s285
      %s288 = sphi 0, %s287
      %s302 = sphi 0, %s288
      %s306 = sphi 0, %s306
      %s308 = sphi 0, %s306
      %s309 = sphi 0, %s308
      %s323 = sphi 0, %s309
      %s327 = sphi 0, %s327
      %s329 = sphi 0, %s327
      %s330 = sphi 0, %s329
      %s344 = sphi 0, %s330
      %s348 = sphi 0, %s348
      %s350 = sphi 0, %s348
      %s351 = sphi 0, %s350
      %s365 = sphi 0, %s351
    $region4: #{gpt_forward.1} parent=1 // loop_header_branch
      %36 = sbr.rel (%p34) target = $region8
    $region5: #{gpt_forward.1} parent=1 // loop_body
      %s38 = ssub.s32 %s33, 1
      %s39 = ssub.s32 %s33, 2
      %s40 = sadd.s32 %s33, 1
      %s42 = sadd.s32 %s41, 1
      %p45 = scmp.eq.s32.totalorder %s33, 11
      %p46 = scmp.ne.s32.totalorder %s41, %s43
      %p47 = scmp.eq.s32.totalorder %s33, 0
      %p48 = por %p46, %p47
      %p49 = scmp.ne.s32.totalorder %s41, %s43
      %p50 = scmp.eq.s32.totalorder %s38, 11
      %p51 = por %p49, %p50
      %p52 = scmp.ne.s32.totalorder %s43, %s44
      %p53 = scmp.eq.s32.totalorder %s38, 0
      %p54 = por %p52, %p53
      %p55 = scmp.ne.s32.totalorder %s43, %s44
      %p56 = scmp.eq.s32.totalorder %s39, 11
      %p57 = por %p55, %p56
      %p59 = scmp.ne.s32.totalorder %s44, %s58
      %p60 = scmp.eq.s32.totalorder %s39, 0
      %p61 = por %p59, %p60
      %s62 = sld [smem:[#allocation6 + %s33]]
      %s63 = sld [smem:[#allocation6 + %s40]]
      %s64 = ssub.s32 %s62, %s63
      %p65 = scmp.eq.s32.totalorder %s64, 0
      %s67 = sadd.s32 %s66, 1
      %s68 = scalar_select %p65, %s66, %s67
      %p71 = pneg %p65
      %p72 = scmp.eq.s32.totalorder %s33, 11
      %p73 = por %p71, %p72
      %p74 = scmp.ne.s32.totalorder %s66, %s69
      %p75 = scmp.eq.s32.totalorder %s33, 0
      %p76 = por %p74, %p75
      %p77 = scmp.ne.s32.totalorder %s66, %s69
      %p78 = scmp.eq.s32.totalorder %s38, 11
      %p79 = por %p77, %p78
      %p80 = scmp.ne.s32.totalorder %s69, %s70
      %p81 = scmp.eq.s32.totalorder %s38, 0
      %p82 = por %p80, %p81
      %p83 = scmp.ne.s32.totalorder %s69, %s70
      %p84 = scmp.eq.s32.totalorder %s39, 11
      %p85 = por %p83, %p84
      %p87 = scmp.ne.s32.totalorder %s70, %s86
      %p88 = scmp.eq.s32.totalorder %s39, 0
      %p89 = por %p87, %p88
      %s90 = sld [smem:[#allocation7 + %s33]]
      %s91 = sld [smem:[#allocation7 + %s40]]
      %s92 = ssub.s32 %s90, %s91
      %p93 = scmp.eq.s32.totalorder %s92, 0
      %s95 = sadd.s32 %s94, 1
      %s96 = scalar_select %p93, %s94, %s95
      %p99 = pneg %p93
      %p100 = scmp.eq.s32.totalorder %s33, 11
      %p101 = por %p99, %p100
      %p102 = scmp.ne.s32.totalorder %s94, %s97
      %p103 = scmp.eq.s32.totalorder %s33, 0
      %p104 = por %p102, %p103
      %p105 = scmp.ne.s32.totalorder %s94, %s97
      %p106 = scmp.eq.s32.totalorder %s38, 11
      %p107 = por %p105, %p106
      %p108 = scmp.ne.s32.totalorder %s97, %s98
      %p109 = scmp.eq.s32.totalorder %s38, 0
      %p110 = por %p108, %p109
      %p111 = scmp.ne.s32.totalorder %s97, %s98
      %p112 = scmp.eq.s32.totalorder %s39, 11
      %p113 = por %p111, %p112
      %p115 = scmp.ne.s32.totalorder %s98, %s114
      %p116 = scmp.eq.s32.totalorder %s39, 0
      %p117 = por %p115, %p116
      %s118 = ssub.s32 %s33, %s40
      %p119 = scmp.eq.s32.totalorder %s118, 0
      %s121 = sadd.s32 %s120, 1
      %s122 = scalar_select %p119, %s120, %s121
      %p125 = pneg %p119
      %p126 = scmp.eq.s32.totalorder %s33, 11
      %p127 = por %p125, %p126
      %p128 = scmp.ne.s32.totalorder %s120, %s123
      %p129 = scmp.eq.s32.totalorder %s33, 0
      %p130 = por %p128, %p129
      %p131 = scmp.ne.s32.totalorder %s120, %s123
      %p132 = scmp.eq.s32.totalorder %s38, 11
      %p133 = por %p131, %p132
      %p134 = scmp.ne.s32.totalorder %s123, %s124
      %p135 = scmp.eq.s32.totalorder %s38, 0
      %p136 = por %p134, %p135
      %p137 = scmp.ne.s32.totalorder %s123, %s124
      %p138 = scmp.eq.s32.totalorder %s39, 11
      %p139 = por %p137, %p138
      %p141 = scmp.ne.s32.totalorder %s124, %s140
      %p142 = scmp.eq.s32.totalorder %s39, 0
      %p143 = por %p141, %p142
      %s144 = ssub.s32 %s33, %s40
      %p145 = scmp.eq.s32.totalorder %s144, 0
      %s147 = sadd.s32 %s146, 1
      %s148 = scalar_select %p145, %s146, %s147
      %p151 = pneg %p145
      %p152 = scmp.eq.s32.totalorder %s33, 11
      %p153 = por %p151, %p152
      %p154 = scmp.ne.s32.totalorder %s146, %s149
      %p155 = scmp.eq.s32.totalorder %s33, 0
      %p156 = por %p154, %p155
      %p157 = scmp.ne.s32.totalorder %s146, %s149
      %p158 = scmp.eq.s32.totalorder %s38, 11
      %p159 = por %p157, %p158
      %p160 = scmp.ne.s32.totalorder %s149, %s150
      %p161 = scmp.eq.s32.totalorder %s38, 0
      %p162 = por %p160, %p161
      %p163 = scmp.ne.s32.totalorder %s149, %s150
      %p164 = scmp.eq.s32.totalorder %s39, 11
      %p165 = por %p163, %p164
      %p167 = scmp.ne.s32.totalorder %s150, %s166
      %p168 = scmp.eq.s32.totalorder %s39, 0
      %p169 = por %p167, %p168
      %s170 = ssub.s32 %s33, %s40
      %p171 = scmp.eq.s32.totalorder %s170, 0
      %s173 = sadd.s32 %s172, 1
      %s174 = scalar_select %p171, %s172, %s173
      %p177 = pneg %p171
      %p178 = scmp.eq.s32.totalorder %s33, 11
      %p179 = por %p177, %p178
      %p180 = scmp.ne.s32.totalorder %s172, %s175
      %p181 = scmp.eq.s32.totalorder %s33, 0
      %p182 = por %p180, %p181
      %p183 = scmp.ne.s32.totalorder %s172, %s175
      %p184 = scmp.eq.s32.totalorder %s38, 11
      %p185 = por %p183, %p184
      %p186 = scmp.ne.s32.totalorder %s175, %s176
      %p187 = scmp.eq.s32.totalorder %s38, 0
      %p188 = por %p186, %p187
      %p189 = scmp.ne.s32.totalorder %s175, %s176
      %p190 = scmp.eq.s32.totalorder %s39, 11
      %p191 = por %p189, %p190
      %p193 = scmp.ne.s32.totalorder %s176, %s192
      %p194 = scmp.eq.s32.totalorder %s39, 0
      %p195 = por %p193, %p194
      %s196 = ssub.s32 %s33, %s40
      %p197 = scmp.eq.s32.totalorder %s196, 0
      %s199 = sadd.s32 %s198, 1
      %s200 = scalar_select %p197, %s198, %s199
      %p203 = pneg %p197
      %p204 = scmp.eq.s32.totalorder %s33, 11
      %p205 = por %p203, %p204
      %p206 = scmp.ne.s32.totalorder %s198, %s201
      %p207 = scmp.eq.s32.totalorder %s33, 0
      %p208 = por %p206, %p207
      %p209 = scmp.ne.s32.totalorder %s198, %s201
      %p210 = scmp.eq.s32.totalorder %s38, 11
      %p211 = por %p209, %p210
      %p212 = scmp.ne.s32.totalorder %s201, %s202
      %p213 = scmp.eq.s32.totalorder %s38, 0
      %p214 = por %p212, %p213
      %p215 = scmp.ne.s32.totalorder %s201, %s202
      %p216 = scmp.eq.s32.totalorder %s39, 11
      %p217 = por %p215, %p216
      %p219 = scmp.ne.s32.totalorder %s202, %s218
      %p220 = scmp.eq.s32.totalorder %s39, 0
      %p221 = por %p219, %p220
      %s223 = sadd.s32 %s222, 1
      %p226 = scmp.eq.s32.totalorder %s33, 11
      %p227 = scmp.ne.s32.totalorder %s222, %s224
      %p228 = scmp.eq.s32.totalorder %s33, 0
      %p229 = por %p227, %p228
      %p230 = scmp.ne.s32.totalorder %s222, %s224
      %p231 = scmp.eq.s32.totalorder %s38, 11
      %p232 = por %p230, %p231
      %p233 = scmp.ne.s32.totalorder %s224, %s225
      %p234 = scmp.eq.s32.totalorder %s38, 0
      %p235 = por %p233, %p234
      %p236 = scmp.ne.s32.totalorder %s224, %s225
      %p237 = scmp.eq.s32.totalorder %s39, 11
      %p238 = por %p236, %p237
      %p240 = scmp.ne.s32.totalorder %s225, %s239
      %p241 = scmp.eq.s32.totalorder %s39, 0
      %p242 = por %p240, %p241
      %s244 = sadd.s32 %s243, 1
      %p247 = scmp.eq.s32.totalorder %s33, 11
      %p248 = scmp.ne.s32.totalorder %s243, %s245
      %p249 = scmp.eq.s32.totalorder %s33, 0
      %p250 = por %p248, %p249
      %p251 = scmp.ne.s32.totalorder %s243, %s245
      %p252 = scmp.eq.s32.totalorder %s38, 11
      %p253 = por %p251, %p252
      %p254 = scmp.ne.s32.totalorder %s245, %s246
      %p255 = scmp.eq.s32.totalorder %s38, 0
      %p256 = por %p254, %p255
      %p257 = scmp.ne.s32.totalorder %s245, %s246
      %p258 = scmp.eq.s32.totalorder %s39, 11
      %p259 = por %p257, %p258
      %p261 = scmp.ne.s32.totalorder %s246, %s260
      %p262 = scmp.eq.s32.totalorder %s39, 0
      %p263 = por %p261, %p262
      %s265 = sadd.s32 %s264, 1
      %p268 = scmp.eq.s32.totalorder %s33, 11
      %p269 = scmp.ne.s32.totalorder %s264, %s266
      %p270 = scmp.eq.s32.totalorder %s33, 0
      %p271 = por %p269, %p270
      %p272 = scmp.ne.s32.totalorder %s264, %s266
      %p273 = scmp.eq.s32.totalorder %s38, 11
      %p274 = por %p272, %p273
      %p275 = scmp.ne.s32.totalorder %s266, %s267
      %p276 = scmp.eq.s32.totalorder %s38, 0
      %p277 = por %p275, %p276
      %p278 = scmp.ne.s32.totalorder %s266, %s267
      %p279 = scmp.eq.s32.totalorder %s39, 11
      %p280 = por %p278, %p279
      %p282 = scmp.ne.s32.totalorder %s267, %s281
      %p283 = scmp.eq.s32.totalorder %s39, 0
      %p284 = por %p282, %p283
      %s286 = sadd.s32 %s285, 1
      %p289 = scmp.eq.s32.totalorder %s33, 11
      %p290 = scmp.ne.s32.totalorder %s285, %s287
      %p291 = scmp.eq.s32.totalorder %s33, 0
      %p292 = por %p290, %p291
      %p293 = scmp.ne.s32.totalorder %s285, %s287
      %p294 = scmp.eq.s32.totalorder %s38, 11
      %p295 = por %p293, %p294
      %p296 = scmp.ne.s32.totalorder %s287, %s288
      %p297 = scmp.eq.s32.totalorder %s38, 0
      %p298 = por %p296, %p297
      %p299 = scmp.ne.s32.totalorder %s287, %s288
      %p300 = scmp.eq.s32.totalorder %s39, 11
      %p301 = por %p299, %p300
      %p303 = scmp.ne.s32.totalorder %s288, %s302
      %p304 = scmp.eq.s32.totalorder %s39, 0
      %p305 = por %p303, %p304
      %s307 = sadd.s32 %s306, 1
      %p310 = scmp.eq.s32.totalorder %s33, 11
      %p311 = scmp.ne.s32.totalorder %s306, %s308
      %p312 = scmp.eq.s32.totalorder %s33, 0
      %p313 = por %p311, %p312
      %p314 = scmp.ne.s32.totalorder %s306, %s308
      %p315 = scmp.eq.s32.totalorder %s38, 11
      %p316 = por %p314, %p315
      %p317 = scmp.ne.s32.totalorder %s308, %s309
      %p318 = scmp.eq.s32.totalorder %s38, 0
      %p319 = por %p317, %p318
      %p320 = scmp.ne.s32.totalorder %s308, %s309
      %p321 = scmp.eq.s32.totalorder %s39, 11
      %p322 = por %p320, %p321
      %p324 = scmp.ne.s32.totalorder %s309, %s323
      %p325 = scmp.eq.s32.totalorder %s39, 0
      %p326 = por %p324, %p325
      %s328 = sadd.s32 %s327, 1
      %p331 = scmp.eq.s32.totalorder %s33, 11
      %p332 = scmp.ne.s32.totalorder %s327, %s329
      %p333 = scmp.eq.s32.totalorder %s33, 0
      %p334 = por %p332, %p333
      %p335 = scmp.ne.s32.totalorder %s327, %s329
      %p336 = scmp.eq.s32.totalorder %s38, 11
      %p337 = por %p335, %p336
      %p338 = scmp.ne.s32.totalorder %s329, %s330
      %p339 = scmp.eq.s32.totalorder %s38, 0
      %p340 = por %p338, %p339
      %p341 = scmp.ne.s32.totalorder %s329, %s330
      %p342 = scmp.eq.s32.totalorder %s39, 11
      %p343 = por %p341, %p342
      %p345 = scmp.ne.s32.totalorder %s330, %s344
      %p346 = scmp.eq.s32.totalorder %s39, 0
      %p347 = por %p345, %p346
      %s349 = sadd.s32 %s348, 1
      %p352 = scmp.eq.s32.totalorder %s33, 11
      %p353 = scmp.ne.s32.totalorder %s348, %s350
      %p354 = scmp.eq.s32.totalorder %s33, 0
      %p355 = por %p353, %p354
      %p356 = scmp.ne.s32.totalorder %s348, %s350
      %p357 = scmp.eq.s32.totalorder %s38, 11
      %p358 = por %p356, %p357
      %p359 = scmp.ne.s32.totalorder %s350, %s351
      %p360 = scmp.eq.s32.totalorder %s38, 0
      %p361 = por %p359, %p360
      %p362 = scmp.ne.s32.totalorder %s350, %s351
      %p363 = scmp.eq.s32.totalorder %s39, 11
      %p364 = por %p362, %p363
      %p366 = scmp.ne.s32.totalorder %s351, %s365
      %p367 = scmp.eq.s32.totalorder %s39, 0
      %p368 = por %p366, %p367
      %p369 = scmp.le.s32.totalorder 1, %s33
      %p370 = scmp.lt.s32.totalorder %s33, 13
      %p371 = pnand %p369, %p370
      %p372 = pneg %p371
      // Predicated region
      $region9: #{gpt_forward.1} parent=5 // pred_check
        _
      $region10: #{gpt_forward.1} parent=5 // pred_check_branch
        %374 = sbr.rel (%p371) target = $region12
      $region11: #{gpt_forward.1} parent=5 // pred_region
        %s375 = ssub.s32 %s33, 1
        // Predicated region
        $region13: #{gpt_forward.1} parent=11 // pred_check
          %p376 = pneg %p54
        $region14: #{gpt_forward.1} parent=11 // pred_check_branch
          %378 = sbr.rel (%p376) target = $region16
        $region15: #{gpt_forward.1} parent=11 // pred_region
          _
        $region16: #{gpt_forward.1} parent=11 // pred_fallthru
          _
        // Predicated region
        $region17: #{gpt_forward.1} parent=11 // pred_check
          %p379 = pneg %p235
        $region18: #{gpt_forward.1} parent=11 // pred_check_branch
          %381 = sbr.rel (%p379) target = $region20
        $region19: #{gpt_forward.1} parent=11 // pred_region
          _
        $region20: #{gpt_forward.1} parent=11 // pred_fallthru
          _
        // Predicated region
        $region21: #{gpt_forward.1} parent=11 // pred_check
          %p382 = pneg %p256
        $region22: #{gpt_forward.1} parent=11 // pred_check_branch
          %384 = sbr.rel (%p382) target = $region24
        $region23: #{gpt_forward.1} parent=11 // pred_region
          _
        $region24: #{gpt_forward.1} parent=11 // pred_fallthru
          _
        // Predicated region
        $region25: #{gpt_forward.1} parent=11 // pred_check
          %p385 = pneg %p277
        $region26: #{gpt_forward.1} parent=11 // pred_check_branch
          %387 = sbr.rel (%p385) target = $region28
        $region27: #{gpt_forward.1} parent=11 // pred_region
          _
        $region28: #{gpt_forward.1} parent=11 // pred_fallthru
          _
        // Predicated region
        $region29: #{gpt_forward.1} parent=11 // pred_check
          %p388 = pneg %p298
        $region30: #{gpt_forward.1} parent=11 // pred_check_branch
          %390 = sbr.rel (%p388) target = $region32
        $region31: #{gpt_forward.1} parent=11 // pred_region
          _
        $region32: #{gpt_forward.1} parent=11 // pred_fallthru
          _
        // Predicated region
        $region33: #{gpt_forward.1} parent=11 // pred_check
          %p391 = pneg %p319
        $region34: #{gpt_forward.1} parent=11 // pred_check_branch
          %393 = sbr.rel (%p391) target = $region36
        $region35: #{gpt_forward.1} parent=11 // pred_region
          %s395 = ssub.s32 256, 256
          %396 = vsyncadd [#allocation9], %s395
          %s397 = sshll.u32 %s13, 4
          %s398 = int_to_ptr.vmem [resolvable:$true] %s397
          %403 = dma.vmem_to_smem %s398, 256, [#allocation8], [#allocation9], 128, 128, 8
        $region36: #{gpt_forward.1} parent=11 // pred_fallthru
          _
        // Predicated region
        $region37: #{gpt_forward.1} parent=11 // pred_check
          %p404 = pneg %p340
        $region38: #{gpt_forward.1} parent=11 // pred_check_branch
          %406 = sbr.rel (%p404) target = $region40
        $region39: #{gpt_forward.1} parent=11 // pred_region
          %s408 = ssub.s32 256, 256
          %409 = vsyncadd [#allocation11], %s408
          %s410 = sshll.u32 %s14, 4
          %s411 = int_to_ptr.vmem [resolvable:$true] %s410
          %416 = dma.vmem_to_smem %s411, 256, [#allocation10], [#allocation11], 128, 128, 8
        $region40: #{gpt_forward.1} parent=11 // pred_fallthru
          _
      $region12: #{gpt_forward.1} parent=5 // pred_fallthru
        _
      %p417 = scmp.lt.s32.totalorder %s33, 12
      // Predicated region
      $region41: #{gpt_forward.1} parent=5 // pred_check
        %p418 = pneg %p417
      $region42: #{gpt_forward.1} parent=5 // pred_check_branch
        %420 = sbr.rel (%p418) target = $region44
      $region43: #{gpt_forward.1} parent=5 // pred_region
        // Predicated region
        $region45: #{gpt_forward.1} parent=43 // pred_check
          %p421 = pneg %p76
        $region46: #{gpt_forward.1} parent=43 // pred_check_branch
          %423 = sbr.rel (%p421) target = $region48
        $region47: #{gpt_forward.1} parent=43 // pred_region
          %s424 = sld [smem:[#allocation6 + %s33]]
          %p425 = scmp.lt.s32.totalorder %s424, 2
          %s426 = scalar_select %p425, %s424, 2
          %s427 = smul.addr %s426, 32
          %s428 = smul.addr %s427, 8
          %s429 = scalar_lea.vmem %s3, %s428
          %s430 = sld [smem:[#allocation6 + %s33]]
        $region48: #{gpt_forward.1} parent=43 // pred_fallthru
          _
        // Predicated region
        $region49: #{gpt_forward.1} parent=43 // pred_check
          %p431 = pneg %p104
        $region50: #{gpt_forward.1} parent=43 // pred_check_branch
          %433 = sbr.rel (%p431) target = $region52
        $region51: #{gpt_forward.1} parent=43 // pred_region
          %s434 = sld [smem:[#allocation7 + %s33]]
          %p435 = scmp.lt.s32.totalorder %s434, 1
          %s436 = scalar_select %p435, %s434, 1
          %s437 = smul.addr %s436, 64
          %s438 = smul.addr %s437, 8
          %s439 = scalar_lea.vmem %s4, %s438
          %s440 = sld [smem:[#allocation7 + %s33]]
        $region52: #{gpt_forward.1} parent=43 // pred_fallthru
          _
        // Predicated region
        $region53: #{gpt_forward.1} parent=43 // pred_check
          %p441 = pneg %p130
        $region54: #{gpt_forward.1} parent=43 // pred_check_branch
          %443 = sbr.rel (%p441) target = $region56
        $region55: #{gpt_forward.1} parent=43 // pred_region
          %p444 = scmp.lt.s32.totalorder %s33, 11
          %s445 = scalar_select %p444, %s33, 11
          %s446 = smul.addr %s445, 48
          %s447 = smul.addr %s446, 4
          %s448 = scalar_lea.vmem %s5, %s447
        $region56: #{gpt_forward.1} parent=43 // pred_fallthru
          _
        // Predicated region
        $region57: #{gpt_forward.1} parent=43 // pred_check
          %p449 = pneg %p156
        $region58: #{gpt_forward.1} parent=43 // pred_check_branch
          %451 = sbr.rel (%p449) target = $region60
        $region59: #{gpt_forward.1} parent=43 // pred_region
          %p452 = scmp.lt.s32.totalorder %s33, 11
          %s453 = scalar_select %p452, %s33, 11
          %s454 = smul.addr %s453, 16
          %s455 = smul.addr %s454, 4
          %s456 = scalar_lea.vmem %s6, %s455
        $region60: #{gpt_forward.1} parent=43 // pred_fallthru
          _
        // Predicated region
        $region61: #{gpt_forward.1} parent=43 // pred_check
          %p457 = pneg %p182
        $region62: #{gpt_forward.1} parent=43 // pred_check_branch
          %459 = sbr.rel (%p457) target = $region64
        $region63: #{gpt_forward.1} parent=43 // pred_region
          %p460 = scmp.lt.s32.totalorder %s33, 11
          %s461 = scalar_select %p460, %s33, 11
          %s462 = smul.addr %s461, 64
          %s463 = smul.addr %s462, 4
          %s464 = scalar_lea.vmem %s7, %s463
        $region64: #{gpt_forward.1} parent=43 // pred_fallthru
          _
        // Predicated region
        $region65: #{gpt_forward.1} parent=43 // pred_check
          %p465 = pneg %p208
        $region66: #{gpt_forward.1} parent=43 // pred_check_branch
          %467 = sbr.rel (%p465) target = $region68
        $region67: #{gpt_forward.1} parent=43 // pred_region
          %p468 = scmp.lt.s32.totalorder %s33, 11
          %s469 = scalar_select %p468, %s33, 11
          %s470 = smul.addr %s469, 64
          %s471 = smul.addr %s470, 4
          %s472 = scalar_lea.vmem %s8, %s471
        $region68: #{gpt_forward.1} parent=43 // pred_fallthru
          _
      $region44: #{gpt_forward.1} parent=5 // pred_fallthru
        _
      %p473 = scmp.le.s32.totalorder 1, %s33
      %p474 = scmp.lt.s32.totalorder %s33, 13
      %p475 = pnand %p473, %p474
      %p476 = pneg %p475
      // Predicated region
      $region69: #{gpt_forward.1} parent=5 // pred_check
        _
      $region70: #{gpt_forward.1} parent=5 // pred_check_branch
        %478 = sbr.rel (%p475) target = $region72
      $region71: #{gpt_forward.1} parent=5 // pred_region
        %s479 = ssub.s32 %s33, 1
        // Predicated region
        $region73: #{gpt_forward.1} parent=71 // pred_check
          %p480 = pneg %p319
        $region74: #{gpt_forward.1} parent=71 // pred_check_branch
          %482 = sbr.rel (%p480) target = $region76
        $region75: #{gpt_forward.1} parent=71 // pred_region
          %483 = dma.done [#allocation9], 256
        $region76: #{gpt_forward.1} parent=71 // pred_fallthru
          _
        // Predicated region
        $region77: #{gpt_forward.1} parent=71 // pred_check
          %p484 = pneg %p340
        $region78: #{gpt_forward.1} parent=71 // pred_check_branch
          %486 = sbr.rel (%p484) target = $region80
        $region79: #{gpt_forward.1} parent=71 // pred_region
          %487 = dma.done [#allocation11], 256
        $region80: #{gpt_forward.1} parent=71 // pred_fallthru
          _
        %488 = sfence
        %p489 = pneg %p54
        %p490 = pneg %p51
        %s491 = sld [smem:[#allocation6 + %s38]]
        %p492 = scmp.lt.s32.totalorder %s491, 2
        %s493 = scalar_select %p492, %s491, 2
        %s494 = smul.addr %s493, 32
        %s495 = smul.addr %s494, 8
        %s496 = scalar_lea.vmem %s3, %s495
        %p497 = pneg %p82
        %p498 = pneg %p79
        %s499 = sld [smem:[#allocation7 + %s38]]
        %p500 = scmp.lt.s32.totalorder %s499, 1
        %s501 = scalar_select %p500, %s499, 1
        %s502 = smul.addr %s501, 64
        %s503 = smul.addr %s502, 8
        %s504 = scalar_lea.vmem %s4, %s503
        %p505 = pneg %p110
        %p506 = pneg %p107
        %p507 = scmp.lt.s32.totalorder %s38, 11
        %s508 = scalar_select %p507, %s38, 11
        %s509 = smul.addr %s508, 48
        %s510 = smul.addr %s509, 4
        %s511 = scalar_lea.vmem %s5, %s510
        %p512 = pneg %p136
        %p513 = pneg %p133
        %p514 = scmp.lt.s32.totalorder %s38, 11
        %s515 = scalar_select %p514, %s38, 11
        %s516 = smul.addr %s515, 16
        %s517 = smul.addr %s516, 4
        %s518 = scalar_lea.vmem %s6, %s517
        %p519 = pneg %p162
        %p520 = pneg %p159
        %p521 = scmp.lt.s32.totalorder %s38, 11
        %s522 = scalar_select %p521, %s38, 11
        %s523 = smul.addr %s522, 64
        %s524 = smul.addr %s523, 4
        %s525 = scalar_lea.vmem %s7, %s524
        %p526 = pneg %p188
        %p527 = pneg %p185
        %p528 = scmp.lt.s32.totalorder %s38, 11
        %s529 = scalar_select %p528, %s38, 11
        %s530 = smul.addr %s529, 64
        %s531 = smul.addr %s530, 4
        %s532 = scalar_lea.vmem %s8, %s531
        %p533 = pneg %p214
        %p534 = pneg %p211
        %p535 = pneg %p235
        %p536 = pneg %p232
        %p537 = pneg %p256
        %p538 = pneg %p253
        %p539 = pneg %p277
        %p540 = pneg %p274
        %p541 = pneg %p298
        %p542 = pneg %p295
        %p543 = pneg %p319
        %p544 = pneg %p316
        %p545 = pneg %p340
        %p546 = pneg %p337
        %p547 = pneg %p361
        %p548 = pneg %p358
        %s549 = sld [smem:[#allocation6 + %s38]]
        %p550 = scmp.lt.s32.totalorder %s549, 2
        %s551 = scalar_select %p550, %s549, 2
        %s552 = smul.addr %s551, 32
        %s553 = smul.addr %s552, 8
        %s554 = scalar_lea.vmem %s3, %s553
        %s555 = sld [smem:[#allocation6 + %s38]]
        %s556 = sld [smem:[#allocation7 + %s38]]
        %p557 = scmp.lt.s32.totalorder %s556, 1
        %s558 = scalar_select %p557, %s556, 1
        %s559 = smul.addr %s558, 64
        %s560 = smul.addr %s559, 8
        %s561 = scalar_lea.vmem %s4, %s560
        %s562 = sld [smem:[#allocation7 + %s38]]
        %p563 = scmp.lt.s32.totalorder %s38, 11
        %s564 = scalar_select %p563, %s38, 11
        %s565 = smul.addr %s564, 48
        %s566 = smul.addr %s565, 4
        %s567 = scalar_lea.vmem %s5, %s566
        %p568 = scmp.lt.s32.totalorder %s38, 11
        %s569 = scalar_select %p568, %s38, 11
        %s570 = smul.addr %s569, 16
        %s571 = smul.addr %s570, 4
        %s572 = scalar_lea.vmem %s6, %s571
        %p573 = scmp.lt.s32.totalorder %s38, 11
        %s574 = scalar_select %p573, %s38, 11
        %s575 = smul.addr %s574, 64
        %s576 = smul.addr %s575, 4
        %s577 = scalar_lea.vmem %s7, %s576
        %p578 = scmp.lt.s32.totalorder %s38, 11
        %s579 = scalar_select %p578, %s38, 11
        %s580 = smul.addr %s579, 64
        %s581 = smul.addr %s580, 4
        %s582 = scalar_lea.vmem %s8, %s581
        %p584 = scmp.eq.s32.totalorder %s38, 0
        // Predicated region
        $region81: #{gpt_forward.1} parent=71 // pred_check
          %p585 = pneg %p584
        $region82: #{gpt_forward.1} parent=71 // pred_check_branch
          %587 = sbr.rel (%p585) target = $region84
        $region83: #{gpt_forward.1} parent=71 // pred_region
          %v588 = vld [vmem:[%s2] sm:$0xff]
          %v589 = vld [vmem:[%s2 + $0x8] sm:$0xff]
          %v590 = vld [vmem:[%s2 + $0x10] sm:$0xff]
          %v591 = vld [vmem:[%s2 + $0x18] sm:$0xff]
          %v592 = vld [vmem:[%s2 + $0x20] sm:$0xff]
          %v593 = vld [vmem:[%s2 + $0x28] sm:$0xff]
          %v594 = vld [vmem:[%s2 + $0x30] sm:$0xff]
          %v595 = vld [vmem:[%s2 + $0x38] sm:$0xff]
          %v596 = vld [vmem:[%s2 + $0x40] sm:$0xff]
          %v597 = vld [vmem:[%s2 + $0x48] sm:$0xff]
          %v598 = vld [vmem:[%s2 + $0x50] sm:$0xff]
          %v599 = vld [vmem:[%s2 + $0x58] sm:$0xff]
          %v600 = vld [vmem:[%s2 + $0x60] sm:$0xff]
          %v601 = vld [vmem:[%s2 + $0x68] sm:$0xff]
          %v602 = vld [vmem:[%s2 + $0x70] sm:$0xff]
          %v603 = vld [vmem:[%s2 + $0x78] sm:$0xff]
          %v604 = vld [vmem:[%s2 + $0x80] sm:$0xff]
          %v605 = vld [vmem:[%s2 + $0x88] sm:$0xff]
          %v606 = vld [vmem:[%s2 + $0x90] sm:$0xff]
          %v607 = vld [vmem:[%s2 + $0x98] sm:$0xff]
          %v608 = vld [vmem:[%s2 + $0xa0] sm:$0xff]
          %v609 = vld [vmem:[%s2 + $0xa8] sm:$0xff]
          %v610 = vld [vmem:[%s2 + $0xb0] sm:$0xff]
          %v611 = vld [vmem:[%s2 + $0xb8] sm:$0xff]
          %v612 = vld [vmem:[%s2 + $0xc0] sm:$0xff]
          %v613 = vld [vmem:[%s2 + $0xc8] sm:$0xff]
          %v614 = vld [vmem:[%s2 + $0xd0] sm:$0xff]
          %v615 = vld [vmem:[%s2 + $0xd8] sm:$0xff]
          %v616 = vld [vmem:[%s2 + $0xe0] sm:$0xff]
          %v617 = vld [vmem:[%s2 + $0xe8] sm:$0xff]
          %v618 = vld [vmem:[%s2 + $0xf0] sm:$0xff]
          %v619 = vld [vmem:[%s2 + $0xf8] sm:$0xff]
          %v620 = vmul.f32 %v588, %v588
          %v621 = vmul.f32 %v589, %v589
          %v622 = vmul.f32 %v590, %v590
          %v623 = vmul.f32 %v591, %v591
          %v624 = vmul.f32 %v592, %v592
          %v625 = vmul.f32 %v593, %v593
          %v626 = vmul.f32 %v594, %v594
          %v627 = vmul.f32 %v595, %v595
          %v628 = vmul.f32 %v596, %v596
          %v629 = vmul.f32 %v597, %v597
          %v630 = vmul.f32 %v598, %v598
          %v631 = vmul.f32 %v599, %v599
          %v632 = vmul.f32 %v600, %v600
          %v633 = vmul.f32 %v601, %v601
          %v634 = vmul.f32 %v602, %v602
          %v635 = vmul.f32 %v603, %v603
          %v636 = vmul.f32 %v604, %v604
          %v637 = vmul.f32 %v605, %v605
          %v638 = vmul.f32 %v606, %v606
          %v639 = vmul.f32 %v607, %v607
          %v640 = vmul.f32 %v608, %v608
          %v641 = vmul.f32 %v609, %v609
          %v642 = vmul.f32 %v610, %v610
          %v643 = vmul.f32 %v611, %v611
          %v644 = vmul.f32 %v612, %v612
          %v645 = vmul.f32 %v613, %v613
          %v646 = vmul.f32 %v614, %v614
          %v647 = vmul.f32 %v615, %v615
          %v648 = vmul.f32 %v616, %v616
          %v649 = vmul.f32 %v617, %v617
          %v650 = vmul.f32 %v618, %v618
          %v651 = vmul.f32 %v619, %v619
          %652 = vadd.xlane.f32.xlu0 %v620
          %v653 = vpop.xlane.xlu0 %652
          %654 = vadd.xlane.f32.xlu0 %v621
          %v655 = vpop.xlane.xlu0 %654
          %656 = vadd.xlane.f32.xlu0 %v622
          %v657 = vpop.xlane.xlu0 %656
          %658 = vadd.xlane.f32.xlu0 %v623
          %v659 = vpop.xlane.xlu0 %658
          %660 = vadd.xlane.f32.xlu0 %v624
          %v661 = vpop.xlane.xlu0 %660
          %662 = vadd.xlane.f32.xlu0 %v625
          %v663 = vpop.xlane.xlu0 %662
          %664 = vadd.xlane.f32.xlu0 %v626
          %v665 = vpop.xlane.xlu0 %664
          %666 = vadd.xlane.f32.xlu0 %v627
          %v667 = vpop.xlane.xlu0 %666
          %668 = vadd.xlane.f32.xlu0 %v628
          %v669 = vpop.xlane.xlu0 %668
          %670 = vadd.xlane.f32.xlu0 %v629
          %v671 = vpop.xlane.xlu0 %670
          %672 = vadd.xlane.f32.xlu0 %v630
          %v673 = vpop.xlane.xlu0 %672
          %674 = vadd.xlane.f32.xlu0 %v631
          %v675 = vpop.xlane.xlu0 %674
          %676 = vadd.xlane.f32.xlu0 %v632
          %v677 = vpop.xlane.xlu0 %676
          %678 = vadd.xlane.f32.xlu0 %v633
          %v679 = vpop.xlane.xlu0 %678
          %680 = vadd.xlane.f32.xlu0 %v634
          %v681 = vpop.xlane.xlu0 %680
          %682 = vadd.xlane.f32.xlu0 %v635
          %v683 = vpop.xlane.xlu0 %682
          %684 = vadd.xlane.f32.xlu0 %v636
          %v685 = vpop.xlane.xlu0 %684
          %686 = vadd.xlane.f32.xlu0 %v637
          %v687 = vpop.xlane.xlu0 %686
          %688 = vadd.xlane.f32.xlu0 %v638
          %v689 = vpop.xlane.xlu0 %688
          %690 = vadd.xlane.f32.xlu0 %v639
          %v691 = vpop.xlane.xlu0 %690
          %692 = vadd.xlane.f32.xlu0 %v640
          %v693 = vpop.xlane.xlu0 %692
          %694 = vadd.xlane.f32.xlu0 %v641
          %v695 = vpop.xlane.xlu0 %694
          %696 = vadd.xlane.f32.xlu0 %v642
          %v697 = vpop.xlane.xlu0 %696
          %698 = vadd.xlane.f32.xlu0 %v643
          %v699 = vpop.xlane.xlu0 %698
          %700 = vadd.xlane.f32.xlu0 %v644
          %v701 = vpop.xlane.xlu0 %700
          %702 = vadd.xlane.f32.xlu0 %v645
          %v703 = vpop.xlane.xlu0 %702
          %704 = vadd.xlane.f32.xlu0 %v646
          %v705 = vpop.xlane.xlu0 %704
          %706 = vadd.xlane.f32.xlu0 %v647
          %v707 = vpop.xlane.xlu0 %706
          %708 = vadd.xlane.f32.xlu0 %v648
          %v709 = vpop.xlane.xlu0 %708
          %710 = vadd.xlane.f32.xlu0 %v649
          %v711 = vpop.xlane.xlu0 %710
          %712 = vadd.xlane.f32.xlu0 %v650
          %v713 = vpop.xlane.xlu0 %712
          %714 = vadd.xlane.f32.xlu0 %v651
          %v715 = vpop.xlane.xlu0 %714
          %v716 = vrcp.pop 128.0
          %v717 = vmul.f32 %v653, %v716
          %v718 = vmul.f32 %v655, %v716
          %v719 = vmul.f32 %v657, %v716
          %v720 = vmul.f32 %v659, %v716
          %v721 = vmul.f32 %v661, %v716
          %v722 = vmul.f32 %v663, %v716
          %v723 = vmul.f32 %v665, %v716
          %v724 = vmul.f32 %v667, %v716
          %v725 = vmul.f32 %v669, %v716
          %v726 = vmul.f32 %v671, %v716
          %v727 = vmul.f32 %v673, %v716
          %v728 = vmul.f32 %v675, %v716
          %v729 = vmul.f32 %v677, %v716
          %v730 = vmul.f32 %v679, %v716
          %v731 = vmul.f32 %v681, %v716
          %v732 = vmul.f32 %v683, %v716
          %v733 = vmul.f32 %v685, %v716
          %v734 = vmul.f32 %v687, %v716
          %v735 = vmul.f32 %v689, %v716
          %v736 = vmul.f32 %v691, %v716
          %v737 = vmul.f32 %v693, %v716
          %v738 = vmul.f32 %v695, %v716
          %v739 = vmul.f32 %v697, %v716
          %v740 = vmul.f32 %v699, %v716
          %v741 = vmul.f32 %v701, %v716
          %v742 = vmul.f32 %v703, %v716
          %v743 = vmul.f32 %v705, %v716
          %v744 = vmul.f32 %v707, %v716
          %v745 = vmul.f32 %v709, %v716
          %v746 = vmul.f32 %v711, %v716
          %v747 = vmul.f32 %v713, %v716
          %v748 = vmul.f32 %v715, %v716
          %v749 = vadd.f32 %v717, 1.1920929e-07
          %v750 = vadd.f32 %v718, 1.1920929e-07
          %v751 = vadd.f32 %v719, 1.1920929e-07
          %v752 = vadd.f32 %v720, 1.1920929e-07
          %v753 = vadd.f32 %v721, 1.1920929e-07
          %v754 = vadd.f32 %v722, 1.1920929e-07
          %v755 = vadd.f32 %v723, 1.1920929e-07
          %v756 = vadd.f32 %v724, 1.1920929e-07
          %v757 = vadd.f32 %v725, 1.1920929e-07
          %v758 = vadd.f32 %v726, 1.1920929e-07
          %v759 = vadd.f32 %v727, 1.1920929e-07
          %v760 = vadd.f32 %v728, 1.1920929e-07
          %v761 = vadd.f32 %v729, 1.1920929e-07
          %v762 = vadd.f32 %v730, 1.1920929e-07
          %v763 = vadd.f32 %v731, 1.1920929e-07
          %v764 = vadd.f32 %v732, 1.1920929e-07
          %v765 = vadd.f32 %v733, 1.1920929e-07
          %v766 = vadd.f32 %v734, 1.1920929e-07
          %v767 = vadd.f32 %v735, 1.1920929e-07
          %v768 = vadd.f32 %v736, 1.1920929e-07
          %v769 = vadd.f32 %v737, 1.1920929e-07
          %v770 = vadd.f32 %v738, 1.1920929e-07
          %v771 = vadd.f32 %v739, 1.1920929e-07
          %v772 = vadd.f32 %v740, 1.1920929e-07
          %v773 = vadd.f32 %v741, 1.1920929e-07
          %v774 = vadd.f32 %v742, 1.1920929e-07
          %v775 = vadd.f32 %v743, 1.1920929e-07
          %v776 = vadd.f32 %v744, 1.1920929e-07
          %v777 = vadd.f32 %v745, 1.1920929e-07
          %v778 = vadd.f32 %v746, 1.1920929e-07
          %v779 = vadd.f32 %v747, 1.1920929e-07
          %v780 = vadd.f32 %v748, 1.1920929e-07
          %v781 = vrsqrt.pop %v749
          %v782 = vrsqrt.pop %v750
          %v783 = vrsqrt.pop %v751
          %v784 = vrsqrt.pop %v752
          %v785 = vrsqrt.pop %v753
          %v786 = vrsqrt.pop %v754
          %v787 = vrsqrt.pop %v755
          %v788 = vrsqrt.pop %v756
          %v789 = vrsqrt.pop %v757
          %v790 = vrsqrt.pop %v758
          %v791 = vrsqrt.pop %v759
          %v792 = vrsqrt.pop %v760
          %v793 = vrsqrt.pop %v761
          %v794 = vrsqrt.pop %v762
          %v795 = vrsqrt.pop %v763
          %v796 = vrsqrt.pop %v764
          %v797 = vrsqrt.pop %v765
          %v798 = vrsqrt.pop %v766
          %v799 = vrsqrt.pop %v767
          %v800 = vrsqrt.pop %v768
          %v801 = vrsqrt.pop %v769
          %v802 = vrsqrt.pop %v770
          %v803 = vrsqrt.pop %v771
          %v804 = vrsqrt.pop %v772
          %v805 = vrsqrt.pop %v773
          %v806 = vrsqrt.pop %v774
          %v807 = vrsqrt.pop %v775
          %v808 = vrsqrt.pop %v776
          %v809 = vrsqrt.pop %v777
          %v810 = vrsqrt.pop %v778
          %v811 = vrsqrt.pop %v779
          %v812 = vrsqrt.pop %v780
          %v813 = vmul.f32 %v588, %v781
          %v814 = vmul.f32 %v589, %v782
          %v815 = vmul.f32 %v590, %v783
          %v816 = vmul.f32 %v591, %v784
          %v817 = vmul.f32 %v592, %v785
          %v818 = vmul.f32 %v593, %v786
          %v819 = vmul.f32 %v594, %v787
          %v820 = vmul.f32 %v595, %v788
          %v821 = vmul.f32 %v596, %v789
          %v822 = vmul.f32 %v597, %v790
          %v823 = vmul.f32 %v598, %v791
          %v824 = vmul.f32 %v599, %v792
          %v825 = vmul.f32 %v600, %v793
          %v826 = vmul.f32 %v601, %v794
          %v827 = vmul.f32 %v602, %v795
          %v828 = vmul.f32 %v603, %v796
          %v829 = vmul.f32 %v604, %v797
          %v830 = vmul.f32 %v605, %v798
          %v831 = vmul.f32 %v606, %v799
          %v832 = vmul.f32 %v607, %v800
          %v833 = vmul.f32 %v608, %v801
          %v834 = vmul.f32 %v609, %v802
          %v835 = vmul.f32 %v610, %v803
          %v836 = vmul.f32 %v611, %v804
          %v837 = vmul.f32 %v612, %v805
          %v838 = vmul.f32 %v613, %v806
          %v839 = vmul.f32 %v614, %v807
          %v840 = vmul.f32 %v615, %v808
          %v841 = vmul.f32 %v616, %v809
          %v842 = vmul.f32 %v617, %v810
          %v843 = vmul.f32 %v618, %v811
          %v844 = vmul.f32 %v619, %v812
          %845 = vst [vmem:[#allocation3] sm:$0xff] %v813
          %846 = vst [vmem:[#allocation3 + $0x8] sm:$0xff] %v814
          %847 = vst [vmem:[#allocation3 + $0x10] sm:$0xff] %v815
          %848 = vst [vmem:[#allocation3 + $0x18] sm:$0xff] %v816
          %849 = vst [vmem:[#allocation3 + $0x20] sm:$0xff] %v817
          %850 = vst [vmem:[#allocation3 + $0x28] sm:$0xff] %v818
          %851 = vst [vmem:[#allocation3 + $0x30] sm:$0xff] %v819
          %852 = vst [vmem:[#allocation3 + $0x38] sm:$0xff] %v820
          %853 = vst [vmem:[#allocation3 + $0x40] sm:$0xff] %v821
          %854 = vst [vmem:[#allocation3 + $0x48] sm:$0xff] %v822
          %855 = vst [vmem:[#allocation3 + $0x50] sm:$0xff] %v823
          %856 = vst [vmem:[#allocation3 + $0x58] sm:$0xff] %v824
          %857 = vst [vmem:[#allocation3 + $0x60] sm:$0xff] %v825
          %858 = vst [vmem:[#allocation3 + $0x68] sm:$0xff] %v826
          %859 = vst [vmem:[#allocation3 + $0x70] sm:$0xff] %v827
          %860 = vst [vmem:[#allocation3 + $0x78] sm:$0xff] %v828
          %861 = vst [vmem:[#allocation3 + $0x80] sm:$0xff] %v829
          %862 = vst [vmem:[#allocation3 + $0x88] sm:$0xff] %v830
          %863 = vst [vmem:[#allocation3 + $0x90] sm:$0xff] %v831
          %864 = vst [vmem:[#allocation3 + $0x98] sm:$0xff] %v832
          %865 = vst [vmem:[#allocation3 + $0xa0] sm:$0xff] %v833
          %866 = vst [vmem:[#allocation3 + $0xa8] sm:$0xff] %v834
          %867 = vst [vmem:[#allocation3 + $0xb0] sm:$0xff] %v835
          %868 = vst [vmem:[#allocation3 + $0xb8] sm:$0xff] %v836
          %869 = vst [vmem:[#allocation3 + $0xc0] sm:$0xff] %v837
          %870 = vst [vmem:[#allocation3 + $0xc8] sm:$0xff] %v838
          %871 = vst [vmem:[#allocation3 + $0xd0] sm:$0xff] %v839
          %872 = vst [vmem:[#allocation3 + $0xd8] sm:$0xff] %v840
          %873 = vst [vmem:[#allocation3 + $0xe0] sm:$0xff] %v841
          %874 = vst [vmem:[#allocation3 + $0xe8] sm:$0xff] %v842
          %875 = vst [vmem:[#allocation3 + $0xf0] sm:$0xff] %v843
          %876 = vst [vmem:[#allocation3 + $0xf8] sm:$0xff] %v844
          %877 = vst [vmem:[#allocation2] sm:$0xff] %v813
          %878 = vst [vmem:[#allocation2 + $0x8] sm:$0xff] %v814
          %879 = vst [vmem:[#allocation2 + $0x10] sm:$0xff] %v815
          %880 = vst [vmem:[#allocation2 + $0x18] sm:$0xff] %v816
          %881 = vst [vmem:[#allocation2 + $0x20] sm:$0xff] %v817
          %882 = vst [vmem:[#allocation2 + $0x28] sm:$0xff] %v818
          %883 = vst [vmem:[#allocation2 + $0x30] sm:$0xff] %v819
          %884 = vst [vmem:[#allocation2 + $0x38] sm:$0xff] %v820
          %885 = vst [vmem:[#allocation2 + $0x40] sm:$0xff] %v821
          %886 = vst [vmem:[#allocation2 + $0x48] sm:$0xff] %v822
          %887 = vst [vmem:[#allocation2 + $0x50] sm:$0xff] %v823
          %888 = vst [vmem:[#allocation2 + $0x58] sm:$0xff] %v824
          %889 = vst [vmem:[#allocation2 + $0x60] sm:$0xff] %v825
          %890 = vst [vmem:[#allocation2 + $0x68] sm:$0xff] %v826
          %891 = vst [vmem:[#allocation2 + $0x70] sm:$0xff] %v827
          %892 = vst [vmem:[#allocation2 + $0x78] sm:$0xff] %v828
          %893 = vst [vmem:[#allocation2 + $0x80] sm:$0xff] %v829
          %894 = vst [vmem:[#allocation2 + $0x88] sm:$0xff] %v830
          %895 = vst [vmem:[#allocation2 + $0x90] sm:$0xff] %v831
          %896 = vst [vmem:[#allocation2 + $0x98] sm:$0xff] %v832
          %897 = vst [vmem:[#allocation2 + $0xa0] sm:$0xff] %v833
          %898 = vst [vmem:[#allocation2 + $0xa8] sm:$0xff] %v834
          %899 = vst [vmem:[#allocation2 + $0xb0] sm:$0xff] %v835
          %900 = vst [vmem:[#allocation2 + $0xb8] sm:$0xff] %v836
          %901 = vst [vmem:[#allocation2 + $0xc0] sm:$0xff] %v837
          %902 = vst [vmem:[#allocation2 + $0xc8] sm:$0xff] %v838
          %903 = vst [vmem:[#allocation2 + $0xd0] sm:$0xff] %v839
          %904 = vst [vmem:[#allocation2 + $0xd8] sm:$0xff] %v840
          %905 = vst [vmem:[#allocation2 + $0xe0] sm:$0xff] %v841
          %906 = vst [vmem:[#allocation2 + $0xe8] sm:$0xff] %v842
          %907 = vst [vmem:[#allocation2 + $0xf0] sm:$0xff] %v843
          %908 = vst [vmem:[#allocation2 + $0xf8] sm:$0xff] %v844
          %909 = vst [vmem:[#allocation4] sm:$0xff] 0.0
          %910 = vst [vmem:[#allocation4 + $0x8] sm:$0xff] 0.0
          %911 = vst [vmem:[#allocation4 + $0x10] sm:$0xff] 0.0
          %912 = vst [vmem:[#allocation4 + $0x18] sm:$0xff] 0.0
          %913 = vst [vmem:[#allocation4 + $0x20] sm:$0xff] 0.0
          %914 = vst [vmem:[#allocation4 + $0x28] sm:$0xff] 0.0
          %915 = vst [vmem:[#allocation4 + $0x30] sm:$0xff] 0.0
          %916 = vst [vmem:[#allocation4 + $0x38] sm:$0xff] 0.0
          %917 = vst [vmem:[#allocation4 + $0x40] sm:$0xff] 0.0
          %918 = vst [vmem:[#allocation4 + $0x48] sm:$0xff] 0.0
          %919 = vst [vmem:[#allocation4 + $0x50] sm:$0xff] 0.0
          %920 = vst [vmem:[#allocation4 + $0x58] sm:$0xff] 0.0
          %921 = vst [vmem:[#allocation4 + $0x60] sm:$0xff] 0.0
          %922 = vst [vmem:[#allocation4 + $0x68] sm:$0xff] 0.0
          %923 = vst [vmem:[#allocation4 + $0x70] sm:$0xff] 0.0
          %924 = vst [vmem:[#allocation4 + $0x78] sm:$0xff] 0.0
          %925 = vst [vmem:[#allocation4 + $0x80] sm:$0xff] 0.0
          %926 = vst [vmem:[#allocation4 + $0x88] sm:$0xff] 0.0
          %927 = vst [vmem:[#allocation4 + $0x90] sm:$0xff] 0.0
          %928 = vst [vmem:[#allocation4 + $0x98] sm:$0xff] 0.0
          %929 = vst [vmem:[#allocation4 + $0xa0] sm:$0xff] 0.0
          %930 = vst [vmem:[#allocation4 + $0xa8] sm:$0xff] 0.0
          %931 = vst [vmem:[#allocation4 + $0xb0] sm:$0xff] 0.0
          %932 = vst [vmem:[#allocation4 + $0xb8] sm:$0xff] 0.0
          %933 = vst [vmem:[#allocation4 + $0xc0] sm:$0xff] 0.0
          %934 = vst [vmem:[#allocation4 + $0xc8] sm:$0xff] 0.0
          %935 = vst [vmem:[#allocation4 + $0xd0] sm:$0xff] 0.0
          %936 = vst [vmem:[#allocation4 + $0xd8] sm:$0xff] 0.0
          %937 = vst [vmem:[#allocation4 + $0xe0] sm:$0xff] 0.0
          %938 = vst [vmem:[#allocation4 + $0xe8] sm:$0xff] 0.0
          %939 = vst [vmem:[#allocation4 + $0xf0] sm:$0xff] 0.0
          %940 = vst [vmem:[#allocation4 + $0xf8] sm:$0xff] 0.0
          %941 = vst [vmem:[#allocation4 + $0x100] sm:$0xff] 0.0
          %942 = vst [vmem:[#allocation4 + $0x108] sm:$0xff] 0.0
          %943 = vst [vmem:[#allocation4 + $0x110] sm:$0xff] 0.0
          %944 = vst [vmem:[#allocation4 + $0x118] sm:$0xff] 0.0
          %945 = vst [vmem:[#allocation4 + $0x120] sm:$0xff] 0.0
          %946 = vst [vmem:[#allocation4 + $0x128] sm:$0xff] 0.0
          %947 = vst [vmem:[#allocation4 + $0x130] sm:$0xff] 0.0
          %948 = vst [vmem:[#allocation4 + $0x138] sm:$0xff] 0.0
          %949 = vst [vmem:[#allocation4 + $0x140] sm:$0xff] 0.0
          %950 = vst [vmem:[#allocation4 + $0x148] sm:$0xff] 0.0
          %951 = vst [vmem:[#allocation4 + $0x150] sm:$0xff] 0.0
          %952 = vst [vmem:[#allocation4 + $0x158] sm:$0xff] 0.0
          %953 = vst [vmem:[#allocation4 + $0x160] sm:$0xff] 0.0
          %954 = vst [vmem:[#allocation4 + $0x168] sm:$0xff] 0.0
          %955 = vst [vmem:[#allocation4 + $0x170] sm:$0xff] 0.0
          %956 = vst [vmem:[#allocation4 + $0x178] sm:$0xff] 0.0
          %957 = vst [vmem:[#allocation4 + $0x180] sm:$0xff] 0.0
          %958 = vst [vmem:[#allocation4 + $0x188] sm:$0xff] 0.0
          %959 = vst [vmem:[#allocation4 + $0x190] sm:$0xff] 0.0
          %960 = vst [vmem:[#allocation4 + $0x198] sm:$0xff] 0.0
          %961 = vst [vmem:[#allocation4 + $0x1a0] sm:$0xff] 0.0
          %962 = vst [vmem:[#allocation4 + $0x1a8] sm:$0xff] 0.0
          %963 = vst [vmem:[#allocation4 + $0x1b0] sm:$0xff] 0.0
          %964 = vst [vmem:[#allocation4 + $0x1b8] sm:$0xff] 0.0
          %965 = vst [vmem:[#allocation4 + $0x1c0] sm:$0xff] 0.0
          %966 = vst [vmem:[#allocation4 + $0x1c8] sm:$0xff] 0.0
          %967 = vst [vmem:[#allocation4 + $0x1d0] sm:$0xff] 0.0
          %968 = vst [vmem:[#allocation4 + $0x1d8] sm:$0xff] 0.0
          %969 = vst [vmem:[#allocation4 + $0x1e0] sm:$0xff] 0.0
          %970 = vst [vmem:[#allocation4 + $0x1e8] sm:$0xff] 0.0
          %971 = vst [vmem:[#allocation4 + $0x1f0] sm:$0xff] 0.0
          %972 = vst [vmem:[#allocation4 + $0x1f8] sm:$0xff] 0.0
          %973 = vst [vmem:[#allocation4 + $0x200] sm:$0xff] 0.0
          %974 = vst [vmem:[#allocation4 + $0x208] sm:$0xff] 0.0
          %975 = vst [vmem:[#allocation4 + $0x210] sm:$0xff] 0.0
          %976 = vst [vmem:[#allocation4 + $0x218] sm:$0xff] 0.0
          %977 = vst [vmem:[#allocation4 + $0x220] sm:$0xff] 0.0
          %978 = vst [vmem:[#allocation4 + $0x228] sm:$0xff] 0.0
          %979 = vst [vmem:[#allocation4 + $0x230] sm:$0xff] 0.0
          %980 = vst [vmem:[#allocation4 + $0x238] sm:$0xff] 0.0
          %981 = vst [vmem:[#allocation4 + $0x240] sm:$0xff] 0.0
          %982 = vst [vmem:[#allocation4 + $0x248] sm:$0xff] 0.0
          %983 = vst [vmem:[#allocation4 + $0x250] sm:$0xff] 0.0
          %984 = vst [vmem:[#allocation4 + $0x258] sm:$0xff] 0.0
          %985 = vst [vmem:[#allocation4 + $0x260] sm:$0xff] 0.0
          %986 = vst [vmem:[#allocation4 + $0x268] sm:$0xff] 0.0
          %987 = vst [vmem:[#allocation4 + $0x270] sm:$0xff] 0.0
          %988 = vst [vmem:[#allocation4 + $0x278] sm:$0xff] 0.0
          %989 = vst [vmem:[#allocation4 + $0x280] sm:$0xff] 0.0
          %990 = vst [vmem:[#allocation4 + $0x288] sm:$0xff] 0.0
          %991 = vst [vmem:[#allocation4 + $0x290] sm:$0xff] 0.0
          %992 = vst [vmem:[#allocation4 + $0x298] sm:$0xff] 0.0
          %993 = vst [vmem:[#allocation4 + $0x2a0] sm:$0xff] 0.0
          %994 = vst [vmem:[#allocation4 + $0x2a8] sm:$0xff] 0.0
          %995 = vst [vmem:[#allocation4 + $0x2b0] sm:$0xff] 0.0
          %996 = vst [vmem:[#allocation4 + $0x2b8] sm:$0xff] 0.0
          %997 = vst [vmem:[#allocation4 + $0x2c0] sm:$0xff] 0.0
          %998 = vst [vmem:[#allocation4 + $0x2c8] sm:$0xff] 0.0
          %999 = vst [vmem:[#allocation4 + $0x2d0] sm:$0xff] 0.0
          %1000 = vst [vmem:[#allocation4 + $0x2d8] sm:$0xff] 0.0
          %1001 = vst [vmem:[#allocation4 + $0x2e0] sm:$0xff] 0.0
          %1002 = vst [vmem:[#allocation4 + $0x2e8] sm:$0xff] 0.0
          %1003 = vst [vmem:[#allocation4 + $0x2f0] sm:$0xff] 0.0
          %1004 = vst [vmem:[#allocation4 + $0x2f8] sm:$0xff] 0.0
          %1005 = vst [vmem:[#allocation4 + $0x300] sm:$0xff] 0.0
          %1006 = vst [vmem:[#allocation4 + $0x308] sm:$0xff] 0.0
          %1007 = vst [vmem:[#allocation4 + $0x310] sm:$0xff] 0.0
          %1008 = vst [vmem:[#allocation4 + $0x318] sm:$0xff] 0.0
          %1009 = vst [vmem:[#allocation4 + $0x320] sm:$0xff] 0.0
          %1010 = vst [vmem:[#allocation4 + $0x328] sm:$0xff] 0.0
          %1011 = vst [vmem:[#allocation4 + $0x330] sm:$0xff] 0.0
          %1012 = vst [vmem:[#allocation4 + $0x338] sm:$0xff] 0.0
          %1013 = vst [vmem:[#allocation4 + $0x340] sm:$0xff] 0.0
          %1014 = vst [vmem:[#allocation4 + $0x348] sm:$0xff] 0.0
          %1015 = vst [vmem:[#allocation4 + $0x350] sm:$0xff] 0.0
          %1016 = vst [vmem:[#allocation4 + $0x358] sm:$0xff] 0.0
          %1017 = vst [vmem:[#allocation4 + $0x360] sm:$0xff] 0.0
          %1018 = vst [vmem:[#allocation4 + $0x368] sm:$0xff] 0.0
          %1019 = vst [vmem:[#allocation4 + $0x370] sm:$0xff] 0.0
          %1020 = vst [vmem:[#allocation4 + $0x378] sm:$0xff] 0.0
          %1021 = vst [vmem:[#allocation4 + $0x380] sm:$0xff] 0.0
          %1022 = vst [vmem:[#allocation4 + $0x388] sm:$0xff] 0.0
          %1023 = vst [vmem:[#allocation4 + $0x390] sm:$0xff] 0.0
          %1024 = vst [vmem:[#allocation4 + $0x398] sm:$0xff] 0.0
          %1025 = vst [vmem:[#allocation4 + $0x3a0] sm:$0xff] 0.0
          %1026 = vst [vmem:[#allocation4 + $0x3a8] sm:$0xff] 0.0
          %1027 = vst [vmem:[#allocation4 + $0x3b0] sm:$0xff] 0.0
          %1028 = vst [vmem:[#allocation4 + $0x3b8] sm:$0xff] 0.0
          %1029 = vst [vmem:[#allocation4 + $0x3c0] sm:$0xff] 0.0
          %1030 = vst [vmem:[#allocation4 + $0x3c8] sm:$0xff] 0.0
          %1031 = vst [vmem:[#allocation4 + $0x3d0] sm:$0xff] 0.0
          %1032 = vst [vmem:[#allocation4 + $0x3d8] sm:$0xff] 0.0
          %1033 = vst [vmem:[#allocation4 + $0x3e0] sm:$0xff] 0.0
          %1034 = vst [vmem:[#allocation4 + $0x3e8] sm:$0xff] 0.0
          %1035 = vst [vmem:[#allocation4 + $0x3f0] sm:$0xff] 0.0
          %1036 = vst [vmem:[#allocation4 + $0x3f8] sm:$0xff] 0.0
          %1037 = vst [vmem:[#allocation4 + $0x400] sm:$0xff] 0.0
          %1038 = vst [vmem:[#allocation4 + $0x408] sm:$0xff] 0.0
          %1039 = vst [vmem:[#allocation4 + $0x410] sm:$0xff] 0.0
          %1040 = vst [vmem:[#allocation4 + $0x418] sm:$0xff] 0.0
          %1041 = vst [vmem:[#allocation4 + $0x420] sm:$0xff] 0.0
          %1042 = vst [vmem:[#allocation4 + $0x428] sm:$0xff] 0.0
          %1043 = vst [vmem:[#allocation4 + $0x430] sm:$0xff] 0.0
          %1044 = vst [vmem:[#allocation4 + $0x438] sm:$0xff] 0.0
          %1045 = vst [vmem:[#allocation4 + $0x440] sm:$0xff] 0.0
          %1046 = vst [vmem:[#allocation4 + $0x448] sm:$0xff] 0.0
          %1047 = vst [vmem:[#allocation4 + $0x450] sm:$0xff] 0.0
          %1048 = vst [vmem:[#allocation4 + $0x458] sm:$0xff] 0.0
          %1049 = vst [vmem:[#allocation4 + $0x460] sm:$0xff] 0.0
          %1050 = vst [vmem:[#allocation4 + $0x468] sm:$0xff] 0.0
          %1051 = vst [vmem:[#allocation4 + $0x470] sm:$0xff] 0.0
          %1052 = vst [vmem:[#allocation4 + $0x478] sm:$0xff] 0.0
          %1053 = vst [vmem:[#allocation4 + $0x480] sm:$0xff] 0.0
          %1054 = vst [vmem:[#allocation4 + $0x488] sm:$0xff] 0.0
          %1055 = vst [vmem:[#allocation4 + $0x490] sm:$0xff] 0.0
          %1056 = vst [vmem:[#allocation4 + $0x498] sm:$0xff] 0.0
          %1057 = vst [vmem:[#allocation4 + $0x4a0] sm:$0xff] 0.0
          %1058 = vst [vmem:[#allocation4 + $0x4a8] sm:$0xff] 0.0
          %1059 = vst [vmem:[#allocation4 + $0x4b0] sm:$0xff] 0.0
          %1060 = vst [vmem:[#allocation4 + $0x4b8] sm:$0xff] 0.0
          %1061 = vst [vmem:[#allocation4 + $0x4c0] sm:$0xff] 0.0
          %1062 = vst [vmem:[#allocation4 + $0x4c8] sm:$0xff] 0.0
          %1063 = vst [vmem:[#allocation4 + $0x4d0] sm:$0xff] 0.0
          %1064 = vst [vmem:[#allocation4 + $0x4d8] sm:$0xff] 0.0
          %1065 = vst [vmem:[#allocation4 + $0x4e0] sm:$0xff] 0.0
          %1066 = vst [vmem:[#allocation4 + $0x4e8] sm:$0xff] 0.0
          %1067 = vst [vmem:[#allocation4 + $0x4f0] sm:$0xff] 0.0
          %1068 = vst [vmem:[#allocation4 + $0x4f8] sm:$0xff] 0.0
          %1069 = vst [vmem:[#allocation4 + $0x500] sm:$0xff] 0.0
          %1070 = vst [vmem:[#allocation4 + $0x508] sm:$0xff] 0.0
          %1071 = vst [vmem:[#allocation4 + $0x510] sm:$0xff] 0.0
          %1072 = vst [vmem:[#allocation4 + $0x518] sm:$0xff] 0.0
          %1073 = vst [vmem:[#allocation4 + $0x520] sm:$0xff] 0.0
          %1074 = vst [vmem:[#allocation4 + $0x528] sm:$0xff] 0.0
          %1075 = vst [vmem:[#allocation4 + $0x530] sm:$0xff] 0.0
          %1076 = vst [vmem:[#allocation4 + $0x538] sm:$0xff] 0.0
          %1077 = vst [vmem:[#allocation4 + $0x540] sm:$0xff] 0.0
          %1078 = vst [vmem:[#allocation4 + $0x548] sm:$0xff] 0.0
          %1079 = vst [vmem:[#allocation4 + $0x550] sm:$0xff] 0.0
          %1080 = vst [vmem:[#allocation4 + $0x558] sm:$0xff] 0.0
          %1081 = vst [vmem:[#allocation4 + $0x560] sm:$0xff] 0.0
          %1082 = vst [vmem:[#allocation4 + $0x568] sm:$0xff] 0.0
          %1083 = vst [vmem:[#allocation4 + $0x570] sm:$0xff] 0.0
          %1084 = vst [vmem:[#allocation4 + $0x578] sm:$0xff] 0.0
          %1085 = vst [vmem:[#allocation4 + $0x580] sm:$0xff] 0.0
          %1086 = vst [vmem:[#allocation4 + $0x588] sm:$0xff] 0.0
          %1087 = vst [vmem:[#allocation4 + $0x590] sm:$0xff] 0.0
          %1088 = vst [vmem:[#allocation4 + $0x598] sm:$0xff] 0.0
          %1089 = vst [vmem:[#allocation4 + $0x5a0] sm:$0xff] 0.0
          %1090 = vst [vmem:[#allocation4 + $0x5a8] sm:$0xff] 0.0
          %1091 = vst [vmem:[#allocation4 + $0x5b0] sm:$0xff] 0.0
          %1092 = vst [vmem:[#allocation4 + $0x5b8] sm:$0xff] 0.0
          %1093 = vst [vmem:[#allocation4 + $0x5c0] sm:$0xff] 0.0
          %1094 = vst [vmem:[#allocation4 + $0x5c8] sm:$0xff] 0.0
          %1095 = vst [vmem:[#allocation4 + $0x5d0] sm:$0xff] 0.0
          %1096 = vst [vmem:[#allocation4 + $0x5d8] sm:$0xff] 0.0
          %1097 = vst [vmem:[#allocation4 + $0x5e0] sm:$0xff] 0.0
          %1098 = vst [vmem:[#allocation4 + $0x5e8] sm:$0xff] 0.0
          %1099 = vst [vmem:[#allocation4 + $0x5f0] sm:$0xff] 0.0
          %1100 = vst [vmem:[#allocation4 + $0x5f8] sm:$0xff] 0.0
        $region84: #{gpt_forward.1} parent=71 // pred_fallthru
          _
        %s1101 = smul.u32 %s38, 128
        %s1102 = sld [smem:[#allocation8 + %s1101]]
        %s1103 = sadd.s32 %s1101, 1
        %s1104 = sld [smem:[#allocation8 + %s1103]]
        %s1105 = sadd.s32 %s1101, 2
        %s1106 = sld [smem:[#allocation8 + %s1105]]
        %s1107 = ssub.s32 11, %s38
        %p1108 = scmp.gt.s32.totalorder %s1107, 0
        %s1109 = scalar_select %p1108, %s1107, 0
        %p1110 = scmp.lt.s32.totalorder %s1109, 5
        %s1111 = scalar_select %p1110, %s1109, 5
        %v1112 = vld [vmem:[#allocation2] sm:$0xff]
        %v1113 = vld [vmem:[#allocation2 + $0x8] sm:$0xff]
        %v1114 = vld [vmem:[#allocation2 + $0x10] sm:$0xff]
        %v1115 = vld [vmem:[#allocation2 + $0x18] sm:$0xff]
        %v1116 = vld [vmem:[#allocation2 + $0x20] sm:$0xff]
        %v1117 = vld [vmem:[#allocation2 + $0x28] sm:$0xff]
        %v1118 = vld [vmem:[#allocation2 + $0x30] sm:$0xff]
        %v1119 = vld [vmem:[#allocation2 + $0x38] sm:$0xff]
        %v1120 = vld [vmem:[#allocation2 + $0x40] sm:$0xff]
        %v1121 = vld [vmem:[#allocation2 + $0x48] sm:$0xff]
        %v1122 = vld [vmem:[#allocation2 + $0x50] sm:$0xff]
        %v1123 = vld [vmem:[#allocation2 + $0x58] sm:$0xff]
        %v1124 = vld [vmem:[#allocation2 + $0x60] sm:$0xff]
        %v1125 = vld [vmem:[#allocation2 + $0x68] sm:$0xff]
        %v1126 = vld [vmem:[#allocation2 + $0x70] sm:$0xff]
        %v1127 = vld [vmem:[#allocation2 + $0x78] sm:$0xff]
        %v1128 = vld [vmem:[#allocation2 + $0x80] sm:$0xff]
        %v1129 = vld [vmem:[#allocation2 + $0x88] sm:$0xff]
        %v1130 = vld [vmem:[#allocation2 + $0x90] sm:$0xff]
        %v1131 = vld [vmem:[#allocation2 + $0x98] sm:$0xff]
        %v1132 = vld [vmem:[#allocation2 + $0xa0] sm:$0xff]
        %v1133 = vld [vmem:[#allocation2 + $0xa8] sm:$0xff]
        %v1134 = vld [vmem:[#allocation2 + $0xb0] sm:$0xff]
        %v1135 = vld [vmem:[#allocation2 + $0xb8] sm:$0xff]
        %v1136 = vld [vmem:[#allocation2 + $0xc0] sm:$0xff]
        %v1137 = vld [vmem:[#allocation2 + $0xc8] sm:$0xff]
        %v1138 = vld [vmem:[#allocation2 + $0xd0] sm:$0xff]
        %v1139 = vld [vmem:[#allocation2 + $0xd8] sm:$0xff]
        %v1140 = vld [vmem:[#allocation2 + $0xe0] sm:$0xff]
        %v1141 = vld [vmem:[#allocation2 + $0xe8] sm:$0xff]
        %v1142 = vld [vmem:[#allocation2 + $0xf0] sm:$0xff]
        %v1143 = vld [vmem:[#allocation2 + $0xf8] sm:$0xff]
        %v1144 = vstv %s1102
        %v1145 = vmul.f32 %v1144, %v1112
        %v1146 = vmul.f32 %v1144, %v1113
        %v1147 = vmul.f32 %v1144, %v1114
        %v1148 = vmul.f32 %v1144, %v1115
        %v1149 = vmul.f32 %v1144, %v1116
        %v1150 = vmul.f32 %v1144, %v1117
        %v1151 = vmul.f32 %v1144, %v1118
        %v1152 = vmul.f32 %v1144, %v1119
        %v1153 = vmul.f32 %v1144, %v1120
        %v1154 = vmul.f32 %v1144, %v1121
        %v1155 = vmul.f32 %v1144, %v1122
        %v1156 = vmul.f32 %v1144, %v1123
        %v1157 = vmul.f32 %v1144, %v1124
        %v1158 = vmul.f32 %v1144, %v1125
        %v1159 = vmul.f32 %v1144, %v1126
        %v1160 = vmul.f32 %v1144, %v1127
        %v1161 = vmul.f32 %v1144, %v1128
        %v1162 = vmul.f32 %v1144, %v1129
        %v1163 = vmul.f32 %v1144, %v1130
        %v1164 = vmul.f32 %v1144, %v1131
        %v1165 = vmul.f32 %v1144, %v1132
        %v1166 = vmul.f32 %v1144, %v1133
        %v1167 = vmul.f32 %v1144, %v1134
        %v1168 = vmul.f32 %v1144, %v1135
        %v1169 = vmul.f32 %v1144, %v1136
        %v1170 = vmul.f32 %v1144, %v1137
        %v1171 = vmul.f32 %v1144, %v1138
        %v1172 = vmul.f32 %v1144, %v1139
        %v1173 = vmul.f32 %v1144, %v1140
        %v1174 = vmul.f32 %v1144, %v1141
        %v1175 = vmul.f32 %v1144, %v1142
        %v1176 = vmul.f32 %v1144, %v1143
        %s1177 = smul.u32 %s1111, 256
        %s1178 = scalar_lea.vmem [#allocation4], %s1177
        %v1179 = vld [vmem:[%s1178] sm:$0xff]
        %v1180 = vld [vmem:[%s1178 + $0x8] sm:$0xff]
        %v1181 = vld [vmem:[%s1178 + $0x10] sm:$0xff]
        %v1182 = vld [vmem:[%s1178 + $0x18] sm:$0xff]
        %v1183 = vld [vmem:[%s1178 + $0x20] sm:$0xff]
        %v1184 = vld [vmem:[%s1178 + $0x28] sm:$0xff]
        %v1185 = vld [vmem:[%s1178 + $0x30] sm:$0xff]
        %v1186 = vld [vmem:[%s1178 + $0x38] sm:$0xff]
        %v1187 = vld [vmem:[%s1178 + $0x40] sm:$0xff]
        %v1188 = vld [vmem:[%s1178 + $0x48] sm:$0xff]
        %v1189 = vld [vmem:[%s1178 + $0x50] sm:$0xff]
        %v1190 = vld [vmem:[%s1178 + $0x58] sm:$0xff]
        %v1191 = vld [vmem:[%s1178 + $0x60] sm:$0xff]
        %v1192 = vld [vmem:[%s1178 + $0x68] sm:$0xff]
        %v1193 = vld [vmem:[%s1178 + $0x70] sm:$0xff]
        %v1194 = vld [vmem:[%s1178 + $0x78] sm:$0xff]
        %v1195 = vld [vmem:[%s1178 + $0x80] sm:$0xff]
        %v1196 = vld [vmem:[%s1178 + $0x88] sm:$0xff]
        %v1197 = vld [vmem:[%s1178 + $0x90] sm:$0xff]
        %v1198 = vld [vmem:[%s1178 + $0x98] sm:$0xff]
        %v1199 = vld [vmem:[%s1178 + $0xa0] sm:$0xff]
        %v1200 = vld [vmem:[%s1178 + $0xa8] sm:$0xff]
        %v1201 = vld [vmem:[%s1178 + $0xb0] sm:$0xff]
        %v1202 = vld [vmem:[%s1178 + $0xb8] sm:$0xff]
        %v1203 = vld [vmem:[%s1178 + $0xc0] sm:$0xff]
        %v1204 = vld [vmem:[%s1178 + $0xc8] sm:$0xff]
        %v1205 = vld [vmem:[%s1178 + $0xd0] sm:$0xff]
        %v1206 = vld [vmem:[%s1178 + $0xd8] sm:$0xff]
        %v1207 = vld [vmem:[%s1178 + $0xe0] sm:$0xff]
        %v1208 = vld [vmem:[%s1178 + $0xe8] sm:$0xff]
        %v1209 = vld [vmem:[%s1178 + $0xf0] sm:$0xff]
        %v1210 = vld [vmem:[%s1178 + $0xf8] sm:$0xff]
        %v1211 = vstv %s1104
        %v1212 = vmul.f32 %v1211, %v1179
        %v1213 = vmul.f32 %v1211, %v1180
        %v1214 = vmul.f32 %v1211, %v1181
        %v1215 = vmul.f32 %v1211, %v1182
        %v1216 = vmul.f32 %v1211, %v1183
        %v1217 = vmul.f32 %v1211, %v1184
        %v1218 = vmul.f32 %v1211, %v1185
        %v1219 = vmul.f32 %v1211, %v1186
        %v1220 = vmul.f32 %v1211, %v1187
        %v1221 = vmul.f32 %v1211, %v1188
        %v1222 = vmul.f32 %v1211, %v1189
        %v1223 = vmul.f32 %v1211, %v1190
        %v1224 = vmul.f32 %v1211, %v1191
        %v1225 = vmul.f32 %v1211, %v1192
        %v1226 = vmul.f32 %v1211, %v1193
        %v1227 = vmul.f32 %v1211, %v1194
        %v1228 = vmul.f32 %v1211, %v1195
        %v1229 = vmul.f32 %v1211, %v1196
        %v1230 = vmul.f32 %v1211, %v1197
        %v1231 = vmul.f32 %v1211, %v1198
        %v1232 = vmul.f32 %v1211, %v1199
        %v1233 = vmul.f32 %v1211, %v1200
        %v1234 = vmul.f32 %v1211, %v1201
        %v1235 = vmul.f32 %v1211, %v1202
        %v1236 = vmul.f32 %v1211, %v1203
        %v1237 = vmul.f32 %v1211, %v1204
        %v1238 = vmul.f32 %v1211, %v1205
        %v1239 = vmul.f32 %v1211, %v1206
        %v1240 = vmul.f32 %v1211, %v1207
        %v1241 = vmul.f32 %v1211, %v1208
        %v1242 = vmul.f32 %v1211, %v1209
        %v1243 = vmul.f32 %v1211, %v1210
        %v1244 = vadd.f32 %v1145, %v1212
        %v1245 = vadd.f32 %v1146, %v1213
        %v1246 = vadd.f32 %v1147, %v1214
        %v1247 = vadd.f32 %v1148, %v1215
        %v1248 = vadd.f32 %v1149, %v1216
        %v1249 = vadd.f32 %v1150, %v1217
        %v1250 = vadd.f32 %v1151, %v1218
        %v1251 = vadd.f32 %v1152, %v1219
        %v1252 = vadd.f32 %v1153, %v1220
        %v1253 = vadd.f32 %v1154, %v1221
        %v1254 = vadd.f32 %v1155, %v1222
        %v1255 = vadd.f32 %v1156, %v1223
        %v1256 = vadd.f32 %v1157, %v1224
        %v1257 = vadd.f32 %v1158, %v1225
        %v1258 = vadd.f32 %v1159, %v1226
        %v1259 = vadd.f32 %v1160, %v1227
        %v1260 = vadd.f32 %v1161, %v1228
        %v1261 = vadd.f32 %v1162, %v1229
        %v1262 = vadd.f32 %v1163, %v1230
        %v1263 = vadd.f32 %v1164, %v1231
        %v1264 = vadd.f32 %v1165, %v1232
        %v1265 = vadd.f32 %v1166, %v1233
        %v1266 = vadd.f32 %v1167, %v1234
        %v1267 = vadd.f32 %v1168, %v1235
        %v1268 = vadd.f32 %v1169, %v1236
        %v1269 = vadd.f32 %v1170, %v1237
        %v1270 = vadd.f32 %v1171, %v1238
        %v1271 = vadd.f32 %v1172, %v1239
        %v1272 = vadd.f32 %v1173, %v1240
        %v1273 = vadd.f32 %v1174, %v1241
        %v1274 = vadd.f32 %v1175, %v1242
        %v1275 = vadd.f32 %v1176, %v1243
        %v1276 = vld [vmem:[#allocation3] sm:$0xff]
        %v1277 = vld [vmem:[#allocation3 + $0x8] sm:$0xff]
        %v1278 = vld [vmem:[#allocation3 + $0x10] sm:$0xff]
        %v1279 = vld [vmem:[#allocation3 + $0x18] sm:$0xff]
        %v1280 = vld [vmem:[#allocation3 + $0x20] sm:$0xff]
        %v1281 = vld [vmem:[#allocation3 + $0x28] sm:$0xff]
        %v1282 = vld [vmem:[#allocation3 + $0x30] sm:$0xff]
        %v1283 = vld [vmem:[#allocation3 + $0x38] sm:$0xff]
        %v1284 = vld [vmem:[#allocation3 + $0x40] sm:$0xff]
        %v1285 = vld [vmem:[#allocation3 + $0x48] sm:$0xff]
        %v1286 = vld [vmem:[#allocation3 + $0x50] sm:$0xff]
        %v1287 = vld [vmem:[#allocation3 + $0x58] sm:$0xff]
        %v1288 = vld [vmem:[#allocation3 + $0x60] sm:$0xff]
        %v1289 = vld [vmem:[#allocation3 + $0x68] sm:$0xff]
        %v1290 = vld [vmem:[#allocation3 + $0x70] sm:$0xff]
        %v1291 = vld [vmem:[#allocation3 + $0x78] sm:$0xff]
        %v1292 = vld [vmem:[#allocation3 + $0x80] sm:$0xff]
        %v1293 = vld [vmem:[#allocation3 + $0x88] sm:$0xff]
        %v1294 = vld [vmem:[#allocation3 + $0x90] sm:$0xff]
        %v1295 = vld [vmem:[#allocation3 + $0x98] sm:$0xff]
        %v1296 = vld [vmem:[#allocation3 + $0xa0] sm:$0xff]
        %v1297 = vld [vmem:[#allocation3 + $0xa8] sm:$0xff]
        %v1298 = vld [vmem:[#allocation3 + $0xb0] sm:$0xff]
        %v1299 = vld [vmem:[#allocation3 + $0xb8] sm:$0xff]
        %v1300 = vld [vmem:[#allocation3 + $0xc0] sm:$0xff]
        %v1301 = vld [vmem:[#allocation3 + $0xc8] sm:$0xff]
        %v1302 = vld [vmem:[#allocation3 + $0xd0] sm:$0xff]
        %v1303 = vld [vmem:[#allocation3 + $0xd8] sm:$0xff]
        %v1304 = vld [vmem:[#allocation3 + $0xe0] sm:$0xff]
        %v1305 = vld [vmem:[#allocation3 + $0xe8] sm:$0xff]
        %v1306 = vld [vmem:[#allocation3 + $0xf0] sm:$0xff]
        %v1307 = vld [vmem:[#allocation3 + $0xf8] sm:$0xff]
        %v1308 = vstv %s1106
        %v1309 = vmul.f32 %v1308, %v1276
        %v1310 = vmul.f32 %v1308, %v1277
        %v1311 = vmul.f32 %v1308, %v1278
        %v1312 = vmul.f32 %v1308, %v1279
        %v1313 = vmul.f32 %v1308, %v1280
        %v1314 = vmul.f32 %v1308, %v1281
        %v1315 = vmul.f32 %v1308, %v1282
        %v1316 = vmul.f32 %v1308, %v1283
        %v1317 = vmul.f32 %v1308, %v1284
        %v1318 = vmul.f32 %v1308, %v1285
        %v1319 = vmul.f32 %v1308, %v1286
        %v1320 = vmul.f32 %v1308, %v1287
        %v1321 = vmul.f32 %v1308, %v1288
        %v1322 = vmul.f32 %v1308, %v1289
        %v1323 = vmul.f32 %v1308, %v1290
        %v1324 = vmul.f32 %v1308, %v1291
        %v1325 = vmul.f32 %v1308, %v1292
        %v1326 = vmul.f32 %v1308, %v1293
        %v1327 = vmul.f32 %v1308, %v1294
        %v1328 = vmul.f32 %v1308, %v1295
        %v1329 = vmul.f32 %v1308, %v1296
        %v1330 = vmul.f32 %v1308, %v1297
        %v1331 = vmul.f32 %v1308, %v1298
        %v1332 = vmul.f32 %v1308, %v1299
        %v1333 = vmul.f32 %v1308, %v1300
        %v1334 = vmul.f32 %v1308, %v1301
        %v1335 = vmul.f32 %v1308, %v1302
        %v1336 = vmul.f32 %v1308, %v1303
        %v1337 = vmul.f32 %v1308, %v1304
        %v1338 = vmul.f32 %v1308, %v1305
        %v1339 = vmul.f32 %v1308, %v1306
        %v1340 = vmul.f32 %v1308, %v1307
        %v1341 = vadd.f32 %v1244, %v1309
        %v1342 = vadd.f32 %v1245, %v1310
        %v1343 = vadd.f32 %v1246, %v1311
        %v1344 = vadd.f32 %v1247, %v1312
        %v1345 = vadd.f32 %v1248, %v1313
        %v1346 = vadd.f32 %v1249, %v1314
        %v1347 = vadd.f32 %v1250, %v1315
        %v1348 = vadd.f32 %v1251, %v1316
        %v1349 = vadd.f32 %v1252, %v1317
        %v1350 = vadd.f32 %v1253, %v1318
        %v1351 = vadd.f32 %v1254, %v1319
        %v1352 = vadd.f32 %v1255, %v1320
        %v1353 = vadd.f32 %v1256, %v1321
        %v1354 = vadd.f32 %v1257, %v1322
        %v1355 = vadd.f32 %v1258, %v1323
        %v1356 = vadd.f32 %v1259, %v1324
        %v1357 = vadd.f32 %v1260, %v1325
        %v1358 = vadd.f32 %v1261, %v1326
        %v1359 = vadd.f32 %v1262, %v1327
        %v1360 = vadd.f32 %v1263, %v1328
        %v1361 = vadd.f32 %v1264, %v1329
        %v1362 = vadd.f32 %v1265, %v1330
        %v1363 = vadd.f32 %v1266, %v1331
        %v1364 = vadd.f32 %v1267, %v1332
        %v1365 = vadd.f32 %v1268, %v1333
        %v1366 = vadd.f32 %v1269, %v1334
        %v1367 = vadd.f32 %v1270, %v1335
        %v1368 = vadd.f32 %v1271, %v1336
        %v1369 = vadd.f32 %v1272, %v1337
        %v1370 = vadd.f32 %v1273, %v1338
        %v1371 = vadd.f32 %v1274, %v1339
        %v1372 = vadd.f32 %v1275, %v1340
        %v1373 = vmul.f32 %v1341, %v1341
        %v1374 = vmul.f32 %v1342, %v1342
        %v1375 = vmul.f32 %v1343, %v1343
        %v1376 = vmul.f32 %v1344, %v1344
        %v1377 = vmul.f32 %v1345, %v1345
        %v1378 = vmul.f32 %v1346, %v1346
        %v1379 = vmul.f32 %v1347, %v1347
        %v1380 = vmul.f32 %v1348, %v1348
        %v1381 = vmul.f32 %v1349, %v1349
        %v1382 = vmul.f32 %v1350, %v1350
        %v1383 = vmul.f32 %v1351, %v1351
        %v1384 = vmul.f32 %v1352, %v1352
        %v1385 = vmul.f32 %v1353, %v1353
        %v1386 = vmul.f32 %v1354, %v1354
        %v1387 = vmul.f32 %v1355, %v1355
        %v1388 = vmul.f32 %v1356, %v1356
        %v1389 = vmul.f32 %v1357, %v1357
        %v1390 = vmul.f32 %v1358, %v1358
        %v1391 = vmul.f32 %v1359, %v1359
        %v1392 = vmul.f32 %v1360, %v1360
        %v1393 = vmul.f32 %v1361, %v1361
        %v1394 = vmul.f32 %v1362, %v1362
        %v1395 = vmul.f32 %v1363, %v1363
        %v1396 = vmul.f32 %v1364, %v1364
        %v1397 = vmul.f32 %v1365, %v1365
        %v1398 = vmul.f32 %v1366, %v1366
        %v1399 = vmul.f32 %v1367, %v1367
        %v1400 = vmul.f32 %v1368, %v1368
        %v1401 = vmul.f32 %v1369, %v1369
        %v1402 = vmul.f32 %v1370, %v1370
        %v1403 = vmul.f32 %v1371, %v1371
        %v1404 = vmul.f32 %v1372, %v1372
        %1405 = vadd.xlane.f32.xlu0 %v1373
        %v1406 = vpop.xlane.xlu0 %1405
        %1407 = vadd.xlane.f32.xlu0 %v1374
        %v1408 = vpop.xlane.xlu0 %1407
        %1409 = vadd.xlane.f32.xlu0 %v1375
        %v1410 = vpop.xlane.xlu0 %1409
        %1411 = vadd.xlane.f32.xlu0 %v1376
        %v1412 = vpop.xlane.xlu0 %1411
        %1413 = vadd.xlane.f32.xlu0 %v1377
        %v1414 = vpop.xlane.xlu0 %1413
        %1415 = vadd.xlane.f32.xlu0 %v1378
        %v1416 = vpop.xlane.xlu0 %1415
        %1417 = vadd.xlane.f32.xlu0 %v1379
        %v1418 = vpop.xlane.xlu0 %1417
        %1419 = vadd.xlane.f32.xlu0 %v1380
        %v1420 = vpop.xlane.xlu0 %1419
        %1421 = vadd.xlane.f32.xlu0 %v1381
        %v1422 = vpop.xlane.xlu0 %1421
        %1423 = vadd.xlane.f32.xlu0 %v1382
        %v1424 = vpop.xlane.xlu0 %1423
        %1425 = vadd.xlane.f32.xlu0 %v1383
        %v1426 = vpop.xlane.xlu0 %1425
        %1427 = vadd.xlane.f32.xlu0 %v1384
        %v1428 = vpop.xlane.xlu0 %1427
        %1429 = vadd.xlane.f32.xlu0 %v1385
        %v1430 = vpop.xlane.xlu0 %1429
        %1431 = vadd.xlane.f32.xlu0 %v1386
        %v1432 = vpop.xlane.xlu0 %1431
        %1433 = vadd.xlane.f32.xlu0 %v1387
        %v1434 = vpop.xlane.xlu0 %1433
        %1435 = vadd.xlane.f32.xlu0 %v1388
        %v1436 = vpop.xlane.xlu0 %1435
        %1437 = vadd.xlane.f32.xlu0 %v1389
        %v1438 = vpop.xlane.xlu0 %1437
        %1439 = vadd.xlane.f32.xlu0 %v1390
        %v1440 = vpop.xlane.xlu0 %1439
        %1441 = vadd.xlane.f32.xlu0 %v1391
        %v1442 = vpop.xlane.xlu0 %1441
        %1443 = vadd.xlane.f32.xlu0 %v1392
        %v1444 = vpop.xlane.xlu0 %1443
        %1445 = vadd.xlane.f32.xlu0 %v1393
        %v1446 = vpop.xlane.xlu0 %1445
        %1447 = vadd.xlane.f32.xlu0 %v1394
        %v1448 = vpop.xlane.xlu0 %1447
        %1449 = vadd.xlane.f32.xlu0 %v1395
        %v1450 = vpop.xlane.xlu0 %1449
        %1451 = vadd.xlane.f32.xlu0 %v1396
        %v1452 = vpop.xlane.xlu0 %1451
        %1453 = vadd.xlane.f32.xlu0 %v1397
        %v1454 = vpop.xlane.xlu0 %1453
        %1455 = vadd.xlane.f32.xlu0 %v1398
        %v1456 = vpop.xlane.xlu0 %1455
        %1457 = vadd.xlane.f32.xlu0 %v1399
        %v1458 = vpop.xlane.xlu0 %1457
        %1459 = vadd.xlane.f32.xlu0 %v1400
        %v1460 = vpop.xlane.xlu0 %1459
        %1461 = vadd.xlane.f32.xlu0 %v1401
        %v1462 = vpop.xlane.xlu0 %1461
        %1463 = vadd.xlane.f32.xlu0 %v1402
        %v1464 = vpop.xlane.xlu0 %1463
        %1465 = vadd.xlane.f32.xlu0 %v1403
        %v1466 = vpop.xlane.xlu0 %1465
        %1467 = vadd.xlane.f32.xlu0 %v1404
        %v1468 = vpop.xlane.xlu0 %1467
        %v1469 = vrcp.pop 128.0
        %v1470 = vmul.f32 %v1406, %v1469
        %v1471 = vmul.f32 %v1408, %v1469
        %v1472 = vmul.f32 %v1410, %v1469
        %v1473 = vmul.f32 %v1412, %v1469
        %v1474 = vmul.f32 %v1414, %v1469
        %v1475 = vmul.f32 %v1416, %v1469
        %v1476 = vmul.f32 %v1418, %v1469
        %v1477 = vmul.f32 %v1420, %v1469
        %v1478 = vmul.f32 %v1422, %v1469
        %v1479 = vmul.f32 %v1424, %v1469
        %v1480 = vmul.f32 %v1426, %v1469
        %v1481 = vmul.f32 %v1428, %v1469
        %v1482 = vmul.f32 %v1430, %v1469
        %v1483 = vmul.f32 %v1432, %v1469
        %v1484 = vmul.f32 %v1434, %v1469
        %v1485 = vmul.f32 %v1436, %v1469
        %v1486 = vmul.f32 %v1438, %v1469
        %v1487 = vmul.f32 %v1440, %v1469
        %v1488 = vmul.f32 %v1442, %v1469
        %v1489 = vmul.f32 %v1444, %v1469
        %v1490 = vmul.f32 %v1446, %v1469
        %v1491 = vmul.f32 %v1448, %v1469
        %v1492 = vmul.f32 %v1450, %v1469
        %v1493 = vmul.f32 %v1452, %v1469
        %v1494 = vmul.f32 %v1454, %v1469
        %v1495 = vmul.f32 %v1456, %v1469
        %v1496 = vmul.f32 %v1458, %v1469
        %v1497 = vmul.f32 %v1460, %v1469
        %v1498 = vmul.f32 %v1462, %v1469
        %v1499 = vmul.f32 %v1464, %v1469
        %v1500 = vmul.f32 %v1466, %v1469
        %v1501 = vmul.f32 %v1468, %v1469
        %v1502 = vadd.f32 %v1470, 1.1920929e-07
        %v1503 = vadd.f32 %v1471, 1.1920929e-07
        %v1504 = vadd.f32 %v1472, 1.1920929e-07
        %v1505 = vadd.f32 %v1473, 1.1920929e-07
        %v1506 = vadd.f32 %v1474, 1.1920929e-07
        %v1507 = vadd.f32 %v1475, 1.1920929e-07
        %v1508 = vadd.f32 %v1476, 1.1920929e-07
        %v1509 = vadd.f32 %v1477, 1.1920929e-07
        %v1510 = vadd.f32 %v1478, 1.1920929e-07
        %v1511 = vadd.f32 %v1479, 1.1920929e-07
        %v1512 = vadd.f32 %v1480, 1.1920929e-07
        %v1513 = vadd.f32 %v1481, 1.1920929e-07
        %v1514 = vadd.f32 %v1482, 1.1920929e-07
        %v1515 = vadd.f32 %v1483, 1.1920929e-07
        %v1516 = vadd.f32 %v1484, 1.1920929e-07
        %v1517 = vadd.f32 %v1485, 1.1920929e-07
        %v1518 = vadd.f32 %v1486, 1.1920929e-07
        %v1519 = vadd.f32 %v1487, 1.1920929e-07
        %v1520 = vadd.f32 %v1488, 1.1920929e-07
        %v1521 = vadd.f32 %v1489, 1.1920929e-07
        %v1522 = vadd.f32 %v1490, 1.1920929e-07
        %v1523 = vadd.f32 %v1491, 1.1920929e-07
        %v1524 = vadd.f32 %v1492, 1.1920929e-07
        %v1525 = vadd.f32 %v1493, 1.1920929e-07
        %v1526 = vadd.f32 %v1494, 1.1920929e-07
        %v1527 = vadd.f32 %v1495, 1.1920929e-07
        %v1528 = vadd.f32 %v1496, 1.1920929e-07
        %v1529 = vadd.f32 %v1497, 1.1920929e-07
        %v1530 = vadd.f32 %v1498, 1.1920929e-07
        %v1531 = vadd.f32 %v1499, 1.1920929e-07
        %v1532 = vadd.f32 %v1500, 1.1920929e-07
        %v1533 = vadd.f32 %v1501, 1.1920929e-07
        %v1534 = vrsqrt.pop %v1502
        %v1535 = vrsqrt.pop %v1503
        %v1536 = vrsqrt.pop %v1504
        %v1537 = vrsqrt.pop %v1505
        %v1538 = vrsqrt.pop %v1506
        %v1539 = vrsqrt.pop %v1507
        %v1540 = vrsqrt.pop %v1508
        %v1541 = vrsqrt.pop %v1509
        %v1542 = vrsqrt.pop %v1510
        %v1543 = vrsqrt.pop %v1511
        %v1544 = vrsqrt.pop %v1512
        %v1545 = vrsqrt.pop %v1513
        %v1546 = vrsqrt.pop %v1514
        %v1547 = vrsqrt.pop %v1515
        %v1548 = vrsqrt.pop %v1516
        %v1549 = vrsqrt.pop %v1517
        %v1550 = vrsqrt.pop %v1518
        %v1551 = vrsqrt.pop %v1519
        %v1552 = vrsqrt.pop %v1520
        %v1553 = vrsqrt.pop %v1521
        %v1554 = vrsqrt.pop %v1522
        %v1555 = vrsqrt.pop %v1523
        %v1556 = vrsqrt.pop %v1524
        %v1557 = vrsqrt.pop %v1525
        %v1558 = vrsqrt.pop %v1526
        %v1559 = vrsqrt.pop %v1527
        %v1560 = vrsqrt.pop %v1528
        %v1561 = vrsqrt.pop %v1529
        %v1562 = vrsqrt.pop %v1530
        %v1563 = vrsqrt.pop %v1531
        %v1564 = vrsqrt.pop %v1532
        %v1565 = vrsqrt.pop %v1533
        %v1566 = vmul.f32 %v1341, %v1534
        %v1567 = vmul.f32 %v1342, %v1535
        %v1568 = vmul.f32 %v1343, %v1536
        %v1569 = vmul.f32 %v1344, %v1537
        %v1570 = vmul.f32 %v1345, %v1538
        %v1571 = vmul.f32 %v1346, %v1539
        %v1572 = vmul.f32 %v1347, %v1540
        %v1573 = vmul.f32 %v1348, %v1541
        %v1574 = vmul.f32 %v1349, %v1542
        %v1575 = vmul.f32 %v1350, %v1543
        %v1576 = vmul.f32 %v1351, %v1544
        %v1577 = vmul.f32 %v1352, %v1545
        %v1578 = vmul.f32 %v1353, %v1546
        %v1579 = vmul.f32 %v1354, %v1547
        %v1580 = vmul.f32 %v1355, %v1548
        %v1581 = vmul.f32 %v1356, %v1549
        %v1582 = vmul.f32 %v1357, %v1550
        %v1583 = vmul.f32 %v1358, %v1551
        %v1584 = vmul.f32 %v1359, %v1552
        %v1585 = vmul.f32 %v1360, %v1553
        %v1586 = vmul.f32 %v1361, %v1554
        %v1587 = vmul.f32 %v1362, %v1555
        %v1588 = vmul.f32 %v1363, %v1556
        %v1589 = vmul.f32 %v1364, %v1557
        %v1590 = vmul.f32 %v1365, %v1558
        %v1591 = vmul.f32 %v1366, %v1559
        %v1592 = vmul.f32 %v1367, %v1560
        %v1593 = vmul.f32 %v1368, %v1561
        %v1594 = vmul.f32 %v1369, %v1562
        %v1595 = vmul.f32 %v1370, %v1563
        %v1596 = vmul.f32 %v1371, %v1564
        %v1597 = vmul.f32 %v1372, %v1565
        %v1598 = vpack.c.bf16 %v1567, %v1566
        %v1599 = vpack.c.bf16 %v1569, %v1568
        %v1600 = vpack.c.bf16 %v1571, %v1570
        %v1601 = vpack.c.bf16 %v1573, %v1572
        %v1602 = vpack.c.bf16 %v1575, %v1574
        %v1603 = vpack.c.bf16 %v1577, %v1576
        %v1604 = vpack.c.bf16 %v1579, %v1578
        %v1605 = vpack.c.bf16 %v1581, %v1580
        %v1606 = vpack.c.bf16 %v1583, %v1582
        %v1607 = vpack.c.bf16 %v1585, %v1584
        %v1608 = vpack.c.bf16 %v1587, %v1586
        %v1609 = vpack.c.bf16 %v1589, %v1588
        %v1610 = vpack.c.bf16 %v1591, %v1590
        %v1611 = vpack.c.bf16 %v1593, %v1592
        %v1612 = vpack.c.bf16 %v1595, %v1594
        %v1613 = vpack.c.bf16 %v1597, %v1596
        %1614 = vst [vmem:[#allocation2] sm:$0xff] %v1341
        %1615 = vst [vmem:[#allocation2 + $0x8] sm:$0xff] %v1342
        %1616 = vst [vmem:[#allocation2 + $0x10] sm:$0xff] %v1343
        %1617 = vst [vmem:[#allocation2 + $0x18] sm:$0xff] %v1344
        %1618 = vst [vmem:[#allocation2 + $0x20] sm:$0xff] %v1345
        %1619 = vst [vmem:[#allocation2 + $0x28] sm:$0xff] %v1346
        %1620 = vst [vmem:[#allocation2 + $0x30] sm:$0xff] %v1347
        %1621 = vst [vmem:[#allocation2 + $0x38] sm:$0xff] %v1348
        %1622 = vst [vmem:[#allocation2 + $0x40] sm:$0xff] %v1349
        %1623 = vst [vmem:[#allocation2 + $0x48] sm:$0xff] %v1350
        %1624 = vst [vmem:[#allocation2 + $0x50] sm:$0xff] %v1351
        %1625 = vst [vmem:[#allocation2 + $0x58] sm:$0xff] %v1352
        %1626 = vst [vmem:[#allocation2 + $0x60] sm:$0xff] %v1353
        %1627 = vst [vmem:[#allocation2 + $0x68] sm:$0xff] %v1354
        %1628 = vst [vmem:[#allocation2 + $0x70] sm:$0xff] %v1355
        %1629 = vst [vmem:[#allocation2 + $0x78] sm:$0xff] %v1356
        %1630 = vst [vmem:[#allocation2 + $0x80] sm:$0xff] %v1357
        %1631 = vst [vmem:[#allocation2 + $0x88] sm:$0xff] %v1358
        %1632 = vst [vmem:[#allocation2 + $0x90] sm:$0xff] %v1359
        %1633 = vst [vmem:[#allocation2 + $0x98] sm:$0xff] %v1360
        %1634 = vst [vmem:[#allocation2 + $0xa0] sm:$0xff] %v1361
        %1635 = vst [vmem:[#allocation2 + $0xa8] sm:$0xff] %v1362
        %1636 = vst [vmem:[#allocation2 + $0xb0] sm:$0xff] %v1363
        %1637 = vst [vmem:[#allocation2 + $0xb8] sm:$0xff] %v1364
        %1638 = vst [vmem:[#allocation2 + $0xc0] sm:$0xff] %v1365
        %1639 = vst [vmem:[#allocation2 + $0xc8] sm:$0xff] %v1366
        %1640 = vst [vmem:[#allocation2 + $0xd0] sm:$0xff] %v1367
        %1641 = vst [vmem:[#allocation2 + $0xd8] sm:$0xff] %v1368
        %1642 = vst [vmem:[#allocation2 + $0xe0] sm:$0xff] %v1369
        %1643 = vst [vmem:[#allocation2 + $0xe8] sm:$0xff] %v1370
        %1644 = vst [vmem:[#allocation2 + $0xf0] sm:$0xff] %v1371
        %1645 = vst [vmem:[#allocation2 + $0xf8] sm:$0xff] %v1372
        %p1646 = scmp.ne.s32.totalorder %s38, 7
        // Predicated region
        $region85: #{gpt_forward.1} parent=71 // pred_check
          %p1647 = pneg %p1646
        $region86: #{gpt_forward.1} parent=71 // pred_check_branch
          %1649 = sbr.rel (%p1647) target = $region88
        $region87: #{gpt_forward.1} parent=71 // pred_region
          %v1650 = vld [vmem:[%s567] sm:$0xff]
          %v1651 = vld [vmem:[%s567 + $0x8] sm:$0xf]
          %v1652 = vld [vmem:[%s567 + $0xc] sm:$0xff]
          %v1653 = vld [vmem:[%s567 + $0x14] sm:$0xf]
          %v1654 = vld [vmem:[%s567 + $0x18] sm:$0xff]
          %v1655 = vld [vmem:[%s567 + $0x20] sm:$0xf]
          %v1656 = vld [vmem:[%s567 + $0x24] sm:$0xff]
          %v1657 = vld [vmem:[%s567 + $0x2c] sm:$0xf]
          %v1658 = vld [vmem:[%s567 + $0x30] sm:$0xff]
          %v1659 = vld [vmem:[%s567 + $0x38] sm:$0xf]
          %v1660 = vld [vmem:[%s567 + $0x3c] sm:$0xff]
          %v1661 = vld [vmem:[%s567 + $0x44] sm:$0xf]
          %v1662 = vld [vmem:[%s567 + $0x48] sm:$0xff]
          %v1663 = vld [vmem:[%s567 + $0x50] sm:$0xf]
          %v1664 = vld [vmem:[%s567 + $0x54] sm:$0xff]
          %v1665 = vld [vmem:[%s567 + $0x5c] sm:$0xf]
          %v1666 = vld [vmem:[%s567 + $0x60] sm:$0xff]
          %v1667 = vld [vmem:[%s567 + $0x68] sm:$0xf]
          %v1668 = vld [vmem:[%s567 + $0x6c] sm:$0xff]
          %v1669 = vld [vmem:[%s567 + $0x74] sm:$0xf]
          %v1670 = vld [vmem:[%s567 + $0x78] sm:$0xff]
          %v1671 = vld [vmem:[%s567 + $0x80] sm:$0xf]
          %v1672 = vld [vmem:[%s567 + $0x84] sm:$0xff]
          %v1673 = vld [vmem:[%s567 + $0x8c] sm:$0xf]
          %v1674 = vld [vmem:[%s567 + $0x90] sm:$0xff]
          %v1675 = vld [vmem:[%s567 + $0x98] sm:$0xf]
          %v1676 = vld [vmem:[%s567 + $0x9c] sm:$0xff]
          %v1677 = vld [vmem:[%s567 + $0xa4] sm:$0xf]
          %v1678 = vld [vmem:[%s567 + $0xa8] sm:$0xff]
          %v1679 = vld [vmem:[%s567 + $0xb0] sm:$0xf]
          %v1680 = vld [vmem:[%s567 + $0xb4] sm:$0xff]
          %v1681 = vld [vmem:[%s567 + $0xbc] sm:$0xf]
          %v1714 = vunpack.c.l.b16 %v1650
          %v1715 = vunpack.c.h.b16 %v1650
          %v1716 = vunpack.c.l.b16 %v1651
          %v1717 = vunpack.c.l.b16 %v1652
          %v1718 = vunpack.c.h.b16 %v1652
          %v1719 = vunpack.c.l.b16 %v1653
          %v1720 = vunpack.c.l.b16 %v1654
          %v1721 = vunpack.c.h.b16 %v1654
          %v1722 = vunpack.c.l.b16 %v1655
          %v1723 = vunpack.c.l.b16 %v1656
          %v1724 = vunpack.c.h.b16 %v1656
          %v1725 = vunpack.c.l.b16 %v1657
          %v1726 = vunpack.c.l.b16 %v1658
          %v1727 = vunpack.c.h.b16 %v1658
          %v1728 = vunpack.c.l.b16 %v1659
          %v1729 = vunpack.c.l.b16 %v1660
          %v1730 = vunpack.c.h.b16 %v1660
          %v1731 = vunpack.c.l.b16 %v1661
          %v1732 = vunpack.c.l.b16 %v1662
          %v1733 = vunpack.c.h.b16 %v1662
          %v1734 = vunpack.c.l.b16 %v1663
          %v1735 = vunpack.c.l.b16 %v1664
          %v1736 = vunpack.c.h.b16 %v1664
          %v1737 = vunpack.c.l.b16 %v1665
          %v1738 = vunpack.c.l.b16 %v1666
          %v1739 = vunpack.c.h.b16 %v1666
          %v1740 = vunpack.c.l.b16 %v1667
          %v1741 = vunpack.c.l.b16 %v1668
          %v1742 = vunpack.c.h.b16 %v1668
          %v1743 = vunpack.c.l.b16 %v1669
          %v1744 = vunpack.c.l.b16 %v1670
          %v1745 = vunpack.c.h.b16 %v1670
          %v1746 = vunpack.c.l.b16 %v1671
          %v1747 = vunpack.c.l.b16 %v1672
          %v1748 = vunpack.c.h.b16 %v1672
          %v1749 = vunpack.c.l.b16 %v1673
          %v1750 = vunpack.c.l.b16 %v1674
          %v1751 = vunpack.c.h.b16 %v1674
          %v1752 = vunpack.c.l.b16 %v1675
          %v1753 = vunpack.c.l.b16 %v1676
          %v1754 = vunpack.c.h.b16 %v1676
          %v1755 = vunpack.c.l.b16 %v1677
          %v1756 = vunpack.c.l.b16 %v1678
          %v1757 = vunpack.c.h.b16 %v1678
          %v1758 = vunpack.c.l.b16 %v1679
          %v1759 = vunpack.c.l.b16 %v1680
          %v1760 = vunpack.c.h.b16 %v1680
          %v1761 = vunpack.c.l.b16 %v1681
          %v1762 = vpack.c.b16 %v1717, %v1714
          %v1763 = vpack.c.b16 %v1718, %v1715
          %v1764 = vpack.c.b16 %v1719, %v1716
          %v1765 = vpack.c.b16 %v1723, %v1720
          %v1766 = vpack.c.b16 %v1724, %v1721
          %v1767 = vpack.c.b16 %v1725, %v1722
          %v1768 = vpack.c.b16 %v1729, %v1726
          %v1769 = vpack.c.b16 %v1730, %v1727
          %v1770 = vpack.c.b16 %v1731, %v1728
          %v1771 = vpack.c.b16 %v1735, %v1732
          %v1772 = vpack.c.b16 %v1736, %v1733
          %v1773 = vpack.c.b16 %v1737, %v1734
          %v1774 = vpack.c.b16 %v1741, %v1738
          %v1775 = vpack.c.b16 %v1742, %v1739
          %v1776 = vpack.c.b16 %v1743, %v1740
          %v1777 = vpack.c.b16 %v1747, %v1744
          %v1778 = vpack.c.b16 %v1748, %v1745
          %v1779 = vpack.c.b16 %v1749, %v1746
          %v1780 = vpack.c.b16 %v1753, %v1750
          %v1781 = vpack.c.b16 %v1754, %v1751
          %v1782 = vpack.c.b16 %v1755, %v1752
          %v1783 = vpack.c.b16 %v1759, %v1756
          %v1784 = vpack.c.b16 %v1760, %v1757
          %v1785 = vpack.c.b16 %v1761, %v1758
          %1810 = vmatprep.subr.bf16.mxu0 %v1784
          %1811 = vmatpush1.bf16.msra.mxu0 %v1783
          %1812 = vmatprep.subr.bf16.mxu0 %v1781
          %1813 = vmatpush1.bf16.msra.mxu0 %v1780
          %1814 = vmatprep.subr.bf16.mxu0 %v1778
          %1815 = vmatpush1.bf16.msra.mxu0 %v1777
          %1816 = vmatprep.subr.bf16.mxu0 %v1775
          %1817 = vmatpush1.bf16.msra.mxu0 %v1774
          %1818 = vmatprep.subr.bf16.mxu0 %v1772
          %1819 = vmatpush1.bf16.msra.mxu0 %v1771
          %1820 = vmatprep.subr.bf16.mxu0 %v1769
          %1821 = vmatpush1.bf16.msra.mxu0 %v1768
          %1822 = vmatprep.subr.bf16.mxu0 %v1766
          %1823 = vmatpush1.bf16.msra.mxu0 %v1765
          %1824 = vmatprep.subr.bf16.mxu0 %v1763
          %1825 = vmatpush1.bf16.msra.mxu0 %v1762
          %1826 = vmatprep.subr.bf16.mxu0 0
          %1827 = vmatpush2.bf16.msra.mxu0 0
          %1828 = vmatprep.subr.bf16.mxu0 0
          %1829 = vmatpush2.bf16.msra.mxu0 0
          %1830 = vmatprep.subr.bf16.mxu0 0
          %1831 = vmatpush2.bf16.msra.mxu0 0
          %1832 = vmatprep.subr.bf16.mxu0 0
          %1833 = vmatpush2.bf16.msra.mxu0 0
          %1834 = vmatprep.subr.bf16.mxu0 0
          %1835 = vmatpush2.bf16.msra.mxu0 0
          %1836 = vmatprep.subr.bf16.mxu0 0
          %1837 = vmatpush2.bf16.msra.mxu0 0
          %1838 = vmatprep.subr.bf16.mxu0 0
          %1839 = vmatpush2.bf16.msra.mxu0 0
          %1840 = vmatprep.subr.bf16.mxu0 0
          %1841 = vmatpush2.bf16.msra.mxu0 0
          %1842 = vmatprep.mubr.bf16.mxu0 0
          %1843 = vmatmul.mubr.bf16.gmra.mxu0 %v1598
          %v1844 = vpop.f32.mrf.mxu0
          %v1845 = vadd.f32 0.0, %v1844
          %v1846 = vpop.f32.mrf.mxu0
          %v1847 = vadd.f32 0.0, %v1846
          %v1848 = vpop.f32.mrf.mxu0
          %v1849 = vadd.f32 0.0, %v1848
          %v1850 = vpop.f32.mrf.mxu0
          %v1851 = vadd.f32 0.0, %v1850
          %1852 = vmatprep.mubr.bf16.mxu0 0
          %1853 = vmatmul.mubr.bf16.gmra.mxu0 %v1599
          %v1854 = vpop.f32.mrf.mxu0
          %v1855 = vadd.f32 0.0, %v1854
          %v1856 = vpop.f32.mrf.mxu0
          %v1857 = vadd.f32 0.0, %v1856
          %v1858 = vpop.f32.mrf.mxu0
          %v1859 = vadd.f32 0.0, %v1858
          %v1860 = vpop.f32.mrf.mxu0
          %v1861 = vadd.f32 0.0, %v1860
          %1862 = vmatprep.mubr.bf16.mxu0 0
          %1863 = vmatmul.mubr.bf16.gmra.mxu0 %v1600
          %v1864 = vpop.f32.mrf.mxu0
          %v1865 = vadd.f32 0.0, %v1864
          %v1866 = vpop.f32.mrf.mxu0
          %v1867 = vadd.f32 0.0, %v1866
          %v1868 = vpop.f32.mrf.mxu0
          %v1869 = vadd.f32 0.0, %v1868
          %v1870 = vpop.f32.mrf.mxu0
          %v1871 = vadd.f32 0.0, %v1870
          %1872 = vmatprep.mubr.bf16.mxu0 0
          %1873 = vmatmul.mubr.bf16.gmra.mxu0 %v1601
          %v1874 = vpop.f32.mrf.mxu0
          %v1875 = vadd.f32 0.0, %v1874
          %v1876 = vpop.f32.mrf.mxu0
          %v1877 = vadd.f32 0.0, %v1876
          %v1878 = vpop.f32.mrf.mxu0
          %v1879 = vadd.f32 0.0, %v1878
          %v1880 = vpop.f32.mrf.mxu0
          %v1881 = vadd.f32 0.0, %v1880
          %1882 = vmatprep.mubr.bf16.mxu0 0
          %1883 = vmatmul.mubr.bf16.gmra.mxu0 %v1602
          %v1884 = vpop.f32.mrf.mxu0
          %v1885 = vadd.f32 0.0, %v1884
          %v1886 = vpop.f32.mrf.mxu0
          %v1887 = vadd.f32 0.0, %v1886
          %v1888 = vpop.f32.mrf.mxu0
          %v1889 = vadd.f32 0.0, %v1888
          %v1890 = vpop.f32.mrf.mxu0
          %v1891 = vadd.f32 0.0, %v1890
          %1892 = vmatprep.mubr.bf16.mxu0 0
          %1893 = vmatmul.mubr.bf16.gmra.mxu0 %v1603
          %v1894 = vpop.f32.mrf.mxu0
          %v1895 = vadd.f32 0.0, %v1894
          %v1896 = vpop.f32.mrf.mxu0
          %v1897 = vadd.f32 0.0, %v1896
          %v1898 = vpop.f32.mrf.mxu0
          %v1899 = vadd.f32 0.0, %v1898
          %v1900 = vpop.f32.mrf.mxu0
          %v1901 = vadd.f32 0.0, %v1900
          %1902 = vmatprep.mubr.bf16.mxu0 0
          %1903 = vmatmul.mubr.bf16.gmra.mxu0 %v1604
          %v1904 = vpop.f32.mrf.mxu0
          %v1905 = vadd.f32 0.0, %v1904
          %v1906 = vpop.f32.mrf.mxu0
          %v1907 = vadd.f32 0.0, %v1906
          %v1908 = vpop.f32.mrf.mxu0
          %v1909 = vadd.f32 0.0, %v1908
          %v1910 = vpop.f32.mrf.mxu0
          %v1911 = vadd.f32 0.0, %v1910
          %1912 = vmatprep.mubr.bf16.mxu0 0
          %1913 = vmatmul.mubr.bf16.gmra.mxu0 %v1605
          %v1914 = vpop.f32.mrf.mxu0
          %v1915 = vadd.f32 0.0, %v1914
          %v1916 = vpop.f32.mrf.mxu0
          %v1917 = vadd.f32 0.0, %v1916
          %v1918 = vpop.f32.mrf.mxu0
          %v1919 = vadd.f32 0.0, %v1918
          %v1920 = vpop.f32.mrf.mxu0
          %v1921 = vadd.f32 0.0, %v1920
          %1922 = vmatprep.mubr.bf16.mxu0 0
          %1923 = vmatmul.mubr.bf16.gmra.mxu0 %v1606
          %v1924 = vpop.f32.mrf.mxu0
          %v1925 = vadd.f32 0.0, %v1924
          %v1926 = vpop.f32.mrf.mxu0
          %v1927 = vadd.f32 0.0, %v1926
          %v1928 = vpop.f32.mrf.mxu0
          %v1929 = vadd.f32 0.0, %v1928
          %v1930 = vpop.f32.mrf.mxu0
          %v1931 = vadd.f32 0.0, %v1930
          %1932 = vmatprep.mubr.bf16.mxu0 0
          %1933 = vmatmul.mubr.bf16.gmra.mxu0 %v1607
          %v1934 = vpop.f32.mrf.mxu0
          %v1935 = vadd.f32 0.0, %v1934
          %v1936 = vpop.f32.mrf.mxu0
          %v1937 = vadd.f32 0.0, %v1936
          %v1938 = vpop.f32.mrf.mxu0
          %v1939 = vadd.f32 0.0, %v1938
          %v1940 = vpop.f32.mrf.mxu0
          %v1941 = vadd.f32 0.0, %v1940
          %1942 = vmatprep.mubr.bf16.mxu0 0
          %1943 = vmatmul.mubr.bf16.gmra.mxu0 %v1608
          %v1944 = vpop.f32.mrf.mxu0
          %v1945 = vadd.f32 0.0, %v1944
          %v1946 = vpop.f32.mrf.mxu0
          %v1947 = vadd.f32 0.0, %v1946
          %v1948 = vpop.f32.mrf.mxu0
          %v1949 = vadd.f32 0.0, %v1948
          %v1950 = vpop.f32.mrf.mxu0
          %v1951 = vadd.f32 0.0, %v1950
          %1952 = vmatprep.mubr.bf16.mxu0 0
          %1953 = vmatmul.mubr.bf16.gmra.mxu0 %v1609
          %v1954 = vpop.f32.mrf.mxu0
          %v1955 = vadd.f32 0.0, %v1954
          %v1956 = vpop.f32.mrf.mxu0
          %v1957 = vadd.f32 0.0, %v1956
          %v1958 = vpop.f32.mrf.mxu0
          %v1959 = vadd.f32 0.0, %v1958
          %v1960 = vpop.f32.mrf.mxu0
          %v1961 = vadd.f32 0.0, %v1960
          %1962 = vmatprep.mubr.bf16.mxu0 0
          %1963 = vmatmul.mubr.bf16.gmra.mxu0 %v1610
          %v1964 = vpop.f32.mrf.mxu0
          %v1965 = vadd.f32 0.0, %v1964
          %v1966 = vpop.f32.mrf.mxu0
          %v1967 = vadd.f32 0.0, %v1966
          %v1968 = vpop.f32.mrf.mxu0
          %v1969 = vadd.f32 0.0, %v1968
          %v1970 = vpop.f32.mrf.mxu0
          %v1971 = vadd.f32 0.0, %v1970
          %1972 = vmatprep.mubr.bf16.mxu0 0
          %1973 = vmatmul.mubr.bf16.gmra.mxu0 %v1611
          %v1974 = vpop.f32.mrf.mxu0
          %v1975 = vadd.f32 0.0, %v1974
          %v1976 = vpop.f32.mrf.mxu0
          %v1977 = vadd.f32 0.0, %v1976
          %v1978 = vpop.f32.mrf.mxu0
          %v1979 = vadd.f32 0.0, %v1978
          %v1980 = vpop.f32.mrf.mxu0
          %v1981 = vadd.f32 0.0, %v1980
          %1982 = vmatprep.mubr.bf16.mxu0 0
          %1983 = vmatmul.mubr.bf16.gmra.mxu0 %v1612
          %v1984 = vpop.f32.mrf.mxu0
          %v1985 = vadd.f32 0.0, %v1984
          %v1986 = vpop.f32.mrf.mxu0
          %v1987 = vadd.f32 0.0, %v1986
          %v1988 = vpop.f32.mrf.mxu0
          %v1989 = vadd.f32 0.0, %v1988
          %v1990 = vpop.f32.mrf.mxu0
          %v1991 = vadd.f32 0.0, %v1990
          %1992 = vmatprep.mubr.bf16.mxu0 0
          %1993 = vmatmul.mubr.bf16.gmra.mxu0 %v1613
          %v1994 = vpop.f32.mrf.mxu0
          %v1995 = vadd.f32 0.0, %v1994
          %v1996 = vpop.f32.mrf.mxu0
          %v1997 = vadd.f32 0.0, %v1996
          %v1998 = vpop.f32.mrf.mxu0
          %v1999 = vadd.f32 0.0, %v1998
          %v2000 = vpop.f32.mrf.mxu0
          %v2001 = vadd.f32 0.0, %v2000
          %2002 = vdwg.mxu0
          %2003 = vmatprep.subr.bf16.mxu0 0
          %2004 = vmatpush1.bf16.msra.mxu0 %v1785
          %2005 = vmatprep.subr.bf16.mxu0 0
          %2006 = vmatpush1.bf16.msra.mxu0 %v1782
          %2007 = vmatprep.subr.bf16.mxu0 0
          %2008 = vmatpush1.bf16.msra.mxu0 %v1779
          %2009 = vmatprep.subr.bf16.mxu0 0
          %2010 = vmatpush1.bf16.msra.mxu0 %v1776
          %2011 = vmatprep.subr.bf16.mxu0 0
          %2012 = vmatpush1.bf16.msra.mxu0 %v1773
          %2013 = vmatprep.subr.bf16.mxu0 0
          %2014 = vmatpush1.bf16.msra.mxu0 %v1770
          %2015 = vmatprep.subr.bf16.mxu0 0
          %2016 = vmatpush1.bf16.msra.mxu0 %v1767
          %2017 = vmatprep.subr.bf16.mxu0 0
          %2018 = vmatpush1.bf16.msra.mxu0 %v1764
          %2019 = vmatprep.subr.bf16.mxu0 0
          %2020 = vmatpush2.bf16.msra.mxu0 0
          %2021 = vmatprep.subr.bf16.mxu0 0
          %2022 = vmatpush2.bf16.msra.mxu0 0
          %2023 = vmatprep.subr.bf16.mxu0 0
          %2024 = vmatpush2.bf16.msra.mxu0 0
          %2025 = vmatprep.subr.bf16.mxu0 0
          %2026 = vmatpush2.bf16.msra.mxu0 0
          %2027 = vmatprep.subr.bf16.mxu0 0
          %2028 = vmatpush2.bf16.msra.mxu0 0
          %2029 = vmatprep.subr.bf16.mxu0 0
          %2030 = vmatpush2.bf16.msra.mxu0 0
          %2031 = vmatprep.subr.bf16.mxu0 0
          %2032 = vmatpush2.bf16.msra.mxu0 0
          %2033 = vmatprep.subr.bf16.mxu0 0
          %2034 = vmatpush2.bf16.msra.mxu0 0
          %2035 = vmatprep.mubr.bf16.mxu0 0
          %2036 = vmatmul.mubr.bf16.gmra.mxu0 %v1598
          %v2037 = vpop.f32.mrf.mxu0
          %v2038 = vadd.f32 0.0, %v2037
          %v2039 = vpop.f32.mrf.mxu0
          %v2040 = vpop.f32.mrf.mxu0
          %v2041 = vadd.f32 0.0, %v2040
          %v2042 = vpop.f32.mrf.mxu0
          %2043 = vmatprep.mubr.bf16.mxu0 0
          %2044 = vmatmul.mubr.bf16.gmra.mxu0 %v1599
          %v2045 = vpop.f32.mrf.mxu0
          %v2046 = vadd.f32 0.0, %v2045
          %v2047 = vpop.f32.mrf.mxu0
          %v2048 = vpop.f32.mrf.mxu0
          %v2049 = vadd.f32 0.0, %v2048
          %v2050 = vpop.f32.mrf.mxu0
          %2051 = vmatprep.mubr.bf16.mxu0 0
          %2052 = vmatmul.mubr.bf16.gmra.mxu0 %v1600
          %v2053 = vpop.f32.mrf.mxu0
          %v2054 = vadd.f32 0.0, %v2053
          %v2055 = vpop.f32.mrf.mxu0
          %v2056 = vpop.f32.mrf.mxu0
          %v2057 = vadd.f32 0.0, %v2056
          %v2058 = vpop.f32.mrf.mxu0
          %2059 = vmatprep.mubr.bf16.mxu0 0
          %2060 = vmatmul.mubr.bf16.gmra.mxu0 %v1601
          %v2061 = vpop.f32.mrf.mxu0
          %v2062 = vadd.f32 0.0, %v2061
          %v2063 = vpop.f32.mrf.mxu0
          %v2064 = vpop.f32.mrf.mxu0
          %v2065 = vadd.f32 0.0, %v2064
          %v2066 = vpop.f32.mrf.mxu0
          %2067 = vmatprep.mubr.bf16.mxu0 0
          %2068 = vmatmul.mubr.bf16.gmra.mxu0 %v1602
          %v2069 = vpop.f32.mrf.mxu0
          %v2070 = vadd.f32 0.0, %v2069
          %v2071 = vpop.f32.mrf.mxu0
          %v2072 = vpop.f32.mrf.mxu0
          %v2073 = vadd.f32 0.0, %v2072
          %v2074 = vpop.f32.mrf.mxu0
          %2075 = vmatprep.mubr.bf16.mxu0 0
          %2076 = vmatmul.mubr.bf16.gmra.mxu0 %v1603
          %v2077 = vpop.f32.mrf.mxu0
          %v2078 = vadd.f32 0.0, %v2077
          %v2079 = vpop.f32.mrf.mxu0
          %v2080 = vpop.f32.mrf.mxu0
          %v2081 = vadd.f32 0.0, %v2080
          %v2082 = vpop.f32.mrf.mxu0
          %2083 = vmatprep.mubr.bf16.mxu0 0
          %2084 = vmatmul.mubr.bf16.gmra.mxu0 %v1604
          %v2085 = vpop.f32.mrf.mxu0
          %v2086 = vadd.f32 0.0, %v2085
          %v2087 = vpop.f32.mrf.mxu0
          %v2088 = vpop.f32.mrf.mxu0
          %v2089 = vadd.f32 0.0, %v2088
          %v2090 = vpop.f32.mrf.mxu0
          %2091 = vmatprep.mubr.bf16.mxu0 0
          %2092 = vmatmul.mubr.bf16.gmra.mxu0 %v1605
          %v2093 = vpop.f32.mrf.mxu0
          %v2094 = vadd.f32 0.0, %v2093
          %v2095 = vpop.f32.mrf.mxu0
          %v2096 = vpop.f32.mrf.mxu0
          %v2097 = vadd.f32 0.0, %v2096
          %v2098 = vpop.f32.mrf.mxu0
          %2099 = vmatprep.mubr.bf16.mxu0 0
          %2100 = vmatmul.mubr.bf16.gmra.mxu0 %v1606
          %v2101 = vpop.f32.mrf.mxu0
          %v2102 = vadd.f32 0.0, %v2101
          %v2103 = vpop.f32.mrf.mxu0
          %v2104 = vpop.f32.mrf.mxu0
          %v2105 = vadd.f32 0.0, %v2104
          %v2106 = vpop.f32.mrf.mxu0
          %2107 = vmatprep.mubr.bf16.mxu0 0
          %2108 = vmatmul.mubr.bf16.gmra.mxu0 %v1607
          %v2109 = vpop.f32.mrf.mxu0
          %v2110 = vadd.f32 0.0, %v2109
          %v2111 = vpop.f32.mrf.mxu0
          %v2112 = vpop.f32.mrf.mxu0
          %v2113 = vadd.f32 0.0, %v2112
          %v2114 = vpop.f32.mrf.mxu0
          %2115 = vmatprep.mubr.bf16.mxu0 0
          %2116 = vmatmul.mubr.bf16.gmra.mxu0 %v1608
          %v2117 = vpop.f32.mrf.mxu0
          %v2118 = vadd.f32 0.0, %v2117
          %v2119 = vpop.f32.mrf.mxu0
          %v2120 = vpop.f32.mrf.mxu0
          %v2121 = vadd.f32 0.0, %v2120
          %v2122 = vpop.f32.mrf.mxu0
          %2123 = vmatprep.mubr.bf16.mxu0 0
          %2124 = vmatmul.mubr.bf16.gmra.mxu0 %v1609
          %v2125 = vpop.f32.mrf.mxu0
          %v2126 = vadd.f32 0.0, %v2125
          %v2127 = vpop.f32.mrf.mxu0
          %v2128 = vpop.f32.mrf.mxu0
          %v2129 = vadd.f32 0.0, %v2128
          %v2130 = vpop.f32.mrf.mxu0
          %2131 = vmatprep.mubr.bf16.mxu0 0
          %2132 = vmatmul.mubr.bf16.gmra.mxu0 %v1610
          %v2133 = vpop.f32.mrf.mxu0
          %v2134 = vadd.f32 0.0, %v2133
          %v2135 = vpop.f32.mrf.mxu0
          %v2136 = vpop.f32.mrf.mxu0
          %v2137 = vadd.f32 0.0, %v2136
          %v2138 = vpop.f32.mrf.mxu0
          %2139 = vmatprep.mubr.bf16.mxu0 0
          %2140 = vmatmul.mubr.bf16.gmra.mxu0 %v1611
          %v2141 = vpop.f32.mrf.mxu0
          %v2142 = vadd.f32 0.0, %v2141
          %v2143 = vpop.f32.mrf.mxu0
          %v2144 = vpop.f32.mrf.mxu0
          %v2145 = vadd.f32 0.0, %v2144
          %v2146 = vpop.f32.mrf.mxu0
          %2147 = vmatprep.mubr.bf16.mxu0 0
          %2148 = vmatmul.mubr.bf16.gmra.mxu0 %v1612
          %v2149 = vpop.f32.mrf.mxu0
          %v2150 = vadd.f32 0.0, %v2149
          %v2151 = vpop.f32.mrf.mxu0
          %v2152 = vpop.f32.mrf.mxu0
          %v2153 = vadd.f32 0.0, %v2152
          %v2154 = vpop.f32.mrf.mxu0
          %2155 = vmatprep.mubr.bf16.mxu0 0
          %2156 = vmatmul.mubr.bf16.gmra.mxu0 %v1613
          %v2157 = vpop.f32.mrf.mxu0
          %v2158 = vadd.f32 0.0, %v2157
          %v2159 = vpop.f32.mrf.mxu0
          %v2160 = vpop.f32.mrf.mxu0
          %v2161 = vadd.f32 0.0, %v2160
          %v2162 = vpop.f32.mrf.mxu0
          %2163 = vdwg.mxu0
          %v2164 = vld [vmem:[%s9] sm:$0xff]
          %v2165 = vld [vmem:[%s9 + $0x8] sm:$0xff]
          %v2166 = vld [vmem:[%s9 + $0x10] sm:$0xff]
          %v2167 = vld [vmem:[%s9 + $0x18] sm:$0xff]
          %v2168 = vld [vmem:[%s9 + $0x20] sm:$0xff]
          %v2169 = vld [vmem:[%s9 + $0x28] sm:$0xff]
          %v2170 = vld [vmem:[%s9 + $0x30] sm:$0xff]
          %v2171 = vld [vmem:[%s9 + $0x38] sm:$0xff]
          %v2172 = vld [vmem:[%s9 + $0x40] sm:$0xff]
          %v2173 = vld [vmem:[%s9 + $0x48] sm:$0xff]
          %v2174 = vld [vmem:[%s9 + $0x50] sm:$0xff]
          %v2175 = vld [vmem:[%s9 + $0x58] sm:$0xff]
          %v2176 = vld [vmem:[%s9 + $0x60] sm:$0xff]
          %v2177 = vld [vmem:[%s9 + $0x68] sm:$0xff]
          %v2178 = vld [vmem:[%s9 + $0x70] sm:$0xff]
          %v2179 = vld [vmem:[%s9 + $0x78] sm:$0xff]
          %v2180 = vld [vmem:[%s9 + $0x80] sm:$0xff]
          %v2181 = vld [vmem:[%s9 + $0x88] sm:$0xff]
          %v2182 = vld [vmem:[%s9 + $0x90] sm:$0xff]
          %v2183 = vld [vmem:[%s9 + $0x98] sm:$0xff]
          %v2184 = vld [vmem:[%s9 + $0xa0] sm:$0xff]
          %v2185 = vld [vmem:[%s9 + $0xa8] sm:$0xff]
          %v2186 = vld [vmem:[%s9 + $0xb0] sm:$0xff]
          %v2187 = vld [vmem:[%s9 + $0xb8] sm:$0xff]
          %v2188 = vld [vmem:[%s9 + $0xc0] sm:$0xff]
          %v2189 = vld [vmem:[%s9 + $0xc8] sm:$0xff]
          %v2190 = vld [vmem:[%s9 + $0xd0] sm:$0xff]
          %v2191 = vld [vmem:[%s9 + $0xd8] sm:$0xff]
          %v2192 = vld [vmem:[%s9 + $0xe0] sm:$0xff]
          %v2193 = vld [vmem:[%s9 + $0xe8] sm:$0xff]
          %v2194 = vld [vmem:[%s9 + $0xf0] sm:$0xff]
          %v2195 = vld [vmem:[%s9 + $0xf8] sm:$0xff]
          %v2196 = vld [vmem:[%s10] sm:$0xff]
          %v2197 = vld [vmem:[%s10 + $0x8] sm:$0xff]
          %v2198 = vld [vmem:[%s10 + $0x10] sm:$0xff]
          %v2199 = vld [vmem:[%s10 + $0x18] sm:$0xff]
          %v2200 = vld [vmem:[%s10 + $0x20] sm:$0xff]
          %v2201 = vld [vmem:[%s10 + $0x28] sm:$0xff]
          %v2202 = vld [vmem:[%s10 + $0x30] sm:$0xff]
          %v2203 = vld [vmem:[%s10 + $0x38] sm:$0xff]
          %v2204 = vld [vmem:[%s10 + $0x40] sm:$0xff]
          %v2205 = vld [vmem:[%s10 + $0x48] sm:$0xff]
          %v2206 = vld [vmem:[%s10 + $0x50] sm:$0xff]
          %v2207 = vld [vmem:[%s10 + $0x58] sm:$0xff]
          %v2208 = vld [vmem:[%s10 + $0x60] sm:$0xff]
          %v2209 = vld [vmem:[%s10 + $0x68] sm:$0xff]
          %v2210 = vld [vmem:[%s10 + $0x70] sm:$0xff]
          %v2211 = vld [vmem:[%s10 + $0x78] sm:$0xff]
          %v2212 = vld [vmem:[%s10 + $0x80] sm:$0xff]
          %v2213 = vld [vmem:[%s10 + $0x88] sm:$0xff]
          %v2214 = vld [vmem:[%s10 + $0x90] sm:$0xff]
          %v2215 = vld [vmem:[%s10 + $0x98] sm:$0xff]
          %v2216 = vld [vmem:[%s10 + $0xa0] sm:$0xff]
          %v2217 = vld [vmem:[%s10 + $0xa8] sm:$0xff]
          %v2218 = vld [vmem:[%s10 + $0xb0] sm:$0xff]
          %v2219 = vld [vmem:[%s10 + $0xb8] sm:$0xff]
          %v2220 = vld [vmem:[%s10 + $0xc0] sm:$0xff]
          %v2221 = vld [vmem:[%s10 + $0xc8] sm:$0xff]
          %v2222 = vld [vmem:[%s10 + $0xd0] sm:$0xff]
          %v2223 = vld [vmem:[%s10 + $0xd8] sm:$0xff]
          %v2224 = vld [vmem:[%s10 + $0xe0] sm:$0xff]
          %v2225 = vld [vmem:[%s10 + $0xe8] sm:$0xff]
          %v2226 = vld [vmem:[%s10 + $0xf0] sm:$0xff]
          %v2227 = vld [vmem:[%s10 + $0xf8] sm:$0xff]
          %v2228 = vmul.f32 %v1845, %v1845
          %v2229 = vmul.f32 %v1849, %v1849
          %v2230 = vmul.f32 %v1855, %v1855
          %v2231 = vmul.f32 %v1859, %v1859
          %v2232 = vmul.f32 %v1865, %v1865
          %v2233 = vmul.f32 %v1869, %v1869
          %v2234 = vmul.f32 %v1875, %v1875
          %v2235 = vmul.f32 %v1879, %v1879
          %v2236 = vmul.f32 %v1885, %v1885
          %v2237 = vmul.f32 %v1889, %v1889
          %v2238 = vmul.f32 %v1895, %v1895
          %v2239 = vmul.f32 %v1899, %v1899
          %v2240 = vmul.f32 %v1905, %v1905
          %v2241 = vmul.f32 %v1909, %v1909
          %v2242 = vmul.f32 %v1915, %v1915
          %v2243 = vmul.f32 %v1919, %v1919
          %v2244 = vmul.f32 %v1925, %v1925
          %v2245 = vmul.f32 %v1929, %v1929
          %v2246 = vmul.f32 %v1935, %v1935
          %v2247 = vmul.f32 %v1939, %v1939
          %v2248 = vmul.f32 %v1945, %v1945
          %v2249 = vmul.f32 %v1949, %v1949
          %v2250 = vmul.f32 %v1955, %v1955
          %v2251 = vmul.f32 %v1959, %v1959
          %v2252 = vmul.f32 %v1965, %v1965
          %v2253 = vmul.f32 %v1969, %v1969
          %v2254 = vmul.f32 %v1975, %v1975
          %v2255 = vmul.f32 %v1979, %v1979
          %v2256 = vmul.f32 %v1985, %v1985
          %v2257 = vmul.f32 %v1989, %v1989
          %v2258 = vmul.f32 %v1995, %v1995
          %v2259 = vmul.f32 %v1999, %v1999
          %2260 = vadd.xlane.f32.xlu0 %v2228
          %v2261 = vpop.xlane.xlu0 %2260
          %2262 = vadd.xlane.f32.xlu0 %v2229
          %v2263 = vpop.xlane.xlu0 %2262
          %2264 = vadd.xlane.f32.xlu0 %v2230
          %v2265 = vpop.xlane.xlu0 %2264
          %2266 = vadd.xlane.f32.xlu0 %v2231
          %v2267 = vpop.xlane.xlu0 %2266
          %2268 = vadd.xlane.f32.xlu0 %v2232
          %v2269 = vpop.xlane.xlu0 %2268
          %2270 = vadd.xlane.f32.xlu0 %v2233
          %v2271 = vpop.xlane.xlu0 %2270
          %2272 = vadd.xlane.f32.xlu0 %v2234
          %v2273 = vpop.xlane.xlu0 %2272
          %2274 = vadd.xlane.f32.xlu0 %v2235
          %v2275 = vpop.xlane.xlu0 %2274
          %2276 = vadd.xlane.f32.xlu0 %v2236
          %v2277 = vpop.xlane.xlu0 %2276
          %2278 = vadd.xlane.f32.xlu0 %v2237
          %v2279 = vpop.xlane.xlu0 %2278
          %2280 = vadd.xlane.f32.xlu0 %v2238
          %v2281 = vpop.xlane.xlu0 %2280
          %2282 = vadd.xlane.f32.xlu0 %v2239
          %v2283 = vpop.xlane.xlu0 %2282
          %2284 = vadd.xlane.f32.xlu0 %v2240
          %v2285 = vpop.xlane.xlu0 %2284
          %2286 = vadd.xlane.f32.xlu0 %v2241
          %v2287 = vpop.xlane.xlu0 %2286
          %2288 = vadd.xlane.f32.xlu0 %v2242
          %v2289 = vpop.xlane.xlu0 %2288
          %2290 = vadd.xlane.f32.xlu0 %v2243
          %v2291 = vpop.xlane.xlu0 %2290
          %2292 = vadd.xlane.f32.xlu0 %v2244
          %v2293 = vpop.xlane.xlu0 %2292
          %2294 = vadd.xlane.f32.xlu0 %v2245
          %v2295 = vpop.xlane.xlu0 %2294
          %2296 = vadd.xlane.f32.xlu0 %v2246
          %v2297 = vpop.xlane.xlu0 %2296
          %2298 = vadd.xlane.f32.xlu0 %v2247
          %v2299 = vpop.xlane.xlu0 %2298
          %2300 = vadd.xlane.f32.xlu0 %v2248
          %v2301 = vpop.xlane.xlu0 %2300
          %2302 = vadd.xlane.f32.xlu0 %v2249
          %v2303 = vpop.xlane.xlu0 %2302
          %2304 = vadd.xlane.f32.xlu0 %v2250
          %v2305 = vpop.xlane.xlu0 %2304
          %2306 = vadd.xlane.f32.xlu0 %v2251
          %v2307 = vpop.xlane.xlu0 %2306
          %2308 = vadd.xlane.f32.xlu0 %v2252
          %v2309 = vpop.xlane.xlu0 %2308
          %2310 = vadd.xlane.f32.xlu0 %v2253
          %v2311 = vpop.xlane.xlu0 %2310
          %2312 = vadd.xlane.f32.xlu0 %v2254
          %v2313 = vpop.xlane.xlu0 %2312
          %2314 = vadd.xlane.f32.xlu0 %v2255
          %v2315 = vpop.xlane.xlu0 %2314
          %2316 = vadd.xlane.f32.xlu0 %v2256
          %v2317 = vpop.xlane.xlu0 %2316
          %2318 = vadd.xlane.f32.xlu0 %v2257
          %v2319 = vpop.xlane.xlu0 %2318
          %2320 = vadd.xlane.f32.xlu0 %v2258
          %v2321 = vpop.xlane.xlu0 %2320
          %2322 = vadd.xlane.f32.xlu0 %v2259
          %v2323 = vpop.xlane.xlu0 %2322
          %v2324 = vmul.f32 %v2261, %v1469
          %v2325 = vmul.f32 %v2263, %v1469
          %v2326 = vmul.f32 %v2265, %v1469
          %v2327 = vmul.f32 %v2267, %v1469
          %v2328 = vmul.f32 %v2269, %v1469
          %v2329 = vmul.f32 %v2271, %v1469
          %v2330 = vmul.f32 %v2273, %v1469
          %v2331 = vmul.f32 %v2275, %v1469
          %v2332 = vmul.f32 %v2277, %v1469
          %v2333 = vmul.f32 %v2279, %v1469
          %v2334 = vmul.f32 %v2281, %v1469
          %v2335 = vmul.f32 %v2283, %v1469
          %v2336 = vmul.f32 %v2285, %v1469
          %v2337 = vmul.f32 %v2287, %v1469
          %v2338 = vmul.f32 %v2289, %v1469
          %v2339 = vmul.f32 %v2291, %v1469
          %v2340 = vmul.f32 %v2293, %v1469
          %v2341 = vmul.f32 %v2295, %v1469
          %v2342 = vmul.f32 %v2297, %v1469
          %v2343 = vmul.f32 %v2299, %v1469
          %v2344 = vmul.f32 %v2301, %v1469
          %v2345 = vmul.f32 %v2303, %v1469
          %v2346 = vmul.f32 %v2305, %v1469
          %v2347 = vmul.f32 %v2307, %v1469
          %v2348 = vmul.f32 %v2309, %v1469
          %v2349 = vmul.f32 %v2311, %v1469
          %v2350 = vmul.f32 %v2313, %v1469
          %v2351 = vmul.f32 %v2315, %v1469
          %v2352 = vmul.f32 %v2317, %v1469
          %v2353 = vmul.f32 %v2319, %v1469
          %v2354 = vmul.f32 %v2321, %v1469
          %v2355 = vmul.f32 %v2323, %v1469
          %v2356 = vadd.f32 %v2324, 1.1920929e-07
          %v2357 = vadd.f32 %v2325, 1.1920929e-07
          %v2358 = vadd.f32 %v2326, 1.1920929e-07
          %v2359 = vadd.f32 %v2327, 1.1920929e-07
          %v2360 = vadd.f32 %v2328, 1.1920929e-07
          %v2361 = vadd.f32 %v2329, 1.1920929e-07
          %v2362 = vadd.f32 %v2330, 1.1920929e-07
          %v2363 = vadd.f32 %v2331, 1.1920929e-07
          %v2364 = vadd.f32 %v2332, 1.1920929e-07
          %v2365 = vadd.f32 %v2333, 1.1920929e-07
          %v2366 = vadd.f32 %v2334, 1.1920929e-07
          %v2367 = vadd.f32 %v2335, 1.1920929e-07
          %v2368 = vadd.f32 %v2336, 1.1920929e-07
          %v2369 = vadd.f32 %v2337, 1.1920929e-07
          %v2370 = vadd.f32 %v2338, 1.1920929e-07
          %v2371 = vadd.f32 %v2339, 1.1920929e-07
          %v2372 = vadd.f32 %v2340, 1.1920929e-07
          %v2373 = vadd.f32 %v2341, 1.1920929e-07
          %v2374 = vadd.f32 %v2342, 1.1920929e-07
          %v2375 = vadd.f32 %v2343, 1.1920929e-07
          %v2376 = vadd.f32 %v2344, 1.1920929e-07
          %v2377 = vadd.f32 %v2345, 1.1920929e-07
          %v2378 = vadd.f32 %v2346, 1.1920929e-07
          %v2379 = vadd.f32 %v2347, 1.1920929e-07
          %v2380 = vadd.f32 %v2348, 1.1920929e-07
          %v2381 = vadd.f32 %v2349, 1.1920929e-07
          %v2382 = vadd.f32 %v2350, 1.1920929e-07
          %v2383 = vadd.f32 %v2351, 1.1920929e-07
          %v2384 = vadd.f32 %v2352, 1.1920929e-07
          %v2385 = vadd.f32 %v2353, 1.1920929e-07
          %v2386 = vadd.f32 %v2354, 1.1920929e-07
          %v2387 = vadd.f32 %v2355, 1.1920929e-07
          %v2388 = vrsqrt.pop %v2356
          %v2389 = vrsqrt.pop %v2357
          %v2390 = vrsqrt.pop %v2358
          %v2391 = vrsqrt.pop %v2359
          %v2392 = vrsqrt.pop %v2360
          %v2393 = vrsqrt.pop %v2361
          %v2394 = vrsqrt.pop %v2362
          %v2395 = vrsqrt.pop %v2363
          %v2396 = vrsqrt.pop %v2364
          %v2397 = vrsqrt.pop %v2365
          %v2398 = vrsqrt.pop %v2366
          %v2399 = vrsqrt.pop %v2367
          %v2400 = vrsqrt.pop %v2368
          %v2401 = vrsqrt.pop %v2369
          %v2402 = vrsqrt.pop %v2370
          %v2403 = vrsqrt.pop %v2371
          %v2404 = vrsqrt.pop %v2372
          %v2405 = vrsqrt.pop %v2373
          %v2406 = vrsqrt.pop %v2374
          %v2407 = vrsqrt.pop %v2375
          %v2408 = vrsqrt.pop %v2376
          %v2409 = vrsqrt.pop %v2377
          %v2410 = vrsqrt.pop %v2378
          %v2411 = vrsqrt.pop %v2379
          %v2412 = vrsqrt.pop %v2380
          %v2413 = vrsqrt.pop %v2381
          %v2414 = vrsqrt.pop %v2382
          %v2415 = vrsqrt.pop %v2383
          %v2416 = vrsqrt.pop %v2384
          %v2417 = vrsqrt.pop %v2385
          %v2418 = vrsqrt.pop %v2386
          %v2419 = vrsqrt.pop %v2387
          %v2420 = vmul.f32 %v1845, %v2388
          %v2421 = vmul.f32 %v1849, %v2389
          %v2422 = vmul.f32 %v1855, %v2390
          %v2423 = vmul.f32 %v1859, %v2391
          %v2424 = vmul.f32 %v1865, %v2392
          %v2425 = vmul.f32 %v1869, %v2393
          %v2426 = vmul.f32 %v1875, %v2394
          %v2427 = vmul.f32 %v1879, %v2395
          %v2428 = vmul.f32 %v1885, %v2396
          %v2429 = vmul.f32 %v1889, %v2397
          %v2430 = vmul.f32 %v1895, %v2398
          %v2431 = vmul.f32 %v1899, %v2399
          %v2432 = vmul.f32 %v1905, %v2400
          %v2433 = vmul.f32 %v1909, %v2401
          %v2434 = vmul.f32 %v1915, %v2402
          %v2435 = vmul.f32 %v1919, %v2403
          %v2436 = vmul.f32 %v1925, %v2404
          %v2437 = vmul.f32 %v1929, %v2405
          %v2438 = vmul.f32 %v1935, %v2406
          %v2439 = vmul.f32 %v1939, %v2407
          %v2440 = vmul.f32 %v1945, %v2408
          %v2441 = vmul.f32 %v1949, %v2409
          %v2442 = vmul.f32 %v1955, %v2410
          %v2443 = vmul.f32 %v1959, %v2411
          %v2444 = vmul.f32 %v1965, %v2412
          %v2445 = vmul.f32 %v1969, %v2413
          %v2446 = vmul.f32 %v1975, %v2414
          %v2447 = vmul.f32 %v1979, %v2415
          %v2448 = vmul.f32 %v1985, %v2416
          %v2449 = vmul.f32 %v1989, %v2417
          %v2450 = vmul.f32 %v1995, %v2418
          %v2451 = vmul.f32 %v1999, %v2419
          %v2452 = vmul.f32 %v1847, %v1847
          %v2453 = vmul.f32 %v1851, %v1851
          %v2454 = vmul.f32 %v1857, %v1857
          %v2455 = vmul.f32 %v1861, %v1861
          %v2456 = vmul.f32 %v1867, %v1867
          %v2457 = vmul.f32 %v1871, %v1871
          %v2458 = vmul.f32 %v1877, %v1877
          %v2459 = vmul.f32 %v1881, %v1881
          %v2460 = vmul.f32 %v1887, %v1887
          %v2461 = vmul.f32 %v1891, %v1891
          %v2462 = vmul.f32 %v1897, %v1897
          %v2463 = vmul.f32 %v1901, %v1901
          %v2464 = vmul.f32 %v1907, %v1907
          %v2465 = vmul.f32 %v1911, %v1911
          %v2466 = vmul.f32 %v1917, %v1917
          %v2467 = vmul.f32 %v1921, %v1921
          %v2468 = vmul.f32 %v1927, %v1927
          %v2469 = vmul.f32 %v1931, %v1931
          %v2470 = vmul.f32 %v1937, %v1937
          %v2471 = vmul.f32 %v1941, %v1941
          %v2472 = vmul.f32 %v1947, %v1947
          %v2473 = vmul.f32 %v1951, %v1951
          %v2474 = vmul.f32 %v1957, %v1957
          %v2475 = vmul.f32 %v1961, %v1961
          %v2476 = vmul.f32 %v1967, %v1967
          %v2477 = vmul.f32 %v1971, %v1971
          %v2478 = vmul.f32 %v1977, %v1977
          %v2479 = vmul.f32 %v1981, %v1981
          %v2480 = vmul.f32 %v1987, %v1987
          %v2481 = vmul.f32 %v1991, %v1991
          %v2482 = vmul.f32 %v1997, %v1997
          %v2483 = vmul.f32 %v2001, %v2001
          %2484 = vadd.xlane.f32.xlu0 %v2452
          %v2485 = vpop.xlane.xlu0 %2484
          %2486 = vadd.xlane.f32.xlu0 %v2453
          %v2487 = vpop.xlane.xlu0 %2486
          %2488 = vadd.xlane.f32.xlu0 %v2454
          %v2489 = vpop.xlane.xlu0 %2488
          %2490 = vadd.xlane.f32.xlu0 %v2455
          %v2491 = vpop.xlane.xlu0 %2490
          %2492 = vadd.xlane.f32.xlu0 %v2456
          %v2493 = vpop.xlane.xlu0 %2492
          %2494 = vadd.xlane.f32.xlu0 %v2457
          %v2495 = vpop.xlane.xlu0 %2494
          %2496 = vadd.xlane.f32.xlu0 %v2458
          %v2497 = vpop.xlane.xlu0 %2496
          %2498 = vadd.xlane.f32.xlu0 %v2459
          %v2499 = vpop.xlane.xlu0 %2498
          %2500 = vadd.xlane.f32.xlu0 %v2460
          %v2501 = vpop.xlane.xlu0 %2500
          %2502 = vadd.xlane.f32.xlu0 %v2461
          %v2503 = vpop.xlane.xlu0 %2502
          %2504 = vadd.xlane.f32.xlu0 %v2462
          %v2505 = vpop.xlane.xlu0 %2504
          %2506 = vadd.xlane.f32.xlu0 %v2463
          %v2507 = vpop.xlane.xlu0 %2506
          %2508 = vadd.xlane.f32.xlu0 %v2464
          %v2509 = vpop.xlane.xlu0 %2508
          %2510 = vadd.xlane.f32.xlu0 %v2465
          %v2511 = vpop.xlane.xlu0 %2510
          %2512 = vadd.xlane.f32.xlu0 %v2466
          %v2513 = vpop.xlane.xlu0 %2512
          %2514 = vadd.xlane.f32.xlu0 %v2467
          %v2515 = vpop.xlane.xlu0 %2514
          %2516 = vadd.xlane.f32.xlu0 %v2468
          %v2517 = vpop.xlane.xlu0 %2516
          %2518 = vadd.xlane.f32.xlu0 %v2469
          %v2519 = vpop.xlane.xlu0 %2518
          %2520 = vadd.xlane.f32.xlu0 %v2470
          %v2521 = vpop.xlane.xlu0 %2520
          %2522 = vadd.xlane.f32.xlu0 %v2471
          %v2523 = vpop.xlane.xlu0 %2522
          %2524 = vadd.xlane.f32.xlu0 %v2472
          %v2525 = vpop.xlane.xlu0 %2524
          %2526 = vadd.xlane.f32.xlu0 %v2473
          %v2527 = vpop.xlane.xlu0 %2526
          %2528 = vadd.xlane.f32.xlu0 %v2474
          %v2529 = vpop.xlane.xlu0 %2528
          %2530 = vadd.xlane.f32.xlu0 %v2475
          %v2531 = vpop.xlane.xlu0 %2530
          %2532 = vadd.xlane.f32.xlu0 %v2476
          %v2533 = vpop.xlane.xlu0 %2532
          %2534 = vadd.xlane.f32.xlu0 %v2477
          %v2535 = vpop.xlane.xlu0 %2534
          %2536 = vadd.xlane.f32.xlu0 %v2478
          %v2537 = vpop.xlane.xlu0 %2536
          %2538 = vadd.xlane.f32.xlu0 %v2479
          %v2539 = vpop.xlane.xlu0 %2538
          %2540 = vadd.xlane.f32.xlu0 %v2480
          %v2541 = vpop.xlane.xlu0 %2540
          %2542 = vadd.xlane.f32.xlu0 %v2481
          %v2543 = vpop.xlane.xlu0 %2542
          %2544 = vadd.xlane.f32.xlu0 %v2482
          %v2545 = vpop.xlane.xlu0 %2544
          %2546 = vadd.xlane.f32.xlu0 %v2483
          %v2547 = vpop.xlane.xlu0 %2546
          %v2548 = vmul.f32 %v2485, %v1469
          %v2549 = vmul.f32 %v2487, %v1469
          %v2550 = vmul.f32 %v2489, %v1469
          %v2551 = vmul.f32 %v2491, %v1469
          %v2552 = vmul.f32 %v2493, %v1469
          %v2553 = vmul.f32 %v2495, %v1469
          %v2554 = vmul.f32 %v2497, %v1469
          %v2555 = vmul.f32 %v2499, %v1469
          %v2556 = vmul.f32 %v2501, %v1469
          %v2557 = vmul.f32 %v2503, %v1469
          %v2558 = vmul.f32 %v2505, %v1469
          %v2559 = vmul.f32 %v2507, %v1469
          %v2560 = vmul.f32 %v2509, %v1469
          %v2561 = vmul.f32 %v2511, %v1469
          %v2562 = vmul.f32 %v2513, %v1469
          %v2563 = vmul.f32 %v2515, %v1469
          %v2564 = vmul.f32 %v2517, %v1469
          %v2565 = vmul.f32 %v2519, %v1469
          %v2566 = vmul.f32 %v2521, %v1469
          %v2567 = vmul.f32 %v2523, %v1469
          %v2568 = vmul.f32 %v2525, %v1469
          %v2569 = vmul.f32 %v2527, %v1469
          %v2570 = vmul.f32 %v2529, %v1469
          %v2571 = vmul.f32 %v2531, %v1469
          %v2572 = vmul.f32 %v2533, %v1469
          %v2573 = vmul.f32 %v2535, %v1469
          %v2574 = vmul.f32 %v2537, %v1469
          %v2575 = vmul.f32 %v2539, %v1469
          %v2576 = vmul.f32 %v2541, %v1469
          %v2577 = vmul.f32 %v2543, %v1469
          %v2578 = vmul.f32 %v2545, %v1469
          %v2579 = vmul.f32 %v2547, %v1469
          %v2580 = vadd.f32 %v2548, 1.1920929e-07
          %v2581 = vadd.f32 %v2549, 1.1920929e-07
          %v2582 = vadd.f32 %v2550, 1.1920929e-07
          %v2583 = vadd.f32 %v2551, 1.1920929e-07
          %v2584 = vadd.f32 %v2552, 1.1920929e-07
          %v2585 = vadd.f32 %v2553, 1.1920929e-07
          %v2586 = vadd.f32 %v2554, 1.1920929e-07
          %v2587 = vadd.f32 %v2555, 1.1920929e-07
          %v2588 = vadd.f32 %v2556, 1.1920929e-07
          %v2589 = vadd.f32 %v2557, 1.1920929e-07
          %v2590 = vadd.f32 %v2558, 1.1920929e-07
          %v2591 = vadd.f32 %v2559, 1.1920929e-07
          %v2592 = vadd.f32 %v2560, 1.1920929e-07
          %v2593 = vadd.f32 %v2561, 1.1920929e-07
          %v2594 = vadd.f32 %v2562, 1.1920929e-07
          %v2595 = vadd.f32 %v2563, 1.1920929e-07
          %v2596 = vadd.f32 %v2564, 1.1920929e-07
          %v2597 = vadd.f32 %v2565, 1.1920929e-07
          %v2598 = vadd.f32 %v2566, 1.1920929e-07
          %v2599 = vadd.f32 %v2567, 1.1920929e-07
          %v2600 = vadd.f32 %v2568, 1.1920929e-07
          %v2601 = vadd.f32 %v2569, 1.1920929e-07
          %v2602 = vadd.f32 %v2570, 1.1920929e-07
          %v2603 = vadd.f32 %v2571, 1.1920929e-07
          %v2604 = vadd.f32 %v2572, 1.1920929e-07
          %v2605 = vadd.f32 %v2573, 1.1920929e-07
          %v2606 = vadd.f32 %v2574, 1.1920929e-07
          %v2607 = vadd.f32 %v2575, 1.1920929e-07
          %v2608 = vadd.f32 %v2576, 1.1920929e-07
          %v2609 = vadd.f32 %v2577, 1.1920929e-07
          %v2610 = vadd.f32 %v2578, 1.1920929e-07
          %v2611 = vadd.f32 %v2579, 1.1920929e-07
          %v2612 = vrsqrt.pop %v2580
          %v2613 = vrsqrt.pop %v2581
          %v2614 = vrsqrt.pop %v2582
          %v2615 = vrsqrt.pop %v2583
          %v2616 = vrsqrt.pop %v2584
          %v2617 = vrsqrt.pop %v2585
          %v2618 = vrsqrt.pop %v2586
          %v2619 = vrsqrt.pop %v2587
          %v2620 = vrsqrt.pop %v2588
          %v2621 = vrsqrt.pop %v2589
          %v2622 = vrsqrt.pop %v2590
          %v2623 = vrsqrt.pop %v2591
          %v2624 = vrsqrt.pop %v2592
          %v2625 = vrsqrt.pop %v2593
          %v2626 = vrsqrt.pop %v2594
          %v2627 = vrsqrt.pop %v2595
          %v2628 = vrsqrt.pop %v2596
          %v2629 = vrsqrt.pop %v2597
          %v2630 = vrsqrt.pop %v2598
          %v2631 = vrsqrt.pop %v2599
          %v2632 = vrsqrt.pop %v2600
          %v2633 = vrsqrt.pop %v2601
          %v2634 = vrsqrt.pop %v2602
          %v2635 = vrsqrt.pop %v2603
          %v2636 = vrsqrt.pop %v2604
          %v2637 = vrsqrt.pop %v2605
          %v2638 = vrsqrt.pop %v2606
          %v2639 = vrsqrt.pop %v2607
          %v2640 = vrsqrt.pop %v2608
          %v2641 = vrsqrt.pop %v2609
          %v2642 = vrsqrt.pop %v2610
          %v2643 = vrsqrt.pop %v2611
          %v2644 = vmul.f32 %v1847, %v2612
          %v2645 = vmul.f32 %v1851, %v2613
          %v2646 = vmul.f32 %v1857, %v2614
          %v2647 = vmul.f32 %v1861, %v2615
          %v2648 = vmul.f32 %v1867, %v2616
          %v2649 = vmul.f32 %v1871, %v2617
          %v2650 = vmul.f32 %v1877, %v2618
          %v2651 = vmul.f32 %v1881, %v2619
          %v2652 = vmul.f32 %v1887, %v2620
          %v2653 = vmul.f32 %v1891, %v2621
          %v2654 = vmul.f32 %v1897, %v2622
          %v2655 = vmul.f32 %v1901, %v2623
          %v2656 = vmul.f32 %v1907, %v2624
          %v2657 = vmul.f32 %v1911, %v2625
          %v2658 = vmul.f32 %v1917, %v2626
          %v2659 = vmul.f32 %v1921, %v2627
          %v2660 = vmul.f32 %v1927, %v2628
          %v2661 = vmul.f32 %v1931, %v2629
          %v2662 = vmul.f32 %v1937, %v2630
          %v2663 = vmul.f32 %v1941, %v2631
          %v2664 = vmul.f32 %v1947, %v2632
          %v2665 = vmul.f32 %v1951, %v2633
          %v2666 = vmul.f32 %v1957, %v2634
          %v2667 = vmul.f32 %v1961, %v2635
          %v2668 = vmul.f32 %v1967, %v2636
          %v2669 = vmul.f32 %v1971, %v2637
          %v2670 = vmul.f32 %v1977, %v2638
          %v2671 = vmul.f32 %v1981, %v2639
          %v2672 = vmul.f32 %v1987, %v2640
          %v2673 = vmul.f32 %v1991, %v2641
          %v2674 = vmul.f32 %v1997, %v2642
          %v2675 = vmul.f32 %v2001, %v2643
          %v2676 = vmul.f32 %v2420, %v2164
          %v2677 = vmul.f32 %v2421, %v2165
          %v2678 = vmul.f32 %v2422, %v2166
          %v2679 = vmul.f32 %v2423, %v2167
          %v2680 = vmul.f32 %v2424, %v2168
          %v2681 = vmul.f32 %v2425, %v2169
          %v2682 = vmul.f32 %v2426, %v2170
          %v2683 = vmul.f32 %v2427, %v2171
          %v2684 = vmul.f32 %v2428, %v2172
          %v2685 = vmul.f32 %v2429, %v2173
          %v2686 = vmul.f32 %v2430, %v2174
          %v2687 = vmul.f32 %v2431, %v2175
          %v2688 = vmul.f32 %v2432, %v2176
          %v2689 = vmul.f32 %v2433, %v2177
          %v2690 = vmul.f32 %v2434, %v2178
          %v2691 = vmul.f32 %v2435, %v2179
          %v2692 = vmul.f32 %v2436, %v2180
          %v2693 = vmul.f32 %v2437, %v2181
          %v2694 = vmul.f32 %v2438, %v2182
          %v2695 = vmul.f32 %v2439, %v2183
          %v2696 = vmul.f32 %v2440, %v2184
          %v2697 = vmul.f32 %v2441, %v2185
          %v2698 = vmul.f32 %v2442, %v2186
          %v2699 = vmul.f32 %v2443, %v2187
          %v2700 = vmul.f32 %v2444, %v2188
          %v2701 = vmul.f32 %v2445, %v2189
          %v2702 = vmul.f32 %v2446, %v2190
          %v2703 = vmul.f32 %v2447, %v2191
          %v2704 = vmul.f32 %v2448, %v2192
          %v2705 = vmul.f32 %v2449, %v2193
          %v2706 = vmul.f32 %v2450, %v2194
          %v2707 = vmul.f32 %v2451, %v2195
          %2708 = vrot.lane.b32.xlu0 %v2420, 64
          %v2709 = vpop.permute.xlu0 %2708
          %2710 = vrot.lane.b32.xlu0 %v2421, 64
          %v2711 = vpop.permute.xlu0 %2710
          %2712 = vrot.lane.b32.xlu0 %v2422, 64
          %v2713 = vpop.permute.xlu0 %2712
          %2714 = vrot.lane.b32.xlu0 %v2423, 64
          %v2715 = vpop.permute.xlu0 %2714
          %2716 = vrot.lane.b32.xlu0 %v2424, 64
          %v2717 = vpop.permute.xlu0 %2716
          %2718 = vrot.lane.b32.xlu0 %v2425, 64
          %v2719 = vpop.permute.xlu0 %2718
          %2720 = vrot.lane.b32.xlu0 %v2426, 64
          %v2721 = vpop.permute.xlu0 %2720
          %2722 = vrot.lane.b32.xlu0 %v2427, 64
          %v2723 = vpop.permute.xlu0 %2722
          %2724 = vrot.lane.b32.xlu0 %v2428, 64
          %v2725 = vpop.permute.xlu0 %2724
          %2726 = vrot.lane.b32.xlu0 %v2429, 64
          %v2727 = vpop.permute.xlu0 %2726
          %2728 = vrot.lane.b32.xlu0 %v2430, 64
          %v2729 = vpop.permute.xlu0 %2728
          %2730 = vrot.lane.b32.xlu0 %v2431, 64
          %v2731 = vpop.permute.xlu0 %2730
          %2732 = vrot.lane.b32.xlu0 %v2432, 64
          %v2733 = vpop.permute.xlu0 %2732
          %2734 = vrot.lane.b32.xlu0 %v2433, 64
          %v2735 = vpop.permute.xlu0 %2734
          %2736 = vrot.lane.b32.xlu0 %v2434, 64
          %v2737 = vpop.permute.xlu0 %2736
          %2738 = vrot.lane.b32.xlu0 %v2435, 64
          %v2739 = vpop.permute.xlu0 %2738
          %2740 = vrot.lane.b32.xlu0 %v2436, 64
          %v2741 = vpop.permute.xlu0 %2740
          %2742 = vrot.lane.b32.xlu0 %v2437, 64
          %v2743 = vpop.permute.xlu0 %2742
          %2744 = vrot.lane.b32.xlu0 %v2438, 64
          %v2745 = vpop.permute.xlu0 %2744
          %2746 = vrot.lane.b32.xlu0 %v2439, 64
          %v2747 = vpop.permute.xlu0 %2746
          %2748 = vrot.lane.b32.xlu0 %v2440, 64
          %v2749 = vpop.permute.xlu0 %2748
          %2750 = vrot.lane.b32.xlu0 %v2441, 64
          %v2751 = vpop.permute.xlu0 %2750
          %2752 = vrot.lane.b32.xlu0 %v2442, 64
          %v2753 = vpop.permute.xlu0 %2752
          %2754 = vrot.lane.b32.xlu0 %v2443, 64
          %v2755 = vpop.permute.xlu0 %2754
          %2756 = vrot.lane.b32.xlu0 %v2444, 64
          %v2757 = vpop.permute.xlu0 %2756
          %2758 = vrot.lane.b32.xlu0 %v2445, 64
          %v2759 = vpop.permute.xlu0 %2758
          %2760 = vrot.lane.b32.xlu0 %v2446, 64
          %v2761 = vpop.permute.xlu0 %2760
          %2762 = vrot.lane.b32.xlu0 %v2447, 64
          %v2763 = vpop.permute.xlu0 %2762
          %2764 = vrot.lane.b32.xlu0 %v2448, 64
          %v2765 = vpop.permute.xlu0 %2764
          %2766 = vrot.lane.b32.xlu0 %v2449, 64
          %v2767 = vpop.permute.xlu0 %2766
          %2768 = vrot.lane.b32.xlu0 %v2450, 64
          %v2769 = vpop.permute.xlu0 %2768
          %2770 = vrot.lane.b32.xlu0 %v2451, 64
          %v2771 = vpop.permute.xlu0 %2770
          %v2772 = vmul.f32 %v2709, %v2196
          %v2773 = vmul.f32 %v2711, %v2197
          %v2774 = vmul.f32 %v2713, %v2198
          %v2775 = vmul.f32 %v2715, %v2199
          %v2776 = vmul.f32 %v2717, %v2200
          %v2777 = vmul.f32 %v2719, %v2201
          %v2778 = vmul.f32 %v2721, %v2202
          %v2779 = vmul.f32 %v2723, %v2203
          %v2780 = vmul.f32 %v2725, %v2204
          %v2781 = vmul.f32 %v2727, %v2205
          %v2782 = vmul.f32 %v2729, %v2206
          %v2783 = vmul.f32 %v2731, %v2207
          %v2784 = vmul.f32 %v2733, %v2208
          %v2785 = vmul.f32 %v2735, %v2209
          %v2786 = vmul.f32 %v2737, %v2210
          %v2787 = vmul.f32 %v2739, %v2211
          %v2788 = vmul.f32 %v2741, %v2212
          %v2789 = vmul.f32 %v2743, %v2213
          %v2790 = vmul.f32 %v2745, %v2214
          %v2791 = vmul.f32 %v2747, %v2215
          %v2792 = vmul.f32 %v2749, %v2216
          %v2793 = vmul.f32 %v2751, %v2217
          %v2794 = vmul.f32 %v2753, %v2218
          %v2795 = vmul.f32 %v2755, %v2219
          %v2796 = vmul.f32 %v2757, %v2220
          %v2797 = vmul.f32 %v2759, %v2221
          %v2798 = vmul.f32 %v2761, %v2222
          %v2799 = vmul.f32 %v2763, %v2223
          %v2800 = vmul.f32 %v2765, %v2224
          %v2801 = vmul.f32 %v2767, %v2225
          %v2802 = vmul.f32 %v2769, %v2226
          %v2803 = vmul.f32 %v2771, %v2227
          %v2804 = vadd.f32 %v2676, %v2772
          %v2805 = vadd.f32 %v2677, %v2773
          %v2806 = vadd.f32 %v2678, %v2774
          %v2807 = vadd.f32 %v2679, %v2775
          %v2808 = vadd.f32 %v2680, %v2776
          %v2809 = vadd.f32 %v2681, %v2777
          %v2810 = vadd.f32 %v2682, %v2778
          %v2811 = vadd.f32 %v2683, %v2779
          %v2812 = vadd.f32 %v2684, %v2780
          %v2813 = vadd.f32 %v2685, %v2781
          %v2814 = vadd.f32 %v2686, %v2782
          %v2815 = vadd.f32 %v2687, %v2783
          %v2816 = vadd.f32 %v2688, %v2784
          %v2817 = vadd.f32 %v2689, %v2785
          %v2818 = vadd.f32 %v2690, %v2786
          %v2819 = vadd.f32 %v2691, %v2787
          %v2820 = vadd.f32 %v2692, %v2788
          %v2821 = vadd.f32 %v2693, %v2789
          %v2822 = vadd.f32 %v2694, %v2790
          %v2823 = vadd.f32 %v2695, %v2791
          %v2824 = vadd.f32 %v2696, %v2792
          %v2825 = vadd.f32 %v2697, %v2793
          %v2826 = vadd.f32 %v2698, %v2794
          %v2827 = vadd.f32 %v2699, %v2795
          %v2828 = vadd.f32 %v2700, %v2796
          %v2829 = vadd.f32 %v2701, %v2797
          %v2830 = vadd.f32 %v2702, %v2798
          %v2831 = vadd.f32 %v2703, %v2799
          %v2832 = vadd.f32 %v2704, %v2800
          %v2833 = vadd.f32 %v2705, %v2801
          %v2834 = vadd.f32 %v2706, %v2802
          %v2835 = vadd.f32 %v2707, %v2803
          %v2836 = vmul.f32 %v2644, %v2164
          %v2837 = vmul.f32 %v2645, %v2165
          %v2838 = vmul.f32 %v2646, %v2166
          %v2839 = vmul.f32 %v2647, %v2167
          %v2840 = vmul.f32 %v2648, %v2168
          %v2841 = vmul.f32 %v2649, %v2169
          %v2842 = vmul.f32 %v2650, %v2170
          %v2843 = vmul.f32 %v2651, %v2171
          %v2844 = vmul.f32 %v2652, %v2172
          %v2845 = vmul.f32 %v2653, %v2173
          %v2846 = vmul.f32 %v2654, %v2174
          %v2847 = vmul.f32 %v2655, %v2175
          %v2848 = vmul.f32 %v2656, %v2176
          %v2849 = vmul.f32 %v2657, %v2177
          %v2850 = vmul.f32 %v2658, %v2178
          %v2851 = vmul.f32 %v2659, %v2179
          %v2852 = vmul.f32 %v2660, %v2180
          %v2853 = vmul.f32 %v2661, %v2181
          %v2854 = vmul.f32 %v2662, %v2182
          %v2855 = vmul.f32 %v2663, %v2183
          %v2856 = vmul.f32 %v2664, %v2184
          %v2857 = vmul.f32 %v2665, %v2185
          %v2858 = vmul.f32 %v2666, %v2186
          %v2859 = vmul.f32 %v2667, %v2187
          %v2860 = vmul.f32 %v2668, %v2188
          %v2861 = vmul.f32 %v2669, %v2189
          %v2862 = vmul.f32 %v2670, %v2190
          %v2863 = vmul.f32 %v2671, %v2191
          %v2864 = vmul.f32 %v2672, %v2192
          %v2865 = vmul.f32 %v2673, %v2193
          %v2866 = vmul.f32 %v2674, %v2194
          %v2867 = vmul.f32 %v2675, %v2195
          %2868 = vrot.lane.b32.xlu0 %v2644, 64
          %v2869 = vpop.permute.xlu0 %2868
          %2870 = vrot.lane.b32.xlu0 %v2645, 64
          %v2871 = vpop.permute.xlu0 %2870
          %2872 = vrot.lane.b32.xlu0 %v2646, 64
          %v2873 = vpop.permute.xlu0 %2872
          %2874 = vrot.lane.b32.xlu0 %v2647, 64
          %v2875 = vpop.permute.xlu0 %2874
          %2876 = vrot.lane.b32.xlu0 %v2648, 64
          %v2877 = vpop.permute.xlu0 %2876
          %2878 = vrot.lane.b32.xlu0 %v2649, 64
          %v2879 = vpop.permute.xlu0 %2878
          %2880 = vrot.lane.b32.xlu0 %v2650, 64
          %v2881 = vpop.permute.xlu0 %2880
          %2882 = vrot.lane.b32.xlu0 %v2651, 64
          %v2883 = vpop.permute.xlu0 %2882
          %2884 = vrot.lane.b32.xlu0 %v2652, 64
          %v2885 = vpop.permute.xlu0 %2884
          %2886 = vrot.lane.b32.xlu0 %v2653, 64
          %v2887 = vpop.permute.xlu0 %2886
          %2888 = vrot.lane.b32.xlu0 %v2654, 64
          %v2889 = vpop.permute.xlu0 %2888
          %2890 = vrot.lane.b32.xlu0 %v2655, 64
          %v2891 = vpop.permute.xlu0 %2890
          %2892 = vrot.lane.b32.xlu0 %v2656, 64
          %v2893 = vpop.permute.xlu0 %2892
          %2894 = vrot.lane.b32.xlu0 %v2657, 64
          %v2895 = vpop.permute.xlu0 %2894
          %2896 = vrot.lane.b32.xlu0 %v2658, 64
          %v2897 = vpop.permute.xlu0 %2896
          %2898 = vrot.lane.b32.xlu0 %v2659, 64
          %v2899 = vpop.permute.xlu0 %2898
          %2900 = vrot.lane.b32.xlu0 %v2660, 64
          %v2901 = vpop.permute.xlu0 %2900
          %2902 = vrot.lane.b32.xlu0 %v2661, 64
          %v2903 = vpop.permute.xlu0 %2902
          %2904 = vrot.lane.b32.xlu0 %v2662, 64
          %v2905 = vpop.permute.xlu0 %2904
          %2906 = vrot.lane.b32.xlu0 %v2663, 64
          %v2907 = vpop.permute.xlu0 %2906
          %2908 = vrot.lane.b32.xlu0 %v2664, 64
          %v2909 = vpop.permute.xlu0 %2908
          %2910 = vrot.lane.b32.xlu0 %v2665, 64
          %v2911 = vpop.permute.xlu0 %2910
          %2912 = vrot.lane.b32.xlu0 %v2666, 64
          %v2913 = vpop.permute.xlu0 %2912
          %2914 = vrot.lane.b32.xlu0 %v2667, 64
          %v2915 = vpop.permute.xlu0 %2914
          %2916 = vrot.lane.b32.xlu0 %v2668, 64
          %v2917 = vpop.permute.xlu0 %2916
          %2918 = vrot.lane.b32.xlu0 %v2669, 64
          %v2919 = vpop.permute.xlu0 %2918
          %2920 = vrot.lane.b32.xlu0 %v2670, 64
          %v2921 = vpop.permute.xlu0 %2920
          %2922 = vrot.lane.b32.xlu0 %v2671, 64
          %v2923 = vpop.permute.xlu0 %2922
          %2924 = vrot.lane.b32.xlu0 %v2672, 64
          %v2925 = vpop.permute.xlu0 %2924
          %2926 = vrot.lane.b32.xlu0 %v2673, 64
          %v2927 = vpop.permute.xlu0 %2926
          %2928 = vrot.lane.b32.xlu0 %v2674, 64
          %v2929 = vpop.permute.xlu0 %2928
          %2930 = vrot.lane.b32.xlu0 %v2675, 64
          %v2931 = vpop.permute.xlu0 %2930
          %v2932 = vmul.f32 %v2869, %v2196
          %v2933 = vmul.f32 %v2871, %v2197
          %v2934 = vmul.f32 %v2873, %v2198
          %v2935 = vmul.f32 %v2875, %v2199
          %v2936 = vmul.f32 %v2877, %v2200
          %v2937 = vmul.f32 %v2879, %v2201
          %v2938 = vmul.f32 %v2881, %v2202
          %v2939 = vmul.f32 %v2883, %v2203
          %v2940 = vmul.f32 %v2885, %v2204
          %v2941 = vmul.f32 %v2887, %v2205
          %v2942 = vmul.f32 %v2889, %v2206
          %v2943 = vmul.f32 %v2891, %v2207
          %v2944 = vmul.f32 %v2893, %v2208
          %v2945 = vmul.f32 %v2895, %v2209
          %v2946 = vmul.f32 %v2897, %v2210
          %v2947 = vmul.f32 %v2899, %v2211
          %v2948 = vmul.f32 %v2901, %v2212
          %v2949 = vmul.f32 %v2903, %v2213
          %v2950 = vmul.f32 %v2905, %v2214
          %v2951 = vmul.f32 %v2907, %v2215
          %v2952 = vmul.f32 %v2909, %v2216
          %v2953 = vmul.f32 %v2911, %v2217
          %v2954 = vmul.f32 %v2913, %v2218
          %v2955 = vmul.f32 %v2915, %v2219
          %v2956 = vmul.f32 %v2917, %v2220
          %v2957 = vmul.f32 %v2919, %v2221
          %v2958 = vmul.f32 %v2921, %v2222
          %v2959 = vmul.f32 %v2923, %v2223
          %v2960 = vmul.f32 %v2925, %v2224
          %v2961 = vmul.f32 %v2927, %v2225
          %v2962 = vmul.f32 %v2929, %v2226
          %v2963 = vmul.f32 %v2931, %v2227
          %v2964 = vadd.f32 %v2836, %v2932
          %v2965 = vadd.f32 %v2837, %v2933
          %v2966 = vadd.f32 %v2838, %v2934
          %v2967 = vadd.f32 %v2839, %v2935
          %v2968 = vadd.f32 %v2840, %v2936
          %v2969 = vadd.f32 %v2841, %v2937
          %v2970 = vadd.f32 %v2842, %v2938
          %v2971 = vadd.f32 %v2843, %v2939
          %v2972 = vadd.f32 %v2844, %v2940
          %v2973 = vadd.f32 %v2845, %v2941
          %v2974 = vadd.f32 %v2846, %v2942
          %v2975 = vadd.f32 %v2847, %v2943
          %v2976 = vadd.f32 %v2848, %v2944
          %v2977 = vadd.f32 %v2849, %v2945
          %v2978 = vadd.f32 %v2850, %v2946
          %v2979 = vadd.f32 %v2851, %v2947
          %v2980 = vadd.f32 %v2852, %v2948
          %v2981 = vadd.f32 %v2853, %v2949
          %v2982 = vadd.f32 %v2854, %v2950
          %v2983 = vadd.f32 %v2855, %v2951
          %v2984 = vadd.f32 %v2856, %v2952
          %v2985 = vadd.f32 %v2857, %v2953
          %v2986 = vadd.f32 %v2858, %v2954
          %v2987 = vadd.f32 %v2859, %v2955
          %v2988 = vadd.f32 %v2860, %v2956
          %v2989 = vadd.f32 %v2861, %v2957
          %v2990 = vadd.f32 %v2862, %v2958
          %v2991 = vadd.f32 %v2863, %v2959
          %v2992 = vadd.f32 %v2864, %v2960
          %v2993 = vadd.f32 %v2865, %v2961
          %v2994 = vadd.f32 %v2866, %v2962
          %v2995 = vadd.f32 %v2867, %v2963
          %s2996 = sld [smem:[#allocation10 + %s1101]]
          %s2997 = sld [smem:[#allocation10 + %s1103]]
          %v2998 = vstv %s2996
          %v2999 = vmul.f32 %v2998, %v2038
          %v3000 = vmul.f32 %v2998, %v2041
          %v3001 = vmul.f32 %v2998, %v2046
          %v3002 = vmul.f32 %v2998, %v2049
          %v3003 = vmul.f32 %v2998, %v2054
          %v3004 = vmul.f32 %v2998, %v2057
          %v3005 = vmul.f32 %v2998, %v2062
          %v3006 = vmul.f32 %v2998, %v2065
          %v3007 = vmul.f32 %v2998, %v2070
          %v3008 = vmul.f32 %v2998, %v2073
          %v3009 = vmul.f32 %v2998, %v2078
          %v3010 = vmul.f32 %v2998, %v2081
          %v3011 = vmul.f32 %v2998, %v2086
          %v3012 = vmul.f32 %v2998, %v2089
          %v3013 = vmul.f32 %v2998, %v2094
          %v3014 = vmul.f32 %v2998, %v2097
          %v3015 = vmul.f32 %v2998, %v2102
          %v3016 = vmul.f32 %v2998, %v2105
          %v3017 = vmul.f32 %v2998, %v2110
          %v3018 = vmul.f32 %v2998, %v2113
          %v3019 = vmul.f32 %v2998, %v2118
          %v3020 = vmul.f32 %v2998, %v2121
          %v3021 = vmul.f32 %v2998, %v2126
          %v3022 = vmul.f32 %v2998, %v2129
          %v3023 = vmul.f32 %v2998, %v2134
          %v3024 = vmul.f32 %v2998, %v2137
          %v3025 = vmul.f32 %v2998, %v2142
          %v3026 = vmul.f32 %v2998, %v2145
          %v3027 = vmul.f32 %v2998, %v2150
          %v3028 = vmul.f32 %v2998, %v2153
          %v3029 = vmul.f32 %v2998, %v2158
          %v3030 = vmul.f32 %v2998, %v2161
          %v3031 = vld [vmem:[%s554] sm:$0xff]
          %v3032 = vld [vmem:[%s554 + $0x8] sm:$0xff]
          %v3033 = vld [vmem:[%s554 + $0x10] sm:$0xff]
          %v3034 = vld [vmem:[%s554 + $0x18] sm:$0xff]
          %v3035 = vld [vmem:[%s554 + $0x20] sm:$0xff]
          %v3036 = vld [vmem:[%s554 + $0x28] sm:$0xff]
          %v3037 = vld [vmem:[%s554 + $0x30] sm:$0xff]
          %v3038 = vld [vmem:[%s554 + $0x38] sm:$0xff]
          %v3039 = vld [vmem:[%s554 + $0x40] sm:$0xff]
          %v3040 = vld [vmem:[%s554 + $0x48] sm:$0xff]
          %v3041 = vld [vmem:[%s554 + $0x50] sm:$0xff]
          %v3042 = vld [vmem:[%s554 + $0x58] sm:$0xff]
          %v3043 = vld [vmem:[%s554 + $0x60] sm:$0xff]
          %v3044 = vld [vmem:[%s554 + $0x68] sm:$0xff]
          %v3045 = vld [vmem:[%s554 + $0x70] sm:$0xff]
          %v3046 = vld [vmem:[%s554 + $0x78] sm:$0xff]
          %v3047 = vld [vmem:[%s554 + $0x80] sm:$0xff]
          %v3048 = vld [vmem:[%s554 + $0x88] sm:$0xff]
          %v3049 = vld [vmem:[%s554 + $0x90] sm:$0xff]
          %v3050 = vld [vmem:[%s554 + $0x98] sm:$0xff]
          %v3051 = vld [vmem:[%s554 + $0xa0] sm:$0xff]
          %v3052 = vld [vmem:[%s554 + $0xa8] sm:$0xff]
          %v3053 = vld [vmem:[%s554 + $0xb0] sm:$0xff]
          %v3054 = vld [vmem:[%s554 + $0xb8] sm:$0xff]
          %v3055 = vld [vmem:[%s554 + $0xc0] sm:$0xff]
          %v3056 = vld [vmem:[%s554 + $0xc8] sm:$0xff]
          %v3057 = vld [vmem:[%s554 + $0xd0] sm:$0xff]
          %v3058 = vld [vmem:[%s554 + $0xd8] sm:$0xff]
          %v3059 = vld [vmem:[%s554 + $0xe0] sm:$0xff]
          %v3060 = vld [vmem:[%s554 + $0xe8] sm:$0xff]
          %v3061 = vld [vmem:[%s554 + $0xf0] sm:$0xff]
          %v3062 = vld [vmem:[%s554 + $0xf8] sm:$0xff]
          %v3063 = vstv %s2997
          %v3064 = vmul.f32 %v3063, %v3031
          %v3065 = vmul.f32 %v3063, %v3032
          %v3066 = vmul.f32 %v3063, %v3033
          %v3067 = vmul.f32 %v3063, %v3034
          %v3068 = vmul.f32 %v3063, %v3035
          %v3069 = vmul.f32 %v3063, %v3036
          %v3070 = vmul.f32 %v3063, %v3037
          %v3071 = vmul.f32 %v3063, %v3038
          %v3072 = vmul.f32 %v3063, %v3039
          %v3073 = vmul.f32 %v3063, %v3040
          %v3074 = vmul.f32 %v3063, %v3041
          %v3075 = vmul.f32 %v3063, %v3042
          %v3076 = vmul.f32 %v3063, %v3043
          %v3077 = vmul.f32 %v3063, %v3044
          %v3078 = vmul.f32 %v3063, %v3045
          %v3079 = vmul.f32 %v3063, %v3046
          %v3080 = vmul.f32 %v3063, %v3047
          %v3081 = vmul.f32 %v3063, %v3048
          %v3082 = vmul.f32 %v3063, %v3049
          %v3083 = vmul.f32 %v3063, %v3050
          %v3084 = vmul.f32 %v3063, %v3051
          %v3085 = vmul.f32 %v3063, %v3052
          %v3086 = vmul.f32 %v3063, %v3053
          %v3087 = vmul.f32 %v3063, %v3054
          %v3088 = vmul.f32 %v3063, %v3055
          %v3089 = vmul.f32 %v3063, %v3056
          %v3090 = vmul.f32 %v3063, %v3057
          %v3091 = vmul.f32 %v3063, %v3058
          %v3092 = vmul.f32 %v3063, %v3059
          %v3093 = vmul.f32 %v3063, %v3060
          %v3094 = vmul.f32 %v3063, %v3061
          %v3095 = vmul.f32 %v3063, %v3062
          %v3096 = vadd.f32 %v2999, %v3064
          %v3097 = vadd.f32 %v3000, %v3065
          %v3098 = vadd.f32 %v3001, %v3066
          %v3099 = vadd.f32 %v3002, %v3067
          %v3100 = vadd.f32 %v3003, %v3068
          %v3101 = vadd.f32 %v3004, %v3069
          %v3102 = vadd.f32 %v3005, %v3070
          %v3103 = vadd.f32 %v3006, %v3071
          %v3104 = vadd.f32 %v3007, %v3072
          %v3105 = vadd.f32 %v3008, %v3073
          %v3106 = vadd.f32 %v3009, %v3074
          %v3107 = vadd.f32 %v3010, %v3075
          %v3108 = vadd.f32 %v3011, %v3076
          %v3109 = vadd.f32 %v3012, %v3077
          %v3110 = vadd.f32 %v3013, %v3078
          %v3111 = vadd.f32 %v3014, %v3079
          %v3112 = vadd.f32 %v3015, %v3080
          %v3113 = vadd.f32 %v3016, %v3081
          %v3114 = vadd.f32 %v3017, %v3082
          %v3115 = vadd.f32 %v3018, %v3083
          %v3116 = vadd.f32 %v3019, %v3084
          %v3117 = vadd.f32 %v3020, %v3085
          %v3118 = vadd.f32 %v3021, %v3086
          %v3119 = vadd.f32 %v3022, %v3087
          %v3120 = vadd.f32 %v3023, %v3088
          %v3121 = vadd.f32 %v3024, %v3089
          %v3122 = vadd.f32 %v3025, %v3090
          %v3123 = vadd.f32 %v3026, %v3091
          %v3124 = vadd.f32 %v3027, %v3092
          %v3125 = vadd.f32 %v3028, %v3093
          %v3126 = vadd.f32 %v3029, %v3094
          %v3127 = vadd.f32 %v3030, %v3095
          %v3128 = vpack.c.bf16 %v2805, %v2804
          %v3129 = vpack.c.bf16 %v2807, %v2806
          %v3130 = vpack.c.bf16 %v2809, %v2808
          %v3131 = vpack.c.bf16 %v2811, %v2810
          %v3132 = vpack.c.bf16 %v2813, %v2812
          %v3133 = vpack.c.bf16 %v2815, %v2814
          %v3134 = vpack.c.bf16 %v2817, %v2816
          %v3135 = vpack.c.bf16 %v2819, %v2818
          %v3136 = vpack.c.bf16 %v2821, %v2820
          %v3137 = vpack.c.bf16 %v2823, %v2822
          %v3138 = vpack.c.bf16 %v2825, %v2824
          %v3139 = vpack.c.bf16 %v2827, %v2826
          %v3140 = vpack.c.bf16 %v2829, %v2828
          %v3141 = vpack.c.bf16 %v2831, %v2830
          %v3142 = vpack.c.bf16 %v2833, %v2832
          %v3143 = vpack.c.bf16 %v2835, %v2834
          %v3144 = vpack.c.bf16 %v2965, %v2964
          %v3145 = vpack.c.bf16 %v2967, %v2966
          %v3146 = vpack.c.bf16 %v2969, %v2968
          %v3147 = vpack.c.bf16 %v2971, %v2970
          %v3148 = vpack.c.bf16 %v2973, %v2972
          %v3149 = vpack.c.bf16 %v2975, %v2974
          %v3150 = vpack.c.bf16 %v2977, %v2976
          %v3151 = vpack.c.bf16 %v2979, %v2978
          %v3152 = vpack.c.bf16 %v2981, %v2980
          %v3153 = vpack.c.bf16 %v2983, %v2982
          %v3154 = vpack.c.bf16 %v2985, %v2984
          %v3155 = vpack.c.bf16 %v2987, %v2986
          %v3156 = vpack.c.bf16 %v2989, %v2988
          %v3157 = vpack.c.bf16 %v2991, %v2990
          %v3158 = vpack.c.bf16 %v2993, %v2992
          %v3159 = vpack.c.bf16 %v2995, %v2994
          %3160 = vmatprep.subr.bf16.mxu0 0
          %3161 = vmatpush1.bf16.xpose.msra.mxu0 %v3151
          %3162 = vmatprep.subr.bf16.mxu0 0
          %3163 = vmatpush1.bf16.xpose.msra.mxu0 %v3150
          %3164 = vmatprep.subr.bf16.mxu0 0
          %3165 = vmatpush1.bf16.xpose.msra.mxu0 %v3149
          %3166 = vmatprep.subr.bf16.mxu0 0
          %3167 = vmatpush1.bf16.xpose.msra.mxu0 %v3148
          %3168 = vmatprep.subr.bf16.mxu0 0
          %3169 = vmatpush1.bf16.xpose.msra.mxu0 %v3147
          %3170 = vmatprep.subr.bf16.mxu0 0
          %3171 = vmatpush1.bf16.xpose.msra.mxu0 %v3146
          %3172 = vmatprep.subr.bf16.mxu0 0
          %3173 = vmatpush1.bf16.xpose.msra.mxu0 %v3145
          %3174 = vmatprep.subr.bf16.mxu0 0
          %3175 = vmatpush1.bf16.xpose.msra.mxu0 %v3144
          %3176 = vmatprep.subr.bf16.mxu0 0
          %3177 = vmatpush2.bf16.xpose.msra.mxu0 %v3159
          %3178 = vmatprep.subr.bf16.mxu0 0
          %3179 = vmatpush2.bf16.xpose.msra.mxu0 %v3158
          %3180 = vmatprep.subr.bf16.mxu0 0
          %3181 = vmatpush2.bf16.xpose.msra.mxu0 %v3157
          %3182 = vmatprep.subr.bf16.mxu0 0
          %3183 = vmatpush2.bf16.xpose.msra.mxu0 %v3156
          %3184 = vmatprep.subr.bf16.mxu0 0
          %3185 = vmatpush2.bf16.xpose.msra.mxu0 %v3155
          %3186 = vmatprep.subr.bf16.mxu0 0
          %3187 = vmatpush2.bf16.xpose.msra.mxu0 %v3154
          %3188 = vmatprep.subr.bf16.mxu0 0
          %3189 = vmatpush2.bf16.xpose.msra.mxu0 %v3153
          %3190 = vmatprep.subr.bf16.mxu0 0
          %3191 = vmatpush2.bf16.xpose.msra.mxu0 %v3152
          %3192 = vmatprep.mubr.bf16.mxu0 0
          %3193 = vmatmul.mubr.bf16.gmra.mxu0 %v3128
          %v3194 = vpop.f32.mrf.mxu0
          %v3195 = vadd.f32 0.0, %v3194
          %v3196 = vpop.f32.mrf.mxu0
          %v3197 = vadd.f32 0.0, %v3196
          %v3198 = vpop.f32.mrf.mxu0
          %v3199 = vadd.f32 0.0, %v3198
          %v3200 = vpop.f32.mrf.mxu0
          %v3201 = vadd.f32 0.0, %v3200
          %3202 = vmatprep.mubr.bf16.mxu0 0
          %3203 = vmatmul.mubr.bf16.gmra.mxu0 %v3129
          %v3204 = vpop.f32.mrf.mxu0
          %v3205 = vadd.f32 0.0, %v3204
          %v3206 = vpop.f32.mrf.mxu0
          %v3207 = vadd.f32 0.0, %v3206
          %v3208 = vpop.f32.mrf.mxu0
          %v3209 = vadd.f32 0.0, %v3208
          %v3210 = vpop.f32.mrf.mxu0
          %v3211 = vadd.f32 0.0, %v3210
          %3212 = vmatprep.mubr.bf16.mxu0 0
          %3213 = vmatmul.mubr.bf16.gmra.mxu0 %v3130
          %v3214 = vpop.f32.mrf.mxu0
          %v3215 = vadd.f32 0.0, %v3214
          %v3216 = vpop.f32.mrf.mxu0
          %v3217 = vadd.f32 0.0, %v3216
          %v3218 = vpop.f32.mrf.mxu0
          %v3219 = vadd.f32 0.0, %v3218
          %v3220 = vpop.f32.mrf.mxu0
          %v3221 = vadd.f32 0.0, %v3220
          %3222 = vmatprep.mubr.bf16.mxu0 0
          %3223 = vmatmul.mubr.bf16.gmra.mxu0 %v3131
          %v3224 = vpop.f32.mrf.mxu0
          %v3225 = vadd.f32 0.0, %v3224
          %v3226 = vpop.f32.mrf.mxu0
          %v3227 = vadd.f32 0.0, %v3226
          %v3228 = vpop.f32.mrf.mxu0
          %v3229 = vadd.f32 0.0, %v3228
          %v3230 = vpop.f32.mrf.mxu0
          %v3231 = vadd.f32 0.0, %v3230
          %3232 = vmatprep.mubr.bf16.mxu0 0
          %3233 = vmatmul.mubr.bf16.gmra.mxu0 %v3132
          %v3234 = vpop.f32.mrf.mxu0
          %v3235 = vadd.f32 0.0, %v3234
          %v3236 = vpop.f32.mrf.mxu0
          %v3237 = vadd.f32 0.0, %v3236
          %v3238 = vpop.f32.mrf.mxu0
          %v3239 = vadd.f32 0.0, %v3238
          %v3240 = vpop.f32.mrf.mxu0
          %v3241 = vadd.f32 0.0, %v3240
          %3242 = vmatprep.mubr.bf16.mxu0 0
          %3243 = vmatmul.mubr.bf16.gmra.mxu0 %v3133
          %v3244 = vpop.f32.mrf.mxu0
          %v3245 = vadd.f32 0.0, %v3244
          %v3246 = vpop.f32.mrf.mxu0
          %v3247 = vadd.f32 0.0, %v3246
          %v3248 = vpop.f32.mrf.mxu0
          %v3249 = vadd.f32 0.0, %v3248
          %v3250 = vpop.f32.mrf.mxu0
          %v3251 = vadd.f32 0.0, %v3250
          %3252 = vmatprep.mubr.bf16.mxu0 0
          %3253 = vmatmul.mubr.bf16.gmra.mxu0 %v3134
          %v3254 = vpop.f32.mrf.mxu0
          %v3255 = vadd.f32 0.0, %v3254
          %v3256 = vpop.f32.mrf.mxu0
          %v3257 = vadd.f32 0.0, %v3256
          %v3258 = vpop.f32.mrf.mxu0
          %v3259 = vadd.f32 0.0, %v3258
          %v3260 = vpop.f32.mrf.mxu0
          %v3261 = vadd.f32 0.0, %v3260
          %3262 = vmatprep.mubr.bf16.mxu0 0
          %3263 = vmatmul.mubr.bf16.gmra.mxu0 %v3135
          %v3264 = vpop.f32.mrf.mxu0
          %v3265 = vadd.f32 0.0, %v3264
          %v3266 = vpop.f32.mrf.mxu0
          %v3267 = vadd.f32 0.0, %v3266
          %v3268 = vpop.f32.mrf.mxu0
          %v3269 = vadd.f32 0.0, %v3268
          %v3270 = vpop.f32.mrf.mxu0
          %v3271 = vadd.f32 0.0, %v3270
          %3272 = vmatprep.mubr.bf16.mxu0 0
          %3273 = vmatmul.mubr.bf16.gmra.mxu0 %v3136
          %v3274 = vpop.f32.mrf.mxu0
          %v3275 = vadd.f32 0.0, %v3274
          %v3276 = vpop.f32.mrf.mxu0
          %v3277 = vadd.f32 0.0, %v3276
          %v3278 = vpop.f32.mrf.mxu0
          %v3279 = vadd.f32 0.0, %v3278
          %v3280 = vpop.f32.mrf.mxu0
          %v3281 = vadd.f32 0.0, %v3280
          %3282 = vmatprep.mubr.bf16.mxu0 0
          %3283 = vmatmul.mubr.bf16.gmra.mxu0 %v3137
          %v3284 = vpop.f32.mrf.mxu0
          %v3285 = vadd.f32 0.0, %v3284
          %v3286 = vpop.f32.mrf.mxu0
          %v3287 = vadd.f32 0.0, %v3286
          %v3288 = vpop.f32.mrf.mxu0
          %v3289 = vadd.f32 0.0, %v3288
          %v3290 = vpop.f32.mrf.mxu0
          %v3291 = vadd.f32 0.0, %v3290
          %3292 = vmatprep.mubr.bf16.mxu0 0
          %3293 = vmatmul.mubr.bf16.gmra.mxu0 %v3138
          %v3294 = vpop.f32.mrf.mxu0
          %v3295 = vadd.f32 0.0, %v3294
          %v3296 = vpop.f32.mrf.mxu0
          %v3297 = vadd.f32 0.0, %v3296
          %v3298 = vpop.f32.mrf.mxu0
          %v3299 = vadd.f32 0.0, %v3298
          %v3300 = vpop.f32.mrf.mxu0
          %v3301 = vadd.f32 0.0, %v3300
          %3302 = vmatprep.mubr.bf16.mxu0 0
          %3303 = vmatmul.mubr.bf16.gmra.mxu0 %v3139
          %v3304 = vpop.f32.mrf.mxu0
          %v3305 = vadd.f32 0.0, %v3304
          %v3306 = vpop.f32.mrf.mxu0
          %v3307 = vadd.f32 0.0, %v3306
          %v3308 = vpop.f32.mrf.mxu0
          %v3309 = vadd.f32 0.0, %v3308
          %v3310 = vpop.f32.mrf.mxu0
          %v3311 = vadd.f32 0.0, %v3310
          %3312 = vmatprep.mubr.bf16.mxu0 0
          %3313 = vmatmul.mubr.bf16.gmra.mxu0 %v3140
          %v3314 = vpop.f32.mrf.mxu0
          %v3315 = vadd.f32 0.0, %v3314
          %v3316 = vpop.f32.mrf.mxu0
          %v3317 = vadd.f32 0.0, %v3316
          %v3318 = vpop.f32.mrf.mxu0
          %v3319 = vadd.f32 0.0, %v3318
          %v3320 = vpop.f32.mrf.mxu0
          %v3321 = vadd.f32 0.0, %v3320
          %3322 = vmatprep.mubr.bf16.mxu0 0
          %3323 = vmatmul.mubr.bf16.gmra.mxu0 %v3141
          %v3324 = vpop.f32.mrf.mxu0
          %v3325 = vadd.f32 0.0, %v3324
          %v3326 = vpop.f32.mrf.mxu0
          %v3327 = vadd.f32 0.0, %v3326
          %v3328 = vpop.f32.mrf.mxu0
          %v3329 = vadd.f32 0.0, %v3328
          %v3330 = vpop.f32.mrf.mxu0
          %v3331 = vadd.f32 0.0, %v3330
          %3332 = vmatprep.mubr.bf16.mxu0 0
          %3333 = vmatmul.mubr.bf16.gmra.mxu0 %v3142
          %v3334 = vpop.f32.mrf.mxu0
          %v3335 = vadd.f32 0.0, %v3334
          %v3336 = vpop.f32.mrf.mxu0
          %v3337 = vadd.f32 0.0, %v3336
          %v3338 = vpop.f32.mrf.mxu0
          %v3339 = vadd.f32 0.0, %v3338
          %v3340 = vpop.f32.mrf.mxu0
          %v3341 = vadd.f32 0.0, %v3340
          %3342 = vmatprep.mubr.bf16.mxu0 0
          %3343 = vmatmul.mubr.bf16.gmra.mxu0 %v3143
          %v3344 = vpop.f32.mrf.mxu0
          %v3345 = vadd.f32 0.0, %v3344
          %v3346 = vpop.f32.mrf.mxu0
          %v3347 = vadd.f32 0.0, %v3346
          %v3348 = vpop.f32.mrf.mxu0
          %v3349 = vadd.f32 0.0, %v3348
          %v3350 = vpop.f32.mrf.mxu0
          %v3351 = vadd.f32 0.0, %v3350
          %3352 = vdwg.mxu0
          %v3353 = vmul.f32 %v3195, 0.12
          %v3354 = vmul.f32 %v3197, 0.12
          %v3355 = vmul.f32 %v3199, 0.12
          %v3356 = vmul.f32 %v3201, 0.12
          %v3357 = vmul.f32 %v3205, 0.12
          %v3358 = vmul.f32 %v3207, 0.12
          %v3359 = vmul.f32 %v3209, 0.12
          %v3360 = vmul.f32 %v3211, 0.12
          %v3361 = vmul.f32 %v3215, 0.12
          %v3362 = vmul.f32 %v3217, 0.12
          %v3363 = vmul.f32 %v3219, 0.12
          %v3364 = vmul.f32 %v3221, 0.12
          %v3365 = vmul.f32 %v3225, 0.12
          %v3366 = vmul.f32 %v3227, 0.12
          %v3367 = vmul.f32 %v3229, 0.12
          %v3368 = vmul.f32 %v3231, 0.12
          %v3369 = vmul.f32 %v3235, 0.12
          %v3370 = vmul.f32 %v3237, 0.12
          %v3371 = vmul.f32 %v3239, 0.12
          %v3372 = vmul.f32 %v3241, 0.12
          %v3373 = vmul.f32 %v3245, 0.12
          %v3374 = vmul.f32 %v3247, 0.12
          %v3375 = vmul.f32 %v3249, 0.12
          %v3376 = vmul.f32 %v3251, 0.12
          %v3377 = vmul.f32 %v3255, 0.12
          %v3378 = vmul.f32 %v3257, 0.12
          %v3379 = vmul.f32 %v3259, 0.12
          %v3380 = vmul.f32 %v3261, 0.12
          %v3381 = vmul.f32 %v3265, 0.12
          %v3382 = vmul.f32 %v3267, 0.12
          %v3383 = vmul.f32 %v3269, 0.12
          %v3384 = vmul.f32 %v3271, 0.12
          %v3385 = vmul.f32 %v3275, 0.12
          %v3386 = vmul.f32 %v3277, 0.12
          %v3387 = vmul.f32 %v3279, 0.12
          %v3388 = vmul.f32 %v3281, 0.12
          %v3389 = vmul.f32 %v3285, 0.12
          %v3390 = vmul.f32 %v3287, 0.12
          %v3391 = vmul.f32 %v3289, 0.12
          %v3392 = vmul.f32 %v3291, 0.12
          %v3393 = vmul.f32 %v3295, 0.12
          %v3394 = vmul.f32 %v3297, 0.12
          %v3395 = vmul.f32 %v3299, 0.12
          %v3396 = vmul.f32 %v3301, 0.12
          %v3397 = vmul.f32 %v3305, 0.12
          %v3398 = vmul.f32 %v3307, 0.12
          %v3399 = vmul.f32 %v3309, 0.12
          %v3400 = vmul.f32 %v3311, 0.12
          %v3401 = vmul.f32 %v3315, 0.12
          %v3402 = vmul.f32 %v3317, 0.12
          %v3403 = vmul.f32 %v3319, 0.12
          %v3404 = vmul.f32 %v3321, 0.12
          %v3405 = vmul.f32 %v3325, 0.12
          %v3406 = vmul.f32 %v3327, 0.12
          %v3407 = vmul.f32 %v3329, 0.12
          %v3408 = vmul.f32 %v3331, 0.12
          %v3409 = vmul.f32 %v3335, 0.12
          %v3410 = vmul.f32 %v3337, 0.12
          %v3411 = vmul.f32 %v3339, 0.12
          %v3412 = vmul.f32 %v3341, 0.12
          %v3413 = vmul.f32 %v3345, 0.12
          %v3414 = vmul.f32 %v3347, 0.12
          %v3415 = vmul.f32 %v3349, 0.12
          %v3416 = vmul.f32 %v3351, 0.12
          %v3417 = vld [vmem:[%s561] sm:$0xff]
          %v3418 = vld [vmem:[%s561 + $0x8] sm:$0xff]
          %v3419 = vld [vmem:[%s561 + $0x10] sm:$0xff]
          %v3420 = vld [vmem:[%s561 + $0x18] sm:$0xff]
          %v3421 = vld [vmem:[%s561 + $0x20] sm:$0xff]
          %v3422 = vld [vmem:[%s561 + $0x28] sm:$0xff]
          %v3423 = vld [vmem:[%s561 + $0x30] sm:$0xff]
          %v3424 = vld [vmem:[%s561 + $0x38] sm:$0xff]
          %v3425 = vld [vmem:[%s561 + $0x40] sm:$0xff]
          %v3426 = vld [vmem:[%s561 + $0x48] sm:$0xff]
          %v3427 = vld [vmem:[%s561 + $0x50] sm:$0xff]
          %v3428 = vld [vmem:[%s561 + $0x58] sm:$0xff]
          %v3429 = vld [vmem:[%s561 + $0x60] sm:$0xff]
          %v3430 = vld [vmem:[%s561 + $0x68] sm:$0xff]
          %v3431 = vld [vmem:[%s561 + $0x70] sm:$0xff]
          %v3432 = vld [vmem:[%s561 + $0x78] sm:$0xff]
          %v3433 = vld [vmem:[%s561 + $0x80] sm:$0xff]
          %v3434 = vld [vmem:[%s561 + $0x88] sm:$0xff]
          %v3435 = vld [vmem:[%s561 + $0x90] sm:$0xff]
          %v3436 = vld [vmem:[%s561 + $0x98] sm:$0xff]
          %v3437 = vld [vmem:[%s561 + $0xa0] sm:$0xff]
          %v3438 = vld [vmem:[%s561 + $0xa8] sm:$0xff]
          %v3439 = vld [vmem:[%s561 + $0xb0] sm:$0xff]
          %v3440 = vld [vmem:[%s561 + $0xb8] sm:$0xff]
          %v3441 = vld [vmem:[%s561 + $0xc0] sm:$0xff]
          %v3442 = vld [vmem:[%s561 + $0xc8] sm:$0xff]
          %v3443 = vld [vmem:[%s561 + $0xd0] sm:$0xff]
          %v3444 = vld [vmem:[%s561 + $0xd8] sm:$0xff]
          %v3445 = vld [vmem:[%s561 + $0xe0] sm:$0xff]
          %v3446 = vld [vmem:[%s561 + $0xe8] sm:$0xff]
          %v3447 = vld [vmem:[%s561 + $0xf0] sm:$0xff]
          %v3448 = vld [vmem:[%s561 + $0xf8] sm:$0xff]
          %v3449 = vld [vmem:[%s561 + $0x100] sm:$0xff]
          %v3450 = vld [vmem:[%s561 + $0x108] sm:$0xff]
          %v3451 = vld [vmem:[%s561 + $0x110] sm:$0xff]
          %v3452 = vld [vmem:[%s561 + $0x118] sm:$0xff]
          %v3453 = vld [vmem:[%s561 + $0x120] sm:$0xff]
          %v3454 = vld [vmem:[%s561 + $0x128] sm:$0xff]
          %v3455 = vld [vmem:[%s561 + $0x130] sm:$0xff]
          %v3456 = vld [vmem:[%s561 + $0x138] sm:$0xff]
          %v3457 = vld [vmem:[%s561 + $0x140] sm:$0xff]
          %v3458 = vld [vmem:[%s561 + $0x148] sm:$0xff]
          %v3459 = vld [vmem:[%s561 + $0x150] sm:$0xff]
          %v3460 = vld [vmem:[%s561 + $0x158] sm:$0xff]
          %v3461 = vld [vmem:[%s561 + $0x160] sm:$0xff]
          %v3462 = vld [vmem:[%s561 + $0x168] sm:$0xff]
          %v3463 = vld [vmem:[%s561 + $0x170] sm:$0xff]
          %v3464 = vld [vmem:[%s561 + $0x178] sm:$0xff]
          %v3465 = vld [vmem:[%s561 + $0x180] sm:$0xff]
          %v3466 = vld [vmem:[%s561 + $0x188] sm:$0xff]
          %v3467 = vld [vmem:[%s561 + $0x190] sm:$0xff]
          %v3468 = vld [vmem:[%s561 + $0x198] sm:$0xff]
          %v3469 = vld [vmem:[%s561 + $0x1a0] sm:$0xff]
          %v3470 = vld [vmem:[%s561 + $0x1a8] sm:$0xff]
          %v3471 = vld [vmem:[%s561 + $0x1b0] sm:$0xff]
          %v3472 = vld [vmem:[%s561 + $0x1b8] sm:$0xff]
          %v3473 = vld [vmem:[%s561 + $0x1c0] sm:$0xff]
          %v3474 = vld [vmem:[%s561 + $0x1c8] sm:$0xff]
          %v3475 = vld [vmem:[%s561 + $0x1d0] sm:$0xff]
          %v3476 = vld [vmem:[%s561 + $0x1d8] sm:$0xff]
          %v3477 = vld [vmem:[%s561 + $0x1e0] sm:$0xff]
          %v3478 = vld [vmem:[%s561 + $0x1e8] sm:$0xff]
          %v3479 = vld [vmem:[%s561 + $0x1f0] sm:$0xff]
          %v3480 = vld [vmem:[%s561 + $0x1f8] sm:$0xff]
          %v3481 = vadd.f32 %v3353, %v3417
          %v3482 = vadd.f32 %v3354, %v3418
          %v3483 = vadd.f32 %v3355, %v3419
          %v3484 = vadd.f32 %v3356, %v3420
          %v3485 = vadd.f32 %v3357, %v3421
          %v3486 = vadd.f32 %v3358, %v3422
          %v3487 = vadd.f32 %v3359, %v3423
          %v3488 = vadd.f32 %v3360, %v3424
          %v3489 = vadd.f32 %v3361, %v3425
          %v3490 = vadd.f32 %v3362, %v3426
          %v3491 = vadd.f32 %v3363, %v3427
          %v3492 = vadd.f32 %v3364, %v3428
          %v3493 = vadd.f32 %v3365, %v3429
          %v3494 = vadd.f32 %v3366, %v3430
          %v3495 = vadd.f32 %v3367, %v3431
          %v3496 = vadd.f32 %v3368, %v3432
          %v3497 = vadd.f32 %v3369, %v3433
          %v3498 = vadd.f32 %v3370, %v3434
          %v3499 = vadd.f32 %v3371, %v3435
          %v3500 = vadd.f32 %v3372, %v3436
          %v3501 = vadd.f32 %v3373, %v3437
          %v3502 = vadd.f32 %v3374, %v3438
          %v3503 = vadd.f32 %v3375, %v3439
          %v3504 = vadd.f32 %v3376, %v3440
          %v3505 = vadd.f32 %v3377, %v3441
          %v3506 = vadd.f32 %v3378, %v3442
          %v3507 = vadd.f32 %v3379, %v3443
          %v3508 = vadd.f32 %v3380, %v3444
          %v3509 = vadd.f32 %v3381, %v3445
          %v3510 = vadd.f32 %v3382, %v3446
          %v3511 = vadd.f32 %v3383, %v3447
          %v3512 = vadd.f32 %v3384, %v3448
          %v3513 = vadd.f32 %v3385, %v3449
          %v3514 = vadd.f32 %v3386, %v3450
          %v3515 = vadd.f32 %v3387, %v3451
          %v3516 = vadd.f32 %v3388, %v3452
          %v3517 = vadd.f32 %v3389, %v3453
          %v3518 = vadd.f32 %v3390, %v3454
          %v3519 = vadd.f32 %v3391, %v3455
          %v3520 = vadd.f32 %v3392, %v3456
          %v3521 = vadd.f32 %v3393, %v3457
          %v3522 = vadd.f32 %v3394, %v3458
          %v3523 = vadd.f32 %v3395, %v3459
          %v3524 = vadd.f32 %v3396, %v3460
          %v3525 = vadd.f32 %v3397, %v3461
          %v3526 = vadd.f32 %v3398, %v3462
          %v3527 = vadd.f32 %v3399, %v3463
          %v3528 = vadd.f32 %v3400, %v3464
          %v3529 = vadd.f32 %v3401, %v3465
          %v3530 = vadd.f32 %v3402, %v3466
          %v3531 = vadd.f32 %v3403, %v3467
          %v3532 = vadd.f32 %v3404, %v3468
          %v3533 = vadd.f32 %v3405, %v3469
          %v3534 = vadd.f32 %v3406, %v3470
          %v3535 = vadd.f32 %v3407, %v3471
          %v3536 = vadd.f32 %v3408, %v3472
          %v3537 = vadd.f32 %v3409, %v3473
          %v3538 = vadd.f32 %v3410, %v3474
          %v3539 = vadd.f32 %v3411, %v3475
          %v3540 = vadd.f32 %v3412, %v3476
          %v3541 = vadd.f32 %v3413, %v3477
          %v3542 = vadd.f32 %v3414, %v3478
          %v3543 = vadd.f32 %v3415, %v3479
          %v3544 = vadd.f32 %v3416, %v3480
          %v3545 = vmax.f32 %v3481, %v3482
          %3546 = vmax.xlane.f32.xlu0 %v3545
          %v3547 = vpop.xlane.xlu0 %3546
          %v3548 = vmax.f32 %v3483, %v3484
          %3549 = vmax.xlane.f32.xlu0 %v3548
          %v3550 = vpop.xlane.xlu0 %3549
          %v3551 = vmax.f32 %v3485, %v3486
          %3552 = vmax.xlane.f32.xlu0 %v3551
          %v3553 = vpop.xlane.xlu0 %3552
          %v3554 = vmax.f32 %v3487, %v3488
          %3555 = vmax.xlane.f32.xlu0 %v3554
          %v3556 = vpop.xlane.xlu0 %3555
          %v3557 = vmax.f32 %v3489, %v3490
          %3558 = vmax.xlane.f32.xlu0 %v3557
          %v3559 = vpop.xlane.xlu0 %3558
          %v3560 = vmax.f32 %v3491, %v3492
          %3561 = vmax.xlane.f32.xlu0 %v3560
          %v3562 = vpop.xlane.xlu0 %3561
          %v3563 = vmax.f32 %v3493, %v3494
          %3564 = vmax.xlane.f32.xlu0 %v3563
          %v3565 = vpop.xlane.xlu0 %3564
          %v3566 = vmax.f32 %v3495, %v3496
          %3567 = vmax.xlane.f32.xlu0 %v3566
          %v3568 = vpop.xlane.xlu0 %3567
          %v3569 = vmax.f32 %v3497, %v3498
          %3570 = vmax.xlane.f32.xlu0 %v3569
          %v3571 = vpop.xlane.xlu0 %3570
          %v3572 = vmax.f32 %v3499, %v3500
          %3573 = vmax.xlane.f32.xlu0 %v3572
          %v3574 = vpop.xlane.xlu0 %3573
          %v3575 = vmax.f32 %v3501, %v3502
          %3576 = vmax.xlane.f32.xlu0 %v3575
          %v3577 = vpop.xlane.xlu0 %3576
          %v3578 = vmax.f32 %v3503, %v3504
          %3579 = vmax.xlane.f32.xlu0 %v3578
          %v3580 = vpop.xlane.xlu0 %3579
          %v3581 = vmax.f32 %v3505, %v3506
          %3582 = vmax.xlane.f32.xlu0 %v3581
          %v3583 = vpop.xlane.xlu0 %3582
          %v3584 = vmax.f32 %v3507, %v3508
          %3585 = vmax.xlane.f32.xlu0 %v3584
          %v3586 = vpop.xlane.xlu0 %3585
          %v3587 = vmax.f32 %v3509, %v3510
          %3588 = vmax.xlane.f32.xlu0 %v3587
          %v3589 = vpop.xlane.xlu0 %3588
          %v3590 = vmax.f32 %v3511, %v3512
          %3591 = vmax.xlane.f32.xlu0 %v3590
          %v3592 = vpop.xlane.xlu0 %3591
          %v3593 = vmax.f32 %v3513, %v3514
          %3594 = vmax.xlane.f32.xlu0 %v3593
          %v3595 = vpop.xlane.xlu0 %3594
          %v3596 = vmax.f32 %v3515, %v3516
          %3597 = vmax.xlane.f32.xlu0 %v3596
          %v3598 = vpop.xlane.xlu0 %3597
          %v3599 = vmax.f32 %v3517, %v3518
          %3600 = vmax.xlane.f32.xlu0 %v3599
          %v3601 = vpop.xlane.xlu0 %3600
          %v3602 = vmax.f32 %v3519, %v3520
          %3603 = vmax.xlane.f32.xlu0 %v3602
          %v3604 = vpop.xlane.xlu0 %3603
          %v3605 = vmax.f32 %v3521, %v3522
          %3606 = vmax.xlane.f32.xlu0 %v3605
          %v3607 = vpop.xlane.xlu0 %3606
          %v3608 = vmax.f32 %v3523, %v3524
          %3609 = vmax.xlane.f32.xlu0 %v3608
          %v3610 = vpop.xlane.xlu0 %3609
          %v3611 = vmax.f32 %v3525, %v3526
          %3612 = vmax.xlane.f32.xlu0 %v3611
          %v3613 = vpop.xlane.xlu0 %3612
          %v3614 = vmax.f32 %v3527, %v3528
          %3615 = vmax.xlane.f32.xlu0 %v3614
          %v3616 = vpop.xlane.xlu0 %3615
          %v3617 = vmax.f32 %v3529, %v3530
          %3618 = vmax.xlane.f32.xlu0 %v3617
          %v3619 = vpop.xlane.xlu0 %3618
          %v3620 = vmax.f32 %v3531, %v3532
          %3621 = vmax.xlane.f32.xlu0 %v3620
          %v3622 = vpop.xlane.xlu0 %3621
          %v3623 = vmax.f32 %v3533, %v3534
          %3624 = vmax.xlane.f32.xlu0 %v3623
          %v3625 = vpop.xlane.xlu0 %3624
          %v3626 = vmax.f32 %v3535, %v3536
          %3627 = vmax.xlane.f32.xlu0 %v3626
          %v3628 = vpop.xlane.xlu0 %3627
          %v3629 = vmax.f32 %v3537, %v3538
          %3630 = vmax.xlane.f32.xlu0 %v3629
          %v3631 = vpop.xlane.xlu0 %3630
          %v3632 = vmax.f32 %v3539, %v3540
          %3633 = vmax.xlane.f32.xlu0 %v3632
          %v3634 = vpop.xlane.xlu0 %3633
          %v3635 = vmax.f32 %v3541, %v3542
          %3636 = vmax.xlane.f32.xlu0 %v3635
          %v3637 = vpop.xlane.xlu0 %3636
          %v3638 = vmax.f32 %v3543, %v3544
          %3639 = vmax.xlane.f32.xlu0 %v3638
          %v3640 = vpop.xlane.xlu0 %3639
          %v3641 = vsub.f32 %v3481, %v3547
          %v3642 = vsub.f32 %v3482, %v3547
          %v3643 = vsub.f32 %v3483, %v3550
          %v3644 = vsub.f32 %v3484, %v3550
          %v3645 = vsub.f32 %v3485, %v3553
          %v3646 = vsub.f32 %v3486, %v3553
          %v3647 = vsub.f32 %v3487, %v3556
          %v3648 = vsub.f32 %v3488, %v3556
          %v3649 = vsub.f32 %v3489, %v3559
          %v3650 = vsub.f32 %v3490, %v3559
          %v3651 = vsub.f32 %v3491, %v3562
          %v3652 = vsub.f32 %v3492, %v3562
          %v3653 = vsub.f32 %v3493, %v3565
          %v3654 = vsub.f32 %v3494, %v3565
          %v3655 = vsub.f32 %v3495, %v3568
          %v3656 = vsub.f32 %v3496, %v3568
          %v3657 = vsub.f32 %v3497, %v3571
          %v3658 = vsub.f32 %v3498, %v3571
          %v3659 = vsub.f32 %v3499, %v3574
          %v3660 = vsub.f32 %v3500, %v3574
          %v3661 = vsub.f32 %v3501, %v3577
          %v3662 = vsub.f32 %v3502, %v3577
          %v3663 = vsub.f32 %v3503, %v3580
          %v3664 = vsub.f32 %v3504, %v3580
          %v3665 = vsub.f32 %v3505, %v3583
          %v3666 = vsub.f32 %v3506, %v3583
          %v3667 = vsub.f32 %v3507, %v3586
          %v3668 = vsub.f32 %v3508, %v3586
          %v3669 = vsub.f32 %v3509, %v3589
          %v3670 = vsub.f32 %v3510, %v3589
          %v3671 = vsub.f32 %v3511, %v3592
          %v3672 = vsub.f32 %v3512, %v3592
          %v3673 = vsub.f32 %v3513, %v3595
          %v3674 = vsub.f32 %v3514, %v3595
          %v3675 = vsub.f32 %v3515, %v3598
          %v3676 = vsub.f32 %v3516, %v3598
          %v3677 = vsub.f32 %v3517, %v3601
          %v3678 = vsub.f32 %v3518, %v3601
          %v3679 = vsub.f32 %v3519, %v3604
          %v3680 = vsub.f32 %v3520, %v3604
          %v3681 = vsub.f32 %v3521, %v3607
          %v3682 = vsub.f32 %v3522, %v3607
          %v3683 = vsub.f32 %v3523, %v3610
          %v3684 = vsub.f32 %v3524, %v3610
          %v3685 = vsub.f32 %v3525, %v3613
          %v3686 = vsub.f32 %v3526, %v3613
          %v3687 = vsub.f32 %v3527, %v3616
          %v3688 = vsub.f32 %v3528, %v3616
          %v3689 = vsub.f32 %v3529, %v3619
          %v3690 = vsub.f32 %v3530, %v3619
          %v3691 = vsub.f32 %v3531, %v3622
          %v3692 = vsub.f32 %v3532, %v3622
          %v3693 = vsub.f32 %v3533, %v3625
          %v3694 = vsub.f32 %v3534, %v3625
          %v3695 = vsub.f32 %v3535, %v3628
          %v3696 = vsub.f32 %v3536, %v3628
          %v3697 = vsub.f32 %v3537, %v3631
          %v3698 = vsub.f32 %v3538, %v3631
          %v3699 = vsub.f32 %v3539, %v3634
          %v3700 = vsub.f32 %v3540, %v3634
          %v3701 = vsub.f32 %v3541, %v3637
          %v3702 = vsub.f32 %v3542, %v3637
          %v3703 = vsub.f32 %v3543, %v3640
          %v3704 = vsub.f32 %v3544, %v3640
          %v3705 = vmul.f32 %v3641, 1.442695
          %v3706 = vpow.pop %v3705
          %v3707 = vmul.f32 %v3642, 1.442695
          %v3708 = vpow.pop %v3707
          %v3709 = vmul.f32 %v3643, 1.442695
          %v3710 = vpow.pop %v3709
          %v3711 = vmul.f32 %v3644, 1.442695
          %v3712 = vpow.pop %v3711
          %v3713 = vmul.f32 %v3645, 1.442695
          %v3714 = vpow.pop %v3713
          %v3715 = vmul.f32 %v3646, 1.442695
          %v3716 = vpow.pop %v3715
          %v3717 = vmul.f32 %v3647, 1.442695
          %v3718 = vpow.pop %v3717
          %v3719 = vmul.f32 %v3648, 1.442695
          %v3720 = vpow.pop %v3719
          %v3721 = vmul.f32 %v3649, 1.442695
          %v3722 = vpow.pop %v3721
          %v3723 = vmul.f32 %v3650, 1.442695
          %v3724 = vpow.pop %v3723
          %v3725 = vmul.f32 %v3651, 1.442695
          %v3726 = vpow.pop %v3725
          %v3727 = vmul.f32 %v3652, 1.442695
          %v3728 = vpow.pop %v3727
          %v3729 = vmul.f32 %v3653, 1.442695
          %v3730 = vpow.pop %v3729
          %v3731 = vmul.f32 %v3654, 1.442695
          %v3732 = vpow.pop %v3731
          %v3733 = vmul.f32 %v3655, 1.442695
          %v3734 = vpow.pop %v3733
          %v3735 = vmul.f32 %v3656, 1.442695
          %v3736 = vpow.pop %v3735
          %v3737 = vmul.f32 %v3657, 1.442695
          %v3738 = vpow.pop %v3737
          %v3739 = vmul.f32 %v3658, 1.442695
          %v3740 = vpow.pop %v3739
          %v3741 = vmul.f32 %v3659, 1.442695
          %v3742 = vpow.pop %v3741
          %v3743 = vmul.f32 %v3660, 1.442695
          %v3744 = vpow.pop %v3743
          %v3745 = vmul.f32 %v3661, 1.442695
          %v3746 = vpow.pop %v3745
          %v3747 = vmul.f32 %v3662, 1.442695
          %v3748 = vpow.pop %v3747
          %v3749 = vmul.f32 %v3663, 1.442695
          %v3750 = vpow.pop %v3749
          %v3751 = vmul.f32 %v3664, 1.442695
          %v3752 = vpow.pop %v3751
          %v3753 = vmul.f32 %v3665, 1.442695
          %v3754 = vpow.pop %v3753
          %v3755 = vmul.f32 %v3666, 1.442695
          %v3756 = vpow.pop %v3755
          %v3757 = vmul.f32 %v3667, 1.442695
          %v3758 = vpow.pop %v3757
          %v3759 = vmul.f32 %v3668, 1.442695
          %v3760 = vpow.pop %v3759
          %v3761 = vmul.f32 %v3669, 1.442695
          %v3762 = vpow.pop %v3761
          %v3763 = vmul.f32 %v3670, 1.442695
          %v3764 = vpow.pop %v3763
          %v3765 = vmul.f32 %v3671, 1.442695
          %v3766 = vpow.pop %v3765
          %v3767 = vmul.f32 %v3672, 1.442695
          %v3768 = vpow.pop %v3767
          %v3769 = vmul.f32 %v3673, 1.442695
          %v3770 = vpow.pop %v3769
          %v3771 = vmul.f32 %v3674, 1.442695
          %v3772 = vpow.pop %v3771
          %v3773 = vmul.f32 %v3675, 1.442695
          %v3774 = vpow.pop %v3773
          %v3775 = vmul.f32 %v3676, 1.442695
          %v3776 = vpow.pop %v3775
          %v3777 = vmul.f32 %v3677, 1.442695
          %v3778 = vpow.pop %v3777
          %v3779 = vmul.f32 %v3678, 1.442695
          %v3780 = vpow.pop %v3779
          %v3781 = vmul.f32 %v3679, 1.442695
          %v3782 = vpow.pop %v3781
          %v3783 = vmul.f32 %v3680, 1.442695
          %v3784 = vpow.pop %v3783
          %v3785 = vmul.f32 %v3681, 1.442695
          %v3786 = vpow.pop %v3785
          %v3787 = vmul.f32 %v3682, 1.442695
          %v3788 = vpow.pop %v3787
          %v3789 = vmul.f32 %v3683, 1.442695
          %v3790 = vpow.pop %v3789
          %v3791 = vmul.f32 %v3684, 1.442695
          %v3792 = vpow.pop %v3791
          %v3793 = vmul.f32 %v3685, 1.442695
          %v3794 = vpow.pop %v3793
          %v3795 = vmul.f32 %v3686, 1.442695
          %v3796 = vpow.pop %v3795
          %v3797 = vmul.f32 %v3687, 1.442695
          %v3798 = vpow.pop %v3797
          %v3799 = vmul.f32 %v3688, 1.442695
          %v3800 = vpow.pop %v3799
          %v3801 = vmul.f32 %v3689, 1.442695
          %v3802 = vpow.pop %v3801
          %v3803 = vmul.f32 %v3690, 1.442695
          %v3804 = vpow.pop %v3803
          %v3805 = vmul.f32 %v3691, 1.442695
          %v3806 = vpow.pop %v3805
          %v3807 = vmul.f32 %v3692, 1.442695
          %v3808 = vpow.pop %v3807
          %v3809 = vmul.f32 %v3693, 1.442695
          %v3810 = vpow.pop %v3809
          %v3811 = vmul.f32 %v3694, 1.442695
          %v3812 = vpow.pop %v3811
          %v3813 = vmul.f32 %v3695, 1.442695
          %v3814 = vpow.pop %v3813
          %v3815 = vmul.f32 %v3696, 1.442695
          %v3816 = vpow.pop %v3815
          %v3817 = vmul.f32 %v3697, 1.442695
          %v3818 = vpow.pop %v3817
          %v3819 = vmul.f32 %v3698, 1.442695
          %v3820 = vpow.pop %v3819
          %v3821 = vmul.f32 %v3699, 1.442695
          %v3822 = vpow.pop %v3821
          %v3823 = vmul.f32 %v3700, 1.442695
          %v3824 = vpow.pop %v3823
          %v3825 = vmul.f32 %v3701, 1.442695
          %v3826 = vpow.pop %v3825
          %v3827 = vmul.f32 %v3702, 1.442695
          %v3828 = vpow.pop %v3827
          %v3829 = vmul.f32 %v3703, 1.442695
          %v3830 = vpow.pop %v3829
          %v3831 = vmul.f32 %v3704, 1.442695
          %v3832 = vpow.pop %v3831
          %v3833 = vadd.f32 %v3706, %v3708
          %3834 = vadd.xlane.f32.xlu0 %v3833
          %v3835 = vpop.xlane.xlu0 %3834
          %v3836 = vadd.f32 %v3710, %v3712
          %3837 = vadd.xlane.f32.xlu0 %v3836
          %v3838 = vpop.xlane.xlu0 %3837
          %v3839 = vadd.f32 %v3714, %v3716
          %3840 = vadd.xlane.f32.xlu0 %v3839
          %v3841 = vpop.xlane.xlu0 %3840
          %v3842 = vadd.f32 %v3718, %v3720
          %3843 = vadd.xlane.f32.xlu0 %v3842
          %v3844 = vpop.xlane.xlu0 %3843
          %v3845 = vadd.f32 %v3722, %v3724
          %3846 = vadd.xlane.f32.xlu0 %v3845
          %v3847 = vpop.xlane.xlu0 %3846
          %v3848 = vadd.f32 %v3726, %v3728
          %3849 = vadd.xlane.f32.xlu0 %v3848
          %v3850 = vpop.xlane.xlu0 %3849
          %v3851 = vadd.f32 %v3730, %v3732
          %3852 = vadd.xlane.f32.xlu0 %v3851
          %v3853 = vpop.xlane.xlu0 %3852
          %v3854 = vadd.f32 %v3734, %v3736
          %3855 = vadd.xlane.f32.xlu0 %v3854
          %v3856 = vpop.xlane.xlu0 %3855
          %v3857 = vadd.f32 %v3738, %v3740
          %3858 = vadd.xlane.f32.xlu0 %v3857
          %v3859 = vpop.xlane.xlu0 %3858
          %v3860 = vadd.f32 %v3742, %v3744
          %3861 = vadd.xlane.f32.xlu0 %v3860
          %v3862 = vpop.xlane.xlu0 %3861
          %v3863 = vadd.f32 %v3746, %v3748
          %3864 = vadd.xlane.f32.xlu0 %v3863
          %v3865 = vpop.xlane.xlu0 %3864
          %v3866 = vadd.f32 %v3750, %v3752
          %3867 = vadd.xlane.f32.xlu0 %v3866
          %v3868 = vpop.xlane.xlu0 %3867
          %v3869 = vadd.f32 %v3754, %v3756
          %3870 = vadd.xlane.f32.xlu0 %v3869
          %v3871 = vpop.xlane.xlu0 %3870
          %v3872 = vadd.f32 %v3758, %v3760
          %3873 = vadd.xlane.f32.xlu0 %v3872
          %v3874 = vpop.xlane.xlu0 %3873
          %v3875 = vadd.f32 %v3762, %v3764
          %3876 = vadd.xlane.f32.xlu0 %v3875
          %v3877 = vpop.xlane.xlu0 %3876
          %v3878 = vadd.f32 %v3766, %v3768
          %3879 = vadd.xlane.f32.xlu0 %v3878
          %v3880 = vpop.xlane.xlu0 %3879
          %v3881 = vadd.f32 %v3770, %v3772
          %3882 = vadd.xlane.f32.xlu0 %v3881
          %v3883 = vpop.xlane.xlu0 %3882
          %v3884 = vadd.f32 %v3774, %v3776
          %3885 = vadd.xlane.f32.xlu0 %v3884
          %v3886 = vpop.xlane.xlu0 %3885
          %v3887 = vadd.f32 %v3778, %v3780
          %3888 = vadd.xlane.f32.xlu0 %v3887
          %v3889 = vpop.xlane.xlu0 %3888
          %v3890 = vadd.f32 %v3782, %v3784
          %3891 = vadd.xlane.f32.xlu0 %v3890
          %v3892 = vpop.xlane.xlu0 %3891
          %v3893 = vadd.f32 %v3786, %v3788
          %3894 = vadd.xlane.f32.xlu0 %v3893
          %v3895 = vpop.xlane.xlu0 %3894
          %v3896 = vadd.f32 %v3790, %v3792
          %3897 = vadd.xlane.f32.xlu0 %v3896
          %v3898 = vpop.xlane.xlu0 %3897
          %v3899 = vadd.f32 %v3794, %v3796
          %3900 = vadd.xlane.f32.xlu0 %v3899
          %v3901 = vpop.xlane.xlu0 %3900
          %v3902 = vadd.f32 %v3798, %v3800
          %3903 = vadd.xlane.f32.xlu0 %v3902
          %v3904 = vpop.xlane.xlu0 %3903
          %v3905 = vadd.f32 %v3802, %v3804
          %3906 = vadd.xlane.f32.xlu0 %v3905
          %v3907 = vpop.xlane.xlu0 %3906
          %v3908 = vadd.f32 %v3806, %v3808
          %3909 = vadd.xlane.f32.xlu0 %v3908
          %v3910 = vpop.xlane.xlu0 %3909
          %v3911 = vadd.f32 %v3810, %v3812
          %3912 = vadd.xlane.f32.xlu0 %v3911
          %v3913 = vpop.xlane.xlu0 %3912
          %v3914 = vadd.f32 %v3814, %v3816
          %3915 = vadd.xlane.f32.xlu0 %v3914
          %v3916 = vpop.xlane.xlu0 %3915
          %v3917 = vadd.f32 %v3818, %v3820
          %3918 = vadd.xlane.f32.xlu0 %v3917
          %v3919 = vpop.xlane.xlu0 %3918
          %v3920 = vadd.f32 %v3822, %v3824
          %3921 = vadd.xlane.f32.xlu0 %v3920
          %v3922 = vpop.xlane.xlu0 %3921
          %v3923 = vadd.f32 %v3826, %v3828
          %3924 = vadd.xlane.f32.xlu0 %v3923
          %v3925 = vpop.xlane.xlu0 %3924
          %v3926 = vadd.f32 %v3830, %v3832
          %3927 = vadd.xlane.f32.xlu0 %v3926
          %v3928 = vpop.xlane.xlu0 %3927
          %v3929 = vpack.c.bf16 %v3710, %v3706
          %v3930 = vpack.c.bf16 %v3712, %v3708
          %v3931 = vpack.c.bf16 %v3718, %v3714
          %v3932 = vpack.c.bf16 %v3720, %v3716
          %v3933 = vpack.c.bf16 %v3726, %v3722
          %v3934 = vpack.c.bf16 %v3728, %v3724
          %v3935 = vpack.c.bf16 %v3734, %v3730
          %v3936 = vpack.c.bf16 %v3736, %v3732
          %v3937 = vpack.c.bf16 %v3742, %v3738
          %v3938 = vpack.c.bf16 %v3744, %v3740
          %v3939 = vpack.c.bf16 %v3750, %v3746
          %v3940 = vpack.c.bf16 %v3752, %v3748
          %v3941 = vpack.c.bf16 %v3758, %v3754
          %v3942 = vpack.c.bf16 %v3760, %v3756
          %v3943 = vpack.c.bf16 %v3766, %v3762
          %v3944 = vpack.c.bf16 %v3768, %v3764
          %v3945 = vpack.c.bf16 %v3774, %v3770
          %v3946 = vpack.c.bf16 %v3776, %v3772
          %v3947 = vpack.c.bf16 %v3782, %v3778
          %v3948 = vpack.c.bf16 %v3784, %v3780
          %v3949 = vpack.c.bf16 %v3790, %v3786
          %v3950 = vpack.c.bf16 %v3792, %v3788
          %v3951 = vpack.c.bf16 %v3798, %v3794
          %v3952 = vpack.c.bf16 %v3800, %v3796
          %v3953 = vpack.c.bf16 %v3806, %v3802
          %v3954 = vpack.c.bf16 %v3808, %v3804
          %v3955 = vpack.c.bf16 %v3814, %v3810
          %v3956 = vpack.c.bf16 %v3816, %v3812
          %v3957 = vpack.c.bf16 %v3822, %v3818
          %v3958 = vpack.c.bf16 %v3824, %v3820
          %v3959 = vpack.c.bf16 %v3830, %v3826
          %v3960 = vpack.c.bf16 %v3832, %v3828
          %v3961 = vpack.c.bf16 %v3097, %v3096
          %v3962 = vpack.c.bf16 %v3099, %v3098
          %v3963 = vpack.c.bf16 %v3101, %v3100
          %v3964 = vpack.c.bf16 %v3103, %v3102
          %v3965 = vpack.c.bf16 %v3105, %v3104
          %v3966 = vpack.c.bf16 %v3107, %v3106
          %v3967 = vpack.c.bf16 %v3109, %v3108
          %v3968 = vpack.c.bf16 %v3111, %v3110
          %v3969 = vpack.c.bf16 %v3113, %v3112
          %v3970 = vpack.c.bf16 %v3115, %v3114
          %v3971 = vpack.c.bf16 %v3117, %v3116
          %v3972 = vpack.c.bf16 %v3119, %v3118
          %v3973 = vpack.c.bf16 %v3121, %v3120
          %v3974 = vpack.c.bf16 %v3123, %v3122
          %v3975 = vpack.c.bf16 %v3125, %v3124
          %v3976 = vpack.c.bf16 %v3127, %v3126
          %3977 = vmatprep.subr.bf16.mxu0 0
          %3978 = vmatpush1.bf16.msra.mxu0 %v3968
          %3979 = vmatprep.subr.bf16.mxu0 0
          %3980 = vmatpush1.bf16.msra.mxu0 %v3967
          %3981 = vmatprep.subr.bf16.mxu0 0
          %3982 = vmatpush1.bf16.msra.mxu0 %v3966
          %3983 = vmatprep.subr.bf16.mxu0 0
          %3984 = vmatpush1.bf16.msra.mxu0 %v3965
          %3985 = vmatprep.subr.bf16.mxu0 0
          %3986 = vmatpush1.bf16.msra.mxu0 %v3964
          %3987 = vmatprep.subr.bf16.mxu0 0
          %3988 = vmatpush1.bf16.msra.mxu0 %v3963
          %3989 = vmatprep.subr.bf16.mxu0 0
          %3990 = vmatpush1.bf16.msra.mxu0 %v3962
          %3991 = vmatprep.subr.bf16.mxu0 0
          %3992 = vmatpush1.bf16.msra.mxu0 %v3961
          %3993 = vmatprep.subr.bf16.mxu0 0
          %3994 = vmatpush2.bf16.msra.mxu0 %v3976
          %3995 = vmatprep.subr.bf16.mxu0 0
          %3996 = vmatpush2.bf16.msra.mxu0 %v3975
          %3997 = vmatprep.subr.bf16.mxu0 0
          %3998 = vmatpush2.bf16.msra.mxu0 %v3974
          %3999 = vmatprep.subr.bf16.mxu0 0
          %4000 = vmatpush2.bf16.msra.mxu0 %v3973
          %4001 = vmatprep.subr.bf16.mxu0 0
          %4002 = vmatpush2.bf16.msra.mxu0 %v3972
          %4003 = vmatprep.subr.bf16.mxu0 0
          %4004 = vmatpush2.bf16.msra.mxu0 %v3971
          %4005 = vmatprep.subr.bf16.mxu0 0
          %4006 = vmatpush2.bf16.msra.mxu0 %v3970
          %4007 = vmatprep.subr.bf16.mxu0 0
          %4008 = vmatpush2.bf16.msra.mxu0 %v3969
          %4009 = vmatprep.mubr.bf16.mxu0 %v3930
          %4010 = vmatmul.mubr.bf16.gmra.mxu0 %v3929
          %v4011 = vpop.f32.mrf.mxu0
          %v4012 = vadd.f32 0.0, %v4011
          %v4013 = vpop.f32.mrf.mxu0
          %v4014 = vpop.f32.mrf.mxu0
          %v4015 = vadd.f32 0.0, %v4014
          %v4016 = vpop.f32.mrf.mxu0
          %4017 = vmatprep.mubr.bf16.mxu0 %v3932
          %4018 = vmatmul.mubr.bf16.gmra.mxu0 %v3931
          %v4019 = vpop.f32.mrf.mxu0
          %v4020 = vadd.f32 0.0, %v4019
          %v4021 = vpop.f32.mrf.mxu0
          %v4022 = vpop.f32.mrf.mxu0
          %v4023 = vadd.f32 0.0, %v4022
          %v4024 = vpop.f32.mrf.mxu0
          %4025 = vmatprep.mubr.bf16.mxu0 %v3934
          %4026 = vmatmul.mubr.bf16.gmra.mxu0 %v3933
          %v4027 = vpop.f32.mrf.mxu0
          %v4028 = vadd.f32 0.0, %v4027
          %v4029 = vpop.f32.mrf.mxu0
          %v4030 = vpop.f32.mrf.mxu0
          %v4031 = vadd.f32 0.0, %v4030
          %v4032 = vpop.f32.mrf.mxu0
          %4033 = vmatprep.mubr.bf16.mxu0 %v3936
          %4034 = vmatmul.mubr.bf16.gmra.mxu0 %v3935
          %v4035 = vpop.f32.mrf.mxu0
          %v4036 = vadd.f32 0.0, %v4035
          %v4037 = vpop.f32.mrf.mxu0
          %v4038 = vpop.f32.mrf.mxu0
          %v4039 = vadd.f32 0.0, %v4038
          %v4040 = vpop.f32.mrf.mxu0
          %4041 = vmatprep.mubr.bf16.mxu0 %v3938
          %4042 = vmatmul.mubr.bf16.gmra.mxu0 %v3937
          %v4043 = vpop.f32.mrf.mxu0
          %v4044 = vadd.f32 0.0, %v4043
          %v4045 = vpop.f32.mrf.mxu0
          %v4046 = vpop.f32.mrf.mxu0
          %v4047 = vadd.f32 0.0, %v4046
          %v4048 = vpop.f32.mrf.mxu0
          %4049 = vmatprep.mubr.bf16.mxu0 %v3940
          %4050 = vmatmul.mubr.bf16.gmra.mxu0 %v3939
          %v4051 = vpop.f32.mrf.mxu0
          %v4052 = vadd.f32 0.0, %v4051
          %v4053 = vpop.f32.mrf.mxu0
          %v4054 = vpop.f32.mrf.mxu0
          %v4055 = vadd.f32 0.0, %v4054
          %v4056 = vpop.f32.mrf.mxu0
          %4057 = vmatprep.mubr.bf16.mxu0 %v3942
          %4058 = vmatmul.mubr.bf16.gmra.mxu0 %v3941
          %v4059 = vpop.f32.mrf.mxu0
          %v4060 = vadd.f32 0.0, %v4059
          %v4061 = vpop.f32.mrf.mxu0
          %v4062 = vpop.f32.mrf.mxu0
          %v4063 = vadd.f32 0.0, %v4062
          %v4064 = vpop.f32.mrf.mxu0
          %4065 = vmatprep.mubr.bf16.mxu0 %v3944
          %4066 = vmatmul.mubr.bf16.gmra.mxu0 %v3943
          %v4067 = vpop.f32.mrf.mxu0
          %v4068 = vadd.f32 0.0, %v4067
          %v4069 = vpop.f32.mrf.mxu0
          %v4070 = vpop.f32.mrf.mxu0
          %v4071 = vadd.f32 0.0, %v4070
          %v4072 = vpop.f32.mrf.mxu0
          %4073 = vmatprep.mubr.bf16.mxu0 %v3946
          %4074 = vmatmul.mubr.bf16.gmra.mxu0 %v3945
          %v4075 = vpop.f32.mrf.mxu0
          %v4076 = vadd.f32 0.0, %v4075
          %v4077 = vpop.f32.mrf.mxu0
          %v4078 = vpop.f32.mrf.mxu0
          %v4079 = vadd.f32 0.0, %v4078
          %v4080 = vpop.f32.mrf.mxu0
          %4081 = vmatprep.mubr.bf16.mxu0 %v3948
          %4082 = vmatmul.mubr.bf16.gmra.mxu0 %v3947
          %v4083 = vpop.f32.mrf.mxu0
          %v4084 = vadd.f32 0.0, %v4083
          %v4085 = vpop.f32.mrf.mxu0
          %v4086 = vpop.f32.mrf.mxu0
          %v4087 = vadd.f32 0.0, %v4086
          %v4088 = vpop.f32.mrf.mxu0
          %4089 = vmatprep.mubr.bf16.mxu0 %v3950
          %4090 = vmatmul.mubr.bf16.gmra.mxu0 %v3949
          %v4091 = vpop.f32.mrf.mxu0
          %v4092 = vadd.f32 0.0, %v4091
          %v4093 = vpop.f32.mrf.mxu0
          %v4094 = vpop.f32.mrf.mxu0
          %v4095 = vadd.f32 0.0, %v4094
          %v4096 = vpop.f32.mrf.mxu0
          %4097 = vmatprep.mubr.bf16.mxu0 %v3952
          %4098 = vmatmul.mubr.bf16.gmra.mxu0 %v3951
          %v4099 = vpop.f32.mrf.mxu0
          %v4100 = vadd.f32 0.0, %v4099
          %v4101 = vpop.f32.mrf.mxu0
          %v4102 = vpop.f32.mrf.mxu0
          %v4103 = vadd.f32 0.0, %v4102
          %v4104 = vpop.f32.mrf.mxu0
          %4105 = vmatprep.mubr.bf16.mxu0 %v3954
          %4106 = vmatmul.mubr.bf16.gmra.mxu0 %v3953
          %v4107 = vpop.f32.mrf.mxu0
          %v4108 = vadd.f32 0.0, %v4107
          %v4109 = vpop.f32.mrf.mxu0
          %v4110 = vpop.f32.mrf.mxu0
          %v4111 = vadd.f32 0.0, %v4110
          %v4112 = vpop.f32.mrf.mxu0
          %4113 = vmatprep.mubr.bf16.mxu0 %v3956
          %4114 = vmatmul.mubr.bf16.gmra.mxu0 %v3955
          %v4115 = vpop.f32.mrf.mxu0
          %v4116 = vadd.f32 0.0, %v4115
          %v4117 = vpop.f32.mrf.mxu0
          %v4118 = vpop.f32.mrf.mxu0
          %v4119 = vadd.f32 0.0, %v4118
          %v4120 = vpop.f32.mrf.mxu0
          %4121 = vmatprep.mubr.bf16.mxu0 %v3958
          %4122 = vmatmul.mubr.bf16.gmra.mxu0 %v3957
          %v4123 = vpop.f32.mrf.mxu0
          %v4124 = vadd.f32 0.0, %v4123
          %v4125 = vpop.f32.mrf.mxu0
          %v4126 = vpop.f32.mrf.mxu0
          %v4127 = vadd.f32 0.0, %v4126
          %v4128 = vpop.f32.mrf.mxu0
          %4129 = vmatprep.mubr.bf16.mxu0 %v3960
          %4130 = vmatmul.mubr.bf16.gmra.mxu0 %v3959
          %v4131 = vpop.f32.mrf.mxu0
          %v4132 = vadd.f32 0.0, %v4131
          %v4133 = vpop.f32.mrf.mxu0
          %v4134 = vpop.f32.mrf.mxu0
          %v4135 = vadd.f32 0.0, %v4134
          %v4136 = vpop.f32.mrf.mxu0
          %4137 = vdwg.mxu0
          %v4138 = vrcp.pop %v3835
          %v4139 = vrcp.pop %v3838
          %v4140 = vrcp.pop %v3841
          %v4141 = vrcp.pop %v3844
          %v4142 = vrcp.pop %v3847
          %v4143 = vrcp.pop %v3850
          %v4144 = vrcp.pop %v3853
          %v4145 = vrcp.pop %v3856
          %v4146 = vrcp.pop %v3859
          %v4147 = vrcp.pop %v3862
          %v4148 = vrcp.pop %v3865
          %v4149 = vrcp.pop %v3868
          %v4150 = vrcp.pop %v3871
          %v4151 = vrcp.pop %v3874
          %v4152 = vrcp.pop %v3877
          %v4153 = vrcp.pop %v3880
          %v4154 = vrcp.pop %v3883
          %v4155 = vrcp.pop %v3886
          %v4156 = vrcp.pop %v3889
          %v4157 = vrcp.pop %v3892
          %v4158 = vrcp.pop %v3895
          %v4159 = vrcp.pop %v3898
          %v4160 = vrcp.pop %v3901
          %v4161 = vrcp.pop %v3904
          %v4162 = vrcp.pop %v3907
          %v4163 = vrcp.pop %v3910
          %v4164 = vrcp.pop %v3913
          %v4165 = vrcp.pop %v3916
          %v4166 = vrcp.pop %v3919
          %v4167 = vrcp.pop %v3922
          %v4168 = vrcp.pop %v3925
          %v4169 = vrcp.pop %v3928
          %v4170 = vmul.f32 %v4012, %v4138
          %v4171 = vmul.f32 %v4015, %v4139
          %v4172 = vmul.f32 %v4020, %v4140
          %v4173 = vmul.f32 %v4023, %v4141
          %v4174 = vmul.f32 %v4028, %v4142
          %v4175 = vmul.f32 %v4031, %v4143
          %v4176 = vmul.f32 %v4036, %v4144
          %v4177 = vmul.f32 %v4039, %v4145
          %v4178 = vmul.f32 %v4044, %v4146
          %v4179 = vmul.f32 %v4047, %v4147
          %v4180 = vmul.f32 %v4052, %v4148
          %v4181 = vmul.f32 %v4055, %v4149
          %v4182 = vmul.f32 %v4060, %v4150
          %v4183 = vmul.f32 %v4063, %v4151
          %v4184 = vmul.f32 %v4068, %v4152
          %v4185 = vmul.f32 %v4071, %v4153
          %v4186 = vmul.f32 %v4076, %v4154
          %v4187 = vmul.f32 %v4079, %v4155
          %v4188 = vmul.f32 %v4084, %v4156
          %v4189 = vmul.f32 %v4087, %v4157
          %v4190 = vmul.f32 %v4092, %v4158
          %v4191 = vmul.f32 %v4095, %v4159
          %v4192 = vmul.f32 %v4100, %v4160
          %v4193 = vmul.f32 %v4103, %v4161
          %v4194 = vmul.f32 %v4108, %v4162
          %v4195 = vmul.f32 %v4111, %v4163
          %v4196 = vmul.f32 %v4116, %v4164
          %v4197 = vmul.f32 %v4119, %v4165
          %v4198 = vmul.f32 %v4124, %v4166
          %v4199 = vmul.f32 %v4127, %v4167
          %v4200 = vmul.f32 %v4132, %v4168
          %v4201 = vmul.f32 %v4135, %v4169
          %v4202 = vpack.c.bf16 %v4171, %v4170
          %v4203 = vpack.c.bf16 %v4173, %v4172
          %v4204 = vpack.c.bf16 %v4175, %v4174
          %v4205 = vpack.c.bf16 %v4177, %v4176
          %v4206 = vpack.c.bf16 %v4179, %v4178
          %v4207 = vpack.c.bf16 %v4181, %v4180
          %v4208 = vpack.c.bf16 %v4183, %v4182
          %v4209 = vpack.c.bf16 %v4185, %v4184
          %v4210 = vpack.c.bf16 %v4187, %v4186
          %v4211 = vpack.c.bf16 %v4189, %v4188
          %v4212 = vpack.c.bf16 %v4191, %v4190
          %v4213 = vpack.c.bf16 %v4193, %v4192
          %v4214 = vpack.c.bf16 %v4195, %v4194
          %v4215 = vpack.c.bf16 %v4197, %v4196
          %v4216 = vpack.c.bf16 %v4199, %v4198
          %v4217 = vpack.c.bf16 %v4201, %v4200
          %v4218 = vld [vmem:[%s572] sm:$0xf]
          %v4219 = vld [vmem:[%s572 + $0x4] sm:$0xf]
          %v4220 = vld [vmem:[%s572 + $0x8] sm:$0xf]
          %v4221 = vld [vmem:[%s572 + $0xc] sm:$0xf]
          %v4222 = vld [vmem:[%s572 + $0x10] sm:$0xf]
          %v4223 = vld [vmem:[%s572 + $0x14] sm:$0xf]
          %v4224 = vld [vmem:[%s572 + $0x18] sm:$0xf]
          %v4225 = vld [vmem:[%s572 + $0x1c] sm:$0xf]
          %v4226 = vld [vmem:[%s572 + $0x20] sm:$0xf]
          %v4227 = vld [vmem:[%s572 + $0x24] sm:$0xf]
          %v4228 = vld [vmem:[%s572 + $0x28] sm:$0xf]
          %v4229 = vld [vmem:[%s572 + $0x2c] sm:$0xf]
          %v4230 = vld [vmem:[%s572 + $0x30] sm:$0xf]
          %v4231 = vld [vmem:[%s572 + $0x34] sm:$0xf]
          %v4232 = vld [vmem:[%s572 + $0x38] sm:$0xf]
          %v4233 = vld [vmem:[%s572 + $0x3c] sm:$0xf]
          %v4250 = vunpack.c.l.b16 %v4218
          %v4251 = vunpack.c.l.b16 %v4219
          %v4252 = vunpack.c.l.b16 %v4220
          %v4253 = vunpack.c.l.b16 %v4221
          %v4254 = vunpack.c.l.b16 %v4222
          %v4255 = vunpack.c.l.b16 %v4223
          %v4256 = vunpack.c.l.b16 %v4224
          %v4257 = vunpack.c.l.b16 %v4225
          %v4258 = vunpack.c.l.b16 %v4226
          %v4259 = vunpack.c.l.b16 %v4227
          %v4260 = vunpack.c.l.b16 %v4228
          %v4261 = vunpack.c.l.b16 %v4229
          %v4262 = vunpack.c.l.b16 %v4230
          %v4263 = vunpack.c.l.b16 %v4231
          %v4264 = vunpack.c.l.b16 %v4232
          %v4265 = vunpack.c.l.b16 %v4233
          %v4266 = vpack.c.b16 %v4251, %v4250
          %v4267 = vpack.c.b16 %v4253, %v4252
          %v4268 = vpack.c.b16 %v4255, %v4254
          %v4269 = vpack.c.b16 %v4257, %v4256
          %v4270 = vpack.c.b16 %v4259, %v4258
          %v4271 = vpack.c.b16 %v4261, %v4260
          %v4272 = vpack.c.b16 %v4263, %v4262
          %v4273 = vpack.c.b16 %v4265, %v4264
          %4282 = vmatprep.subr.bf16.mxu0 0
          %4283 = vmatpush1.bf16.msra.mxu0 %v4273
          %4284 = vmatprep.subr.bf16.mxu0 0
          %4285 = vmatpush1.bf16.msra.mxu0 %v4272
          %4286 = vmatprep.subr.bf16.mxu0 0
          %4287 = vmatpush1.bf16.msra.mxu0 %v4271
          %4288 = vmatprep.subr.bf16.mxu0 0
          %4289 = vmatpush1.bf16.msra.mxu0 %v4270
          %4290 = vmatprep.subr.bf16.mxu0 0
          %4291 = vmatpush1.bf16.msra.mxu0 %v4269
          %4292 = vmatprep.subr.bf16.mxu0 0
          %4293 = vmatpush1.bf16.msra.mxu0 %v4268
          %4294 = vmatprep.subr.bf16.mxu0 0
          %4295 = vmatpush1.bf16.msra.mxu0 %v4267
          %4296 = vmatprep.subr.bf16.mxu0 0
          %4297 = vmatpush1.bf16.msra.mxu0 %v4266
          %4298 = vmatprep.subr.bf16.mxu0 0
          %4299 = vmatpush2.bf16.msra.mxu0 0
          %4300 = vmatprep.subr.bf16.mxu0 0
          %4301 = vmatpush2.bf16.msra.mxu0 0
          %4302 = vmatprep.subr.bf16.mxu0 0
          %4303 = vmatpush2.bf16.msra.mxu0 0
          %4304 = vmatprep.subr.bf16.mxu0 0
          %4305 = vmatpush2.bf16.msra.mxu0 0
          %4306 = vmatprep.subr.bf16.mxu0 0
          %4307 = vmatpush2.bf16.msra.mxu0 0
          %4308 = vmatprep.subr.bf16.mxu0 0
          %4309 = vmatpush2.bf16.msra.mxu0 0
          %4310 = vmatprep.subr.bf16.mxu0 0
          %4311 = vmatpush2.bf16.msra.mxu0 0
          %4312 = vmatprep.subr.bf16.mxu0 0
          %4313 = vmatpush2.bf16.msra.mxu0 0
          %4314 = vmatprep.mubr.bf16.mxu0 0
          %4315 = vmatmul.mubr.bf16.gmra.mxu0 %v4202
          %v4316 = vpop.f32.mrf.mxu0
          %v4317 = vadd.f32 0.0, %v4316
          %v4318 = vpop.f32.mrf.mxu0
          %v4319 = vpop.f32.mrf.mxu0
          %v4320 = vadd.f32 0.0, %v4319
          %v4321 = vpop.f32.mrf.mxu0
          %4322 = vmatprep.mubr.bf16.mxu0 0
          %4323 = vmatmul.mubr.bf16.gmra.mxu0 %v4203
          %v4324 = vpop.f32.mrf.mxu0
          %v4325 = vadd.f32 0.0, %v4324
          %v4326 = vpop.f32.mrf.mxu0
          %v4327 = vpop.f32.mrf.mxu0
          %v4328 = vadd.f32 0.0, %v4327
          %v4329 = vpop.f32.mrf.mxu0
          %4330 = vmatprep.mubr.bf16.mxu0 0
          %4331 = vmatmul.mubr.bf16.gmra.mxu0 %v4204
          %v4332 = vpop.f32.mrf.mxu0
          %v4333 = vadd.f32 0.0, %v4332
          %v4334 = vpop.f32.mrf.mxu0
          %v4335 = vpop.f32.mrf.mxu0
          %v4336 = vadd.f32 0.0, %v4335
          %v4337 = vpop.f32.mrf.mxu0
          %4338 = vmatprep.mubr.bf16.mxu0 0
          %4339 = vmatmul.mubr.bf16.gmra.mxu0 %v4205
          %v4340 = vpop.f32.mrf.mxu0
          %v4341 = vadd.f32 0.0, %v4340
          %v4342 = vpop.f32.mrf.mxu0
          %v4343 = vpop.f32.mrf.mxu0
          %v4344 = vadd.f32 0.0, %v4343
          %v4345 = vpop.f32.mrf.mxu0
          %4346 = vmatprep.mubr.bf16.mxu0 0
          %4347 = vmatmul.mubr.bf16.gmra.mxu0 %v4206
          %v4348 = vpop.f32.mrf.mxu0
          %v4349 = vadd.f32 0.0, %v4348
          %v4350 = vpop.f32.mrf.mxu0
          %v4351 = vpop.f32.mrf.mxu0
          %v4352 = vadd.f32 0.0, %v4351
          %v4353 = vpop.f32.mrf.mxu0
          %4354 = vmatprep.mubr.bf16.mxu0 0
          %4355 = vmatmul.mubr.bf16.gmra.mxu0 %v4207
          %v4356 = vpop.f32.mrf.mxu0
          %v4357 = vadd.f32 0.0, %v4356
          %v4358 = vpop.f32.mrf.mxu0
          %v4359 = vpop.f32.mrf.mxu0
          %v4360 = vadd.f32 0.0, %v4359
          %v4361 = vpop.f32.mrf.mxu0
          %4362 = vmatprep.mubr.bf16.mxu0 0
          %4363 = vmatmul.mubr.bf16.gmra.mxu0 %v4208
          %v4364 = vpop.f32.mrf.mxu0
          %v4365 = vadd.f32 0.0, %v4364
          %v4366 = vpop.f32.mrf.mxu0
          %v4367 = vpop.f32.mrf.mxu0
          %v4368 = vadd.f32 0.0, %v4367
          %v4369 = vpop.f32.mrf.mxu0
          %4370 = vmatprep.mubr.bf16.mxu0 0
          %4371 = vmatmul.mubr.bf16.gmra.mxu0 %v4209
          %v4372 = vpop.f32.mrf.mxu0
          %v4373 = vadd.f32 0.0, %v4372
          %v4374 = vpop.f32.mrf.mxu0
          %v4375 = vpop.f32.mrf.mxu0
          %v4376 = vadd.f32 0.0, %v4375
          %v4377 = vpop.f32.mrf.mxu0
          %4378 = vmatprep.mubr.bf16.mxu0 0
          %4379 = vmatmul.mubr.bf16.gmra.mxu0 %v4210
          %v4380 = vpop.f32.mrf.mxu0
          %v4381 = vadd.f32 0.0, %v4380
          %v4382 = vpop.f32.mrf.mxu0
          %v4383 = vpop.f32.mrf.mxu0
          %v4384 = vadd.f32 0.0, %v4383
          %v4385 = vpop.f32.mrf.mxu0
          %4386 = vmatprep.mubr.bf16.mxu0 0
          %4387 = vmatmul.mubr.bf16.gmra.mxu0 %v4211
          %v4388 = vpop.f32.mrf.mxu0
          %v4389 = vadd.f32 0.0, %v4388
          %v4390 = vpop.f32.mrf.mxu0
          %v4391 = vpop.f32.mrf.mxu0
          %v4392 = vadd.f32 0.0, %v4391
          %v4393 = vpop.f32.mrf.mxu0
          %4394 = vmatprep.mubr.bf16.mxu0 0
          %4395 = vmatmul.mubr.bf16.gmra.mxu0 %v4212
          %v4396 = vpop.f32.mrf.mxu0
          %v4397 = vadd.f32 0.0, %v4396
          %v4398 = vpop.f32.mrf.mxu0
          %v4399 = vpop.f32.mrf.mxu0
          %v4400 = vadd.f32 0.0, %v4399
          %v4401 = vpop.f32.mrf.mxu0
          %4402 = vmatprep.mubr.bf16.mxu0 0
          %4403 = vmatmul.mubr.bf16.gmra.mxu0 %v4213
          %v4404 = vpop.f32.mrf.mxu0
          %v4405 = vadd.f32 0.0, %v4404
          %v4406 = vpop.f32.mrf.mxu0
          %v4407 = vpop.f32.mrf.mxu0
          %v4408 = vadd.f32 0.0, %v4407
          %v4409 = vpop.f32.mrf.mxu0
          %4410 = vmatprep.mubr.bf16.mxu0 0
          %4411 = vmatmul.mubr.bf16.gmra.mxu0 %v4214
          %v4412 = vpop.f32.mrf.mxu0
          %v4413 = vadd.f32 0.0, %v4412
          %v4414 = vpop.f32.mrf.mxu0
          %v4415 = vpop.f32.mrf.mxu0
          %v4416 = vadd.f32 0.0, %v4415
          %v4417 = vpop.f32.mrf.mxu0
          %4418 = vmatprep.mubr.bf16.mxu0 0
          %4419 = vmatmul.mubr.bf16.gmra.mxu0 %v4215
          %v4420 = vpop.f32.mrf.mxu0
          %v4421 = vadd.f32 0.0, %v4420
          %v4422 = vpop.f32.mrf.mxu0
          %v4423 = vpop.f32.mrf.mxu0
          %v4424 = vadd.f32 0.0, %v4423
          %v4425 = vpop.f32.mrf.mxu0
          %4426 = vmatprep.mubr.bf16.mxu0 0
          %4427 = vmatmul.mubr.bf16.gmra.mxu0 %v4216
          %v4428 = vpop.f32.mrf.mxu0
          %v4429 = vadd.f32 0.0, %v4428
          %v4430 = vpop.f32.mrf.mxu0
          %v4431 = vpop.f32.mrf.mxu0
          %v4432 = vadd.f32 0.0, %v4431
          %v4433 = vpop.f32.mrf.mxu0
          %4434 = vmatprep.mubr.bf16.mxu0 0
          %4435 = vmatmul.mubr.bf16.gmra.mxu0 %v4217
          %v4436 = vpop.f32.mrf.mxu0
          %v4437 = vadd.f32 0.0, %v4436
          %v4438 = vpop.f32.mrf.mxu0
          %v4439 = vpop.f32.mrf.mxu0
          %v4440 = vadd.f32 0.0, %v4439
          %v4441 = vpop.f32.mrf.mxu0
          %4442 = vdwg.mxu0
          %v4443 = vadd.f32 %v1341, %v4317
          %v4444 = vadd.f32 %v1342, %v4320
          %v4445 = vadd.f32 %v1343, %v4325
          %v4446 = vadd.f32 %v1344, %v4328
          %v4447 = vadd.f32 %v1345, %v4333
          %v4448 = vadd.f32 %v1346, %v4336
          %v4449 = vadd.f32 %v1347, %v4341
          %v4450 = vadd.f32 %v1348, %v4344
          %v4451 = vadd.f32 %v1349, %v4349
          %v4452 = vadd.f32 %v1350, %v4352
          %v4453 = vadd.f32 %v1351, %v4357
          %v4454 = vadd.f32 %v1352, %v4360
          %v4455 = vadd.f32 %v1353, %v4365
          %v4456 = vadd.f32 %v1354, %v4368
          %v4457 = vadd.f32 %v1355, %v4373
          %v4458 = vadd.f32 %v1356, %v4376
          %v4459 = vadd.f32 %v1357, %v4381
          %v4460 = vadd.f32 %v1358, %v4384
          %v4461 = vadd.f32 %v1359, %v4389
          %v4462 = vadd.f32 %v1360, %v4392
          %v4463 = vadd.f32 %v1361, %v4397
          %v4464 = vadd.f32 %v1362, %v4400
          %v4465 = vadd.f32 %v1363, %v4405
          %v4466 = vadd.f32 %v1364, %v4408
          %v4467 = vadd.f32 %v1365, %v4413
          %v4468 = vadd.f32 %v1366, %v4416
          %v4469 = vadd.f32 %v1367, %v4421
          %v4470 = vadd.f32 %v1368, %v4424
          %v4471 = vadd.f32 %v1369, %v4429
          %v4472 = vadd.f32 %v1370, %v4432
          %v4473 = vadd.f32 %v1371, %v4437
          %v4474 = vadd.f32 %v1372, %v4440
          %4475 = vst [vmem:[#allocation2] sm:$0xff] %v4443
          %4476 = vst [vmem:[#allocation2 + $0x8] sm:$0xff] %v4444
          %4477 = vst [vmem:[#allocation2 + $0x10] sm:$0xff] %v4445
          %4478 = vst [vmem:[#allocation2 + $0x18] sm:$0xff] %v4446
          %4479 = vst [vmem:[#allocation2 + $0x20] sm:$0xff] %v4447
          %4480 = vst [vmem:[#allocation2 + $0x28] sm:$0xff] %v4448
          %4481 = vst [vmem:[#allocation2 + $0x30] sm:$0xff] %v4449
          %4482 = vst [vmem:[#allocation2 + $0x38] sm:$0xff] %v4450
          %4483 = vst [vmem:[#allocation2 + $0x40] sm:$0xff] %v4451
          %4484 = vst [vmem:[#allocation2 + $0x48] sm:$0xff] %v4452
          %4485 = vst [vmem:[#allocation2 + $0x50] sm:$0xff] %v4453
          %4486 = vst [vmem:[#allocation2 + $0x58] sm:$0xff] %v4454
          %4487 = vst [vmem:[#allocation2 + $0x60] sm:$0xff] %v4455
          %4488 = vst [vmem:[#allocation2 + $0x68] sm:$0xff] %v4456
          %4489 = vst [vmem:[#allocation2 + $0x70] sm:$0xff] %v4457
          %4490 = vst [vmem:[#allocation2 + $0x78] sm:$0xff] %v4458
          %4491 = vst [vmem:[#allocation2 + $0x80] sm:$0xff] %v4459
          %4492 = vst [vmem:[#allocation2 + $0x88] sm:$0xff] %v4460
          %4493 = vst [vmem:[#allocation2 + $0x90] sm:$0xff] %v4461
          %4494 = vst [vmem:[#allocation2 + $0x98] sm:$0xff] %v4462
          %4495 = vst [vmem:[#allocation2 + $0xa0] sm:$0xff] %v4463
          %4496 = vst [vmem:[#allocation2 + $0xa8] sm:$0xff] %v4464
          %4497 = vst [vmem:[#allocation2 + $0xb0] sm:$0xff] %v4465
          %4498 = vst [vmem:[#allocation2 + $0xb8] sm:$0xff] %v4466
          %4499 = vst [vmem:[#allocation2 + $0xc0] sm:$0xff] %v4467
          %4500 = vst [vmem:[#allocation2 + $0xc8] sm:$0xff] %v4468
          %4501 = vst [vmem:[#allocation2 + $0xd0] sm:$0xff] %v4469
          %4502 = vst [vmem:[#allocation2 + $0xd8] sm:$0xff] %v4470
          %4503 = vst [vmem:[#allocation2 + $0xe0] sm:$0xff] %v4471
          %4504 = vst [vmem:[#allocation2 + $0xe8] sm:$0xff] %v4472
          %4505 = vst [vmem:[#allocation2 + $0xf0] sm:$0xff] %v4473
          %4506 = vst [vmem:[#allocation2 + $0xf8] sm:$0xff] %v4474
        $region88: #{gpt_forward.1} parent=71 // pred_fallthru
          _
        %v4507 = vld [vmem:[#allocation2] sm:$0xff]
        %v4508 = vld [vmem:[#allocation2 + $0x8] sm:$0xff]
        %v4509 = vld [vmem:[#allocation2 + $0x10] sm:$0xff]
        %v4510 = vld [vmem:[#allocation2 + $0x18] sm:$0xff]
        %v4511 = vld [vmem:[#allocation2 + $0x20] sm:$0xff]
        %v4512 = vld [vmem:[#allocation2 + $0x28] sm:$0xff]
        %v4513 = vld [vmem:[#allocation2 + $0x30] sm:$0xff]
        %v4514 = vld [vmem:[#allocation2 + $0x38] sm:$0xff]
        %v4515 = vld [vmem:[#allocation2 + $0x40] sm:$0xff]
        %v4516 = vld [vmem:[#allocation2 + $0x48] sm:$0xff]
        %v4517 = vld [vmem:[#allocation2 + $0x50] sm:$0xff]
        %v4518 = vld [vmem:[#allocation2 + $0x58] sm:$0xff]
        %v4519 = vld [vmem:[#allocation2 + $0x60] sm:$0xff]
        %v4520 = vld [vmem:[#allocation2 + $0x68] sm:$0xff]
        %v4521 = vld [vmem:[#allocation2 + $0x70] sm:$0xff]
        %v4522 = vld [vmem:[#allocation2 + $0x78] sm:$0xff]
        %v4523 = vld [vmem:[#allocation2 + $0x80] sm:$0xff]
        %v4524 = vld [vmem:[#allocation2 + $0x88] sm:$0xff]
        %v4525 = vld [vmem:[#allocation2 + $0x90] sm:$0xff]
        %v4526 = vld [vmem:[#allocation2 + $0x98] sm:$0xff]
        %v4527 = vld [vmem:[#allocation2 + $0xa0] sm:$0xff]
        %v4528 = vld [vmem:[#allocation2 + $0xa8] sm:$0xff]
        %v4529 = vld [vmem:[#allocation2 + $0xb0] sm:$0xff]
        %v4530 = vld [vmem:[#allocation2 + $0xb8] sm:$0xff]
        %v4531 = vld [vmem:[#allocation2 + $0xc0] sm:$0xff]
        %v4532 = vld [vmem:[#allocation2 + $0xc8] sm:$0xff]
        %v4533 = vld [vmem:[#allocation2 + $0xd0] sm:$0xff]
        %v4534 = vld [vmem:[#allocation2 + $0xd8] sm:$0xff]
        %v4535 = vld [vmem:[#allocation2 + $0xe0] sm:$0xff]
        %v4536 = vld [vmem:[#allocation2 + $0xe8] sm:$0xff]
        %v4537 = vld [vmem:[#allocation2 + $0xf0] sm:$0xff]
        %v4538 = vld [vmem:[#allocation2 + $0xf8] sm:$0xff]
        %v4539 = vmul.f32 %v4507, %v4507
        %v4540 = vmul.f32 %v4508, %v4508
        %v4541 = vmul.f32 %v4509, %v4509
        %v4542 = vmul.f32 %v4510, %v4510
        %v4543 = vmul.f32 %v4511, %v4511
        %v4544 = vmul.f32 %v4512, %v4512
        %v4545 = vmul.f32 %v4513, %v4513
        %v4546 = vmul.f32 %v4514, %v4514
        %v4547 = vmul.f32 %v4515, %v4515
        %v4548 = vmul.f32 %v4516, %v4516
        %v4549 = vmul.f32 %v4517, %v4517
        %v4550 = vmul.f32 %v4518, %v4518
        %v4551 = vmul.f32 %v4519, %v4519
        %v4552 = vmul.f32 %v4520, %v4520
        %v4553 = vmul.f32 %v4521, %v4521
        %v4554 = vmul.f32 %v4522, %v4522
        %v4555 = vmul.f32 %v4523, %v4523
        %v4556 = vmul.f32 %v4524, %v4524
        %v4557 = vmul.f32 %v4525, %v4525
        %v4558 = vmul.f32 %v4526, %v4526
        %v4559 = vmul.f32 %v4527, %v4527
        %v4560 = vmul.f32 %v4528, %v4528
        %v4561 = vmul.f32 %v4529, %v4529
        %v4562 = vmul.f32 %v4530, %v4530
        %v4563 = vmul.f32 %v4531, %v4531
        %v4564 = vmul.f32 %v4532, %v4532
        %v4565 = vmul.f32 %v4533, %v4533
        %v4566 = vmul.f32 %v4534, %v4534
        %v4567 = vmul.f32 %v4535, %v4535
        %v4568 = vmul.f32 %v4536, %v4536
        %v4569 = vmul.f32 %v4537, %v4537
        %v4570 = vmul.f32 %v4538, %v4538
        %4571 = vadd.xlane.f32.xlu0 %v4539
        %v4572 = vpop.xlane.xlu0 %4571
        %4573 = vadd.xlane.f32.xlu0 %v4540
        %v4574 = vpop.xlane.xlu0 %4573
        %4575 = vadd.xlane.f32.xlu0 %v4541
        %v4576 = vpop.xlane.xlu0 %4575
        %4577 = vadd.xlane.f32.xlu0 %v4542
        %v4578 = vpop.xlane.xlu0 %4577
        %4579 = vadd.xlane.f32.xlu0 %v4543
        %v4580 = vpop.xlane.xlu0 %4579
        %4581 = vadd.xlane.f32.xlu0 %v4544
        %v4582 = vpop.xlane.xlu0 %4581
        %4583 = vadd.xlane.f32.xlu0 %v4545
        %v4584 = vpop.xlane.xlu0 %4583
        %4585 = vadd.xlane.f32.xlu0 %v4546
        %v4586 = vpop.xlane.xlu0 %4585
        %4587 = vadd.xlane.f32.xlu0 %v4547
        %v4588 = vpop.xlane.xlu0 %4587
        %4589 = vadd.xlane.f32.xlu0 %v4548
        %v4590 = vpop.xlane.xlu0 %4589
        %4591 = vadd.xlane.f32.xlu0 %v4549
        %v4592 = vpop.xlane.xlu0 %4591
        %4593 = vadd.xlane.f32.xlu0 %v4550
        %v4594 = vpop.xlane.xlu0 %4593
        %4595 = vadd.xlane.f32.xlu0 %v4551
        %v4596 = vpop.xlane.xlu0 %4595
        %4597 = vadd.xlane.f32.xlu0 %v4552
        %v4598 = vpop.xlane.xlu0 %4597
        %4599 = vadd.xlane.f32.xlu0 %v4553
        %v4600 = vpop.xlane.xlu0 %4599
        %4601 = vadd.xlane.f32.xlu0 %v4554
        %v4602 = vpop.xlane.xlu0 %4601
        %4603 = vadd.xlane.f32.xlu0 %v4555
        %v4604 = vpop.xlane.xlu0 %4603
        %4605 = vadd.xlane.f32.xlu0 %v4556
        %v4606 = vpop.xlane.xlu0 %4605
        %4607 = vadd.xlane.f32.xlu0 %v4557
        %v4608 = vpop.xlane.xlu0 %4607
        %4609 = vadd.xlane.f32.xlu0 %v4558
        %v4610 = vpop.xlane.xlu0 %4609
        %4611 = vadd.xlane.f32.xlu0 %v4559
        %v4612 = vpop.xlane.xlu0 %4611
        %4613 = vadd.xlane.f32.xlu0 %v4560
        %v4614 = vpop.xlane.xlu0 %4613
        %4615 = vadd.xlane.f32.xlu0 %v4561
        %v4616 = vpop.xlane.xlu0 %4615
        %4617 = vadd.xlane.f32.xlu0 %v4562
        %v4618 = vpop.xlane.xlu0 %4617
        %4619 = vadd.xlane.f32.xlu0 %v4563
        %v4620 = vpop.xlane.xlu0 %4619
        %4621 = vadd.xlane.f32.xlu0 %v4564
        %v4622 = vpop.xlane.xlu0 %4621
        %4623 = vadd.xlane.f32.xlu0 %v4565
        %v4624 = vpop.xlane.xlu0 %4623
        %4625 = vadd.xlane.f32.xlu0 %v4566
        %v4626 = vpop.xlane.xlu0 %4625
        %4627 = vadd.xlane.f32.xlu0 %v4567
        %v4628 = vpop.xlane.xlu0 %4627
        %4629 = vadd.xlane.f32.xlu0 %v4568
        %v4630 = vpop.xlane.xlu0 %4629
        %4631 = vadd.xlane.f32.xlu0 %v4569
        %v4632 = vpop.xlane.xlu0 %4631
        %4633 = vadd.xlane.f32.xlu0 %v4570
        %v4634 = vpop.xlane.xlu0 %4633
        %v4635 = vmul.f32 %v4572, %v1469
        %v4636 = vmul.f32 %v4574, %v1469
        %v4637 = vmul.f32 %v4576, %v1469
        %v4638 = vmul.f32 %v4578, %v1469
        %v4639 = vmul.f32 %v4580, %v1469
        %v4640 = vmul.f32 %v4582, %v1469
        %v4641 = vmul.f32 %v4584, %v1469
        %v4642 = vmul.f32 %v4586, %v1469
        %v4643 = vmul.f32 %v4588, %v1469
        %v4644 = vmul.f32 %v4590, %v1469
        %v4645 = vmul.f32 %v4592, %v1469
        %v4646 = vmul.f32 %v4594, %v1469
        %v4647 = vmul.f32 %v4596, %v1469
        %v4648 = vmul.f32 %v4598, %v1469
        %v4649 = vmul.f32 %v4600, %v1469
        %v4650 = vmul.f32 %v4602, %v1469
        %v4651 = vmul.f32 %v4604, %v1469
        %v4652 = vmul.f32 %v4606, %v1469
        %v4653 = vmul.f32 %v4608, %v1469
        %v4654 = vmul.f32 %v4610, %v1469
        %v4655 = vmul.f32 %v4612, %v1469
        %v4656 = vmul.f32 %v4614, %v1469
        %v4657 = vmul.f32 %v4616, %v1469
        %v4658 = vmul.f32 %v4618, %v1469
        %v4659 = vmul.f32 %v4620, %v1469
        %v4660 = vmul.f32 %v4622, %v1469
        %v4661 = vmul.f32 %v4624, %v1469
        %v4662 = vmul.f32 %v4626, %v1469
        %v4663 = vmul.f32 %v4628, %v1469
        %v4664 = vmul.f32 %v4630, %v1469
        %v4665 = vmul.f32 %v4632, %v1469
        %v4666 = vmul.f32 %v4634, %v1469
        %v4667 = vadd.f32 %v4635, 1.1920929e-07
        %v4668 = vadd.f32 %v4636, 1.1920929e-07
        %v4669 = vadd.f32 %v4637, 1.1920929e-07
        %v4670 = vadd.f32 %v4638, 1.1920929e-07
        %v4671 = vadd.f32 %v4639, 1.1920929e-07
        %v4672 = vadd.f32 %v4640, 1.1920929e-07
        %v4673 = vadd.f32 %v4641, 1.1920929e-07
        %v4674 = vadd.f32 %v4642, 1.1920929e-07
        %v4675 = vadd.f32 %v4643, 1.1920929e-07
        %v4676 = vadd.f32 %v4644, 1.1920929e-07
        %v4677 = vadd.f32 %v4645, 1.1920929e-07
        %v4678 = vadd.f32 %v4646, 1.1920929e-07
        %v4679 = vadd.f32 %v4647, 1.1920929e-07
        %v4680 = vadd.f32 %v4648, 1.1920929e-07
        %v4681 = vadd.f32 %v4649, 1.1920929e-07
        %v4682 = vadd.f32 %v4650, 1.1920929e-07
        %v4683 = vadd.f32 %v4651, 1.1920929e-07
        %v4684 = vadd.f32 %v4652, 1.1920929e-07
        %v4685 = vadd.f32 %v4653, 1.1920929e-07
        %v4686 = vadd.f32 %v4654, 1.1920929e-07
        %v4687 = vadd.f32 %v4655, 1.1920929e-07
        %v4688 = vadd.f32 %v4656, 1.1920929e-07
        %v4689 = vadd.f32 %v4657, 1.1920929e-07
        %v4690 = vadd.f32 %v4658, 1.1920929e-07
        %v4691 = vadd.f32 %v4659, 1.1920929e-07
        %v4692 = vadd.f32 %v4660, 1.1920929e-07
        %v4693 = vadd.f32 %v4661, 1.1920929e-07
        %v4694 = vadd.f32 %v4662, 1.1920929e-07
        %v4695 = vadd.f32 %v4663, 1.1920929e-07
        %v4696 = vadd.f32 %v4664, 1.1920929e-07
        %v4697 = vadd.f32 %v4665, 1.1920929e-07
        %v4698 = vadd.f32 %v4666, 1.1920929e-07
        %v4699 = vrsqrt.pop %v4667
        %v4700 = vrsqrt.pop %v4668
        %v4701 = vrsqrt.pop %v4669
        %v4702 = vrsqrt.pop %v4670
        %v4703 = vrsqrt.pop %v4671
        %v4704 = vrsqrt.pop %v4672
        %v4705 = vrsqrt.pop %v4673
        %v4706 = vrsqrt.pop %v4674
        %v4707 = vrsqrt.pop %v4675
        %v4708 = vrsqrt.pop %v4676
        %v4709 = vrsqrt.pop %v4677
        %v4710 = vrsqrt.pop %v4678
        %v4711 = vrsqrt.pop %v4679
        %v4712 = vrsqrt.pop %v4680
        %v4713 = vrsqrt.pop %v4681
        %v4714 = vrsqrt.pop %v4682
        %v4715 = vrsqrt.pop %v4683
        %v4716 = vrsqrt.pop %v4684
        %v4717 = vrsqrt.pop %v4685
        %v4718 = vrsqrt.pop %v4686
        %v4719 = vrsqrt.pop %v4687
        %v4720 = vrsqrt.pop %v4688
        %v4721 = vrsqrt.pop %v4689
        %v4722 = vrsqrt.pop %v4690
        %v4723 = vrsqrt.pop %v4691
        %v4724 = vrsqrt.pop %v4692
        %v4725 = vrsqrt.pop %v4693
        %v4726 = vrsqrt.pop %v4694
        %v4727 = vrsqrt.pop %v4695
        %v4728 = vrsqrt.pop %v4696
        %v4729 = vrsqrt.pop %v4697
        %v4730 = vrsqrt.pop %v4698
        %v4731 = vmul.f32 %v4507, %v4699
        %v4732 = vmul.f32 %v4508, %v4700
        %v4733 = vmul.f32 %v4509, %v4701
        %v4734 = vmul.f32 %v4510, %v4702
        %v4735 = vmul.f32 %v4511, %v4703
        %v4736 = vmul.f32 %v4512, %v4704
        %v4737 = vmul.f32 %v4513, %v4705
        %v4738 = vmul.f32 %v4514, %v4706
        %v4739 = vmul.f32 %v4515, %v4707
        %v4740 = vmul.f32 %v4516, %v4708
        %v4741 = vmul.f32 %v4517, %v4709
        %v4742 = vmul.f32 %v4518, %v4710
        %v4743 = vmul.f32 %v4519, %v4711
        %v4744 = vmul.f32 %v4520, %v4712
        %v4745 = vmul.f32 %v4521, %v4713
        %v4746 = vmul.f32 %v4522, %v4714
        %v4747 = vmul.f32 %v4523, %v4715
        %v4748 = vmul.f32 %v4524, %v4716
        %v4749 = vmul.f32 %v4525, %v4717
        %v4750 = vmul.f32 %v4526, %v4718
        %v4751 = vmul.f32 %v4527, %v4719
        %v4752 = vmul.f32 %v4528, %v4720
        %v4753 = vmul.f32 %v4529, %v4721
        %v4754 = vmul.f32 %v4530, %v4722
        %v4755 = vmul.f32 %v4531, %v4723
        %v4756 = vmul.f32 %v4532, %v4724
        %v4757 = vmul.f32 %v4533, %v4725
        %v4758 = vmul.f32 %v4534, %v4726
        %v4759 = vmul.f32 %v4535, %v4727
        %v4760 = vmul.f32 %v4536, %v4728
        %v4761 = vmul.f32 %v4537, %v4729
        %v4762 = vmul.f32 %v4538, %v4730
        %v4763 = vpack.c.bf16 %v4732, %v4731
        %v4764 = vpack.c.bf16 %v4734, %v4733
        %v4765 = vpack.c.bf16 %v4736, %v4735
        %v4766 = vpack.c.bf16 %v4738, %v4737
        %v4767 = vpack.c.bf16 %v4740, %v4739
        %v4768 = vpack.c.bf16 %v4742, %v4741
        %v4769 = vpack.c.bf16 %v4744, %v4743
        %v4770 = vpack.c.bf16 %v4746, %v4745
        %v4771 = vpack.c.bf16 %v4748, %v4747
        %v4772 = vpack.c.bf16 %v4750, %v4749
        %v4773 = vpack.c.bf16 %v4752, %v4751
        %v4774 = vpack.c.bf16 %v4754, %v4753
        %v4775 = vpack.c.bf16 %v4756, %v4755
        %v4776 = vpack.c.bf16 %v4758, %v4757
        %v4777 = vpack.c.bf16 %v4760, %v4759
        %v4778 = vpack.c.bf16 %v4762, %v4761
        %v4779 = vld [vmem:[%s577] sm:$0xff]
        %v4780 = vld [vmem:[%s577 + $0x8] sm:$0xff]
        %v4781 = vld [vmem:[%s577 + $0x10] sm:$0xff]
        %v4782 = vld [vmem:[%s577 + $0x18] sm:$0xff]
        %v4783 = vld [vmem:[%s577 + $0x20] sm:$0xff]
        %v4784 = vld [vmem:[%s577 + $0x28] sm:$0xff]
        %v4785 = vld [vmem:[%s577 + $0x30] sm:$0xff]
        %v4786 = vld [vmem:[%s577 + $0x38] sm:$0xff]
        %v4787 = vld [vmem:[%s577 + $0x40] sm:$0xff]
        %v4788 = vld [vmem:[%s577 + $0x48] sm:$0xff]
        %v4789 = vld [vmem:[%s577 + $0x50] sm:$0xff]
        %v4790 = vld [vmem:[%s577 + $0x58] sm:$0xff]
        %v4791 = vld [vmem:[%s577 + $0x60] sm:$0xff]
        %v4792 = vld [vmem:[%s577 + $0x68] sm:$0xff]
        %v4793 = vld [vmem:[%s577 + $0x70] sm:$0xff]
        %v4794 = vld [vmem:[%s577 + $0x78] sm:$0xff]
        %v4795 = vld [vmem:[%s577 + $0x80] sm:$0xff]
        %v4796 = vld [vmem:[%s577 + $0x88] sm:$0xff]
        %v4797 = vld [vmem:[%s577 + $0x90] sm:$0xff]
        %v4798 = vld [vmem:[%s577 + $0x98] sm:$0xff]
        %v4799 = vld [vmem:[%s577 + $0xa0] sm:$0xff]
        %v4800 = vld [vmem:[%s577 + $0xa8] sm:$0xff]
        %v4801 = vld [vmem:[%s577 + $0xb0] sm:$0xff]
        %v4802 = vld [vmem:[%s577 + $0xb8] sm:$0xff]
        %v4803 = vld [vmem:[%s577 + $0xc0] sm:$0xff]
        %v4804 = vld [vmem:[%s577 + $0xc8] sm:$0xff]
        %v4805 = vld [vmem:[%s577 + $0xd0] sm:$0xff]
        %v4806 = vld [vmem:[%s577 + $0xd8] sm:$0xff]
        %v4807 = vld [vmem:[%s577 + $0xe0] sm:$0xff]
        %v4808 = vld [vmem:[%s577 + $0xe8] sm:$0xff]
        %v4809 = vld [vmem:[%s577 + $0xf0] sm:$0xff]
        %v4810 = vld [vmem:[%s577 + $0xf8] sm:$0xff]
        %v4843 = vunpack.c.l.b16 %v4779
        %v4844 = vunpack.c.h.b16 %v4779
        %v4845 = vunpack.c.l.b16 %v4780
        %v4846 = vunpack.c.h.b16 %v4780
        %v4847 = vunpack.c.l.b16 %v4781
        %v4848 = vunpack.c.h.b16 %v4781
        %v4849 = vunpack.c.l.b16 %v4782
        %v4850 = vunpack.c.h.b16 %v4782
        %v4851 = vunpack.c.l.b16 %v4783
        %v4852 = vunpack.c.h.b16 %v4783
        %v4853 = vunpack.c.l.b16 %v4784
        %v4854 = vunpack.c.h.b16 %v4784
        %v4855 = vunpack.c.l.b16 %v4785
        %v4856 = vunpack.c.h.b16 %v4785
        %v4857 = vunpack.c.l.b16 %v4786
        %v4858 = vunpack.c.h.b16 %v4786
        %v4859 = vunpack.c.l.b16 %v4787
        %v4860 = vunpack.c.h.b16 %v4787
        %v4861 = vunpack.c.l.b16 %v4788
        %v4862 = vunpack.c.h.b16 %v4788
        %v4863 = vunpack.c.l.b16 %v4789
        %v4864 = vunpack.c.h.b16 %v4789
        %v4865 = vunpack.c.l.b16 %v4790
        %v4866 = vunpack.c.h.b16 %v4790
        %v4867 = vunpack.c.l.b16 %v4791
        %v4868 = vunpack.c.h.b16 %v4791
        %v4869 = vunpack.c.l.b16 %v4792
        %v4870 = vunpack.c.h.b16 %v4792
        %v4871 = vunpack.c.l.b16 %v4793
        %v4872 = vunpack.c.h.b16 %v4793
        %v4873 = vunpack.c.l.b16 %v4794
        %v4874 = vunpack.c.h.b16 %v4794
        %v4875 = vunpack.c.l.b16 %v4795
        %v4876 = vunpack.c.h.b16 %v4795
        %v4877 = vunpack.c.l.b16 %v4796
        %v4878 = vunpack.c.h.b16 %v4796
        %v4879 = vunpack.c.l.b16 %v4797
        %v4880 = vunpack.c.h.b16 %v4797
        %v4881 = vunpack.c.l.b16 %v4798
        %v4882 = vunpack.c.h.b16 %v4798
        %v4883 = vunpack.c.l.b16 %v4799
        %v4884 = vunpack.c.h.b16 %v4799
        %v4885 = vunpack.c.l.b16 %v4800
        %v4886 = vunpack.c.h.b16 %v4800
        %v4887 = vunpack.c.l.b16 %v4801
        %v4888 = vunpack.c.h.b16 %v4801
        %v4889 = vunpack.c.l.b16 %v4802
        %v4890 = vunpack.c.h.b16 %v4802
        %v4891 = vunpack.c.l.b16 %v4803
        %v4892 = vunpack.c.h.b16 %v4803
        %v4893 = vunpack.c.l.b16 %v4804
        %v4894 = vunpack.c.h.b16 %v4804
        %v4895 = vunpack.c.l.b16 %v4805
        %v4896 = vunpack.c.h.b16 %v4805
        %v4897 = vunpack.c.l.b16 %v4806
        %v4898 = vunpack.c.h.b16 %v4806
        %v4899 = vunpack.c.l.b16 %v4807
        %v4900 = vunpack.c.h.b16 %v4807
        %v4901 = vunpack.c.l.b16 %v4808
        %v4902 = vunpack.c.h.b16 %v4808
        %v4903 = vunpack.c.l.b16 %v4809
        %v4904 = vunpack.c.h.b16 %v4809
        %v4905 = vunpack.c.l.b16 %v4810
        %v4906 = vunpack.c.h.b16 %v4810
        %v4907 = vpack.c.b16 %v4847, %v4843
        %v4908 = vpack.c.b16 %v4848, %v4844
        %v4909 = vpack.c.b16 %v4849, %v4845
        %v4910 = vpack.c.b16 %v4850, %v4846
        %v4911 = vpack.c.b16 %v4855, %v4851
        %v4912 = vpack.c.b16 %v4856, %v4852
        %v4913 = vpack.c.b16 %v4857, %v4853
        %v4914 = vpack.c.b16 %v4858, %v4854
        %v4915 = vpack.c.b16 %v4863, %v4859
        %v4916 = vpack.c.b16 %v4864, %v4860
        %v4917 = vpack.c.b16 %v4865, %v4861
        %v4918 = vpack.c.b16 %v4866, %v4862
        %v4919 = vpack.c.b16 %v4871, %v4867
        %v4920 = vpack.c.b16 %v4872, %v4868
        %v4921 = vpack.c.b16 %v4873, %v4869
        %v4922 = vpack.c.b16 %v4874, %v4870
        %v4923 = vpack.c.b16 %v4879, %v4875
        %v4924 = vpack.c.b16 %v4880, %v4876
        %v4925 = vpack.c.b16 %v4881, %v4877
        %v4926 = vpack.c.b16 %v4882, %v4878
        %v4927 = vpack.c.b16 %v4887, %v4883
        %v4928 = vpack.c.b16 %v4888, %v4884
        %v4929 = vpack.c.b16 %v4889, %v4885
        %v4930 = vpack.c.b16 %v4890, %v4886
        %v4931 = vpack.c.b16 %v4895, %v4891
        %v4932 = vpack.c.b16 %v4896, %v4892
        %v4933 = vpack.c.b16 %v4897, %v4893
        %v4934 = vpack.c.b16 %v4898, %v4894
        %v4935 = vpack.c.b16 %v4903, %v4899
        %v4936 = vpack.c.b16 %v4904, %v4900
        %v4937 = vpack.c.b16 %v4905, %v4901
        %v4938 = vpack.c.b16 %v4906, %v4902
        %4971 = vmatprep.subr.bf16.mxu0 %v4936
        %4972 = vmatpush1.bf16.msra.mxu0 %v4935
        %4973 = vmatprep.subr.bf16.mxu0 %v4932
        %4974 = vmatpush1.bf16.msra.mxu0 %v4931
        %4975 = vmatprep.subr.bf16.mxu0 %v4928
        %4976 = vmatpush1.bf16.msra.mxu0 %v4927
        %4977 = vmatprep.subr.bf16.mxu0 %v4924
        %4978 = vmatpush1.bf16.msra.mxu0 %v4923
        %4979 = vmatprep.subr.bf16.mxu0 %v4920
        %4980 = vmatpush1.bf16.msra.mxu0 %v4919
        %4981 = vmatprep.subr.bf16.mxu0 %v4916
        %4982 = vmatpush1.bf16.msra.mxu0 %v4915
        %4983 = vmatprep.subr.bf16.mxu0 %v4912
        %4984 = vmatpush1.bf16.msra.mxu0 %v4911
        %4985 = vmatprep.subr.bf16.mxu0 %v4908
        %4986 = vmatpush1.bf16.msra.mxu0 %v4907
        %4987 = vmatprep.subr.bf16.mxu0 0
        %4988 = vmatpush2.bf16.msra.mxu0 0
        %4989 = vmatprep.subr.bf16.mxu0 0
        %4990 = vmatpush2.bf16.msra.mxu0 0
        %4991 = vmatprep.subr.bf16.mxu0 0
        %4992 = vmatpush2.bf16.msra.mxu0 0
        %4993 = vmatprep.subr.bf16.mxu0 0
        %4994 = vmatpush2.bf16.msra.mxu0 0
        %4995 = vmatprep.subr.bf16.mxu0 0
        %4996 = vmatpush2.bf16.msra.mxu0 0
        %4997 = vmatprep.subr.bf16.mxu0 0
        %4998 = vmatpush2.bf16.msra.mxu0 0
        %4999 = vmatprep.subr.bf16.mxu0 0
        %5000 = vmatpush2.bf16.msra.mxu0 0
        %5001 = vmatprep.subr.bf16.mxu0 0
        %5002 = vmatpush2.bf16.msra.mxu0 0
        %5003 = vmatprep.mubr.bf16.mxu0 0
        %5004 = vmatmul.mubr.bf16.gmra.mxu0 %v4763
        %v5005 = vpop.f32.mrf.mxu0
        %v5006 = vadd.f32 0.0, %v5005
        %v5007 = vpop.f32.mrf.mxu0
        %v5008 = vadd.f32 0.0, %v5007
        %v5009 = vpop.f32.mrf.mxu0
        %v5010 = vadd.f32 0.0, %v5009
        %v5011 = vpop.f32.mrf.mxu0
        %v5012 = vadd.f32 0.0, %v5011
        %5013 = vmatprep.mubr.bf16.mxu0 0
        %5014 = vmatmul.mubr.bf16.gmra.mxu0 %v4764
        %v5015 = vpop.f32.mrf.mxu0
        %v5016 = vadd.f32 0.0, %v5015
        %v5017 = vpop.f32.mrf.mxu0
        %v5018 = vadd.f32 0.0, %v5017
        %v5019 = vpop.f32.mrf.mxu0
        %v5020 = vadd.f32 0.0, %v5019
        %v5021 = vpop.f32.mrf.mxu0
        %v5022 = vadd.f32 0.0, %v5021
        %5023 = vmatprep.mubr.bf16.mxu0 0
        %5024 = vmatmul.mubr.bf16.gmra.mxu0 %v4765
        %v5025 = vpop.f32.mrf.mxu0
        %v5026 = vadd.f32 0.0, %v5025
        %v5027 = vpop.f32.mrf.mxu0
        %v5028 = vadd.f32 0.0, %v5027
        %v5029 = vpop.f32.mrf.mxu0
        %v5030 = vadd.f32 0.0, %v5029
        %v5031 = vpop.f32.mrf.mxu0
        %v5032 = vadd.f32 0.0, %v5031
        %5033 = vmatprep.mubr.bf16.mxu0 0
        %5034 = vmatmul.mubr.bf16.gmra.mxu0 %v4766
        %v5035 = vpop.f32.mrf.mxu0
        %v5036 = vadd.f32 0.0, %v5035
        %v5037 = vpop.f32.mrf.mxu0
        %v5038 = vadd.f32 0.0, %v5037
        %v5039 = vpop.f32.mrf.mxu0
        %v5040 = vadd.f32 0.0, %v5039
        %v5041 = vpop.f32.mrf.mxu0
        %v5042 = vadd.f32 0.0, %v5041
        %5043 = vmatprep.mubr.bf16.mxu0 0
        %5044 = vmatmul.mubr.bf16.gmra.mxu0 %v4767
        %v5045 = vpop.f32.mrf.mxu0
        %v5046 = vadd.f32 0.0, %v5045
        %v5047 = vpop.f32.mrf.mxu0
        %v5048 = vadd.f32 0.0, %v5047
        %v5049 = vpop.f32.mrf.mxu0
        %v5050 = vadd.f32 0.0, %v5049
        %v5051 = vpop.f32.mrf.mxu0
        %v5052 = vadd.f32 0.0, %v5051
        %5053 = vmatprep.mubr.bf16.mxu0 0
        %5054 = vmatmul.mubr.bf16.gmra.mxu0 %v4768
        %v5055 = vpop.f32.mrf.mxu0
        %v5056 = vadd.f32 0.0, %v5055
        %v5057 = vpop.f32.mrf.mxu0
        %v5058 = vadd.f32 0.0, %v5057
        %v5059 = vpop.f32.mrf.mxu0
        %v5060 = vadd.f32 0.0, %v5059
        %v5061 = vpop.f32.mrf.mxu0
        %v5062 = vadd.f32 0.0, %v5061
        %5063 = vmatprep.mubr.bf16.mxu0 0
        %5064 = vmatmul.mubr.bf16.gmra.mxu0 %v4769
        %v5065 = vpop.f32.mrf.mxu0
        %v5066 = vadd.f32 0.0, %v5065
        %v5067 = vpop.f32.mrf.mxu0
        %v5068 = vadd.f32 0.0, %v5067
        %v5069 = vpop.f32.mrf.mxu0
        %v5070 = vadd.f32 0.0, %v5069
        %v5071 = vpop.f32.mrf.mxu0
        %v5072 = vadd.f32 0.0, %v5071
        %5073 = vmatprep.mubr.bf16.mxu0 0
        %5074 = vmatmul.mubr.bf16.gmra.mxu0 %v4770
        %v5075 = vpop.f32.mrf.mxu0
        %v5076 = vadd.f32 0.0, %v5075
        %v5077 = vpop.f32.mrf.mxu0
        %v5078 = vadd.f32 0.0, %v5077
        %v5079 = vpop.f32.mrf.mxu0
        %v5080 = vadd.f32 0.0, %v5079
        %v5081 = vpop.f32.mrf.mxu0
        %v5082 = vadd.f32 0.0, %v5081
        %5083 = vmatprep.mubr.bf16.mxu0 0
        %5084 = vmatmul.mubr.bf16.gmra.mxu0 %v4771
        %v5085 = vpop.f32.mrf.mxu0
        %v5086 = vadd.f32 0.0, %v5085
        %v5087 = vpop.f32.mrf.mxu0
        %v5088 = vadd.f32 0.0, %v5087
        %v5089 = vpop.f32.mrf.mxu0
        %v5090 = vadd.f32 0.0, %v5089
        %v5091 = vpop.f32.mrf.mxu0
        %v5092 = vadd.f32 0.0, %v5091
        %5093 = vmatprep.mubr.bf16.mxu0 0
        %5094 = vmatmul.mubr.bf16.gmra.mxu0 %v4772
        %v5095 = vpop.f32.mrf.mxu0
        %v5096 = vadd.f32 0.0, %v5095
        %v5097 = vpop.f32.mrf.mxu0
        %v5098 = vadd.f32 0.0, %v5097
        %v5099 = vpop.f32.mrf.mxu0
        %v5100 = vadd.f32 0.0, %v5099
        %v5101 = vpop.f32.mrf.mxu0
        %v5102 = vadd.f32 0.0, %v5101
        %5103 = vmatprep.mubr.bf16.mxu0 0
        %5104 = vmatmul.mubr.bf16.gmra.mxu0 %v4773
        %v5105 = vpop.f32.mrf.mxu0
        %v5106 = vadd.f32 0.0, %v5105
        %v5107 = vpop.f32.mrf.mxu0
        %v5108 = vadd.f32 0.0, %v5107
        %v5109 = vpop.f32.mrf.mxu0
        %v5110 = vadd.f32 0.0, %v5109
        %v5111 = vpop.f32.mrf.mxu0
        %v5112 = vadd.f32 0.0, %v5111
        %5113 = vmatprep.mubr.bf16.mxu0 0
        %5114 = vmatmul.mubr.bf16.gmra.mxu0 %v4774
        %v5115 = vpop.f32.mrf.mxu0
        %v5116 = vadd.f32 0.0, %v5115
        %v5117 = vpop.f32.mrf.mxu0
        %v5118 = vadd.f32 0.0, %v5117
        %v5119 = vpop.f32.mrf.mxu0
        %v5120 = vadd.f32 0.0, %v5119
        %v5121 = vpop.f32.mrf.mxu0
        %v5122 = vadd.f32 0.0, %v5121
        %5123 = vmatprep.mubr.bf16.mxu0 0
        %5124 = vmatmul.mubr.bf16.gmra.mxu0 %v4775
        %v5125 = vpop.f32.mrf.mxu0
        %v5126 = vadd.f32 0.0, %v5125
        %v5127 = vpop.f32.mrf.mxu0
        %v5128 = vadd.f32 0.0, %v5127
        %v5129 = vpop.f32.mrf.mxu0
        %v5130 = vadd.f32 0.0, %v5129
        %v5131 = vpop.f32.mrf.mxu0
        %v5132 = vadd.f32 0.0, %v5131
        %5133 = vmatprep.mubr.bf16.mxu0 0
        %5134 = vmatmul.mubr.bf16.gmra.mxu0 %v4776
        %v5135 = vpop.f32.mrf.mxu0
        %v5136 = vadd.f32 0.0, %v5135
        %v5137 = vpop.f32.mrf.mxu0
        %v5138 = vadd.f32 0.0, %v5137
        %v5139 = vpop.f32.mrf.mxu0
        %v5140 = vadd.f32 0.0, %v5139
        %v5141 = vpop.f32.mrf.mxu0
        %v5142 = vadd.f32 0.0, %v5141
        %5143 = vmatprep.mubr.bf16.mxu0 0
        %5144 = vmatmul.mubr.bf16.gmra.mxu0 %v4777
        %v5145 = vpop.f32.mrf.mxu0
        %v5146 = vadd.f32 0.0, %v5145
        %v5147 = vpop.f32.mrf.mxu0
        %v5148 = vadd.f32 0.0, %v5147
        %v5149 = vpop.f32.mrf.mxu0
        %v5150 = vadd.f32 0.0, %v5149
        %v5151 = vpop.f32.mrf.mxu0
        %v5152 = vadd.f32 0.0, %v5151
        %5153 = vmatprep.mubr.bf16.mxu0 0
        %5154 = vmatmul.mubr.bf16.gmra.mxu0 %v4778
        %v5155 = vpop.f32.mrf.mxu0
        %v5156 = vadd.f32 0.0, %v5155
        %v5157 = vpop.f32.mrf.mxu0
        %v5158 = vadd.f32 0.0, %v5157
        %v5159 = vpop.f32.mrf.mxu0
        %v5160 = vadd.f32 0.0, %v5159
        %v5161 = vpop.f32.mrf.mxu0
        %v5162 = vadd.f32 0.0, %v5161
        %5163 = vdwg.mxu0
        %5164 = vmatprep.subr.bf16.mxu0 %v4938
        %5165 = vmatpush1.bf16.msra.mxu0 %v4937
        %5166 = vmatprep.subr.bf16.mxu0 %v4934
        %5167 = vmatpush1.bf16.msra.mxu0 %v4933
        %5168 = vmatprep.subr.bf16.mxu0 %v4930
        %5169 = vmatpush1.bf16.msra.mxu0 %v4929
        %5170 = vmatprep.subr.bf16.mxu0 %v4926
        %5171 = vmatpush1.bf16.msra.mxu0 %v4925
        %5172 = vmatprep.subr.bf16.mxu0 %v4922
        %5173 = vmatpush1.bf16.msra.mxu0 %v4921
        %5174 = vmatprep.subr.bf16.mxu0 %v4918
        %5175 = vmatpush1.bf16.msra.mxu0 %v4917
        %5176 = vmatprep.subr.bf16.mxu0 %v4914
        %5177 = vmatpush1.bf16.msra.mxu0 %v4913
        %5178 = vmatprep.subr.bf16.mxu0 %v4910
        %5179 = vmatpush1.bf16.msra.mxu0 %v4909
        %5180 = vmatprep.subr.bf16.mxu0 0
        %5181 = vmatpush2.bf16.msra.mxu0 0
        %5182 = vmatprep.subr.bf16.mxu0 0
        %5183 = vmatpush2.bf16.msra.mxu0 0
        %5184 = vmatprep.subr.bf16.mxu0 0
        %5185 = vmatpush2.bf16.msra.mxu0 0
        %5186 = vmatprep.subr.bf16.mxu0 0
        %5187 = vmatpush2.bf16.msra.mxu0 0
        %5188 = vmatprep.subr.bf16.mxu0 0
        %5189 = vmatpush2.bf16.msra.mxu0 0
        %5190 = vmatprep.subr.bf16.mxu0 0
        %5191 = vmatpush2.bf16.msra.mxu0 0
        %5192 = vmatprep.subr.bf16.mxu0 0
        %5193 = vmatpush2.bf16.msra.mxu0 0
        %5194 = vmatprep.subr.bf16.mxu0 0
        %5195 = vmatpush2.bf16.msra.mxu0 0
        %5196 = vmatprep.mubr.bf16.mxu0 0
        %5197 = vmatmul.mubr.bf16.gmra.mxu0 %v4763
        %v5198 = vpop.f32.mrf.mxu0
        %v5199 = vadd.f32 0.0, %v5198
        %v5200 = vpop.f32.mrf.mxu0
        %v5201 = vadd.f32 0.0, %v5200
        %v5202 = vpop.f32.mrf.mxu0
        %v5203 = vadd.f32 0.0, %v5202
        %v5204 = vpop.f32.mrf.mxu0
        %v5205 = vadd.f32 0.0, %v5204
        %5206 = vmatprep.mubr.bf16.mxu0 0
        %5207 = vmatmul.mubr.bf16.gmra.mxu0 %v4764
        %v5208 = vpop.f32.mrf.mxu0
        %v5209 = vadd.f32 0.0, %v5208
        %v5210 = vpop.f32.mrf.mxu0
        %v5211 = vadd.f32 0.0, %v5210
        %v5212 = vpop.f32.mrf.mxu0
        %v5213 = vadd.f32 0.0, %v5212
        %v5214 = vpop.f32.mrf.mxu0
        %v5215 = vadd.f32 0.0, %v5214
        %5216 = vmatprep.mubr.bf16.mxu0 0
        %5217 = vmatmul.mubr.bf16.gmra.mxu0 %v4765
        %v5218 = vpop.f32.mrf.mxu0
        %v5219 = vadd.f32 0.0, %v5218
        %v5220 = vpop.f32.mrf.mxu0
        %v5221 = vadd.f32 0.0, %v5220
        %v5222 = vpop.f32.mrf.mxu0
        %v5223 = vadd.f32 0.0, %v5222
        %v5224 = vpop.f32.mrf.mxu0
        %v5225 = vadd.f32 0.0, %v5224
        %5226 = vmatprep.mubr.bf16.mxu0 0
        %5227 = vmatmul.mubr.bf16.gmra.mxu0 %v4766
        %v5228 = vpop.f32.mrf.mxu0
        %v5229 = vadd.f32 0.0, %v5228
        %v5230 = vpop.f32.mrf.mxu0
        %v5231 = vadd.f32 0.0, %v5230
        %v5232 = vpop.f32.mrf.mxu0
        %v5233 = vadd.f32 0.0, %v5232
        %v5234 = vpop.f32.mrf.mxu0
        %v5235 = vadd.f32 0.0, %v5234
        %5236 = vmatprep.mubr.bf16.mxu0 0
        %5237 = vmatmul.mubr.bf16.gmra.mxu0 %v4767
        %v5238 = vpop.f32.mrf.mxu0
        %v5239 = vadd.f32 0.0, %v5238
        %v5240 = vpop.f32.mrf.mxu0
        %v5241 = vadd.f32 0.0, %v5240
        %v5242 = vpop.f32.mrf.mxu0
        %v5243 = vadd.f32 0.0, %v5242
        %v5244 = vpop.f32.mrf.mxu0
        %v5245 = vadd.f32 0.0, %v5244
        %5246 = vmatprep.mubr.bf16.mxu0 0
        %5247 = vmatmul.mubr.bf16.gmra.mxu0 %v4768
        %v5248 = vpop.f32.mrf.mxu0
        %v5249 = vadd.f32 0.0, %v5248
        %v5250 = vpop.f32.mrf.mxu0
        %v5251 = vadd.f32 0.0, %v5250
        %v5252 = vpop.f32.mrf.mxu0
        %v5253 = vadd.f32 0.0, %v5252
        %v5254 = vpop.f32.mrf.mxu0
        %v5255 = vadd.f32 0.0, %v5254
        %5256 = vmatprep.mubr.bf16.mxu0 0
        %5257 = vmatmul.mubr.bf16.gmra.mxu0 %v4769
        %v5258 = vpop.f32.mrf.mxu0
        %v5259 = vadd.f32 0.0, %v5258
        %v5260 = vpop.f32.mrf.mxu0
        %v5261 = vadd.f32 0.0, %v5260
        %v5262 = vpop.f32.mrf.mxu0
        %v5263 = vadd.f32 0.0, %v5262
        %v5264 = vpop.f32.mrf.mxu0
        %v5265 = vadd.f32 0.0, %v5264
        %5266 = vmatprep.mubr.bf16.mxu0 0
        %5267 = vmatmul.mubr.bf16.gmra.mxu0 %v4770
        %v5268 = vpop.f32.mrf.mxu0
        %v5269 = vadd.f32 0.0, %v5268
        %v5270 = vpop.f32.mrf.mxu0
        %v5271 = vadd.f32 0.0, %v5270
        %v5272 = vpop.f32.mrf.mxu0
        %v5273 = vadd.f32 0.0, %v5272
        %v5274 = vpop.f32.mrf.mxu0
        %v5275 = vadd.f32 0.0, %v5274
        %5276 = vmatprep.mubr.bf16.mxu0 0
        %5277 = vmatmul.mubr.bf16.gmra.mxu0 %v4771
        %v5278 = vpop.f32.mrf.mxu0
        %v5279 = vadd.f32 0.0, %v5278
        %v5280 = vpop.f32.mrf.mxu0
        %v5281 = vadd.f32 0.0, %v5280
        %v5282 = vpop.f32.mrf.mxu0
        %v5283 = vadd.f32 0.0, %v5282
        %v5284 = vpop.f32.mrf.mxu0
        %v5285 = vadd.f32 0.0, %v5284
        %5286 = vmatprep.mubr.bf16.mxu0 0
        %5287 = vmatmul.mubr.bf16.gmra.mxu0 %v4772
        %v5288 = vpop.f32.mrf.mxu0
        %v5289 = vadd.f32 0.0, %v5288
        %v5290 = vpop.f32.mrf.mxu0
        %v5291 = vadd.f32 0.0, %v5290
        %v5292 = vpop.f32.mrf.mxu0
        %v5293 = vadd.f32 0.0, %v5292
        %v5294 = vpop.f32.mrf.mxu0
        %v5295 = vadd.f32 0.0, %v5294
        %5296 = vmatprep.mubr.bf16.mxu0 0
        %5297 = vmatmul.mubr.bf16.gmra.mxu0 %v4773
        %v5298 = vpop.f32.mrf.mxu0
        %v5299 = vadd.f32 0.0, %v5298
        %v5300 = vpop.f32.mrf.mxu0
        %v5301 = vadd.f32 0.0, %v5300
        %v5302 = vpop.f32.mrf.mxu0
        %v5303 = vadd.f32 0.0, %v5302
        %v5304 = vpop.f32.mrf.mxu0
        %v5305 = vadd.f32 0.0, %v5304
        %5306 = vmatprep.mubr.bf16.mxu0 0
        %5307 = vmatmul.mubr.bf16.gmra.mxu0 %v4774
        %v5308 = vpop.f32.mrf.mxu0
        %v5309 = vadd.f32 0.0, %v5308
        %v5310 = vpop.f32.mrf.mxu0
        %v5311 = vadd.f32 0.0, %v5310
        %v5312 = vpop.f32.mrf.mxu0
        %v5313 = vadd.f32 0.0, %v5312
        %v5314 = vpop.f32.mrf.mxu0
        %v5315 = vadd.f32 0.0, %v5314
        %5316 = vmatprep.mubr.bf16.mxu0 0
        %5317 = vmatmul.mubr.bf16.gmra.mxu0 %v4775
        %v5318 = vpop.f32.mrf.mxu0
        %v5319 = vadd.f32 0.0, %v5318
        %v5320 = vpop.f32.mrf.mxu0
        %v5321 = vadd.f32 0.0, %v5320
        %v5322 = vpop.f32.mrf.mxu0
        %v5323 = vadd.f32 0.0, %v5322
        %v5324 = vpop.f32.mrf.mxu0
        %v5325 = vadd.f32 0.0, %v5324
        %5326 = vmatprep.mubr.bf16.mxu0 0
        %5327 = vmatmul.mubr.bf16.gmra.mxu0 %v4776
        %v5328 = vpop.f32.mrf.mxu0
        %v5329 = vadd.f32 0.0, %v5328
        %v5330 = vpop.f32.mrf.mxu0
        %v5331 = vadd.f32 0.0, %v5330
        %v5332 = vpop.f32.mrf.mxu0
        %v5333 = vadd.f32 0.0, %v5332
        %v5334 = vpop.f32.mrf.mxu0
        %v5335 = vadd.f32 0.0, %v5334
        %5336 = vmatprep.mubr.bf16.mxu0 0
        %5337 = vmatmul.mubr.bf16.gmra.mxu0 %v4777
        %v5338 = vpop.f32.mrf.mxu0
        %v5339 = vadd.f32 0.0, %v5338
        %v5340 = vpop.f32.mrf.mxu0
        %v5341 = vadd.f32 0.0, %v5340
        %v5342 = vpop.f32.mrf.mxu0
        %v5343 = vadd.f32 0.0, %v5342
        %v5344 = vpop.f32.mrf.mxu0
        %v5345 = vadd.f32 0.0, %v5344
        %5346 = vmatprep.mubr.bf16.mxu0 0
        %5347 = vmatmul.mubr.bf16.gmra.mxu0 %v4778
        %v5348 = vpop.f32.mrf.mxu0
        %v5349 = vadd.f32 0.0, %v5348
        %v5350 = vpop.f32.mrf.mxu0
        %v5351 = vadd.f32 0.0, %v5350
        %v5352 = vpop.f32.mrf.mxu0
        %v5353 = vadd.f32 0.0, %v5352
        %v5354 = vpop.f32.mrf.mxu0
        %v5355 = vadd.f32 0.0, %v5354
        %5356 = vdwg.mxu0
        %v5357 = vmax.f32 %v5006, 0.0
        %v5358 = vmax.f32 %v5008, 0.0
        %v5359 = vmax.f32 %v5199, 0.0
        %v5360 = vmax.f32 %v5201, 0.0
        %v5361 = vmax.f32 %v5010, 0.0
        %v5362 = vmax.f32 %v5012, 0.0
        %v5363 = vmax.f32 %v5203, 0.0
        %v5364 = vmax.f32 %v5205, 0.0
        %v5365 = vmax.f32 %v5016, 0.0
        %v5366 = vmax.f32 %v5018, 0.0
        %v5367 = vmax.f32 %v5209, 0.0
        %v5368 = vmax.f32 %v5211, 0.0
        %v5369 = vmax.f32 %v5020, 0.0
        %v5370 = vmax.f32 %v5022, 0.0
        %v5371 = vmax.f32 %v5213, 0.0
        %v5372 = vmax.f32 %v5215, 0.0
        %v5373 = vmax.f32 %v5026, 0.0
        %v5374 = vmax.f32 %v5028, 0.0
        %v5375 = vmax.f32 %v5219, 0.0
        %v5376 = vmax.f32 %v5221, 0.0
        %v5377 = vmax.f32 %v5030, 0.0
        %v5378 = vmax.f32 %v5032, 0.0
        %v5379 = vmax.f32 %v5223, 0.0
        %v5380 = vmax.f32 %v5225, 0.0
        %v5381 = vmax.f32 %v5036, 0.0
        %v5382 = vmax.f32 %v5038, 0.0
        %v5383 = vmax.f32 %v5229, 0.0
        %v5384 = vmax.f32 %v5231, 0.0
        %v5385 = vmax.f32 %v5040, 0.0
        %v5386 = vmax.f32 %v5042, 0.0
        %v5387 = vmax.f32 %v5233, 0.0
        %v5388 = vmax.f32 %v5235, 0.0
        %v5389 = vmax.f32 %v5046, 0.0
        %v5390 = vmax.f32 %v5048, 0.0
        %v5391 = vmax.f32 %v5239, 0.0
        %v5392 = vmax.f32 %v5241, 0.0
        %v5393 = vmax.f32 %v5050, 0.0
        %v5394 = vmax.f32 %v5052, 0.0
        %v5395 = vmax.f32 %v5243, 0.0
        %v5396 = vmax.f32 %v5245, 0.0
        %v5397 = vmax.f32 %v5056, 0.0
        %v5398 = vmax.f32 %v5058, 0.0
        %v5399 = vmax.f32 %v5249, 0.0
        %v5400 = vmax.f32 %v5251, 0.0
        %v5401 = vmax.f32 %v5060, 0.0
        %v5402 = vmax.f32 %v5062, 0.0
        %v5403 = vmax.f32 %v5253, 0.0
        %v5404 = vmax.f32 %v5255, 0.0
        %v5405 = vmax.f32 %v5066, 0.0
        %v5406 = vmax.f32 %v5068, 0.0
        %v5407 = vmax.f32 %v5259, 0.0
        %v5408 = vmax.f32 %v5261, 0.0
        %v5409 = vmax.f32 %v5070, 0.0
        %v5410 = vmax.f32 %v5072, 0.0
        %v5411 = vmax.f32 %v5263, 0.0
        %v5412 = vmax.f32 %v5265, 0.0
        %v5413 = vmax.f32 %v5076, 0.0
        %v5414 = vmax.f32 %v5078, 0.0
        %v5415 = vmax.f32 %v5269, 0.0
        %v5416 = vmax.f32 %v5271, 0.0
        %v5417 = vmax.f32 %v5080, 0.0
        %v5418 = vmax.f32 %v5082, 0.0
        %v5419 = vmax.f32 %v5273, 0.0
        %v5420 = vmax.f32 %v5275, 0.0
        %v5421 = vmax.f32 %v5086, 0.0
        %v5422 = vmax.f32 %v5088, 0.0
        %v5423 = vmax.f32 %v5279, 0.0
        %v5424 = vmax.f32 %v5281, 0.0
        %v5425 = vmax.f32 %v5090, 0.0
        %v5426 = vmax.f32 %v5092, 0.0
        %v5427 = vmax.f32 %v5283, 0.0
        %v5428 = vmax.f32 %v5285, 0.0
        %v5429 = vmax.f32 %v5096, 0.0
        %v5430 = vmax.f32 %v5098, 0.0
        %v5431 = vmax.f32 %v5289, 0.0
        %v5432 = vmax.f32 %v5291, 0.0
        %v5433 = vmax.f32 %v5100, 0.0
        %v5434 = vmax.f32 %v5102, 0.0
        %v5435 = vmax.f32 %v5293, 0.0
        %v5436 = vmax.f32 %v5295, 0.0
        %v5437 = vmax.f32 %v5106, 0.0
        %v5438 = vmax.f32 %v5108, 0.0
        %v5439 = vmax.f32 %v5299, 0.0
        %v5440 = vmax.f32 %v5301, 0.0
        %v5441 = vmax.f32 %v5110, 0.0
        %v5442 = vmax.f32 %v5112, 0.0
        %v5443 = vmax.f32 %v5303, 0.0
        %v5444 = vmax.f32 %v5305, 0.0
        %v5445 = vmax.f32 %v5116, 0.0
        %v5446 = vmax.f32 %v5118, 0.0
        %v5447 = vmax.f32 %v5309, 0.0
        %v5448 = vmax.f32 %v5311, 0.0
        %v5449 = vmax.f32 %v5120, 0.0
        %v5450 = vmax.f32 %v5122, 0.0
        %v5451 = vmax.f32 %v5313, 0.0
        %v5452 = vmax.f32 %v5315, 0.0
        %v5453 = vmax.f32 %v5126, 0.0
        %v5454 = vmax.f32 %v5128, 0.0
        %v5455 = vmax.f32 %v5319, 0.0
        %v5456 = vmax.f32 %v5321, 0.0
        %v5457 = vmax.f32 %v5130, 0.0
        %v5458 = vmax.f32 %v5132, 0.0
        %v5459 = vmax.f32 %v5323, 0.0
        %v5460 = vmax.f32 %v5325, 0.0
        %v5461 = vmax.f32 %v5136, 0.0
        %v5462 = vmax.f32 %v5138, 0.0
        %v5463 = vmax.f32 %v5329, 0.0
        %v5464 = vmax.f32 %v5331, 0.0
        %v5465 = vmax.f32 %v5140, 0.0
        %v5466 = vmax.f32 %v5142, 0.0
        %v5467 = vmax.f32 %v5333, 0.0
        %v5468 = vmax.f32 %v5335, 0.0
        %v5469 = vmax.f32 %v5146, 0.0
        %v5470 = vmax.f32 %v5148, 0.0
        %v5471 = vmax.f32 %v5339, 0.0
        %v5472 = vmax.f32 %v5341, 0.0
        %v5473 = vmax.f32 %v5150, 0.0
        %v5474 = vmax.f32 %v5152, 0.0
        %v5475 = vmax.f32 %v5343, 0.0
        %v5476 = vmax.f32 %v5345, 0.0
        %v5477 = vmax.f32 %v5156, 0.0
        %v5478 = vmax.f32 %v5158, 0.0
        %v5479 = vmax.f32 %v5349, 0.0
        %v5480 = vmax.f32 %v5351, 0.0
        %v5481 = vmax.f32 %v5160, 0.0
        %v5482 = vmax.f32 %v5162, 0.0
        %v5483 = vmax.f32 %v5353, 0.0
        %v5484 = vmax.f32 %v5355, 0.0
        %v5485 = vmul.f32 %v5357, %v5357
        %v5486 = vmul.f32 %v5358, %v5358
        %v5487 = vmul.f32 %v5359, %v5359
        %v5488 = vmul.f32 %v5360, %v5360
        %v5489 = vmul.f32 %v5361, %v5361
        %v5490 = vmul.f32 %v5362, %v5362
        %v5491 = vmul.f32 %v5363, %v5363
        %v5492 = vmul.f32 %v5364, %v5364
        %v5493 = vmul.f32 %v5365, %v5365
        %v5494 = vmul.f32 %v5366, %v5366
        %v5495 = vmul.f32 %v5367, %v5367
        %v5496 = vmul.f32 %v5368, %v5368
        %v5497 = vmul.f32 %v5369, %v5369
        %v5498 = vmul.f32 %v5370, %v5370
        %v5499 = vmul.f32 %v5371, %v5371
        %v5500 = vmul.f32 %v5372, %v5372
        %v5501 = vmul.f32 %v5373, %v5373
        %v5502 = vmul.f32 %v5374, %v5374
        %v5503 = vmul.f32 %v5375, %v5375
        %v5504 = vmul.f32 %v5376, %v5376
        %v5505 = vmul.f32 %v5377, %v5377
        %v5506 = vmul.f32 %v5378, %v5378
        %v5507 = vmul.f32 %v5379, %v5379
        %v5508 = vmul.f32 %v5380, %v5380
        %v5509 = vmul.f32 %v5381, %v5381
        %v5510 = vmul.f32 %v5382, %v5382
        %v5511 = vmul.f32 %v5383, %v5383
        %v5512 = vmul.f32 %v5384, %v5384
        %v5513 = vmul.f32 %v5385, %v5385
        %v5514 = vmul.f32 %v5386, %v5386
        %v5515 = vmul.f32 %v5387, %v5387
        %v5516 = vmul.f32 %v5388, %v5388
        %v5517 = vmul.f32 %v5389, %v5389
        %v5518 = vmul.f32 %v5390, %v5390
        %v5519 = vmul.f32 %v5391, %v5391
        %v5520 = vmul.f32 %v5392, %v5392
        %v5521 = vmul.f32 %v5393, %v5393
        %v5522 = vmul.f32 %v5394, %v5394
        %v5523 = vmul.f32 %v5395, %v5395
        %v5524 = vmul.f32 %v5396, %v5396
        %v5525 = vmul.f32 %v5397, %v5397
        %v5526 = vmul.f32 %v5398, %v5398
        %v5527 = vmul.f32 %v5399, %v5399
        %v5528 = vmul.f32 %v5400, %v5400
        %v5529 = vmul.f32 %v5401, %v5401
        %v5530 = vmul.f32 %v5402, %v5402
        %v5531 = vmul.f32 %v5403, %v5403
        %v5532 = vmul.f32 %v5404, %v5404
        %v5533 = vmul.f32 %v5405, %v5405
        %v5534 = vmul.f32 %v5406, %v5406
        %v5535 = vmul.f32 %v5407, %v5407
        %v5536 = vmul.f32 %v5408, %v5408
        %v5537 = vmul.f32 %v5409, %v5409
        %v5538 = vmul.f32 %v5410, %v5410
        %v5539 = vmul.f32 %v5411, %v5411
        %v5540 = vmul.f32 %v5412, %v5412
        %v5541 = vmul.f32 %v5413, %v5413
        %v5542 = vmul.f32 %v5414, %v5414
        %v5543 = vmul.f32 %v5415, %v5415
        %v5544 = vmul.f32 %v5416, %v5416
        %v5545 = vmul.f32 %v5417, %v5417
        %v5546 = vmul.f32 %v5418, %v5418
        %v5547 = vmul.f32 %v5419, %v5419
        %v5548 = vmul.f32 %v5420, %v5420
        %v5549 = vmul.f32 %v5421, %v5421
        %v5550 = vmul.f32 %v5422, %v5422
        %v5551 = vmul.f32 %v5423, %v5423
        %v5552 = vmul.f32 %v5424, %v5424
        %v5553 = vmul.f32 %v5425, %v5425
        %v5554 = vmul.f32 %v5426, %v5426
        %v5555 = vmul.f32 %v5427, %v5427
        %v5556 = vmul.f32 %v5428, %v5428
        %v5557 = vmul.f32 %v5429, %v5429
        %v5558 = vmul.f32 %v5430, %v5430
        %v5559 = vmul.f32 %v5431, %v5431
        %v5560 = vmul.f32 %v5432, %v5432
        %v5561 = vmul.f32 %v5433, %v5433
        %v5562 = vmul.f32 %v5434, %v5434
        %v5563 = vmul.f32 %v5435, %v5435
        %v5564 = vmul.f32 %v5436, %v5436
        %v5565 = vmul.f32 %v5437, %v5437
        %v5566 = vmul.f32 %v5438, %v5438
        %v5567 = vmul.f32 %v5439, %v5439
        %v5568 = vmul.f32 %v5440, %v5440
        %v5569 = vmul.f32 %v5441, %v5441
        %v5570 = vmul.f32 %v5442, %v5442
        %v5571 = vmul.f32 %v5443, %v5443
        %v5572 = vmul.f32 %v5444, %v5444
        %v5573 = vmul.f32 %v5445, %v5445
        %v5574 = vmul.f32 %v5446, %v5446
        %v5575 = vmul.f32 %v5447, %v5447
        %v5576 = vmul.f32 %v5448, %v5448
        %v5577 = vmul.f32 %v5449, %v5449
        %v5578 = vmul.f32 %v5450, %v5450
        %v5579 = vmul.f32 %v5451, %v5451
        %v5580 = vmul.f32 %v5452, %v5452
        %v5581 = vmul.f32 %v5453, %v5453
        %v5582 = vmul.f32 %v5454, %v5454
        %v5583 = vmul.f32 %v5455, %v5455
        %v5584 = vmul.f32 %v5456, %v5456
        %v5585 = vmul.f32 %v5457, %v5457
        %v5586 = vmul.f32 %v5458, %v5458
        %v5587 = vmul.f32 %v5459, %v5459
        %v5588 = vmul.f32 %v5460, %v5460
        %v5589 = vmul.f32 %v5461, %v5461
        %v5590 = vmul.f32 %v5462, %v5462
        %v5591 = vmul.f32 %v5463, %v5463
        %v5592 = vmul.f32 %v5464, %v5464
        %v5593 = vmul.f32 %v5465, %v5465
        %v5594 = vmul.f32 %v5466, %v5466
        %v5595 = vmul.f32 %v5467, %v5467
        %v5596 = vmul.f32 %v5468, %v5468
        %v5597 = vmul.f32 %v5469, %v5469
        %v5598 = vmul.f32 %v5470, %v5470
        %v5599 = vmul.f32 %v5471, %v5471
        %v5600 = vmul.f32 %v5472, %v5472
        %v5601 = vmul.f32 %v5473, %v5473
        %v5602 = vmul.f32 %v5474, %v5474
        %v5603 = vmul.f32 %v5475, %v5475
        %v5604 = vmul.f32 %v5476, %v5476
        %v5605 = vmul.f32 %v5477, %v5477
        %v5606 = vmul.f32 %v5478, %v5478
        %v5607 = vmul.f32 %v5479, %v5479
        %v5608 = vmul.f32 %v5480, %v5480
        %v5609 = vmul.f32 %v5481, %v5481
        %v5610 = vmul.f32 %v5482, %v5482
        %v5611 = vmul.f32 %v5483, %v5483
        %v5612 = vmul.f32 %v5484, %v5484
        %v5613 = vpack.c.bf16 %v5489, %v5485
        %v5614 = vpack.c.bf16 %v5490, %v5486
        %v5615 = vpack.c.bf16 %v5491, %v5487
        %v5616 = vpack.c.bf16 %v5492, %v5488
        %v5617 = vpack.c.bf16 %v5497, %v5493
        %v5618 = vpack.c.bf16 %v5498, %v5494
        %v5619 = vpack.c.bf16 %v5499, %v5495
        %v5620 = vpack.c.bf16 %v5500, %v5496
        %v5621 = vpack.c.bf16 %v5505, %v5501
        %v5622 = vpack.c.bf16 %v5506, %v5502
        %v5623 = vpack.c.bf16 %v5507, %v5503
        %v5624 = vpack.c.bf16 %v5508, %v5504
        %v5625 = vpack.c.bf16 %v5513, %v5509
        %v5626 = vpack.c.bf16 %v5514, %v5510
        %v5627 = vpack.c.bf16 %v5515, %v5511
        %v5628 = vpack.c.bf16 %v5516, %v5512
        %v5629 = vpack.c.bf16 %v5521, %v5517
        %v5630 = vpack.c.bf16 %v5522, %v5518
        %v5631 = vpack.c.bf16 %v5523, %v5519
        %v5632 = vpack.c.bf16 %v5524, %v5520
        %v5633 = vpack.c.bf16 %v5529, %v5525
        %v5634 = vpack.c.bf16 %v5530, %v5526
        %v5635 = vpack.c.bf16 %v5531, %v5527
        %v5636 = vpack.c.bf16 %v5532, %v5528
        %v5637 = vpack.c.bf16 %v5537, %v5533
        %v5638 = vpack.c.bf16 %v5538, %v5534
        %v5639 = vpack.c.bf16 %v5539, %v5535
        %v5640 = vpack.c.bf16 %v5540, %v5536
        %v5641 = vpack.c.bf16 %v5545, %v5541
        %v5642 = vpack.c.bf16 %v5546, %v5542
        %v5643 = vpack.c.bf16 %v5547, %v5543
        %v5644 = vpack.c.bf16 %v5548, %v5544
        %v5645 = vpack.c.bf16 %v5553, %v5549
        %v5646 = vpack.c.bf16 %v5554, %v5550
        %v5647 = vpack.c.bf16 %v5555, %v5551
        %v5648 = vpack.c.bf16 %v5556, %v5552
        %v5649 = vpack.c.bf16 %v5561, %v5557
        %v5650 = vpack.c.bf16 %v5562, %v5558
        %v5651 = vpack.c.bf16 %v5563, %v5559
        %v5652 = vpack.c.bf16 %v5564, %v5560
        %v5653 = vpack.c.bf16 %v5569, %v5565
        %v5654 = vpack.c.bf16 %v5570, %v5566
        %v5655 = vpack.c.bf16 %v5571, %v5567
        %v5656 = vpack.c.bf16 %v5572, %v5568
        %v5657 = vpack.c.bf16 %v5577, %v5573
        %v5658 = vpack.c.bf16 %v5578, %v5574
        %v5659 = vpack.c.bf16 %v5579, %v5575
        %v5660 = vpack.c.bf16 %v5580, %v5576
        %v5661 = vpack.c.bf16 %v5585, %v5581
        %v5662 = vpack.c.bf16 %v5586, %v5582
        %v5663 = vpack.c.bf16 %v5587, %v5583
        %v5664 = vpack.c.bf16 %v5588, %v5584
        %v5665 = vpack.c.bf16 %v5593, %v5589
        %v5666 = vpack.c.bf16 %v5594, %v5590
        %v5667 = vpack.c.bf16 %v5595, %v5591
        %v5668 = vpack.c.bf16 %v5596, %v5592
        %v5669 = vpack.c.bf16 %v5601, %v5597
        %v5670 = vpack.c.bf16 %v5602, %v5598
        %v5671 = vpack.c.bf16 %v5603, %v5599
        %v5672 = vpack.c.bf16 %v5604, %v5600
        %v5673 = vpack.c.bf16 %v5609, %v5605
        %v5674 = vpack.c.bf16 %v5610, %v5606
        %v5675 = vpack.c.bf16 %v5611, %v5607
        %v5676 = vpack.c.bf16 %v5612, %v5608
        %v5677 = vld [vmem:[%s582] sm:$0xf]
        %v5678 = vld [vmem:[%s582 + $0x4] sm:$0xf]
        %v5679 = vld [vmem:[%s582 + $0x8] sm:$0xf]
        %v5680 = vld [vmem:[%s582 + $0xc] sm:$0xf]
        %v5681 = vld [vmem:[%s582 + $0x10] sm:$0xf]
        %v5682 = vld [vmem:[%s582 + $0x14] sm:$0xf]
        %v5683 = vld [vmem:[%s582 + $0x18] sm:$0xf]
        %v5684 = vld [vmem:[%s582 + $0x1c] sm:$0xf]
        %v5685 = vld [vmem:[%s582 + $0x20] sm:$0xf]
        %v5686 = vld [vmem:[%s582 + $0x24] sm:$0xf]
        %v5687 = vld [vmem:[%s582 + $0x28] sm:$0xf]
        %v5688 = vld [vmem:[%s582 + $0x2c] sm:$0xf]
        %v5689 = vld [vmem:[%s582 + $0x30] sm:$0xf]
        %v5690 = vld [vmem:[%s582 + $0x34] sm:$0xf]
        %v5691 = vld [vmem:[%s582 + $0x38] sm:$0xf]
        %v5692 = vld [vmem:[%s582 + $0x3c] sm:$0xf]
        %v5693 = vld [vmem:[%s582 + $0x40] sm:$0xf]
        %v5694 = vld [vmem:[%s582 + $0x44] sm:$0xf]
        %v5695 = vld [vmem:[%s582 + $0x48] sm:$0xf]
        %v5696 = vld [vmem:[%s582 + $0x4c] sm:$0xf]
        %v5697 = vld [vmem:[%s582 + $0x50] sm:$0xf]
        %v5698 = vld [vmem:[%s582 + $0x54] sm:$0xf]
        %v5699 = vld [vmem:[%s582 + $0x58] sm:$0xf]
        %v5700 = vld [vmem:[%s582 + $0x5c] sm:$0xf]
        %v5701 = vld [vmem:[%s582 + $0x60] sm:$0xf]
        %v5702 = vld [vmem:[%s582 + $0x64] sm:$0xf]
        %v5703 = vld [vmem:[%s582 + $0x68] sm:$0xf]
        %v5704 = vld [vmem:[%s582 + $0x6c] sm:$0xf]
        %v5705 = vld [vmem:[%s582 + $0x70] sm:$0xf]
        %v5706 = vld [vmem:[%s582 + $0x74] sm:$0xf]
        %v5707 = vld [vmem:[%s582 + $0x78] sm:$0xf]
        %v5708 = vld [vmem:[%s582 + $0x7c] sm:$0xf]
        %v5709 = vld [vmem:[%s582 + $0x80] sm:$0xf]
        %v5710 = vld [vmem:[%s582 + $0x84] sm:$0xf]
        %v5711 = vld [vmem:[%s582 + $0x88] sm:$0xf]
        %v5712 = vld [vmem:[%s582 + $0x8c] sm:$0xf]
        %v5713 = vld [vmem:[%s582 + $0x90] sm:$0xf]
        %v5714 = vld [vmem:[%s582 + $0x94] sm:$0xf]
        %v5715 = vld [vmem:[%s582 + $0x98] sm:$0xf]
        %v5716 = vld [vmem:[%s582 + $0x9c] sm:$0xf]
        %v5717 = vld [vmem:[%s582 + $0xa0] sm:$0xf]
        %v5718 = vld [vmem:[%s582 + $0xa4] sm:$0xf]
        %v5719 = vld [vmem:[%s582 + $0xa8] sm:$0xf]
        %v5720 = vld [vmem:[%s582 + $0xac] sm:$0xf]
        %v5721 = vld [vmem:[%s582 + $0xb0] sm:$0xf]
        %v5722 = vld [vmem:[%s582 + $0xb4] sm:$0xf]
        %v5723 = vld [vmem:[%s582 + $0xb8] sm:$0xf]
        %v5724 = vld [vmem:[%s582 + $0xbc] sm:$0xf]
        %v5725 = vld [vmem:[%s582 + $0xc0] sm:$0xf]
        %v5726 = vld [vmem:[%s582 + $0xc4] sm:$0xf]
        %v5727 = vld [vmem:[%s582 + $0xc8] sm:$0xf]
        %v5728 = vld [vmem:[%s582 + $0xcc] sm:$0xf]
        %v5729 = vld [vmem:[%s582 + $0xd0] sm:$0xf]
        %v5730 = vld [vmem:[%s582 + $0xd4] sm:$0xf]
        %v5731 = vld [vmem:[%s582 + $0xd8] sm:$0xf]
        %v5732 = vld [vmem:[%s582 + $0xdc] sm:$0xf]
        %v5733 = vld [vmem:[%s582 + $0xe0] sm:$0xf]
        %v5734 = vld [vmem:[%s582 + $0xe4] sm:$0xf]
        %v5735 = vld [vmem:[%s582 + $0xe8] sm:$0xf]
        %v5736 = vld [vmem:[%s582 + $0xec] sm:$0xf]
        %v5737 = vld [vmem:[%s582 + $0xf0] sm:$0xf]
        %v5738 = vld [vmem:[%s582 + $0xf4] sm:$0xf]
        %v5739 = vld [vmem:[%s582 + $0xf8] sm:$0xf]
        %v5740 = vld [vmem:[%s582 + $0xfc] sm:$0xf]
        %v5805 = vunpack.c.l.b16 %v5677
        %v5806 = vunpack.c.l.b16 %v5678
        %v5807 = vunpack.c.l.b16 %v5679
        %v5808 = vunpack.c.l.b16 %v5680
        %v5809 = vunpack.c.l.b16 %v5681
        %v5810 = vunpack.c.l.b16 %v5682
        %v5811 = vunpack.c.l.b16 %v5683
        %v5812 = vunpack.c.l.b16 %v5684
        %v5813 = vunpack.c.l.b16 %v5685
        %v5814 = vunpack.c.l.b16 %v5686
        %v5815 = vunpack.c.l.b16 %v5687
        %v5816 = vunpack.c.l.b16 %v5688
        %v5817 = vunpack.c.l.b16 %v5689
        %v5818 = vunpack.c.l.b16 %v5690
        %v5819 = vunpack.c.l.b16 %v5691
        %v5820 = vunpack.c.l.b16 %v5692
        %v5821 = vunpack.c.l.b16 %v5693
        %v5822 = vunpack.c.l.b16 %v5694
        %v5823 = vunpack.c.l.b16 %v5695
        %v5824 = vunpack.c.l.b16 %v5696
        %v5825 = vunpack.c.l.b16 %v5697
        %v5826 = vunpack.c.l.b16 %v5698
        %v5827 = vunpack.c.l.b16 %v5699
        %v5828 = vunpack.c.l.b16 %v5700
        %v5829 = vunpack.c.l.b16 %v5701
        %v5830 = vunpack.c.l.b16 %v5702
        %v5831 = vunpack.c.l.b16 %v5703
        %v5832 = vunpack.c.l.b16 %v5704
        %v5833 = vunpack.c.l.b16 %v5705
        %v5834 = vunpack.c.l.b16 %v5706
        %v5835 = vunpack.c.l.b16 %v5707
        %v5836 = vunpack.c.l.b16 %v5708
        %v5837 = vunpack.c.l.b16 %v5709
        %v5838 = vunpack.c.l.b16 %v5710
        %v5839 = vunpack.c.l.b16 %v5711
        %v5840 = vunpack.c.l.b16 %v5712
        %v5841 = vunpack.c.l.b16 %v5713
        %v5842 = vunpack.c.l.b16 %v5714
        %v5843 = vunpack.c.l.b16 %v5715
        %v5844 = vunpack.c.l.b16 %v5716
        %v5845 = vunpack.c.l.b16 %v5717
        %v5846 = vunpack.c.l.b16 %v5718
        %v5847 = vunpack.c.l.b16 %v5719
        %v5848 = vunpack.c.l.b16 %v5720
        %v5849 = vunpack.c.l.b16 %v5721
        %v5850 = vunpack.c.l.b16 %v5722
        %v5851 = vunpack.c.l.b16 %v5723
        %v5852 = vunpack.c.l.b16 %v5724
        %v5853 = vunpack.c.l.b16 %v5725
        %v5854 = vunpack.c.l.b16 %v5726
        %v5855 = vunpack.c.l.b16 %v5727
        %v5856 = vunpack.c.l.b16 %v5728
        %v5857 = vunpack.c.l.b16 %v5729
        %v5858 = vunpack.c.l.b16 %v5730
        %v5859 = vunpack.c.l.b16 %v5731
        %v5860 = vunpack.c.l.b16 %v5732
        %v5861 = vunpack.c.l.b16 %v5733
        %v5862 = vunpack.c.l.b16 %v5734
        %v5863 = vunpack.c.l.b16 %v5735
        %v5864 = vunpack.c.l.b16 %v5736
        %v5865 = vunpack.c.l.b16 %v5737
        %v5866 = vunpack.c.l.b16 %v5738
        %v5867 = vunpack.c.l.b16 %v5739
        %v5868 = vunpack.c.l.b16 %v5740
        %v5869 = vpack.c.b16 %v5806, %v5805
        %v5870 = vpack.c.b16 %v5808, %v5807
        %v5871 = vpack.c.b16 %v5810, %v5809
        %v5872 = vpack.c.b16 %v5812, %v5811
        %v5873 = vpack.c.b16 %v5814, %v5813
        %v5874 = vpack.c.b16 %v5816, %v5815
        %v5875 = vpack.c.b16 %v5818, %v5817
        %v5876 = vpack.c.b16 %v5820, %v5819
        %v5877 = vpack.c.b16 %v5822, %v5821
        %v5878 = vpack.c.b16 %v5824, %v5823
        %v5879 = vpack.c.b16 %v5826, %v5825
        %v5880 = vpack.c.b16 %v5828, %v5827
        %v5881 = vpack.c.b16 %v5830, %v5829
        %v5882 = vpack.c.b16 %v5832, %v5831
        %v5883 = vpack.c.b16 %v5834, %v5833
        %v5884 = vpack.c.b16 %v5836, %v5835
        %v5885 = vpack.c.b16 %v5838, %v5837
        %v5886 = vpack.c.b16 %v5840, %v5839
        %v5887 = vpack.c.b16 %v5842, %v5841
        %v5888 = vpack.c.b16 %v5844, %v5843
        %v5889 = vpack.c.b16 %v5846, %v5845
        %v5890 = vpack.c.b16 %v5848, %v5847
        %v5891 = vpack.c.b16 %v5850, %v5849
        %v5892 = vpack.c.b16 %v5852, %v5851
        %v5893 = vpack.c.b16 %v5854, %v5853
        %v5894 = vpack.c.b16 %v5856, %v5855
        %v5895 = vpack.c.b16 %v5858, %v5857
        %v5896 = vpack.c.b16 %v5860, %v5859
        %v5897 = vpack.c.b16 %v5862, %v5861
        %v5898 = vpack.c.b16 %v5864, %v5863
        %v5899 = vpack.c.b16 %v5866, %v5865
        %v5900 = vpack.c.b16 %v5868, %v5867
        %5933 = vmatprep.subr.bf16.mxu0 0
        %5934 = vmatpush1.bf16.msra.mxu0 %v5876
        %5935 = vmatprep.subr.bf16.mxu0 0
        %5936 = vmatpush1.bf16.msra.mxu0 %v5875
        %5937 = vmatprep.subr.bf16.mxu0 0
        %5938 = vmatpush1.bf16.msra.mxu0 %v5874
        %5939 = vmatprep.subr.bf16.mxu0 0
        %5940 = vmatpush1.bf16.msra.mxu0 %v5873
        %5941 = vmatprep.subr.bf16.mxu0 0
        %5942 = vmatpush1.bf16.msra.mxu0 %v5872
        %5943 = vmatprep.subr.bf16.mxu0 0
        %5944 = vmatpush1.bf16.msra.mxu0 %v5871
        %5945 = vmatprep.subr.bf16.mxu0 0
        %5946 = vmatpush1.bf16.msra.mxu0 %v5870
        %5947 = vmatprep.subr.bf16.mxu0 0
        %5948 = vmatpush1.bf16.msra.mxu0 %v5869
        %5949 = vmatprep.subr.bf16.mxu0 0
        %5950 = vmatpush2.bf16.msra.mxu0 %v5884
        %5951 = vmatprep.subr.bf16.mxu0 0
        %5952 = vmatpush2.bf16.msra.mxu0 %v5883
        %5953 = vmatprep.subr.bf16.mxu0 0
        %5954 = vmatpush2.bf16.msra.mxu0 %v5882
        %5955 = vmatprep.subr.bf16.mxu0 0
        %5956 = vmatpush2.bf16.msra.mxu0 %v5881
        %5957 = vmatprep.subr.bf16.mxu0 0
        %5958 = vmatpush2.bf16.msra.mxu0 %v5880
        %5959 = vmatprep.subr.bf16.mxu0 0
        %5960 = vmatpush2.bf16.msra.mxu0 %v5879
        %5961 = vmatprep.subr.bf16.mxu0 0
        %5962 = vmatpush2.bf16.msra.mxu0 %v5878
        %5963 = vmatprep.subr.bf16.mxu0 0
        %5964 = vmatpush2.bf16.msra.mxu0 %v5877
        %5965 = vmatprep.mubr.bf16.mxu0 %v5614
        %5966 = vmatmul.mubr.bf16.gmra.mxu0 %v5613
        %v5967 = vpop.f32.mrf.mxu0
        %v5968 = vadd.f32 0.0, %v5967
        %v5969 = vpop.f32.mrf.mxu0
        %v5970 = vpop.f32.mrf.mxu0
        %v5971 = vadd.f32 0.0, %v5970
        %v5972 = vpop.f32.mrf.mxu0
        %5973 = vmatprep.mubr.bf16.mxu0 %v5618
        %5974 = vmatmul.mubr.bf16.gmra.mxu0 %v5617
        %v5975 = vpop.f32.mrf.mxu0
        %v5976 = vadd.f32 0.0, %v5975
        %v5977 = vpop.f32.mrf.mxu0
        %v5978 = vpop.f32.mrf.mxu0
        %v5979 = vadd.f32 0.0, %v5978
        %v5980 = vpop.f32.mrf.mxu0
        %5981 = vmatprep.mubr.bf16.mxu0 %v5622
        %5982 = vmatmul.mubr.bf16.gmra.mxu0 %v5621
        %v5983 = vpop.f32.mrf.mxu0
        %v5984 = vadd.f32 0.0, %v5983
        %v5985 = vpop.f32.mrf.mxu0
        %v5986 = vpop.f32.mrf.mxu0
        %v5987 = vadd.f32 0.0, %v5986
        %v5988 = vpop.f32.mrf.mxu0
        %5989 = vmatprep.mubr.bf16.mxu0 %v5626
        %5990 = vmatmul.mubr.bf16.gmra.mxu0 %v5625
        %v5991 = vpop.f32.mrf.mxu0
        %v5992 = vadd.f32 0.0, %v5991
        %v5993 = vpop.f32.mrf.mxu0
        %v5994 = vpop.f32.mrf.mxu0
        %v5995 = vadd.f32 0.0, %v5994
        %v5996 = vpop.f32.mrf.mxu0
        %5997 = vmatprep.mubr.bf16.mxu0 %v5630
        %5998 = vmatmul.mubr.bf16.gmra.mxu0 %v5629
        %v5999 = vpop.f32.mrf.mxu0
        %v6000 = vadd.f32 0.0, %v5999
        %v6001 = vpop.f32.mrf.mxu0
        %v6002 = vpop.f32.mrf.mxu0
        %v6003 = vadd.f32 0.0, %v6002
        %v6004 = vpop.f32.mrf.mxu0
        %6005 = vmatprep.mubr.bf16.mxu0 %v5634
        %6006 = vmatmul.mubr.bf16.gmra.mxu0 %v5633
        %v6007 = vpop.f32.mrf.mxu0
        %v6008 = vadd.f32 0.0, %v6007
        %v6009 = vpop.f32.mrf.mxu0
        %v6010 = vpop.f32.mrf.mxu0
        %v6011 = vadd.f32 0.0, %v6010
        %v6012 = vpop.f32.mrf.mxu0
        %6013 = vmatprep.mubr.bf16.mxu0 %v5638
        %6014 = vmatmul.mubr.bf16.gmra.mxu0 %v5637
        %v6015 = vpop.f32.mrf.mxu0
        %v6016 = vadd.f32 0.0, %v6015
        %v6017 = vpop.f32.mrf.mxu0
        %v6018 = vpop.f32.mrf.mxu0
        %v6019 = vadd.f32 0.0, %v6018
        %v6020 = vpop.f32.mrf.mxu0
        %6021 = vmatprep.mubr.bf16.mxu0 %v5642
        %6022 = vmatmul.mubr.bf16.gmra.mxu0 %v5641
        %v6023 = vpop.f32.mrf.mxu0
        %v6024 = vadd.f32 0.0, %v6023
        %v6025 = vpop.f32.mrf.mxu0
        %v6026 = vpop.f32.mrf.mxu0
        %v6027 = vadd.f32 0.0, %v6026
        %v6028 = vpop.f32.mrf.mxu0
        %6029 = vmatprep.mubr.bf16.mxu0 %v5646
        %6030 = vmatmul.mubr.bf16.gmra.mxu0 %v5645
        %v6031 = vpop.f32.mrf.mxu0
        %v6032 = vadd.f32 0.0, %v6031
        %v6033 = vpop.f32.mrf.mxu0
        %v6034 = vpop.f32.mrf.mxu0
        %v6035 = vadd.f32 0.0, %v6034
        %v6036 = vpop.f32.mrf.mxu0
        %6037 = vmatprep.mubr.bf16.mxu0 %v5650
        %6038 = vmatmul.mubr.bf16.gmra.mxu0 %v5649
        %v6039 = vpop.f32.mrf.mxu0
        %v6040 = vadd.f32 0.0, %v6039
        %v6041 = vpop.f32.mrf.mxu0
        %v6042 = vpop.f32.mrf.mxu0
        %v6043 = vadd.f32 0.0, %v6042
        %v6044 = vpop.f32.mrf.mxu0
        %6045 = vmatprep.mubr.bf16.mxu0 %v5654
        %6046 = vmatmul.mubr.bf16.gmra.mxu0 %v5653
        %v6047 = vpop.f32.mrf.mxu0
        %v6048 = vadd.f32 0.0, %v6047
        %v6049 = vpop.f32.mrf.mxu0
        %v6050 = vpop.f32.mrf.mxu0
        %v6051 = vadd.f32 0.0, %v6050
        %v6052 = vpop.f32.mrf.mxu0
        %6053 = vmatprep.mubr.bf16.mxu0 %v5658
        %6054 = vmatmul.mubr.bf16.gmra.mxu0 %v5657
        %v6055 = vpop.f32.mrf.mxu0
        %v6056 = vadd.f32 0.0, %v6055
        %v6057 = vpop.f32.mrf.mxu0
        %v6058 = vpop.f32.mrf.mxu0
        %v6059 = vadd.f32 0.0, %v6058
        %v6060 = vpop.f32.mrf.mxu0
        %6061 = vmatprep.mubr.bf16.mxu0 %v5662
        %6062 = vmatmul.mubr.bf16.gmra.mxu0 %v5661
        %v6063 = vpop.f32.mrf.mxu0
        %v6064 = vadd.f32 0.0, %v6063
        %v6065 = vpop.f32.mrf.mxu0
        %v6066 = vpop.f32.mrf.mxu0
        %v6067 = vadd.f32 0.0, %v6066
        %v6068 = vpop.f32.mrf.mxu0
        %6069 = vmatprep.mubr.bf16.mxu0 %v5666
        %6070 = vmatmul.mubr.bf16.gmra.mxu0 %v5665
        %v6071 = vpop.f32.mrf.mxu0
        %v6072 = vadd.f32 0.0, %v6071
        %v6073 = vpop.f32.mrf.mxu0
        %v6074 = vpop.f32.mrf.mxu0
        %v6075 = vadd.f32 0.0, %v6074
        %v6076 = vpop.f32.mrf.mxu0
        %6077 = vmatprep.mubr.bf16.mxu0 %v5670
        %6078 = vmatmul.mubr.bf16.gmra.mxu0 %v5669
        %v6079 = vpop.f32.mrf.mxu0
        %v6080 = vadd.f32 0.0, %v6079
        %v6081 = vpop.f32.mrf.mxu0
        %v6082 = vpop.f32.mrf.mxu0
        %v6083 = vadd.f32 0.0, %v6082
        %v6084 = vpop.f32.mrf.mxu0
        %6085 = vmatprep.mubr.bf16.mxu0 %v5674
        %6086 = vmatmul.mubr.bf16.gmra.mxu0 %v5673
        %v6087 = vpop.f32.mrf.mxu0
        %v6088 = vadd.f32 0.0, %v6087
        %v6089 = vpop.f32.mrf.mxu0
        %v6090 = vpop.f32.mrf.mxu0
        %v6091 = vadd.f32 0.0, %v6090
        %v6092 = vpop.f32.mrf.mxu0
        %6093 = vdwg.mxu0
        %6094 = vmatprep.subr.bf16.mxu0 0
        %6095 = vmatpush1.bf16.msra.mxu0 %v5892
        %6096 = vmatprep.subr.bf16.mxu0 0
        %6097 = vmatpush1.bf16.msra.mxu0 %v5891
        %6098 = vmatprep.subr.bf16.mxu0 0
        %6099 = vmatpush1.bf16.msra.mxu0 %v5890
        %6100 = vmatprep.subr.bf16.mxu0 0
        %6101 = vmatpush1.bf16.msra.mxu0 %v5889
        %6102 = vmatprep.subr.bf16.mxu0 0
        %6103 = vmatpush1.bf16.msra.mxu0 %v5888
        %6104 = vmatprep.subr.bf16.mxu0 0
        %6105 = vmatpush1.bf16.msra.mxu0 %v5887
        %6106 = vmatprep.subr.bf16.mxu0 0
        %6107 = vmatpush1.bf16.msra.mxu0 %v5886
        %6108 = vmatprep.subr.bf16.mxu0 0
        %6109 = vmatpush1.bf16.msra.mxu0 %v5885
        %6110 = vmatprep.subr.bf16.mxu0 0
        %6111 = vmatpush2.bf16.msra.mxu0 %v5900
        %6112 = vmatprep.subr.bf16.mxu0 0
        %6113 = vmatpush2.bf16.msra.mxu0 %v5899
        %6114 = vmatprep.subr.bf16.mxu0 0
        %6115 = vmatpush2.bf16.msra.mxu0 %v5898
        %6116 = vmatprep.subr.bf16.mxu0 0
        %6117 = vmatpush2.bf16.msra.mxu0 %v5897
        %6118 = vmatprep.subr.bf16.mxu0 0
        %6119 = vmatpush2.bf16.msra.mxu0 %v5896
        %6120 = vmatprep.subr.bf16.mxu0 0
        %6121 = vmatpush2.bf16.msra.mxu0 %v5895
        %6122 = vmatprep.subr.bf16.mxu0 0
        %6123 = vmatpush2.bf16.msra.mxu0 %v5894
        %6124 = vmatprep.subr.bf16.mxu0 0
        %6125 = vmatpush2.bf16.msra.mxu0 %v5893
        %6126 = vmatprep.mubr.bf16.mxu0 %v5616
        %6127 = vmatmul.mubr.bf16.gmra.mxu0 %v5615
        %v6128 = vpop.f32.mrf.mxu0
        %v6129 = vadd.f32 %v5968, %v6128
        %v6130 = vpop.f32.mrf.mxu0
        %v6131 = vpop.f32.mrf.mxu0
        %v6132 = vadd.f32 %v5971, %v6131
        %v6133 = vpop.f32.mrf.mxu0
        %6134 = vmatprep.mubr.bf16.mxu0 %v5620
        %6135 = vmatmul.mubr.bf16.gmra.mxu0 %v5619
        %v6136 = vpop.f32.mrf.mxu0
        %v6137 = vadd.f32 %v5976, %v6136
        %v6138 = vpop.f32.mrf.mxu0
        %v6139 = vpop.f32.mrf.mxu0
        %v6140 = vadd.f32 %v5979, %v6139
        %v6141 = vpop.f32.mrf.mxu0
        %6142 = vmatprep.mubr.bf16.mxu0 %v5624
        %6143 = vmatmul.mubr.bf16.gmra.mxu0 %v5623
        %v6144 = vpop.f32.mrf.mxu0
        %v6145 = vadd.f32 %v5984, %v6144
        %v6146 = vpop.f32.mrf.mxu0
        %v6147 = vpop.f32.mrf.mxu0
        %v6148 = vadd.f32 %v5987, %v6147
        %v6149 = vpop.f32.mrf.mxu0
        %6150 = vmatprep.mubr.bf16.mxu0 %v5628
        %6151 = vmatmul.mubr.bf16.gmra.mxu0 %v5627
        %v6152 = vpop.f32.mrf.mxu0
        %v6153 = vadd.f32 %v5992, %v6152
        %v6154 = vpop.f32.mrf.mxu0
        %v6155 = vpop.f32.mrf.mxu0
        %v6156 = vadd.f32 %v5995, %v6155
        %v6157 = vpop.f32.mrf.mxu0
        %6158 = vmatprep.mubr.bf16.mxu0 %v5632
        %6159 = vmatmul.mubr.bf16.gmra.mxu0 %v5631
        %v6160 = vpop.f32.mrf.mxu0
        %v6161 = vadd.f32 %v6000, %v6160
        %v6162 = vpop.f32.mrf.mxu0
        %v6163 = vpop.f32.mrf.mxu0
        %v6164 = vadd.f32 %v6003, %v6163
        %v6165 = vpop.f32.mrf.mxu0
        %6166 = vmatprep.mubr.bf16.mxu0 %v5636
        %6167 = vmatmul.mubr.bf16.gmra.mxu0 %v5635
        %v6168 = vpop.f32.mrf.mxu0
        %v6169 = vadd.f32 %v6008, %v6168
        %v6170 = vpop.f32.mrf.mxu0
        %v6171 = vpop.f32.mrf.mxu0
        %v6172 = vadd.f32 %v6011, %v6171
        %v6173 = vpop.f32.mrf.mxu0
        %6174 = vmatprep.mubr.bf16.mxu0 %v5640
        %6175 = vmatmul.mubr.bf16.gmra.mxu0 %v5639
        %v6176 = vpop.f32.mrf.mxu0
        %v6177 = vadd.f32 %v6016, %v6176
        %v6178 = vpop.f32.mrf.mxu0
        %v6179 = vpop.f32.mrf.mxu0
        %v6180 = vadd.f32 %v6019, %v6179
        %v6181 = vpop.f32.mrf.mxu0
        %6182 = vmatprep.mubr.bf16.mxu0 %v5644
        %6183 = vmatmul.mubr.bf16.gmra.mxu0 %v5643
        %v6184 = vpop.f32.mrf.mxu0
        %v6185 = vadd.f32 %v6024, %v6184
        %v6186 = vpop.f32.mrf.mxu0
        %v6187 = vpop.f32.mrf.mxu0
        %v6188 = vadd.f32 %v6027, %v6187
        %v6189 = vpop.f32.mrf.mxu0
        %6190 = vmatprep.mubr.bf16.mxu0 %v5648
        %6191 = vmatmul.mubr.bf16.gmra.mxu0 %v5647
        %v6192 = vpop.f32.mrf.mxu0
        %v6193 = vadd.f32 %v6032, %v6192
        %v6194 = vpop.f32.mrf.mxu0
        %v6195 = vpop.f32.mrf.mxu0
        %v6196 = vadd.f32 %v6035, %v6195
        %v6197 = vpop.f32.mrf.mxu0
        %6198 = vmatprep.mubr.bf16.mxu0 %v5652
        %6199 = vmatmul.mubr.bf16.gmra.mxu0 %v5651
        %v6200 = vpop.f32.mrf.mxu0
        %v6201 = vadd.f32 %v6040, %v6200
        %v6202 = vpop.f32.mrf.mxu0
        %v6203 = vpop.f32.mrf.mxu0
        %v6204 = vadd.f32 %v6043, %v6203
        %v6205 = vpop.f32.mrf.mxu0
        %6206 = vmatprep.mubr.bf16.mxu0 %v5656
        %6207 = vmatmul.mubr.bf16.gmra.mxu0 %v5655
        %v6208 = vpop.f32.mrf.mxu0
        %v6209 = vadd.f32 %v6048, %v6208
        %v6210 = vpop.f32.mrf.mxu0
        %v6211 = vpop.f32.mrf.mxu0
        %v6212 = vadd.f32 %v6051, %v6211
        %v6213 = vpop.f32.mrf.mxu0
        %6214 = vmatprep.mubr.bf16.mxu0 %v5660
        %6215 = vmatmul.mubr.bf16.gmra.mxu0 %v5659
        %v6216 = vpop.f32.mrf.mxu0
        %v6217 = vadd.f32 %v6056, %v6216
        %v6218 = vpop.f32.mrf.mxu0
        %v6219 = vpop.f32.mrf.mxu0
        %v6220 = vadd.f32 %v6059, %v6219
        %v6221 = vpop.f32.mrf.mxu0
        %6222 = vmatprep.mubr.bf16.mxu0 %v5664
        %6223 = vmatmul.mubr.bf16.gmra.mxu0 %v5663
        %v6224 = vpop.f32.mrf.mxu0
        %v6225 = vadd.f32 %v6064, %v6224
        %v6226 = vpop.f32.mrf.mxu0
        %v6227 = vpop.f32.mrf.mxu0
        %v6228 = vadd.f32 %v6067, %v6227
        %v6229 = vpop.f32.mrf.mxu0
        %6230 = vmatprep.mubr.bf16.mxu0 %v5668
        %6231 = vmatmul.mubr.bf16.gmra.mxu0 %v5667
        %v6232 = vpop.f32.mrf.mxu0
        %v6233 = vadd.f32 %v6072, %v6232
        %v6234 = vpop.f32.mrf.mxu0
        %v6235 = vpop.f32.mrf.mxu0
        %v6236 = vadd.f32 %v6075, %v6235
        %v6237 = vpop.f32.mrf.mxu0
        %6238 = vmatprep.mubr.bf16.mxu0 %v5672
        %6239 = vmatmul.mubr.bf16.gmra.mxu0 %v5671
        %v6240 = vpop.f32.mrf.mxu0
        %v6241 = vadd.f32 %v6080, %v6240
        %v6242 = vpop.f32.mrf.mxu0
        %v6243 = vpop.f32.mrf.mxu0
        %v6244 = vadd.f32 %v6083, %v6243
        %v6245 = vpop.f32.mrf.mxu0
        %6246 = vmatprep.mubr.bf16.mxu0 %v5676
        %6247 = vmatmul.mubr.bf16.gmra.mxu0 %v5675
        %v6248 = vpop.f32.mrf.mxu0
        %v6249 = vadd.f32 %v6088, %v6248
        %v6250 = vpop.f32.mrf.mxu0
        %v6251 = vpop.f32.mrf.mxu0
        %v6252 = vadd.f32 %v6091, %v6251
        %v6253 = vpop.f32.mrf.mxu0
        %6254 = vdwg.mxu0
        %v6255 = vadd.f32 %v4507, %v6129
        %v6256 = vadd.f32 %v4508, %v6132
        %v6257 = vadd.f32 %v4509, %v6137
        %v6258 = vadd.f32 %v4510, %v6140
        %v6259 = vadd.f32 %v4511, %v6145
        %v6260 = vadd.f32 %v4512, %v6148
        %v6261 = vadd.f32 %v4513, %v6153
        %v6262 = vadd.f32 %v4514, %v6156
        %v6263 = vadd.f32 %v4515, %v6161
        %v6264 = vadd.f32 %v4516, %v6164
        %v6265 = vadd.f32 %v4517, %v6169
        %v6266 = vadd.f32 %v4518, %v6172
        %v6267 = vadd.f32 %v4519, %v6177
        %v6268 = vadd.f32 %v4520, %v6180
        %v6269 = vadd.f32 %v4521, %v6185
        %v6270 = vadd.f32 %v4522, %v6188
        %v6271 = vadd.f32 %v4523, %v6193
        %v6272 = vadd.f32 %v4524, %v6196
        %v6273 = vadd.f32 %v4525, %v6201
        %v6274 = vadd.f32 %v4526, %v6204
        %v6275 = vadd.f32 %v4527, %v6209
        %v6276 = vadd.f32 %v4528, %v6212
        %v6277 = vadd.f32 %v4529, %v6217
        %v6278 = vadd.f32 %v4530, %v6220
        %v6279 = vadd.f32 %v4531, %v6225
        %v6280 = vadd.f32 %v4532, %v6228
        %v6281 = vadd.f32 %v4533, %v6233
        %v6282 = vadd.f32 %v4534, %v6236
        %v6283 = vadd.f32 %v4535, %v6241
        %v6284 = vadd.f32 %v4536, %v6244
        %v6285 = vadd.f32 %v4537, %v6249
        %v6286 = vadd.f32 %v4538, %v6252
        %6287 = vst [vmem:[#allocation2] sm:$0xff] %v6255
        %6288 = vst [vmem:[#allocation2 + $0x8] sm:$0xff] %v6256
        %6289 = vst [vmem:[#allocation2 + $0x10] sm:$0xff] %v6257
        %6290 = vst [vmem:[#allocation2 + $0x18] sm:$0xff] %v6258
        %6291 = vst [vmem:[#allocation2 + $0x20] sm:$0xff] %v6259
        %6292 = vst [vmem:[#allocation2 + $0x28] sm:$0xff] %v6260
        %6293 = vst [vmem:[#allocation2 + $0x30] sm:$0xff] %v6261
        %6294 = vst [vmem:[#allocation2 + $0x38] sm:$0xff] %v6262
        %6295 = vst [vmem:[#allocation2 + $0x40] sm:$0xff] %v6263
        %6296 = vst [vmem:[#allocation2 + $0x48] sm:$0xff] %v6264
        %6297 = vst [vmem:[#allocation2 + $0x50] sm:$0xff] %v6265
        %6298 = vst [vmem:[#allocation2 + $0x58] sm:$0xff] %v6266
        %6299 = vst [vmem:[#allocation2 + $0x60] sm:$0xff] %v6267
        %6300 = vst [vmem:[#allocation2 + $0x68] sm:$0xff] %v6268
        %6301 = vst [vmem:[#allocation2 + $0x70] sm:$0xff] %v6269
        %6302 = vst [vmem:[#allocation2 + $0x78] sm:$0xff] %v6270
        %6303 = vst [vmem:[#allocation2 + $0x80] sm:$0xff] %v6271
        %6304 = vst [vmem:[#allocation2 + $0x88] sm:$0xff] %v6272
        %6305 = vst [vmem:[#allocation2 + $0x90] sm:$0xff] %v6273
        %6306 = vst [vmem:[#allocation2 + $0x98] sm:$0xff] %v6274
        %6307 = vst [vmem:[#allocation2 + $0xa0] sm:$0xff] %v6275
        %6308 = vst [vmem:[#allocation2 + $0xa8] sm:$0xff] %v6276
        %6309 = vst [vmem:[#allocation2 + $0xb0] sm:$0xff] %v6277
        %6310 = vst [vmem:[#allocation2 + $0xb8] sm:$0xff] %v6278
        %6311 = vst [vmem:[#allocation2 + $0xc0] sm:$0xff] %v6279
        %6312 = vst [vmem:[#allocation2 + $0xc8] sm:$0xff] %v6280
        %6313 = vst [vmem:[#allocation2 + $0xd0] sm:$0xff] %v6281
        %6314 = vst [vmem:[#allocation2 + $0xd8] sm:$0xff] %v6282
        %6315 = vst [vmem:[#allocation2 + $0xe0] sm:$0xff] %v6283
        %6316 = vst [vmem:[#allocation2 + $0xe8] sm:$0xff] %v6284
        %6317 = vst [vmem:[#allocation2 + $0xf0] sm:$0xff] %v6285
        %6318 = vst [vmem:[#allocation2 + $0xf8] sm:$0xff] %v6286
        %p6319 = scmp.lt.s32.totalorder %s38, 6
        // Predicated region
        $region89: #{gpt_forward.1} parent=71 // pred_check
          %p6320 = pneg %p6319
        $region90: #{gpt_forward.1} parent=71 // pred_check_branch
          %6322 = sbr.rel (%p6320) target = $region92
        $region91: #{gpt_forward.1} parent=71 // pred_region
          %s6323 = smul.u32 %s38, 256
          %s6324 = scalar_lea.vmem [#allocation4], %s6323
          %6325 = vst [vmem:[%s6324] sm:$0xff] %v6255
          %6326 = vst [vmem:[%s6324 + $0x8] sm:$0xff] %v6256
          %6327 = vst [vmem:[%s6324 + $0x10] sm:$0xff] %v6257
          %6328 = vst [vmem:[%s6324 + $0x18] sm:$0xff] %v6258
          %6329 = vst [vmem:[%s6324 + $0x20] sm:$0xff] %v6259
          %6330 = vst [vmem:[%s6324 + $0x28] sm:$0xff] %v6260
          %6331 = vst [vmem:[%s6324 + $0x30] sm:$0xff] %v6261
          %6332 = vst [vmem:[%s6324 + $0x38] sm:$0xff] %v6262
          %6333 = vst [vmem:[%s6324 + $0x40] sm:$0xff] %v6263
          %6334 = vst [vmem:[%s6324 + $0x48] sm:$0xff] %v6264
          %6335 = vst [vmem:[%s6324 + $0x50] sm:$0xff] %v6265
          %6336 = vst [vmem:[%s6324 + $0x58] sm:$0xff] %v6266
          %6337 = vst [vmem:[%s6324 + $0x60] sm:$0xff] %v6267
          %6338 = vst [vmem:[%s6324 + $0x68] sm:$0xff] %v6268
          %6339 = vst [vmem:[%s6324 + $0x70] sm:$0xff] %v6269
          %6340 = vst [vmem:[%s6324 + $0x78] sm:$0xff] %v6270
          %6341 = vst [vmem:[%s6324 + $0x80] sm:$0xff] %v6271
          %6342 = vst [vmem:[%s6324 + $0x88] sm:$0xff] %v6272
          %6343 = vst [vmem:[%s6324 + $0x90] sm:$0xff] %v6273
          %6344 = vst [vmem:[%s6324 + $0x98] sm:$0xff] %v6274
          %6345 = vst [vmem:[%s6324 + $0xa0] sm:$0xff] %v6275
          %6346 = vst [vmem:[%s6324 + $0xa8] sm:$0xff] %v6276
          %6347 = vst [vmem:[%s6324 + $0xb0] sm:$0xff] %v6277
          %6348 = vst [vmem:[%s6324 + $0xb8] sm:$0xff] %v6278
          %6349 = vst [vmem:[%s6324 + $0xc0] sm:$0xff] %v6279
          %6350 = vst [vmem:[%s6324 + $0xc8] sm:$0xff] %v6280
          %6351 = vst [vmem:[%s6324 + $0xd0] sm:$0xff] %v6281
          %6352 = vst [vmem:[%s6324 + $0xd8] sm:$0xff] %v6282
          %6353 = vst [vmem:[%s6324 + $0xe0] sm:$0xff] %v6283
          %6354 = vst [vmem:[%s6324 + $0xe8] sm:$0xff] %v6284
          %6355 = vst [vmem:[%s6324 + $0xf0] sm:$0xff] %v6285
          %6356 = vst [vmem:[%s6324 + $0xf8] sm:$0xff] %v6286
        $region92: #{gpt_forward.1} parent=71 // pred_fallthru
          _
        %p6357 = scmp.eq.s32.totalorder %s38, 11
        // Predicated region
        $region93: #{gpt_forward.1} parent=71 // pred_check
          %p6358 = pneg %p6357
        $region94: #{gpt_forward.1} parent=71 // pred_check_branch
          %6360 = sbr.rel (%p6358) target = $region96
        $region95: #{gpt_forward.1} parent=71 // pred_region
          %v6361 = vmul.f32 %v6255, %v6255
          %v6362 = vmul.f32 %v6256, %v6256
          %v6363 = vmul.f32 %v6257, %v6257
          %v6364 = vmul.f32 %v6258, %v6258
          %v6365 = vmul.f32 %v6259, %v6259
          %v6366 = vmul.f32 %v6260, %v6260
          %v6367 = vmul.f32 %v6261, %v6261
          %v6368 = vmul.f32 %v6262, %v6262
          %v6369 = vmul.f32 %v6263, %v6263
          %v6370 = vmul.f32 %v6264, %v6264
          %v6371 = vmul.f32 %v6265, %v6265
          %v6372 = vmul.f32 %v6266, %v6266
          %v6373 = vmul.f32 %v6267, %v6267
          %v6374 = vmul.f32 %v6268, %v6268
          %v6375 = vmul.f32 %v6269, %v6269
          %v6376 = vmul.f32 %v6270, %v6270
          %v6377 = vmul.f32 %v6271, %v6271
          %v6378 = vmul.f32 %v6272, %v6272
          %v6379 = vmul.f32 %v6273, %v6273
          %v6380 = vmul.f32 %v6274, %v6274
          %v6381 = vmul.f32 %v6275, %v6275
          %v6382 = vmul.f32 %v6276, %v6276
          %v6383 = vmul.f32 %v6277, %v6277
          %v6384 = vmul.f32 %v6278, %v6278
          %v6385 = vmul.f32 %v6279, %v6279
          %v6386 = vmul.f32 %v6280, %v6280
          %v6387 = vmul.f32 %v6281, %v6281
          %v6388 = vmul.f32 %v6282, %v6282
          %v6389 = vmul.f32 %v6283, %v6283
          %v6390 = vmul.f32 %v6284, %v6284
          %v6391 = vmul.f32 %v6285, %v6285
          %v6392 = vmul.f32 %v6286, %v6286
          %6393 = vadd.xlane.f32.xlu0 %v6361
          %v6394 = vpop.xlane.xlu0 %6393
          %6395 = vadd.xlane.f32.xlu0 %v6362
          %v6396 = vpop.xlane.xlu0 %6395
          %6397 = vadd.xlane.f32.xlu0 %v6363
          %v6398 = vpop.xlane.xlu0 %6397
          %6399 = vadd.xlane.f32.xlu0 %v6364
          %v6400 = vpop.xlane.xlu0 %6399
          %6401 = vadd.xlane.f32.xlu0 %v6365
          %v6402 = vpop.xlane.xlu0 %6401
          %6403 = vadd.xlane.f32.xlu0 %v6366
          %v6404 = vpop.xlane.xlu0 %6403
          %6405 = vadd.xlane.f32.xlu0 %v6367
          %v6406 = vpop.xlane.xlu0 %6405
          %6407 = vadd.xlane.f32.xlu0 %v6368
          %v6408 = vpop.xlane.xlu0 %6407
          %6409 = vadd.xlane.f32.xlu0 %v6369
          %v6410 = vpop.xlane.xlu0 %6409
          %6411 = vadd.xlane.f32.xlu0 %v6370
          %v6412 = vpop.xlane.xlu0 %6411
          %6413 = vadd.xlane.f32.xlu0 %v6371
          %v6414 = vpop.xlane.xlu0 %6413
          %6415 = vadd.xlane.f32.xlu0 %v6372
          %v6416 = vpop.xlane.xlu0 %6415
          %6417 = vadd.xlane.f32.xlu0 %v6373
          %v6418 = vpop.xlane.xlu0 %6417
          %6419 = vadd.xlane.f32.xlu0 %v6374
          %v6420 = vpop.xlane.xlu0 %6419
          %6421 = vadd.xlane.f32.xlu0 %v6375
          %v6422 = vpop.xlane.xlu0 %6421
          %6423 = vadd.xlane.f32.xlu0 %v6376
          %v6424 = vpop.xlane.xlu0 %6423
          %6425 = vadd.xlane.f32.xlu0 %v6377
          %v6426 = vpop.xlane.xlu0 %6425
          %6427 = vadd.xlane.f32.xlu0 %v6378
          %v6428 = vpop.xlane.xlu0 %6427
          %6429 = vadd.xlane.f32.xlu0 %v6379
          %v6430 = vpop.xlane.xlu0 %6429
          %6431 = vadd.xlane.f32.xlu0 %v6380
          %v6432 = vpop.xlane.xlu0 %6431
          %6433 = vadd.xlane.f32.xlu0 %v6381
          %v6434 = vpop.xlane.xlu0 %6433
          %6435 = vadd.xlane.f32.xlu0 %v6382
          %v6436 = vpop.xlane.xlu0 %6435
          %6437 = vadd.xlane.f32.xlu0 %v6383
          %v6438 = vpop.xlane.xlu0 %6437
          %6439 = vadd.xlane.f32.xlu0 %v6384
          %v6440 = vpop.xlane.xlu0 %6439
          %6441 = vadd.xlane.f32.xlu0 %v6385
          %v6442 = vpop.xlane.xlu0 %6441
          %6443 = vadd.xlane.f32.xlu0 %v6386
          %v6444 = vpop.xlane.xlu0 %6443
          %6445 = vadd.xlane.f32.xlu0 %v6387
          %v6446 = vpop.xlane.xlu0 %6445
          %6447 = vadd.xlane.f32.xlu0 %v6388
          %v6448 = vpop.xlane.xlu0 %6447
          %6449 = vadd.xlane.f32.xlu0 %v6389
          %v6450 = vpop.xlane.xlu0 %6449
          %6451 = vadd.xlane.f32.xlu0 %v6390
          %v6452 = vpop.xlane.xlu0 %6451
          %6453 = vadd.xlane.f32.xlu0 %v6391
          %v6454 = vpop.xlane.xlu0 %6453
          %6455 = vadd.xlane.f32.xlu0 %v6392
          %v6456 = vpop.xlane.xlu0 %6455
          %v6457 = vmul.f32 %v6394, %v1469
          %v6458 = vmul.f32 %v6396, %v1469
          %v6459 = vmul.f32 %v6398, %v1469
          %v6460 = vmul.f32 %v6400, %v1469
          %v6461 = vmul.f32 %v6402, %v1469
          %v6462 = vmul.f32 %v6404, %v1469
          %v6463 = vmul.f32 %v6406, %v1469
          %v6464 = vmul.f32 %v6408, %v1469
          %v6465 = vmul.f32 %v6410, %v1469
          %v6466 = vmul.f32 %v6412, %v1469
          %v6467 = vmul.f32 %v6414, %v1469
          %v6468 = vmul.f32 %v6416, %v1469
          %v6469 = vmul.f32 %v6418, %v1469
          %v6470 = vmul.f32 %v6420, %v1469
          %v6471 = vmul.f32 %v6422, %v1469
          %v6472 = vmul.f32 %v6424, %v1469
          %v6473 = vmul.f32 %v6426, %v1469
          %v6474 = vmul.f32 %v6428, %v1469
          %v6475 = vmul.f32 %v6430, %v1469
          %v6476 = vmul.f32 %v6432, %v1469
          %v6477 = vmul.f32 %v6434, %v1469
          %v6478 = vmul.f32 %v6436, %v1469
          %v6479 = vmul.f32 %v6438, %v1469
          %v6480 = vmul.f32 %v6440, %v1469
          %v6481 = vmul.f32 %v6442, %v1469
          %v6482 = vmul.f32 %v6444, %v1469
          %v6483 = vmul.f32 %v6446, %v1469
          %v6484 = vmul.f32 %v6448, %v1469
          %v6485 = vmul.f32 %v6450, %v1469
          %v6486 = vmul.f32 %v6452, %v1469
          %v6487 = vmul.f32 %v6454, %v1469
          %v6488 = vmul.f32 %v6456, %v1469
          %v6489 = vadd.f32 %v6457, 1.1920929e-07
          %v6490 = vadd.f32 %v6458, 1.1920929e-07
          %v6491 = vadd.f32 %v6459, 1.1920929e-07
          %v6492 = vadd.f32 %v6460, 1.1920929e-07
          %v6493 = vadd.f32 %v6461, 1.1920929e-07
          %v6494 = vadd.f32 %v6462, 1.1920929e-07
          %v6495 = vadd.f32 %v6463, 1.1920929e-07
          %v6496 = vadd.f32 %v6464, 1.1920929e-07
          %v6497 = vadd.f32 %v6465, 1.1920929e-07
          %v6498 = vadd.f32 %v6466, 1.1920929e-07
          %v6499 = vadd.f32 %v6467, 1.1920929e-07
          %v6500 = vadd.f32 %v6468, 1.1920929e-07
          %v6501 = vadd.f32 %v6469, 1.1920929e-07
          %v6502 = vadd.f32 %v6470, 1.1920929e-07
          %v6503 = vadd.f32 %v6471, 1.1920929e-07
          %v6504 = vadd.f32 %v6472, 1.1920929e-07
          %v6505 = vadd.f32 %v6473, 1.1920929e-07
          %v6506 = vadd.f32 %v6474, 1.1920929e-07
          %v6507 = vadd.f32 %v6475, 1.1920929e-07
          %v6508 = vadd.f32 %v6476, 1.1920929e-07
          %v6509 = vadd.f32 %v6477, 1.1920929e-07
          %v6510 = vadd.f32 %v6478, 1.1920929e-07
          %v6511 = vadd.f32 %v6479, 1.1920929e-07
          %v6512 = vadd.f32 %v6480, 1.1920929e-07
          %v6513 = vadd.f32 %v6481, 1.1920929e-07
          %v6514 = vadd.f32 %v6482, 1.1920929e-07
          %v6515 = vadd.f32 %v6483, 1.1920929e-07
          %v6516 = vadd.f32 %v6484, 1.1920929e-07
          %v6517 = vadd.f32 %v6485, 1.1920929e-07
          %v6518 = vadd.f32 %v6486, 1.1920929e-07
          %v6519 = vadd.f32 %v6487, 1.1920929e-07
          %v6520 = vadd.f32 %v6488, 1.1920929e-07
          %v6521 = vrsqrt.pop %v6489
          %v6522 = vrsqrt.pop %v6490
          %v6523 = vrsqrt.pop %v6491
          %v6524 = vrsqrt.pop %v6492
          %v6525 = vrsqrt.pop %v6493
          %v6526 = vrsqrt.pop %v6494
          %v6527 = vrsqrt.pop %v6495
          %v6528 = vrsqrt.pop %v6496
          %v6529 = vrsqrt.pop %v6497
          %v6530 = vrsqrt.pop %v6498
          %v6531 = vrsqrt.pop %v6499
          %v6532 = vrsqrt.pop %v6500
          %v6533 = vrsqrt.pop %v6501
          %v6534 = vrsqrt.pop %v6502
          %v6535 = vrsqrt.pop %v6503
          %v6536 = vrsqrt.pop %v6504
          %v6537 = vrsqrt.pop %v6505
          %v6538 = vrsqrt.pop %v6506
          %v6539 = vrsqrt.pop %v6507
          %v6540 = vrsqrt.pop %v6508
          %v6541 = vrsqrt.pop %v6509
          %v6542 = vrsqrt.pop %v6510
          %v6543 = vrsqrt.pop %v6511
          %v6544 = vrsqrt.pop %v6512
          %v6545 = vrsqrt.pop %v6513
          %v6546 = vrsqrt.pop %v6514
          %v6547 = vrsqrt.pop %v6515
          %v6548 = vrsqrt.pop %v6516
          %v6549 = vrsqrt.pop %v6517
          %v6550 = vrsqrt.pop %v6518
          %v6551 = vrsqrt.pop %v6519
          %v6552 = vrsqrt.pop %v6520
          %v6553 = vmul.f32 %v6255, %v6521
          %v6554 = vmul.f32 %v6256, %v6522
          %v6555 = vmul.f32 %v6257, %v6523
          %v6556 = vmul.f32 %v6258, %v6524
          %v6557 = vmul.f32 %v6259, %v6525
          %v6558 = vmul.f32 %v6260, %v6526
          %v6559 = vmul.f32 %v6261, %v6527
          %v6560 = vmul.f32 %v6262, %v6528
          %v6561 = vmul.f32 %v6263, %v6529
          %v6562 = vmul.f32 %v6264, %v6530
          %v6563 = vmul.f32 %v6265, %v6531
          %v6564 = vmul.f32 %v6266, %v6532
          %v6565 = vmul.f32 %v6267, %v6533
          %v6566 = vmul.f32 %v6268, %v6534
          %v6567 = vmul.f32 %v6269, %v6535
          %v6568 = vmul.f32 %v6270, %v6536
          %v6569 = vmul.f32 %v6271, %v6537
          %v6570 = vmul.f32 %v6272, %v6538
          %v6571 = vmul.f32 %v6273, %v6539
          %v6572 = vmul.f32 %v6274, %v6540
          %v6573 = vmul.f32 %v6275, %v6541
          %v6574 = vmul.f32 %v6276, %v6542
          %v6575 = vmul.f32 %v6277, %v6543
          %v6576 = vmul.f32 %v6278, %v6544
          %v6577 = vmul.f32 %v6279, %v6545
          %v6578 = vmul.f32 %v6280, %v6546
          %v6579 = vmul.f32 %v6281, %v6547
          %v6580 = vmul.f32 %v6282, %v6548
          %v6581 = vmul.f32 %v6283, %v6549
          %v6582 = vmul.f32 %v6284, %v6550
          %v6583 = vmul.f32 %v6285, %v6551
          %v6584 = vmul.f32 %v6286, %v6552
          %v6585 = vpack.c.bf16 %v6554, %v6553
          %v6586 = vpack.c.bf16 %v6556, %v6555
          %v6587 = vpack.c.bf16 %v6558, %v6557
          %v6588 = vpack.c.bf16 %v6560, %v6559
          %v6589 = vpack.c.bf16 %v6562, %v6561
          %v6590 = vpack.c.bf16 %v6564, %v6563
          %v6591 = vpack.c.bf16 %v6566, %v6565
          %v6592 = vpack.c.bf16 %v6568, %v6567
          %v6593 = vpack.c.bf16 %v6570, %v6569
          %v6594 = vpack.c.bf16 %v6572, %v6571
          %v6595 = vpack.c.bf16 %v6574, %v6573
          %v6596 = vpack.c.bf16 %v6576, %v6575
          %v6597 = vpack.c.bf16 %v6578, %v6577
          %v6598 = vpack.c.bf16 %v6580, %v6579
          %v6599 = vpack.c.bf16 %v6582, %v6581
          %v6600 = vpack.c.bf16 %v6584, %v6583
          %v6601 = vld [vmem:[%s11] sm:$0xf]
          %v6602 = vld [vmem:[%s11 + $0x4] sm:$0xf]
          %v6603 = vld [vmem:[%s11 + $0x8] sm:$0xf]
          %v6604 = vld [vmem:[%s11 + $0xc] sm:$0xf]
          %v6605 = vld [vmem:[%s11 + $0x10] sm:$0xf]
          %v6606 = vld [vmem:[%s11 + $0x14] sm:$0xf]
          %v6607 = vld [vmem:[%s11 + $0x18] sm:$0xf]
          %v6608 = vld [vmem:[%s11 + $0x1c] sm:$0xf]
          %v6609 = vld [vmem:[%s11 + $0x20] sm:$0xf]
          %v6610 = vld [vmem:[%s11 + $0x24] sm:$0xf]
          %v6611 = vld [vmem:[%s11 + $0x28] sm:$0xf]
          %v6612 = vld [vmem:[%s11 + $0x2c] sm:$0xf]
          %v6613 = vld [vmem:[%s11 + $0x30] sm:$0xf]
          %v6614 = vld [vmem:[%s11 + $0x34] sm:$0xf]
          %v6615 = vld [vmem:[%s11 + $0x38] sm:$0xf]
          %v6616 = vld [vmem:[%s11 + $0x3c] sm:$0xf]
          %v6633 = vunpack.c.l.b16 %v6601
          %v6634 = vunpack.c.l.b16 %v6602
          %v6635 = vunpack.c.l.b16 %v6603
          %v6636 = vunpack.c.l.b16 %v6604
          %v6637 = vunpack.c.l.b16 %v6605
          %v6638 = vunpack.c.l.b16 %v6606
          %v6639 = vunpack.c.l.b16 %v6607
          %v6640 = vunpack.c.l.b16 %v6608
          %v6641 = vunpack.c.l.b16 %v6609
          %v6642 = vunpack.c.l.b16 %v6610
          %v6643 = vunpack.c.l.b16 %v6611
          %v6644 = vunpack.c.l.b16 %v6612
          %v6645 = vunpack.c.l.b16 %v6613
          %v6646 = vunpack.c.l.b16 %v6614
          %v6647 = vunpack.c.l.b16 %v6615
          %v6648 = vunpack.c.l.b16 %v6616
          %v6649 = vpack.c.b16 %v6634, %v6633
          %v6650 = vpack.c.b16 %v6636, %v6635
          %v6651 = vpack.c.b16 %v6638, %v6637
          %v6652 = vpack.c.b16 %v6640, %v6639
          %v6653 = vpack.c.b16 %v6642, %v6641
          %v6654 = vpack.c.b16 %v6644, %v6643
          %v6655 = vpack.c.b16 %v6646, %v6645
          %v6656 = vpack.c.b16 %v6648, %v6647
          %6665 = vmatprep.subr.bf16.mxu0 0
          %6666 = vmatpush1.bf16.msra.mxu0 %v6656
          %6667 = vmatprep.subr.bf16.mxu0 0
          %6668 = vmatpush1.bf16.msra.mxu0 %v6655
          %6669 = vmatprep.subr.bf16.mxu0 0
          %6670 = vmatpush1.bf16.msra.mxu0 %v6654
          %6671 = vmatprep.subr.bf16.mxu0 0
          %6672 = vmatpush1.bf16.msra.mxu0 %v6653
          %6673 = vmatprep.subr.bf16.mxu0 0
          %6674 = vmatpush1.bf16.msra.mxu0 %v6652
          %6675 = vmatprep.subr.bf16.mxu0 0
          %6676 = vmatpush1.bf16.msra.mxu0 %v6651
          %6677 = vmatprep.subr.bf16.mxu0 0
          %6678 = vmatpush1.bf16.msra.mxu0 %v6650
          %6679 = vmatprep.subr.bf16.mxu0 0
          %6680 = vmatpush1.bf16.msra.mxu0 %v6649
          %6681 = vmatprep.subr.bf16.mxu0 0
          %6682 = vmatpush2.bf16.msra.mxu0 0
          %6683 = vmatprep.subr.bf16.mxu0 0
          %6684 = vmatpush2.bf16.msra.mxu0 0
          %6685 = vmatprep.subr.bf16.mxu0 0
          %6686 = vmatpush2.bf16.msra.mxu0 0
          %6687 = vmatprep.subr.bf16.mxu0 0
          %6688 = vmatpush2.bf16.msra.mxu0 0
          %6689 = vmatprep.subr.bf16.mxu0 0
          %6690 = vmatpush2.bf16.msra.mxu0 0
          %6691 = vmatprep.subr.bf16.mxu0 0
          %6692 = vmatpush2.bf16.msra.mxu0 0
          %6693 = vmatprep.subr.bf16.mxu0 0
          %6694 = vmatpush2.bf16.msra.mxu0 0
          %6695 = vmatprep.subr.bf16.mxu0 0
          %6696 = vmatpush2.bf16.msra.mxu0 0
          %6697 = vmatprep.mubr.bf16.mxu0 0
          %6698 = vmatmul.mubr.bf16.gmra.mxu0 %v6585
          %v6699 = vpop.f32.mrf.mxu0
          %v6700 = vadd.f32 0.0, %v6699
          %v6701 = vpop.f32.mrf.mxu0
          %v6702 = vpop.f32.mrf.mxu0
          %v6703 = vadd.f32 0.0, %v6702
          %v6704 = vpop.f32.mrf.mxu0
          %6705 = vmatprep.mubr.bf16.mxu0 0
          %6706 = vmatmul.mubr.bf16.gmra.mxu0 %v6586
          %v6707 = vpop.f32.mrf.mxu0
          %v6708 = vadd.f32 0.0, %v6707
          %v6709 = vpop.f32.mrf.mxu0
          %v6710 = vpop.f32.mrf.mxu0
          %v6711 = vadd.f32 0.0, %v6710
          %v6712 = vpop.f32.mrf.mxu0
          %6713 = vmatprep.mubr.bf16.mxu0 0
          %6714 = vmatmul.mubr.bf16.gmra.mxu0 %v6587
          %v6715 = vpop.f32.mrf.mxu0
          %v6716 = vadd.f32 0.0, %v6715
          %v6717 = vpop.f32.mrf.mxu0
          %v6718 = vpop.f32.mrf.mxu0
          %v6719 = vadd.f32 0.0, %v6718
          %v6720 = vpop.f32.mrf.mxu0
          %6721 = vmatprep.mubr.bf16.mxu0 0
          %6722 = vmatmul.mubr.bf16.gmra.mxu0 %v6588
          %v6723 = vpop.f32.mrf.mxu0
          %v6724 = vadd.f32 0.0, %v6723
          %v6725 = vpop.f32.mrf.mxu0
          %v6726 = vpop.f32.mrf.mxu0
          %v6727 = vadd.f32 0.0, %v6726
          %v6728 = vpop.f32.mrf.mxu0
          %6729 = vmatprep.mubr.bf16.mxu0 0
          %6730 = vmatmul.mubr.bf16.gmra.mxu0 %v6589
          %v6731 = vpop.f32.mrf.mxu0
          %v6732 = vadd.f32 0.0, %v6731
          %v6733 = vpop.f32.mrf.mxu0
          %v6734 = vpop.f32.mrf.mxu0
          %v6735 = vadd.f32 0.0, %v6734
          %v6736 = vpop.f32.mrf.mxu0
          %6737 = vmatprep.mubr.bf16.mxu0 0
          %6738 = vmatmul.mubr.bf16.gmra.mxu0 %v6590
          %v6739 = vpop.f32.mrf.mxu0
          %v6740 = vadd.f32 0.0, %v6739
          %v6741 = vpop.f32.mrf.mxu0
          %v6742 = vpop.f32.mrf.mxu0
          %v6743 = vadd.f32 0.0, %v6742
          %v6744 = vpop.f32.mrf.mxu0
          %6745 = vmatprep.mubr.bf16.mxu0 0
          %6746 = vmatmul.mubr.bf16.gmra.mxu0 %v6591
          %v6747 = vpop.f32.mrf.mxu0
          %v6748 = vadd.f32 0.0, %v6747
          %v6749 = vpop.f32.mrf.mxu0
          %v6750 = vpop.f32.mrf.mxu0
          %v6751 = vadd.f32 0.0, %v6750
          %v6752 = vpop.f32.mrf.mxu0
          %6753 = vmatprep.mubr.bf16.mxu0 0
          %6754 = vmatmul.mubr.bf16.gmra.mxu0 %v6592
          %v6755 = vpop.f32.mrf.mxu0
          %v6756 = vadd.f32 0.0, %v6755
          %v6757 = vpop.f32.mrf.mxu0
          %v6758 = vpop.f32.mrf.mxu0
          %v6759 = vadd.f32 0.0, %v6758
          %v6760 = vpop.f32.mrf.mxu0
          %6761 = vmatprep.mubr.bf16.mxu0 0
          %6762 = vmatmul.mubr.bf16.gmra.mxu0 %v6593
          %v6763 = vpop.f32.mrf.mxu0
          %v6764 = vadd.f32 0.0, %v6763
          %v6765 = vpop.f32.mrf.mxu0
          %v6766 = vpop.f32.mrf.mxu0
          %v6767 = vadd.f32 0.0, %v6766
          %v6768 = vpop.f32.mrf.mxu0
          %6769 = vmatprep.mubr.bf16.mxu0 0
          %6770 = vmatmul.mubr.bf16.gmra.mxu0 %v6594
          %v6771 = vpop.f32.mrf.mxu0
          %v6772 = vadd.f32 0.0, %v6771
          %v6773 = vpop.f32.mrf.mxu0
          %v6774 = vpop.f32.mrf.mxu0
          %v6775 = vadd.f32 0.0, %v6774
          %v6776 = vpop.f32.mrf.mxu0
          %6777 = vmatprep.mubr.bf16.mxu0 0
          %6778 = vmatmul.mubr.bf16.gmra.mxu0 %v6595
          %v6779 = vpop.f32.mrf.mxu0
          %v6780 = vadd.f32 0.0, %v6779
          %v6781 = vpop.f32.mrf.mxu0
          %v6782 = vpop.f32.mrf.mxu0
          %v6783 = vadd.f32 0.0, %v6782
          %v6784 = vpop.f32.mrf.mxu0
          %6785 = vmatprep.mubr.bf16.mxu0 0
          %6786 = vmatmul.mubr.bf16.gmra.mxu0 %v6596
          %v6787 = vpop.f32.mrf.mxu0
          %v6788 = vadd.f32 0.0, %v6787
          %v6789 = vpop.f32.mrf.mxu0
          %v6790 = vpop.f32.mrf.mxu0
          %v6791 = vadd.f32 0.0, %v6790
          %v6792 = vpop.f32.mrf.mxu0
          %6793 = vmatprep.mubr.bf16.mxu0 0
          %6794 = vmatmul.mubr.bf16.gmra.mxu0 %v6597
          %v6795 = vpop.f32.mrf.mxu0
          %v6796 = vadd.f32 0.0, %v6795
          %v6797 = vpop.f32.mrf.mxu0
          %v6798 = vpop.f32.mrf.mxu0
          %v6799 = vadd.f32 0.0, %v6798
          %v6800 = vpop.f32.mrf.mxu0
          %6801 = vmatprep.mubr.bf16.mxu0 0
          %6802 = vmatmul.mubr.bf16.gmra.mxu0 %v6598
          %v6803 = vpop.f32.mrf.mxu0
          %v6804 = vadd.f32 0.0, %v6803
          %v6805 = vpop.f32.mrf.mxu0
          %v6806 = vpop.f32.mrf.mxu0
          %v6807 = vadd.f32 0.0, %v6806
          %v6808 = vpop.f32.mrf.mxu0
          %6809 = vmatprep.mubr.bf16.mxu0 0
          %6810 = vmatmul.mubr.bf16.gmra.mxu0 %v6599
          %v6811 = vpop.f32.mrf.mxu0
          %v6812 = vadd.f32 0.0, %v6811
          %v6813 = vpop.f32.mrf.mxu0
          %v6814 = vpop.f32.mrf.mxu0
          %v6815 = vadd.f32 0.0, %v6814
          %v6816 = vpop.f32.mrf.mxu0
          %6817 = vmatprep.mubr.bf16.mxu0 0
          %6818 = vmatmul.mubr.bf16.gmra.mxu0 %v6600
          %v6819 = vpop.f32.mrf.mxu0
          %v6820 = vadd.f32 0.0, %v6819
          %v6821 = vpop.f32.mrf.mxu0
          %v6822 = vpop.f32.mrf.mxu0
          %v6823 = vadd.f32 0.0, %v6822
          %v6824 = vpop.f32.mrf.mxu0
          %6825 = vdwg.mxu0
          %v6826 = vmul.f32 %v6700, 0.011785113
          %v6827 = vmul.f32 %v6703, 0.011785113
          %v6828 = vmul.f32 %v6708, 0.011785113
          %v6829 = vmul.f32 %v6711, 0.011785113
          %v6830 = vmul.f32 %v6716, 0.011785113
          %v6831 = vmul.f32 %v6719, 0.011785113
          %v6832 = vmul.f32 %v6724, 0.011785113
          %v6833 = vmul.f32 %v6727, 0.011785113
          %v6834 = vmul.f32 %v6732, 0.011785113
          %v6835 = vmul.f32 %v6735, 0.011785113
          %v6836 = vmul.f32 %v6740, 0.011785113
          %v6837 = vmul.f32 %v6743, 0.011785113
          %v6838 = vmul.f32 %v6748, 0.011785113
          %v6839 = vmul.f32 %v6751, 0.011785113
          %v6840 = vmul.f32 %v6756, 0.011785113
          %v6841 = vmul.f32 %v6759, 0.011785113
          %v6842 = vmul.f32 %v6764, 0.011785113
          %v6843 = vmul.f32 %v6767, 0.011785113
          %v6844 = vmul.f32 %v6772, 0.011785113
          %v6845 = vmul.f32 %v6775, 0.011785113
          %v6846 = vmul.f32 %v6780, 0.011785113
          %v6847 = vmul.f32 %v6783, 0.011785113
          %v6848 = vmul.f32 %v6788, 0.011785113
          %v6849 = vmul.f32 %v6791, 0.011785113
          %v6850 = vmul.f32 %v6796, 0.011785113
          %v6851 = vmul.f32 %v6799, 0.011785113
          %v6852 = vmul.f32 %v6804, 0.011785113
          %v6853 = vmul.f32 %v6807, 0.011785113
          %v6854 = vmul.f32 %v6812, 0.011785113
          %v6855 = vmul.f32 %v6815, 0.011785113
          %v6856 = vmul.f32 %v6820, 0.011785113
          %v6857 = vmul.f32 %v6823, 0.011785113
          %v6858 = vxor.u32 %v6826, 2147483648
          %v6859 = vxor.u32 %v6827, 2147483648
          %v6860 = vxor.u32 %v6828, 2147483648
          %v6861 = vxor.u32 %v6829, 2147483648
          %v6862 = vxor.u32 %v6830, 2147483648
          %v6863 = vxor.u32 %v6831, 2147483648
          %v6864 = vxor.u32 %v6832, 2147483648
          %v6865 = vxor.u32 %v6833, 2147483648
          %v6866 = vxor.u32 %v6834, 2147483648
          %v6867 = vxor.u32 %v6835, 2147483648
          %v6868 = vxor.u32 %v6836, 2147483648
          %v6869 = vxor.u32 %v6837, 2147483648
          %v6870 = vxor.u32 %v6838, 2147483648
          %v6871 = vxor.u32 %v6839, 2147483648
          %v6872 = vxor.u32 %v6840, 2147483648
          %v6873 = vxor.u32 %v6841, 2147483648
          %v6874 = vxor.u32 %v6842, 2147483648
          %v6875 = vxor.u32 %v6843, 2147483648
          %v6876 = vxor.u32 %v6844, 2147483648
          %v6877 = vxor.u32 %v6845, 2147483648
          %v6878 = vxor.u32 %v6846, 2147483648
          %v6879 = vxor.u32 %v6847, 2147483648
          %v6880 = vxor.u32 %v6848, 2147483648
          %v6881 = vxor.u32 %v6849, 2147483648
          %v6882 = vxor.u32 %v6850, 2147483648
          %v6883 = vxor.u32 %v6851, 2147483648
          %v6884 = vxor.u32 %v6852, 2147483648
          %v6885 = vxor.u32 %v6853, 2147483648
          %v6886 = vxor.u32 %v6854, 2147483648
          %v6887 = vxor.u32 %v6855, 2147483648
          %v6888 = vxor.u32 %v6856, 2147483648
          %v6889 = vxor.u32 %v6857, 2147483648
          %v6890 = vmul.f32 %v6858, 1.442695
          %v6891 = vpow.pop %v6890
          %v6892 = vmul.f32 %v6859, 1.442695
          %v6893 = vpow.pop %v6892
          %v6894 = vmul.f32 %v6860, 1.442695
          %v6895 = vpow.pop %v6894
          %v6896 = vmul.f32 %v6861, 1.442695
          %v6897 = vpow.pop %v6896
          %v6898 = vmul.f32 %v6862, 1.442695
          %v6899 = vpow.pop %v6898
          %v6900 = vmul.f32 %v6863, 1.442695
          %v6901 = vpow.pop %v6900
          %v6902 = vmul.f32 %v6864, 1.442695
          %v6903 = vpow.pop %v6902
          %v6904 = vmul.f32 %v6865, 1.442695
          %v6905 = vpow.pop %v6904
          %v6906 = vmul.f32 %v6866, 1.442695
          %v6907 = vpow.pop %v6906
          %v6908 = vmul.f32 %v6867, 1.442695
          %v6909 = vpow.pop %v6908
          %v6910 = vmul.f32 %v6868, 1.442695
          %v6911 = vpow.pop %v6910
          %v6912 = vmul.f32 %v6869, 1.442695
          %v6913 = vpow.pop %v6912
          %v6914 = vmul.f32 %v6870, 1.442695
          %v6915 = vpow.pop %v6914
          %v6916 = vmul.f32 %v6871, 1.442695
          %v6917 = vpow.pop %v6916
          %v6918 = vmul.f32 %v6872, 1.442695
          %v6919 = vpow.pop %v6918
          %v6920 = vmul.f32 %v6873, 1.442695
          %v6921 = vpow.pop %v6920
          %v6922 = vmul.f32 %v6874, 1.442695
          %v6923 = vpow.pop %v6922
          %v6924 = vmul.f32 %v6875, 1.442695
          %v6925 = vpow.pop %v6924
          %v6926 = vmul.f32 %v6876, 1.442695
          %v6927 = vpow.pop %v6926
          %v6928 = vmul.f32 %v6877, 1.442695
          %v6929 = vpow.pop %v6928
          %v6930 = vmul.f32 %v6878, 1.442695
          %v6931 = vpow.pop %v6930
          %v6932 = vmul.f32 %v6879, 1.442695
          %v6933 = vpow.pop %v6932
          %v6934 = vmul.f32 %v6880, 1.442695
          %v6935 = vpow.pop %v6934
          %v6936 = vmul.f32 %v6881, 1.442695
          %v6937 = vpow.pop %v6936
          %v6938 = vmul.f32 %v6882, 1.442695
          %v6939 = vpow.pop %v6938
          %v6940 = vmul.f32 %v6883, 1.442695
          %v6941 = vpow.pop %v6940
          %v6942 = vmul.f32 %v6884, 1.442695
          %v6943 = vpow.pop %v6942
          %v6944 = vmul.f32 %v6885, 1.442695
          %v6945 = vpow.pop %v6944
          %v6946 = vmul.f32 %v6886, 1.442695
          %v6947 = vpow.pop %v6946
          %v6948 = vmul.f32 %v6887, 1.442695
          %v6949 = vpow.pop %v6948
          %v6950 = vmul.f32 %v6888, 1.442695
          %v6951 = vpow.pop %v6950
          %v6952 = vmul.f32 %v6889, 1.442695
          %v6953 = vpow.pop %v6952
          %v6954 = vadd.f32 %v6891, 1.0
          %v6955 = vadd.f32 %v6893, 1.0
          %v6956 = vadd.f32 %v6895, 1.0
          %v6957 = vadd.f32 %v6897, 1.0
          %v6958 = vadd.f32 %v6899, 1.0
          %v6959 = vadd.f32 %v6901, 1.0
          %v6960 = vadd.f32 %v6903, 1.0
          %v6961 = vadd.f32 %v6905, 1.0
          %v6962 = vadd.f32 %v6907, 1.0
          %v6963 = vadd.f32 %v6909, 1.0
          %v6964 = vadd.f32 %v6911, 1.0
          %v6965 = vadd.f32 %v6913, 1.0
          %v6966 = vadd.f32 %v6915, 1.0
          %v6967 = vadd.f32 %v6917, 1.0
          %v6968 = vadd.f32 %v6919, 1.0
          %v6969 = vadd.f32 %v6921, 1.0
          %v6970 = vadd.f32 %v6923, 1.0
          %v6971 = vadd.f32 %v6925, 1.0
          %v6972 = vadd.f32 %v6927, 1.0
          %v6973 = vadd.f32 %v6929, 1.0
          %v6974 = vadd.f32 %v6931, 1.0
          %v6975 = vadd.f32 %v6933, 1.0
          %v6976 = vadd.f32 %v6935, 1.0
          %v6977 = vadd.f32 %v6937, 1.0
          %v6978 = vadd.f32 %v6939, 1.0
          %v6979 = vadd.f32 %v6941, 1.0
          %v6980 = vadd.f32 %v6943, 1.0
          %v6981 = vadd.f32 %v6945, 1.0
          %v6982 = vadd.f32 %v6947, 1.0
          %v6983 = vadd.f32 %v6949, 1.0
          %v6984 = vadd.f32 %v6951, 1.0
          %v6985 = vadd.f32 %v6953, 1.0
          %v6986 = vrcp.pop %v6954
          %v6987 = vmul.f32 1.0, %v6986
          %v6988 = vrcp.pop %v6955
          %v6989 = vmul.f32 1.0, %v6988
          %v6990 = vrcp.pop %v6956
          %v6991 = vmul.f32 1.0, %v6990
          %v6992 = vrcp.pop %v6957
          %v6993 = vmul.f32 1.0, %v6992
          %v6994 = vrcp.pop %v6958
          %v6995 = vmul.f32 1.0, %v6994
          %v6996 = vrcp.pop %v6959
          %v6997 = vmul.f32 1.0, %v6996
          %v6998 = vrcp.pop %v6960
          %v6999 = vmul.f32 1.0, %v6998
          %v7000 = vrcp.pop %v6961
          %v7001 = vmul.f32 1.0, %v7000
          %v7002 = vrcp.pop %v6962
          %v7003 = vmul.f32 1.0, %v7002
          %v7004 = vrcp.pop %v6963
          %v7005 = vmul.f32 1.0, %v7004
          %v7006 = vrcp.pop %v6964
          %v7007 = vmul.f32 1.0, %v7006
          %v7008 = vrcp.pop %v6965
          %v7009 = vmul.f32 1.0, %v7008
          %v7010 = vrcp.pop %v6966
          %v7011 = vmul.f32 1.0, %v7010
          %v7012 = vrcp.pop %v6967
          %v7013 = vmul.f32 1.0, %v7012
          %v7014 = vrcp.pop %v6968
          %v7015 = vmul.f32 1.0, %v7014
          %v7016 = vrcp.pop %v6969
          %v7017 = vmul.f32 1.0, %v7016
          %v7018 = vrcp.pop %v6970
          %v7019 = vmul.f32 1.0, %v7018
          %v7020 = vrcp.pop %v6971
          %v7021 = vmul.f32 1.0, %v7020
          %v7022 = vrcp.pop %v6972
          %v7023 = vmul.f32 1.0, %v7022
          %v7024 = vrcp.pop %v6973
          %v7025 = vmul.f32 1.0, %v7024
          %v7026 = vrcp.pop %v6974
          %v7027 = vmul.f32 1.0, %v7026
          %v7028 = vrcp.pop %v6975
          %v7029 = vmul.f32 1.0, %v7028
          %v7030 = vrcp.pop %v6976
          %v7031 = vmul.f32 1.0, %v7030
          %v7032 = vrcp.pop %v6977
          %v7033 = vmul.f32 1.0, %v7032
          %v7034 = vrcp.pop %v6978
          %v7035 = vmul.f32 1.0, %v7034
          %v7036 = vrcp.pop %v6979
          %v7037 = vmul.f32 1.0, %v7036
          %v7038 = vrcp.pop %v6980
          %v7039 = vmul.f32 1.0, %v7038
          %v7040 = vrcp.pop %v6981
          %v7041 = vmul.f32 1.0, %v7040
          %v7042 = vrcp.pop %v6982
          %v7043 = vmul.f32 1.0, %v7042
          %v7044 = vrcp.pop %v6983
          %v7045 = vmul.f32 1.0, %v7044
          %v7046 = vrcp.pop %v6984
          %v7047 = vmul.f32 1.0, %v7046
          %v7048 = vrcp.pop %v6985
          %v7049 = vmul.f32 1.0, %v7048
          %v7050 = vmul.f32 %v6987, 30.0
          %v7051 = vmul.f32 %v6989, 30.0
          %v7052 = vmul.f32 %v6991, 30.0
          %v7053 = vmul.f32 %v6993, 30.0
          %v7054 = vmul.f32 %v6995, 30.0
          %v7055 = vmul.f32 %v6997, 30.0
          %v7056 = vmul.f32 %v6999, 30.0
          %v7057 = vmul.f32 %v7001, 30.0
          %v7058 = vmul.f32 %v7003, 30.0
          %v7059 = vmul.f32 %v7005, 30.0
          %v7060 = vmul.f32 %v7007, 30.0
          %v7061 = vmul.f32 %v7009, 30.0
          %v7062 = vmul.f32 %v7011, 30.0
          %v7063 = vmul.f32 %v7013, 30.0
          %v7064 = vmul.f32 %v7015, 30.0
          %v7065 = vmul.f32 %v7017, 30.0
          %v7066 = vmul.f32 %v7019, 30.0
          %v7067 = vmul.f32 %v7021, 30.0
          %v7068 = vmul.f32 %v7023, 30.0
          %v7069 = vmul.f32 %v7025, 30.0
          %v7070 = vmul.f32 %v7027, 30.0
          %v7071 = vmul.f32 %v7029, 30.0
          %v7072 = vmul.f32 %v7031, 30.0
          %v7073 = vmul.f32 %v7033, 30.0
          %v7074 = vmul.f32 %v7035, 30.0
          %v7075 = vmul.f32 %v7037, 30.0
          %v7076 = vmul.f32 %v7039, 30.0
          %v7077 = vmul.f32 %v7041, 30.0
          %v7078 = vmul.f32 %v7043, 30.0
          %v7079 = vmul.f32 %v7045, 30.0
          %v7080 = vmul.f32 %v7047, 30.0
          %v7081 = vmul.f32 %v7049, 30.0
          %7082 = vmax.xlane.f32.xlu0 %v7050
          %v7083 = vpop.xlane.xlu0 %7082
          %7084 = vmax.xlane.f32.xlu0 %v7051
          %v7085 = vpop.xlane.xlu0 %7084
          %7086 = vmax.xlane.f32.xlu0 %v7052
          %v7087 = vpop.xlane.xlu0 %7086
          %7088 = vmax.xlane.f32.xlu0 %v7053
          %v7089 = vpop.xlane.xlu0 %7088
          %7090 = vmax.xlane.f32.xlu0 %v7054
          %v7091 = vpop.xlane.xlu0 %7090
          %7092 = vmax.xlane.f32.xlu0 %v7055
          %v7093 = vpop.xlane.xlu0 %7092
          %7094 = vmax.xlane.f32.xlu0 %v7056
          %v7095 = vpop.xlane.xlu0 %7094
          %7096 = vmax.xlane.f32.xlu0 %v7057
          %v7097 = vpop.xlane.xlu0 %7096
          %7098 = vmax.xlane.f32.xlu0 %v7058
          %v7099 = vpop.xlane.xlu0 %7098
          %7100 = vmax.xlane.f32.xlu0 %v7059
          %v7101 = vpop.xlane.xlu0 %7100
          %7102 = vmax.xlane.f32.xlu0 %v7060
          %v7103 = vpop.xlane.xlu0 %7102
          %7104 = vmax.xlane.f32.xlu0 %v7061
          %v7105 = vpop.xlane.xlu0 %7104
          %7106 = vmax.xlane.f32.xlu0 %v7062
          %v7107 = vpop.xlane.xlu0 %7106
          %7108 = vmax.xlane.f32.xlu0 %v7063
          %v7109 = vpop.xlane.xlu0 %7108
          %7110 = vmax.xlane.f32.xlu0 %v7064
          %v7111 = vpop.xlane.xlu0 %7110
          %7112 = vmax.xlane.f32.xlu0 %v7065
          %v7113 = vpop.xlane.xlu0 %7112
          %7114 = vmax.xlane.f32.xlu0 %v7066
          %v7115 = vpop.xlane.xlu0 %7114
          %7116 = vmax.xlane.f32.xlu0 %v7067
          %v7117 = vpop.xlane.xlu0 %7116
          %7118 = vmax.xlane.f32.xlu0 %v7068
          %v7119 = vpop.xlane.xlu0 %7118
          %7120 = vmax.xlane.f32.xlu0 %v7069
          %v7121 = vpop.xlane.xlu0 %7120
          %7122 = vmax.xlane.f32.xlu0 %v7070
          %v7123 = vpop.xlane.xlu0 %7122
          %7124 = vmax.xlane.f32.xlu0 %v7071
          %v7125 = vpop.xlane.xlu0 %7124
          %7126 = vmax.xlane.f32.xlu0 %v7072
          %v7127 = vpop.xlane.xlu0 %7126
          %7128 = vmax.xlane.f32.xlu0 %v7073
          %v7129 = vpop.xlane.xlu0 %7128
          %7130 = vmax.xlane.f32.xlu0 %v7074
          %v7131 = vpop.xlane.xlu0 %7130
          %7132 = vmax.xlane.f32.xlu0 %v7075
          %v7133 = vpop.xlane.xlu0 %7132
          %7134 = vmax.xlane.f32.xlu0 %v7076
          %v7135 = vpop.xlane.xlu0 %7134
          %7136 = vmax.xlane.f32.xlu0 %v7077
          %v7137 = vpop.xlane.xlu0 %7136
          %7138 = vmax.xlane.f32.xlu0 %v7078
          %v7139 = vpop.xlane.xlu0 %7138
          %7140 = vmax.xlane.f32.xlu0 %v7079
          %v7141 = vpop.xlane.xlu0 %7140
          %7142 = vmax.xlane.f32.xlu0 %v7080
          %v7143 = vpop.xlane.xlu0 %7142
          %7144 = vmax.xlane.f32.xlu0 %v7081
          %v7145 = vpop.xlane.xlu0 %7144
          %v7146 = vsub.f32 %v7050, %v7083
          %v7147 = vsub.f32 %v7051, %v7085
          %v7148 = vsub.f32 %v7052, %v7087
          %v7149 = vsub.f32 %v7053, %v7089
          %v7150 = vsub.f32 %v7054, %v7091
          %v7151 = vsub.f32 %v7055, %v7093
          %v7152 = vsub.f32 %v7056, %v7095
          %v7153 = vsub.f32 %v7057, %v7097
          %v7154 = vsub.f32 %v7058, %v7099
          %v7155 = vsub.f32 %v7059, %v7101
          %v7156 = vsub.f32 %v7060, %v7103
          %v7157 = vsub.f32 %v7061, %v7105
          %v7158 = vsub.f32 %v7062, %v7107
          %v7159 = vsub.f32 %v7063, %v7109
          %v7160 = vsub.f32 %v7064, %v7111
          %v7161 = vsub.f32 %v7065, %v7113
          %v7162 = vsub.f32 %v7066, %v7115
          %v7163 = vsub.f32 %v7067, %v7117
          %v7164 = vsub.f32 %v7068, %v7119
          %v7165 = vsub.f32 %v7069, %v7121
          %v7166 = vsub.f32 %v7070, %v7123
          %v7167 = vsub.f32 %v7071, %v7125
          %v7168 = vsub.f32 %v7072, %v7127
          %v7169 = vsub.f32 %v7073, %v7129
          %v7170 = vsub.f32 %v7074, %v7131
          %v7171 = vsub.f32 %v7075, %v7133
          %v7172 = vsub.f32 %v7076, %v7135
          %v7173 = vsub.f32 %v7077, %v7137
          %v7174 = vsub.f32 %v7078, %v7139
          %v7175 = vsub.f32 %v7079, %v7141
          %v7176 = vsub.f32 %v7080, %v7143
          %v7177 = vsub.f32 %v7081, %v7145
          %v7178 = vmul.f32 %v7146, 1.442695
          %v7179 = vpow.pop %v7178
          %v7180 = vmul.f32 %v7147, 1.442695
          %v7181 = vpow.pop %v7180
          %v7182 = vmul.f32 %v7148, 1.442695
          %v7183 = vpow.pop %v7182
          %v7184 = vmul.f32 %v7149, 1.442695
          %v7185 = vpow.pop %v7184
          %v7186 = vmul.f32 %v7150, 1.442695
          %v7187 = vpow.pop %v7186
          %v7188 = vmul.f32 %v7151, 1.442695
          %v7189 = vpow.pop %v7188
          %v7190 = vmul.f32 %v7152, 1.442695
          %v7191 = vpow.pop %v7190
          %v7192 = vmul.f32 %v7153, 1.442695
          %v7193 = vpow.pop %v7192
          %v7194 = vmul.f32 %v7154, 1.442695
          %v7195 = vpow.pop %v7194
          %v7196 = vmul.f32 %v7155, 1.442695
          %v7197 = vpow.pop %v7196
          %v7198 = vmul.f32 %v7156, 1.442695
          %v7199 = vpow.pop %v7198
          %v7200 = vmul.f32 %v7157, 1.442695
          %v7201 = vpow.pop %v7200
          %v7202 = vmul.f32 %v7158, 1.442695
          %v7203 = vpow.pop %v7202
          %v7204 = vmul.f32 %v7159, 1.442695
          %v7205 = vpow.pop %v7204
          %v7206 = vmul.f32 %v7160, 1.442695
          %v7207 = vpow.pop %v7206
          %v7208 = vmul.f32 %v7161, 1.442695
          %v7209 = vpow.pop %v7208
          %v7210 = vmul.f32 %v7162, 1.442695
          %v7211 = vpow.pop %v7210
          %v7212 = vmul.f32 %v7163, 1.442695
          %v7213 = vpow.pop %v7212
          %v7214 = vmul.f32 %v7164, 1.442695
          %v7215 = vpow.pop %v7214
          %v7216 = vmul.f32 %v7165, 1.442695
          %v7217 = vpow.pop %v7216
          %v7218 = vmul.f32 %v7166, 1.442695
          %v7219 = vpow.pop %v7218
          %v7220 = vmul.f32 %v7167, 1.442695
          %v7221 = vpow.pop %v7220
          %v7222 = vmul.f32 %v7168, 1.442695
          %v7223 = vpow.pop %v7222
          %v7224 = vmul.f32 %v7169, 1.442695
          %v7225 = vpow.pop %v7224
          %v7226 = vmul.f32 %v7170, 1.442695
          %v7227 = vpow.pop %v7226
          %v7228 = vmul.f32 %v7171, 1.442695
          %v7229 = vpow.pop %v7228
          %v7230 = vmul.f32 %v7172, 1.442695
          %v7231 = vpow.pop %v7230
          %v7232 = vmul.f32 %v7173, 1.442695
          %v7233 = vpow.pop %v7232
          %v7234 = vmul.f32 %v7174, 1.442695
          %v7235 = vpow.pop %v7234
          %v7236 = vmul.f32 %v7175, 1.442695
          %v7237 = vpow.pop %v7236
          %v7238 = vmul.f32 %v7176, 1.442695
          %v7239 = vpow.pop %v7238
          %v7240 = vmul.f32 %v7177, 1.442695
          %v7241 = vpow.pop %v7240
          %7242 = vadd.xlane.f32.xlu0 %v7179
          %v7243 = vpop.xlane.xlu0 %7242
          %7244 = vadd.xlane.f32.xlu0 %v7181
          %v7245 = vpop.xlane.xlu0 %7244
          %7246 = vadd.xlane.f32.xlu0 %v7183
          %v7247 = vpop.xlane.xlu0 %7246
          %7248 = vadd.xlane.f32.xlu0 %v7185
          %v7249 = vpop.xlane.xlu0 %7248
          %7250 = vadd.xlane.f32.xlu0 %v7187
          %v7251 = vpop.xlane.xlu0 %7250
          %7252 = vadd.xlane.f32.xlu0 %v7189
          %v7253 = vpop.xlane.xlu0 %7252
          %7254 = vadd.xlane.f32.xlu0 %v7191
          %v7255 = vpop.xlane.xlu0 %7254
          %7256 = vadd.xlane.f32.xlu0 %v7193
          %v7257 = vpop.xlane.xlu0 %7256
          %7258 = vadd.xlane.f32.xlu0 %v7195
          %v7259 = vpop.xlane.xlu0 %7258
          %7260 = vadd.xlane.f32.xlu0 %v7197
          %v7261 = vpop.xlane.xlu0 %7260
          %7262 = vadd.xlane.f32.xlu0 %v7199
          %v7263 = vpop.xlane.xlu0 %7262
          %7264 = vadd.xlane.f32.xlu0 %v7201
          %v7265 = vpop.xlane.xlu0 %7264
          %7266 = vadd.xlane.f32.xlu0 %v7203
          %v7267 = vpop.xlane.xlu0 %7266
          %7268 = vadd.xlane.f32.xlu0 %v7205
          %v7269 = vpop.xlane.xlu0 %7268
          %7270 = vadd.xlane.f32.xlu0 %v7207
          %v7271 = vpop.xlane.xlu0 %7270
          %7272 = vadd.xlane.f32.xlu0 %v7209
          %v7273 = vpop.xlane.xlu0 %7272
          %7274 = vadd.xlane.f32.xlu0 %v7211
          %v7275 = vpop.xlane.xlu0 %7274
          %7276 = vadd.xlane.f32.xlu0 %v7213
          %v7277 = vpop.xlane.xlu0 %7276
          %7278 = vadd.xlane.f32.xlu0 %v7215
          %v7279 = vpop.xlane.xlu0 %7278
          %7280 = vadd.xlane.f32.xlu0 %v7217
          %v7281 = vpop.xlane.xlu0 %7280
          %7282 = vadd.xlane.f32.xlu0 %v7219
          %v7283 = vpop.xlane.xlu0 %7282
          %7284 = vadd.xlane.f32.xlu0 %v7221
          %v7285 = vpop.xlane.xlu0 %7284
          %7286 = vadd.xlane.f32.xlu0 %v7223
          %v7287 = vpop.xlane.xlu0 %7286
          %7288 = vadd.xlane.f32.xlu0 %v7225
          %v7289 = vpop.xlane.xlu0 %7288
          %7290 = vadd.xlane.f32.xlu0 %v7227
          %v7291 = vpop.xlane.xlu0 %7290
          %7292 = vadd.xlane.f32.xlu0 %v7229
          %v7293 = vpop.xlane.xlu0 %7292
          %7294 = vadd.xlane.f32.xlu0 %v7231
          %v7295 = vpop.xlane.xlu0 %7294
          %7296 = vadd.xlane.f32.xlu0 %v7233
          %v7297 = vpop.xlane.xlu0 %7296
          %7298 = vadd.xlane.f32.xlu0 %v7235
          %v7299 = vpop.xlane.xlu0 %7298
          %7300 = vadd.xlane.f32.xlu0 %v7237
          %v7301 = vpop.xlane.xlu0 %7300
          %7302 = vadd.xlane.f32.xlu0 %v7239
          %v7303 = vpop.xlane.xlu0 %7302
          %7304 = vadd.xlane.f32.xlu0 %v7241
          %v7305 = vpop.xlane.xlu0 %7304
          %v7306 = vlog2.pop %v7243
          %v7307 = vmul.f32 %v7306, 0.6931472
          %v7308 = vlog2.pop %v7245
          %v7309 = vmul.f32 %v7308, 0.6931472
          %v7310 = vlog2.pop %v7247
          %v7311 = vmul.f32 %v7310, 0.6931472
          %v7312 = vlog2.pop %v7249
          %v7313 = vmul.f32 %v7312, 0.6931472
          %v7314 = vlog2.pop %v7251
          %v7315 = vmul.f32 %v7314, 0.6931472
          %v7316 = vlog2.pop %v7253
          %v7317 = vmul.f32 %v7316, 0.6931472
          %v7318 = vlog2.pop %v7255
          %v7319 = vmul.f32 %v7318, 0.6931472
          %v7320 = vlog2.pop %v7257
          %v7321 = vmul.f32 %v7320, 0.6931472
          %v7322 = vlog2.pop %v7259
          %v7323 = vmul.f32 %v7322, 0.6931472
          %v7324 = vlog2.pop %v7261
          %v7325 = vmul.f32 %v7324, 0.6931472
          %v7326 = vlog2.pop %v7263
          %v7327 = vmul.f32 %v7326, 0.6931472
          %v7328 = vlog2.pop %v7265
          %v7329 = vmul.f32 %v7328, 0.6931472
          %v7330 = vlog2.pop %v7267
          %v7331 = vmul.f32 %v7330, 0.6931472
          %v7332 = vlog2.pop %v7269
          %v7333 = vmul.f32 %v7332, 0.6931472
          %v7334 = vlog2.pop %v7271
          %v7335 = vmul.f32 %v7334, 0.6931472
          %v7336 = vlog2.pop %v7273
          %v7337 = vmul.f32 %v7336, 0.6931472
          %v7338 = vlog2.pop %v7275
          %v7339 = vmul.f32 %v7338, 0.6931472
          %v7340 = vlog2.pop %v7277
          %v7341 = vmul.f32 %v7340, 0.6931472
          %v7342 = vlog2.pop %v7279
          %v7343 = vmul.f32 %v7342, 0.6931472
          %v7344 = vlog2.pop %v7281
          %v7345 = vmul.f32 %v7344, 0.6931472
          %v7346 = vlog2.pop %v7283
          %v7347 = vmul.f32 %v7346, 0.6931472
          %v7348 = vlog2.pop %v7285
          %v7349 = vmul.f32 %v7348, 0.6931472
          %v7350 = vlog2.pop %v7287
          %v7351 = vmul.f32 %v7350, 0.6931472
          %v7352 = vlog2.pop %v7289
          %v7353 = vmul.f32 %v7352, 0.6931472
          %v7354 = vlog2.pop %v7291
          %v7355 = vmul.f32 %v7354, 0.6931472
          %v7356 = vlog2.pop %v7293
          %v7357 = vmul.f32 %v7356, 0.6931472
          %v7358 = vlog2.pop %v7295
          %v7359 = vmul.f32 %v7358, 0.6931472
          %v7360 = vlog2.pop %v7297
          %v7361 = vmul.f32 %v7360, 0.6931472
          %v7362 = vlog2.pop %v7299
          %v7363 = vmul.f32 %v7362, 0.6931472
          %v7364 = vlog2.pop %v7301
          %v7365 = vmul.f32 %v7364, 0.6931472
          %v7366 = vlog2.pop %v7303
          %v7367 = vmul.f32 %v7366, 0.6931472
          %v7368 = vlog2.pop %v7305
          %v7369 = vmul.f32 %v7368, 0.6931472
          %v7370 = vadd.f32 %v7083, %v7307
          %v7371 = vadd.f32 %v7085, %v7309
          %v7372 = vadd.f32 %v7087, %v7311
          %v7373 = vadd.f32 %v7089, %v7313
          %v7374 = vadd.f32 %v7091, %v7315
          %v7375 = vadd.f32 %v7093, %v7317
          %v7376 = vadd.f32 %v7095, %v7319
          %v7377 = vadd.f32 %v7097, %v7321
          %v7378 = vadd.f32 %v7099, %v7323
          %v7379 = vadd.f32 %v7101, %v7325
          %v7380 = vadd.f32 %v7103, %v7327
          %v7381 = vadd.f32 %v7105, %v7329
          %v7382 = vadd.f32 %v7107, %v7331
          %v7383 = vadd.f32 %v7109, %v7333
          %v7384 = vadd.f32 %v7111, %v7335
          %v7385 = vadd.f32 %v7113, %v7337
          %v7386 = vadd.f32 %v7115, %v7339
          %v7387 = vadd.f32 %v7117, %v7341
          %v7388 = vadd.f32 %v7119, %v7343
          %v7389 = vadd.f32 %v7121, %v7345
          %v7390 = vadd.f32 %v7123, %v7347
          %v7391 = vadd.f32 %v7125, %v7349
          %v7392 = vadd.f32 %v7127, %v7351
          %v7393 = vadd.f32 %v7129, %v7353
          %v7394 = vadd.f32 %v7131, %v7355
          %v7395 = vadd.f32 %v7133, %v7357
          %v7396 = vadd.f32 %v7135, %v7359
          %v7397 = vadd.f32 %v7137, %v7361
          %v7398 = vadd.f32 %v7139, %v7363
          %v7399 = vadd.f32 %v7141, %v7365
          %v7400 = vadd.f32 %v7143, %v7367
          %v7401 = vadd.f32 %v7145, %v7369
          %v7402 = vlaneseq
          %v7403 = vand.u32 %v7402, 127
          %v7404 = vld [vmem:[%s12] sm:$0xff]
          %v7405 = vld [vmem:[%s12 + $0x8] sm:$0xff]
          %v7406 = vld [vmem:[%s12 + $0x10] sm:$0xff]
          %v7407 = vld [vmem:[%s12 + $0x18] sm:$0xff]
          %v7408 = vld [vmem:[%s12 + $0x20] sm:$0xff]
          %v7409 = vld [vmem:[%s12 + $0x28] sm:$0xff]
          %v7410 = vld [vmem:[%s12 + $0x30] sm:$0xff]
          %v7411 = vld [vmem:[%s12 + $0x38] sm:$0xff]
          %v7412 = vld [vmem:[%s12 + $0x40] sm:$0xff]
          %v7413 = vld [vmem:[%s12 + $0x48] sm:$0xff]
          %v7414 = vld [vmem:[%s12 + $0x50] sm:$0xff]
          %v7415 = vld [vmem:[%s12 + $0x58] sm:$0xff]
          %v7416 = vld [vmem:[%s12 + $0x60] sm:$0xff]
          %v7417 = vld [vmem:[%s12 + $0x68] sm:$0xff]
          %v7418 = vld [vmem:[%s12 + $0x70] sm:$0xff]
          %v7419 = vld [vmem:[%s12 + $0x78] sm:$0xff]
          %v7420 = vld [vmem:[%s12 + $0x80] sm:$0xff]
          %v7421 = vld [vmem:[%s12 + $0x88] sm:$0xff]
          %v7422 = vld [vmem:[%s12 + $0x90] sm:$0xff]
          %v7423 = vld [vmem:[%s12 + $0x98] sm:$0xff]
          %v7424 = vld [vmem:[%s12 + $0xa0] sm:$0xff]
          %v7425 = vld [vmem:[%s12 + $0xa8] sm:$0xff]
          %v7426 = vld [vmem:[%s12 + $0xb0] sm:$0xff]
          %v7427 = vld [vmem:[%s12 + $0xb8] sm:$0xff]
          %v7428 = vld [vmem:[%s12 + $0xc0] sm:$0xff]
          %v7429 = vld [vmem:[%s12 + $0xc8] sm:$0xff]
          %v7430 = vld [vmem:[%s12 + $0xd0] sm:$0xff]
          %v7431 = vld [vmem:[%s12 + $0xd8] sm:$0xff]
          %v7432 = vld [vmem:[%s12 + $0xe0] sm:$0xff]
          %v7433 = vld [vmem:[%s12 + $0xe8] sm:$0xff]
          %v7434 = vld [vmem:[%s12 + $0xf0] sm:$0xff]
          %v7435 = vld [vmem:[%s12 + $0xf8] sm:$0xff]
          %7436 = vset.pattern.permute.xlu0 0
          %7437 = vperm.xlu0 %7436, %v7404
          %v7438 = vpop.permute.xlu0 %7437
          %7439 = vset.pattern.permute.xlu0 0
          %7440 = vperm.xlu0 %7439, %v7405
          %v7441 = vpop.permute.xlu0 %7440
          %7442 = vset.pattern.permute.xlu0 0
          %7443 = vperm.xlu0 %7442, %v7406
          %v7444 = vpop.permute.xlu0 %7443
          %7445 = vset.pattern.permute.xlu0 0
          %7446 = vperm.xlu0 %7445, %v7407
          %v7447 = vpop.permute.xlu0 %7446
          %7448 = vset.pattern.permute.xlu0 0
          %7449 = vperm.xlu0 %7448, %v7408
          %v7450 = vpop.permute.xlu0 %7449
          %7451 = vset.pattern.permute.xlu0 0
          %7452 = vperm.xlu0 %7451, %v7409
          %v7453 = vpop.permute.xlu0 %7452
          %7454 = vset.pattern.permute.xlu0 0
          %7455 = vperm.xlu0 %7454, %v7410
          %v7456 = vpop.permute.xlu0 %7455
          %7457 = vset.pattern.permute.xlu0 0
          %7458 = vperm.xlu0 %7457, %v7411
          %v7459 = vpop.permute.xlu0 %7458
          %7460 = vset.pattern.permute.xlu0 0
          %7461 = vperm.xlu0 %7460, %v7412
          %v7462 = vpop.permute.xlu0 %7461
          %7463 = vset.pattern.permute.xlu0 0
          %7464 = vperm.xlu0 %7463, %v7413
          %v7465 = vpop.permute.xlu0 %7464
          %7466 = vset.pattern.permute.xlu0 0
          %7467 = vperm.xlu0 %7466, %v7414
          %v7468 = vpop.permute.xlu0 %7467
          %7469 = vset.pattern.permute.xlu0 0
          %7470 = vperm.xlu0 %7469, %v7415
          %v7471 = vpop.permute.xlu0 %7470
          %7472 = vset.pattern.permute.xlu0 0
          %7473 = vperm.xlu0 %7472, %v7416
          %v7474 = vpop.permute.xlu0 %7473
          %7475 = vset.pattern.permute.xlu0 0
          %7476 = vperm.xlu0 %7475, %v7417
          %v7477 = vpop.permute.xlu0 %7476
          %7478 = vset.pattern.permute.xlu0 0
          %7479 = vperm.xlu0 %7478, %v7418
          %v7480 = vpop.permute.xlu0 %7479
          %7481 = vset.pattern.permute.xlu0 0
          %7482 = vperm.xlu0 %7481, %v7419
          %v7483 = vpop.permute.xlu0 %7482
          %7484 = vset.pattern.permute.xlu0 0
          %7485 = vperm.xlu0 %7484, %v7420
          %v7486 = vpop.permute.xlu0 %7485
          %7487 = vset.pattern.permute.xlu0 0
          %7488 = vperm.xlu0 %7487, %v7421
          %v7489 = vpop.permute.xlu0 %7488
          %7490 = vset.pattern.permute.xlu0 0
          %7491 = vperm.xlu0 %7490, %v7422
          %v7492 = vpop.permute.xlu0 %7491
          %7493 = vset.pattern.permute.xlu0 0
          %7494 = vperm.xlu0 %7493, %v7423
          %v7495 = vpop.permute.xlu0 %7494
          %7496 = vset.pattern.permute.xlu0 0
          %7497 = vperm.xlu0 %7496, %v7424
          %v7498 = vpop.permute.xlu0 %7497
          %7499 = vset.pattern.permute.xlu0 0
          %7500 = vperm.xlu0 %7499, %v7425
          %v7501 = vpop.permute.xlu0 %7500
          %7502 = vset.pattern.permute.xlu0 0
          %7503 = vperm.xlu0 %7502, %v7426
          %v7504 = vpop.permute.xlu0 %7503
          %7505 = vset.pattern.permute.xlu0 0
          %7506 = vperm.xlu0 %7505, %v7427
          %v7507 = vpop.permute.xlu0 %7506
          %7508 = vset.pattern.permute.xlu0 0
          %7509 = vperm.xlu0 %7508, %v7428
          %v7510 = vpop.permute.xlu0 %7509
          %7511 = vset.pattern.permute.xlu0 0
          %7512 = vperm.xlu0 %7511, %v7429
          %v7513 = vpop.permute.xlu0 %7512
          %7514 = vset.pattern.permute.xlu0 0
          %7515 = vperm.xlu0 %7514, %v7430
          %v7516 = vpop.permute.xlu0 %7515
          %7517 = vset.pattern.permute.xlu0 0
          %7518 = vperm.xlu0 %7517, %v7431
          %v7519 = vpop.permute.xlu0 %7518
          %7520 = vset.pattern.permute.xlu0 0
          %7521 = vperm.xlu0 %7520, %v7432
          %v7522 = vpop.permute.xlu0 %7521
          %7523 = vset.pattern.permute.xlu0 0
          %7524 = vperm.xlu0 %7523, %v7433
          %v7525 = vpop.permute.xlu0 %7524
          %7526 = vset.pattern.permute.xlu0 0
          %7527 = vperm.xlu0 %7526, %v7434
          %v7528 = vpop.permute.xlu0 %7527
          %7529 = vset.pattern.permute.xlu0 0
          %7530 = vperm.xlu0 %7529, %v7435
          %v7531 = vpop.permute.xlu0 %7530
          %vm7532 = vcmp.eq.s32.totalorder %v7403, %v7438
          %vm7533 = vcmp.eq.s32.totalorder %v7403, %v7441
          %vm7534 = vcmp.eq.s32.totalorder %v7403, %v7444
          %vm7535 = vcmp.eq.s32.totalorder %v7403, %v7447
          %vm7536 = vcmp.eq.s32.totalorder %v7403, %v7450
          %vm7537 = vcmp.eq.s32.totalorder %v7403, %v7453
          %vm7538 = vcmp.eq.s32.totalorder %v7403, %v7456
          %vm7539 = vcmp.eq.s32.totalorder %v7403, %v7459
          %vm7540 = vcmp.eq.s32.totalorder %v7403, %v7462
          %vm7541 = vcmp.eq.s32.totalorder %v7403, %v7465
          %vm7542 = vcmp.eq.s32.totalorder %v7403, %v7468
          %vm7543 = vcmp.eq.s32.totalorder %v7403, %v7471
          %vm7544 = vcmp.eq.s32.totalorder %v7403, %v7474
          %vm7545 = vcmp.eq.s32.totalorder %v7403, %v7477
          %vm7546 = vcmp.eq.s32.totalorder %v7403, %v7480
          %vm7547 = vcmp.eq.s32.totalorder %v7403, %v7483
          %vm7548 = vcmp.eq.s32.totalorder %v7403, %v7486
          %vm7549 = vcmp.eq.s32.totalorder %v7403, %v7489
          %vm7550 = vcmp.eq.s32.totalorder %v7403, %v7492
          %vm7551 = vcmp.eq.s32.totalorder %v7403, %v7495
          %vm7552 = vcmp.eq.s32.totalorder %v7403, %v7498
          %vm7553 = vcmp.eq.s32.totalorder %v7403, %v7501
          %vm7554 = vcmp.eq.s32.totalorder %v7403, %v7504
          %vm7555 = vcmp.eq.s32.totalorder %v7403, %v7507
          %vm7556 = vcmp.eq.s32.totalorder %v7403, %v7510
          %vm7557 = vcmp.eq.s32.totalorder %v7403, %v7513
          %vm7558 = vcmp.eq.s32.totalorder %v7403, %v7516
          %vm7559 = vcmp.eq.s32.totalorder %v7403, %v7519
          %vm7560 = vcmp.eq.s32.totalorder %v7403, %v7522
          %vm7561 = vcmp.eq.s32.totalorder %v7403, %v7525
          %vm7562 = vcmp.eq.s32.totalorder %v7403, %v7528
          %vm7563 = vcmp.eq.s32.totalorder %v7403, %v7531
          %v7564 = vsel %vm7532, %v7050, 0.0
          %v7565 = vsel %vm7533, %v7051, 0.0
          %v7566 = vsel %vm7534, %v7052, 0.0
          %v7567 = vsel %vm7535, %v7053, 0.0
          %v7568 = vsel %vm7536, %v7054, 0.0
          %v7569 = vsel %vm7537, %v7055, 0.0
          %v7570 = vsel %vm7538, %v7056, 0.0
          %v7571 = vsel %vm7539, %v7057, 0.0
          %v7572 = vsel %vm7540, %v7058, 0.0
          %v7573 = vsel %vm7541, %v7059, 0.0
          %v7574 = vsel %vm7542, %v7060, 0.0
          %v7575 = vsel %vm7543, %v7061, 0.0
          %v7576 = vsel %vm7544, %v7062, 0.0
          %v7577 = vsel %vm7545, %v7063, 0.0
          %v7578 = vsel %vm7546, %v7064, 0.0
          %v7579 = vsel %vm7547, %v7065, 0.0
          %v7580 = vsel %vm7548, %v7066, 0.0
          %v7581 = vsel %vm7549, %v7067, 0.0
          %v7582 = vsel %vm7550, %v7068, 0.0
          %v7583 = vsel %vm7551, %v7069, 0.0
          %v7584 = vsel %vm7552, %v7070, 0.0
          %v7585 = vsel %vm7553, %v7071, 0.0
          %v7586 = vsel %vm7554, %v7072, 0.0
          %v7587 = vsel %vm7555, %v7073, 0.0
          %v7588 = vsel %vm7556, %v7074, 0.0
          %v7589 = vsel %vm7557, %v7075, 0.0
          %v7590 = vsel %vm7558, %v7076, 0.0
          %v7591 = vsel %vm7559, %v7077, 0.0
          %v7592 = vsel %vm7560, %v7078, 0.0
          %v7593 = vsel %vm7561, %v7079, 0.0
          %v7594 = vsel %vm7562, %v7080, 0.0
          %v7595 = vsel %vm7563, %v7081, 0.0
          %7596 = vadd.xlane.f32.xlu0 %v7564
          %v7597 = vpop.xlane.xlu0 %7596
          %7598 = vadd.xlane.f32.xlu0 %v7565
          %v7599 = vpop.xlane.xlu0 %7598
          %7600 = vadd.xlane.f32.xlu0 %v7566
          %v7601 = vpop.xlane.xlu0 %7600
          %7602 = vadd.xlane.f32.xlu0 %v7567
          %v7603 = vpop.xlane.xlu0 %7602
          %7604 = vadd.xlane.f32.xlu0 %v7568
          %v7605 = vpop.xlane.xlu0 %7604
          %7606 = vadd.xlane.f32.xlu0 %v7569
          %v7607 = vpop.xlane.xlu0 %7606
          %7608 = vadd.xlane.f32.xlu0 %v7570
          %v7609 = vpop.xlane.xlu0 %7608
          %7610 = vadd.xlane.f32.xlu0 %v7571
          %v7611 = vpop.xlane.xlu0 %7610
          %7612 = vadd.xlane.f32.xlu0 %v7572
          %v7613 = vpop.xlane.xlu0 %7612
          %7614 = vadd.xlane.f32.xlu0 %v7573
          %v7615 = vpop.xlane.xlu0 %7614
          %7616 = vadd.xlane.f32.xlu0 %v7574
          %v7617 = vpop.xlane.xlu0 %7616
          %7618 = vadd.xlane.f32.xlu0 %v7575
          %v7619 = vpop.xlane.xlu0 %7618
          %7620 = vadd.xlane.f32.xlu0 %v7576
          %v7621 = vpop.xlane.xlu0 %7620
          %7622 = vadd.xlane.f32.xlu0 %v7577
          %v7623 = vpop.xlane.xlu0 %7622
          %7624 = vadd.xlane.f32.xlu0 %v7578
          %v7625 = vpop.xlane.xlu0 %7624
          %7626 = vadd.xlane.f32.xlu0 %v7579
          %v7627 = vpop.xlane.xlu0 %7626
          %7628 = vadd.xlane.f32.xlu0 %v7580
          %v7629 = vpop.xlane.xlu0 %7628
          %7630 = vadd.xlane.f32.xlu0 %v7581
          %v7631 = vpop.xlane.xlu0 %7630
          %7632 = vadd.xlane.f32.xlu0 %v7582
          %v7633 = vpop.xlane.xlu0 %7632
          %7634 = vadd.xlane.f32.xlu0 %v7583
          %v7635 = vpop.xlane.xlu0 %7634
          %7636 = vadd.xlane.f32.xlu0 %v7584
          %v7637 = vpop.xlane.xlu0 %7636
          %7638 = vadd.xlane.f32.xlu0 %v7585
          %v7639 = vpop.xlane.xlu0 %7638
          %7640 = vadd.xlane.f32.xlu0 %v7586
          %v7641 = vpop.xlane.xlu0 %7640
          %7642 = vadd.xlane.f32.xlu0 %v7587
          %v7643 = vpop.xlane.xlu0 %7642
          %7644 = vadd.xlane.f32.xlu0 %v7588
          %v7645 = vpop.xlane.xlu0 %7644
          %7646 = vadd.xlane.f32.xlu0 %v7589
          %v7647 = vpop.xlane.xlu0 %7646
          %7648 = vadd.xlane.f32.xlu0 %v7590
          %v7649 = vpop.xlane.xlu0 %7648
          %7650 = vadd.xlane.f32.xlu0 %v7591
          %v7651 = vpop.xlane.xlu0 %7650
          %7652 = vadd.xlane.f32.xlu0 %v7592
          %v7653 = vpop.xlane.xlu0 %7652
          %7654 = vadd.xlane.f32.xlu0 %v7593
          %v7655 = vpop.xlane.xlu0 %7654
          %7656 = vadd.xlane.f32.xlu0 %v7594
          %v7657 = vpop.xlane.xlu0 %7656
          %7658 = vadd.xlane.f32.xlu0 %v7595
          %v7659 = vpop.xlane.xlu0 %7658
          %v7660 = vsub.f32 %v7370, %v7597
          %v7661 = vsub.f32 %v7371, %v7599
          %v7662 = vsub.f32 %v7372, %v7601
          %v7663 = vsub.f32 %v7373, %v7603
          %v7664 = vsub.f32 %v7374, %v7605
          %v7665 = vsub.f32 %v7375, %v7607
          %v7666 = vsub.f32 %v7376, %v7609
          %v7667 = vsub.f32 %v7377, %v7611
          %v7668 = vsub.f32 %v7378, %v7613
          %v7669 = vsub.f32 %v7379, %v7615
          %v7670 = vsub.f32 %v7380, %v7617
          %v7671 = vsub.f32 %v7381, %v7619
          %v7672 = vsub.f32 %v7382, %v7621
          %v7673 = vsub.f32 %v7383, %v7623
          %v7674 = vsub.f32 %v7384, %v7625
          %v7675 = vsub.f32 %v7385, %v7627
          %v7676 = vsub.f32 %v7386, %v7629
          %v7677 = vsub.f32 %v7387, %v7631
          %v7678 = vsub.f32 %v7388, %v7633
          %v7679 = vsub.f32 %v7389, %v7635
          %v7680 = vsub.f32 %v7390, %v7637
          %v7681 = vsub.f32 %v7391, %v7639
          %v7682 = vsub.f32 %v7392, %v7641
          %v7683 = vsub.f32 %v7393, %v7643
          %v7684 = vsub.f32 %v7394, %v7645
          %v7685 = vsub.f32 %v7395, %v7647
          %v7686 = vsub.f32 %v7396, %v7649
          %v7687 = vsub.f32 %v7397, %v7651
          %v7688 = vsub.f32 %v7398, %v7653
          %v7689 = vsub.f32 %v7399, %v7655
          %v7690 = vsub.f32 %v7400, %v7657
          %v7691 = vsub.f32 %v7401, %v7659
          %vm7692 = vcmask 7168
          %7693 = vst.msk [vmem:[%s15] sm:$0xff] %vm7692, %v7660
          %7694 = vst.msk [vmem:[%s15 + $0x8] sm:$0xff] %vm7692, %v7661
          %7695 = vst.msk [vmem:[%s15 + $0x10] sm:$0xff] %vm7692, %v7662
          %7696 = vst.msk [vmem:[%s15 + $0x18] sm:$0xff] %vm7692, %v7663
          %7697 = vst.msk [vmem:[%s15 + $0x20] sm:$0xff] %vm7692, %v7664
          %7698 = vst.msk [vmem:[%s15 + $0x28] sm:$0xff] %vm7692, %v7665
          %7699 = vst.msk [vmem:[%s15 + $0x30] sm:$0xff] %vm7692, %v7666
          %7700 = vst.msk [vmem:[%s15 + $0x38] sm:$0xff] %vm7692, %v7667
          %7701 = vst.msk [vmem:[%s15 + $0x40] sm:$0xff] %vm7692, %v7668
          %7702 = vst.msk [vmem:[%s15 + $0x48] sm:$0xff] %vm7692, %v7669
          %7703 = vst.msk [vmem:[%s15 + $0x50] sm:$0xff] %vm7692, %v7670
          %7704 = vst.msk [vmem:[%s15 + $0x58] sm:$0xff] %vm7692, %v7671
          %7705 = vst.msk [vmem:[%s15 + $0x60] sm:$0xff] %vm7692, %v7672
          %7706 = vst.msk [vmem:[%s15 + $0x68] sm:$0xff] %vm7692, %v7673
          %7707 = vst.msk [vmem:[%s15 + $0x70] sm:$0xff] %vm7692, %v7674
          %7708 = vst.msk [vmem:[%s15 + $0x78] sm:$0xff] %vm7692, %v7675
          %7709 = vst.msk [vmem:[%s15 + $0x80] sm:$0xff] %vm7692, %v7676
          %7710 = vst.msk [vmem:[%s15 + $0x88] sm:$0xff] %vm7692, %v7677
          %7711 = vst.msk [vmem:[%s15 + $0x90] sm:$0xff] %vm7692, %v7678
          %7712 = vst.msk [vmem:[%s15 + $0x98] sm:$0xff] %vm7692, %v7679
          %7713 = vst.msk [vmem:[%s15 + $0xa0] sm:$0xff] %vm7692, %v7680
          %7714 = vst.msk [vmem:[%s15 + $0xa8] sm:$0xff] %vm7692, %v7681
          %7715 = vst.msk [vmem:[%s15 + $0xb0] sm:$0xff] %vm7692, %v7682
          %7716 = vst.msk [vmem:[%s15 + $0xb8] sm:$0xff] %vm7692, %v7683
          %7717 = vst.msk [vmem:[%s15 + $0xc0] sm:$0xff] %vm7692, %v7684
          %7718 = vst.msk [vmem:[%s15 + $0xc8] sm:$0xff] %vm7692, %v7685
          %7719 = vst.msk [vmem:[%s15 + $0xd0] sm:$0xff] %vm7692, %v7686
          %7720 = vst.msk [vmem:[%s15 + $0xd8] sm:$0xff] %vm7692, %v7687
          %7721 = vst.msk [vmem:[%s15 + $0xe0] sm:$0xff] %vm7692, %v7688
          %7722 = vst.msk [vmem:[%s15 + $0xe8] sm:$0xff] %vm7692, %v7689
          %7723 = vst.msk [vmem:[%s15 + $0xf0] sm:$0xff] %vm7692, %v7690
          %7724 = vst.msk [vmem:[%s15 + $0xf8] sm:$0xff] %vm7692, %v7691
        $region96: #{gpt_forward.1} parent=71 // pred_fallthru
          _
        // Predicated region
        $region97: #{gpt_forward.1} parent=71 // pred_check
          %p7725 = pneg %p358
        $region98: #{gpt_forward.1} parent=71 // pred_check_branch
          %7727 = sbr.rel (%p7725) target = $region100
        $region99: #{gpt_forward.1} parent=71 // pred_region
          _
        $region100: #{gpt_forward.1} parent=71 // pred_fallthru
          _
        // Predicated region
        $region101: #{gpt_forward.1} parent=71 // pred_check
          %p7728 = pneg %p358
        $region102: #{gpt_forward.1} parent=71 // pred_check_branch
          %7730 = sbr.rel (%p7728) target = $region104
        $region103: #{gpt_forward.1} parent=71 // pred_region
          _
        $region104: #{gpt_forward.1} parent=71 // pred_fallthru
          _
      $region72: #{gpt_forward.1} parent=5 // pred_fallthru
        _
      %p7731 = scmp.le.s32.totalorder 2, %s33
      // Predicated region
      $region105: #{gpt_forward.1} parent=5 // pred_check
        %p7732 = pneg %p7731
      $region106: #{gpt_forward.1} parent=5 // pred_check_branch
        %7734 = sbr.rel (%p7732) target = $region108
      $region107: #{gpt_forward.1} parent=5 // pred_region
        %s7735 = ssub.s32 %s33, 2
      $region108: #{gpt_forward.1} parent=5 // pred_fallthru
        _
    $region6: #{gpt_forward.1} parent=1 // loop_footer
      %s37 = sadd.s32 1, %s33
    $region7: #{gpt_forward.1} parent=1 // loop_footer_branch
      %32 = sbr.rel target = $region3
    $region8: #{gpt_forward.1} parent=1 // loop_exit
      _
    %7736 = vsyncpa [#allocation9], 1
    %s7737 = scalar_lea.sflag [#allocation9], 1
    %7738 = vsyncpa %s7737, 1
    %7739 = vsyncpa [#allocation11], 1

</llo_original>
